<compile_context>
chip_gen: v6e
topology: v6e:2x2x1
jax: 0.10.0
libtpu: 0.0.40
codegen_flags: <defaults>
</compile_context>

<pallas_src>
import functools

import numpy as np
import jax
import jax.numpy as jnp
from jax.experimental import pallas as pl
from jax.experimental.pallas import tpu as pltpu


_SMEM = pl.BlockSpec(memory_space=pltpu.MemorySpace.SMEM)


# ----------------------------------------------------------------------------
# In-kernel helpers (single channel: the reference model requires C == 1)
# ----------------------------------------------------------------------------
def _reflect_pad_hw(x, p, H, W):
    """PyTorch-style 'reflect' padding of the last two dims of a (bb, H, W) value.

    Built on-chip from mirrored edge rows/cols; no padded HBM copy exists.
    """
    if p == 0:
        return x
    top = [x[:, k:k + 1, :] for k in range(p, 0, -1)]            # rows p .. 1
    bot = [x[:, H - 2 - k:H - 1 - k, :] for k in range(p)]       # rows H-2 .. H-1-p
    xv = jnp.concatenate(top + [x] + bot, axis=1)                # (bb, H+2p, W)
    left = [xv[:, :, k:k + 1] for k in range(p, 0, -1)]
    right = [xv[:, :, W - 2 - k:W - 1 - k] for k in range(p)]
    return jnp.concatenate(left + [xv] + right, axis=2)          # (bb, H+2p, W+2p)


def _conv_reflect(x, w_ref, bias, *, H, W, K, pad):
    """K x K reflect-padded conv (cross-correlation, as nn.Conv2d) on (bb, H, W).

    Weights are scalars in SMEM; each tap is a scalar-broadcast FMA on the VPU.
    TODO(synk): for C > 1 this should become an im2col matmul on the MXU.
    """
    xp = _reflect_pad_hw(x, pad, H, W)
    acc = jnp.zeros((x.shape[0], H, W), jnp.float32) + bias
    for dy in range(K):
        for dx in range(K):
            acc = acc + w_ref[dy * K + dx] * xp[:, dy:dy + H, dx:dx + W]
    return acc


# ----------------------------------------------------------------------------
# Fused per-layer kernels (2 pallas_calls per ADMM layer instead of 7)
# ----------------------------------------------------------------------------
def _stage1_kernel(scal_ref, w1_ref, w2_ref, w3_ref, w4_ref,
                   d_ref, y_ref, l_ref, s_ref,
                   sout_ref, g2_ref, *, H, W, K, pad):
    # scal = [1/mu1, lambda1, b1, b2, 1/mu2, b3, b4]
    inv_mu1 = scal_ref[0]
    lam1 = scal_ref[1]
    b1 = scal_ref[2]
    b2 = scal_ref[3]
    inv_mu2 = scal_ref[4]
    b3 = scal_ref[5]
    b4 = scal_ref[6]

    d = d_ref[...]
    y = y_ref[...]

    # S branch: G1 = p2(D + Y/mu1 - p1(L)); S_out = Threshold(0,0)(G1 - lambda1)
    p1l = _conv_reflect(l_ref[...], w1_ref, b1, H=H, W=W, K=K, pad=pad)
    g1 = _conv_reflect(d + y * inv_mu1 - p1l, w2_ref, b2, H=H, W=W, K=K, pad=pad)
    sout_ref[...] = jnp.maximum(g1 - lam1, 0.0).astype(sout_ref.dtype)

    # L branch: G2 = p4(D + Y/mu2 - p3(S))
    p3s = _conv_reflect(s_ref[...], w3_ref, b3, H=H, W=W, K=K, pad=pad)
    g2 = _conv_reflect(d + y * inv_mu2 - p3s, w4_ref, b4, H=H, W=W, K=K, pad=pad)
    g2_ref[...] = g2.astype(g2_ref.dtype)


def _stage2_kernel(scal_ref, w1_ref, w3_ref,
                   y_ref, d_ref, lo_ref, so_ref,
                   yout_ref, *, H, W, K, pad):
    # scal = [mu3, b1, b3]
    mu3 = scal_ref[0]
    b1 = scal_ref[1]
    b3 = scal_ref[2]
    p1lo = _conv_reflect(lo_ref[...], w1_ref, b1, H=H, W=W, K=K, pad=pad)
    p3so = _conv_reflect(so_ref[...], w3_ref, b3, H=H, W=W, K=K, pad=pad)
    yout = y_ref[...] + mu3 * (d_ref[...] - p1lo - p3so)
    yout_ref[...] = yout.astype(yout_ref.dtype)


# ----------------------------------------------------------------------------
# Pallas wrappers
# ----------------------------------------------------------------------------
def _batch_block(B):
    # >= 2 parallel grid blocks when the batch splits evenly (v7x has 2 TCs);
    # otherwise keep the whole (tiny) batch resident in a single step.
    return B // 2 if (B >= 2 and B % 2 == 0) else B


def admm_stage1(D, Y, L, S, scal, w1, w2, w3, w4, *, K, pad):
    B, H, W = D.shape
    bb = _batch_block(B)
    blk = pl.BlockSpec((bb, H, W), lambda i: (i, 0, 0))
    kernel = functools.partial(_stage1_kernel, H=H, W=W, K=K, pad=pad)
    return pl.pallas_call(
        kernel,
        out_shape=(jax.ShapeDtypeStruct((B, H, W), D.dtype),
                   jax.ShapeDtypeStruct((B, H, W), D.dtype)),
        grid=(B // bb,),
        in_specs=[_SMEM, _SMEM, _SMEM, _SMEM, _SMEM, blk, blk, blk, blk],
        out_specs=(blk, blk),
        compiler_params=pltpu.CompilerParams(dimension_semantics=("parallel",)),
    )(scal, w1, w2, w3, w4, D, Y, L, S)


def admm_stage2(Y, D, L_out, S_out, scal, w1, w3, *, K, pad):
    B, H, W = Y.shape
    bb = _batch_block(B)
    blk = pl.BlockSpec((bb, H, W), lambda i: (i, 0, 0))
    kernel = functools.partial(_stage2_kernel, H=H, W=W, K=K, pad=pad)
    return pl.pallas_call(
        kernel,
        out_shape=jax.ShapeDtypeStruct((B, H, W), Y.dtype),
        grid=(B // bb,),
        in_specs=[_SMEM, _SMEM, _SMEM, blk, blk, blk, blk],
        out_specs=blk,
        compiler_params=pltpu.CompilerParams(dimension_semantics=("parallel",)),
    )(scal, w1, w3, Y, D, L_out, S_out)


# ----------------------------------------------------------------------------
# AdmmNet parameters + forward
# ----------------------------------------------------------------------------
def init_layer_params(key, C, H, W, K):
    assert C == 1, "reference AdmmLayer semantics require a single channel"
    keys = jax.random.split(key, 8)
    bound = 1.0 / np.sqrt(C * K * K)

    def wb(kw, kb):
        w = jax.random.uniform(kw, (C, C, K, K), jnp.float32, -bound, bound)
        b = jax.random.uniform(kb, (C,), jnp.float32, -bound, bound)
        return w, b

    w1, b1 = wb(keys[0], keys[1])
    w2, b2 = wb(keys[2], keys[3])
    w3, b3 = wb(keys[4], keys[5])
    w4, b4 = wb(keys[6], keys[7])

    mu = 0.5
    lam_pcp = 1.0 / np.sqrt(H * W)
    mu1_v = mu2_v = mu3_v = 1.0 / mu          # parameter values, as in the reference
    lambda1_v = 1.0 / mu
    lambda2_v = 0.1 * lam_pcp / mu

    # Hoisted scalar packs (no per-layer concatenate in the forward pass).
    scal1 = jnp.stack([jnp.float32(1.0 / mu1_v), jnp.float32(lambda1_v),
                       b1[0], b2[0], jnp.float32(1.0 / mu2_v), b3[0], b4[0]])
    scal_y = jnp.stack([jnp.float32(mu3_v), b1[0], b3[0]])

    return dict(
        w1f=w1.reshape(-1), w2f=w2.reshape(-1),
        w3f=w3.reshape(-1), w4f=w4.reshape(-1),
        scal1=scal1.astype(jnp.float32), scal_y=scal_y.astype(jnp.float32),
        lambda2=jnp.float32(lambda2_v),
        K=K, pad=K // 2,
    )


def admm_layer_forward(params, comps):
    D, L, S, Y = comps                         # each (B, H, W)
    B, H, W = D.shape
    K, pad = params["K"], params["pad"]

    # Stage 1 (one fused kernel): S_out and G2.
    S_out, G2 = admm_stage1(D, Y, L, S, params["scal1"],
                            params["w1f"], params["w2f"],
                            params["w3f"], params["w4f"], K=K, pad=pad)

    # Nuclear-norm prox: SVD + singular-value soft threshold + low-rank rebuild.
    # TODO(synk): the SVD factorization (torch.svd) has no clean Pallas
    # equivalent; it and the tiny (H*W,B)x(B,B) reconstruction stay in plain JAX.
    G2m = G2.reshape(B, H * W).T               # (H*W, B)
    u, s, vh = jnp.linalg.svd(G2m, full_matrices=False)
    s_thr = jnp.maximum(s - params["lambda2"], 0.0)
    L_stacked = (u * s_thr) @ vh               # (H*W, B)
    L_out = L_stacked.T.reshape(B, H, W)

    # Stage 2 (one fused kernel): Y_out = Y + mu3 * (D - p1(L_out) - p3(S_out)).
    Y_out = admm_stage2(Y, D, L_out, S_out, params["scal_y"],
                        params["w1f"], params["w3f"], K=K, pad=pad)

    return (D, L_out, S_out, Y_out)


def admm_net_forward(layer_params, D):
    B, C, H, W = D.shape
    assert C == 1
    d = D.reshape(B, H, W)
    z = jnp.zeros_like(d)
    comps = (d, z, z, z)
    for p in layer_params:
        comps = admm_layer_forward(p, comps)
    _, L, S, _ = comps
    return jnp.concatenate([L.reshape(B, 1, H, W), S.reshape(B, 1, H, W)], axis=1)


# ----------------------------------------------------------------------------
if __name__ == "__main__":
    B, C, H, W = 2, 1, 16, 16    # C must be 1 (the reference module's reshape requires it)
    n_layers = 2

    key = jax.random.PRNGKey(0)
    k_in, k_par = jax.random.split(key)
    D = jax.random.normal(k_in, (B, C, H, W), dtype=jnp.float32)

    pkeys = jax.random.split(k_par, n_layers)
    layer_params = []
    for li in range(n_layers):
        K = 5 if li < 3 else 3
        layer_params.append(init_layer_params(pkeys[li], C, H, W, K))

    fwd = jax.jit(functools.partial(admm_net_forward, layer_params))
    out = jax.block_until_ready(fwd(D))

    assert out.shape == (B, 2 * C, H, W), out.shape
    assert bool(jnp.all(jnp.isfinite(out)))
    print("KERNEL_OK")
</pallas_src>

<mosaic_0001>
module attributes {stable_mosaic.version = 11 : i64} {
  func.func @_stage1_kernel(%arg0: i32, %arg1: memref<7xf32, #tpu.memory_space<smem>>, %arg2: memref<25xf32, #tpu.memory_space<smem>>, %arg3: memref<25xf32, #tpu.memory_space<smem>>, %arg4: memref<25xf32, #tpu.memory_space<smem>>, %arg5: memref<25xf32, #tpu.memory_space<smem>>, %arg6: memref<1x16x16xf32, #tpu.memory_space<vmem>>, %arg7: memref<1x16x16xf32, #tpu.memory_space<vmem>>, %arg8: memref<1x16x16xf32, #tpu.memory_space<vmem>>, %arg9: memref<1x16x16xf32, #tpu.memory_space<vmem>>, %arg10: memref<1x16x16xf32, #tpu.memory_space<vmem>>, %arg11: memref<1x16x16xf32, #tpu.memory_space<vmem>>) attributes {dimension_semantics = [#tpu.dimension_semantics<parallel>], iteration_bounds = array<i64: 2>, scalar_prefetch = 0 : i64, scratch_operands = 0 : i64, tpu.core_type = #tpu.core_type<tc>, window_params = [{transform_indices = @transform_0, window_bounds = array<i64: 7>}, {transform_indices = @transform_1, window_bounds = array<i64: 25>}, {transform_indices = @transform_2, window_bounds = array<i64: 25>}, {transform_indices = @transform_3, window_bounds = array<i64: 25>}, {transform_indices = @transform_4, window_bounds = array<i64: 25>}, {transform_indices = @transform_5, window_bounds = array<i64: 1, 16, 16>}, {transform_indices = @transform_6, window_bounds = array<i64: 1, 16, 16>}, {transform_indices = @transform_7, window_bounds = array<i64: 1, 16, 16>}, {transform_indices = @transform_8, window_bounds = array<i64: 1, 16, 16>}, {transform_indices = @transform_9, window_bounds = array<i64: 1, 16, 16>}, {transform_indices = @transform_10, window_bounds = array<i64: 1, 16, 16>}]} {
    %c0 = arith.constant 0 : index
    %0 = memref.load %arg1[%c0] : memref<7xf32, #tpu.memory_space<smem>>
    %c1 = arith.constant 1 : index
    %1 = memref.load %arg1[%c1] : memref<7xf32, #tpu.memory_space<smem>>
    %c2 = arith.constant 2 : index
    %2 = memref.load %arg1[%c2] : memref<7xf32, #tpu.memory_space<smem>>
    %c3 = arith.constant 3 : index
    %3 = memref.load %arg1[%c3] : memref<7xf32, #tpu.memory_space<smem>>
    %c4 = arith.constant 4 : index
    %4 = memref.load %arg1[%c4] : memref<7xf32, #tpu.memory_space<smem>>
    %c5 = arith.constant 5 : index
    %5 = memref.load %arg1[%c5] : memref<7xf32, #tpu.memory_space<smem>>
    %c6 = arith.constant 6 : index
    %6 = memref.load %arg1[%c6] : memref<7xf32, #tpu.memory_space<smem>>
    %c0_0 = arith.constant 0 : index
    %c0_1 = arith.constant 0 : index
    %c0_2 = arith.constant 0 : index
    %7 = vector.load %arg6[%c0_0, %c0_1, %c0_2] : memref<1x16x16xf32, #tpu.memory_space<vmem>>, vector<1x16x16xf32>
    %c0_3 = arith.constant 0 : index
    %c0_4 = arith.constant 0 : index
    %c0_5 = arith.constant 0 : index
    %8 = vector.load %arg7[%c0_3, %c0_4, %c0_5] : memref<1x16x16xf32, #tpu.memory_space<vmem>>, vector<1x16x16xf32>
    %c0_6 = arith.constant 0 : index
    %c0_7 = arith.constant 0 : index
    %c0_8 = arith.constant 0 : index
    %9 = vector.load %arg8[%c0_6, %c0_7, %c0_8] : memref<1x16x16xf32, #tpu.memory_space<vmem>>, vector<1x16x16xf32>
    %10 = vector.extract_strided_slice %9 {offsets = [0, 2, 0], sizes = [1, 1, 16], strides = [1, 1, 1]} : vector<1x16x16xf32> to vector<1x1x16xf32>
    %11 = vector.extract_strided_slice %9 {offsets = [0, 1, 0], sizes = [1, 1, 16], strides = [1, 1, 1]} : vector<1x16x16xf32> to vector<1x1x16xf32>
    %12 = vector.extract_strided_slice %9 {offsets = [0, 14, 0], sizes = [1, 1, 16], strides = [1, 1, 1]} : vector<1x16x16xf32> to vector<1x1x16xf32>
    %13 = vector.extract_strided_slice %9 {offsets = [0, 13, 0], sizes = [1, 1, 16], strides = [1, 1, 1]} : vector<1x16x16xf32> to vector<1x1x16xf32>
    %14 = tpu.concatenate %10, %11, %9, %12, %13 in 1 : vector<1x1x16xf32>, vector<1x1x16xf32>, vector<1x16x16xf32>, vector<1x1x16xf32>, vector<1x1x16xf32> -> vector<1x20x16xf32>
    %15 = vector.extract_strided_slice %14 {offsets = [0, 0, 2], sizes = [1, 20, 1], strides = [1, 1, 1]} : vector<1x20x16xf32> to vector<1x20x1xf32>
    %16 = vector.extract_strided_slice %14 {offsets = [0, 0, 1], sizes = [1, 20, 1], strides = [1, 1, 1]} : vector<1x20x16xf32> to vector<1x20x1xf32>
    %17 = vector.extract_strided_slice %14 {offsets = [0, 0, 14], sizes = [1, 20, 1], strides = [1, 1, 1]} : vector<1x20x16xf32> to vector<1x20x1xf32>
    %18 = vector.extract_strided_slice %14 {offsets = [0, 0, 13], sizes = [1, 20, 1], strides = [1, 1, 1]} : vector<1x20x16xf32> to vector<1x20x1xf32>
    %19 = tpu.concatenate %15, %16, %14, %17, %18 in 2 : vector<1x20x1xf32>, vector<1x20x1xf32>, vector<1x20x16xf32>, vector<1x20x1xf32>, vector<1x20x1xf32> -> vector<1x20x20xf32>
    %cst = arith.constant 0.000000e+00 : f32
    %20 = vector.broadcast %cst : f32 to vector<1x16x16xf32>
    %21 = vector.broadcast %2 : f32 to vector<1x16x16xf32>
    %22 = arith.addf %20, %21 : vector<1x16x16xf32>
    %c0_9 = arith.constant 0 : index
    %23 = memref.load %arg2[%c0_9] : memref<25xf32, #tpu.memory_space<smem>>
    %24 = vector.extract_strided_slice %19 {offsets = [0, 0, 0], sizes = [1, 16, 16], strides = [1, 1, 1]} : vector<1x20x20xf32> to vector<1x16x16xf32>
    %25 = vector.broadcast %23 : f32 to vector<1x16x16xf32>
    %26 = arith.mulf %25, %24 : vector<1x16x16xf32>
    %27 = arith.addf %22, %26 : vector<1x16x16xf32>
    %c1_10 = arith.constant 1 : index
    %28 = memref.load %arg2[%c1_10] : memref<25xf32, #tpu.memory_space<smem>>
    %29 = vector.extract_strided_slice %19 {offsets = [0, 0, 1], sizes = [1, 16, 16], strides = [1, 1, 1]} : vector<1x20x20xf32> to vector<1x16x16xf32>
    %30 = vector.broadcast %28 : f32 to vector<1x16x16xf32>
    %31 = arith.mulf %30, %29 : vector<1x16x16xf32>
    %32 = arith.addf %27, %31 : vector<1x16x16xf32>
    %c2_11 = arith.constant 2 : index
    %33 = memref.load %arg2[%c2_11] : memref<25xf32, #tpu.memory_space<smem>>
    %34 = vector.extract_strided_slice %19 {offsets = [0, 0, 2], sizes = [1, 16, 16], strides = [1, 1, 1]} : vector<1x20x20xf32> to vector<1x16x16xf32>
    %35 = vector.broadcast %33 : f32 to vector<1x16x16xf32>
    %36 = arith.mulf %35, %34 : vector<1x16x16xf32>
    %37 = arith.addf %32, %36 : vector<1x16x16xf32>
    %c3_12 = arith.constant 3 : index
    %38 = memref.load %arg2[%c3_12] : memref<25xf32, #tpu.memory_space<smem>>
    %39 = vector.extract_strided_slice %19 {offsets = [0, 0, 3], sizes = [1, 16, 16], strides = [1, 1, 1]} : vector<1x20x20xf32> to vector<1x16x16xf32>
    %40 = vector.broadcast %38 : f32 to vector<1x16x16xf32>
    %41 = arith.mulf %40, %39 : vector<1x16x16xf32>
    %42 = arith.addf %37, %41 : vector<1x16x16xf32>
    %c4_13 = arith.constant 4 : index
    %43 = memref.load %arg2[%c4_13] : memref<25xf32, #tpu.memory_space<smem>>
    %44 = vector.extract_strided_slice %19 {offsets = [0, 0, 4], sizes = [1, 16, 16], strides = [1, 1, 1]} : vector<1x20x20xf32> to vector<1x16x16xf32>
    %45 = vector.broadcast %43 : f32 to vector<1x16x16xf32>
    %46 = arith.mulf %45, %44 : vector<1x16x16xf32>
    %47 = arith.addf %42, %46 : vector<1x16x16xf32>
    %c5_14 = arith.constant 5 : index
    %48 = memref.load %arg2[%c5_14] : memref<25xf32, #tpu.memory_space<smem>>
    %49 = vector.extract_strided_slice %19 {offsets = [0, 1, 0], sizes = [1, 16, 16], strides = [1, 1, 1]} : vector<1x20x20xf32> to vector<1x16x16xf32>
    %50 = vector.broadcast %48 : f32 to vector<1x16x16xf32>
    %51 = arith.mulf %50, %49 : vector<1x16x16xf32>
    %52 = arith.addf %47, %51 : vector<1x16x16xf32>
    %c6_15 = arith.constant 6 : index
    %53 = memref.load %arg2[%c6_15] : memref<25xf32, #tpu.memory_space<smem>>
    %54 = vector.extract_strided_slice %19 {offsets = [0, 1, 1], sizes = [1, 16, 16], strides = [1, 1, 1]} : vector<1x20x20xf32> to vector<1x16x16xf32>
    %55 = vector.broadcast %53 : f32 to vector<1x16x16xf32>
    %56 = arith.mulf %55, %54 : vector<1x16x16xf32>
    %57 = arith.addf %52, %56 : vector<1x16x16xf32>
    %c7 = arith.constant 7 : index
    %58 = memref.load %arg2[%c7] : memref<25xf32, #tpu.memory_space<smem>>
    %59 = vector.extract_strided_slice %19 {offsets = [0, 1, 2], sizes = [1, 16, 16], strides = [1, 1, 1]} : vector<1x20x20xf32> to vector<1x16x16xf32>
    %60 = vector.broadcast %58 : f32 to vector<1x16x16xf32>
    %61 = arith.mulf %60, %59 : vector<1x16x16xf32>
    %62 = arith.addf %57, %61 : vector<1x16x16xf32>
    %c8 = arith.constant 8 : index
    %63 = memref.load %arg2[%c8] : memref<25xf32, #tpu.memory_space<smem>>
    %64 = vector.extract_strided_slice %19 {offsets = [0, 1, 3], sizes = [1, 16, 16], strides = [1, 1, 1]} : vector<1x20x20xf32> to vector<1x16x16xf32>
    %65 = vector.broadcast %63 : f32 to vector<1x16x16xf32>
    %66 = arith.mulf %65, %64 : vector<1x16x16xf32>
    %67 = arith.addf %62, %66 : vector<1x16x16xf32>
    %c9 = arith.constant 9 : index
    %68 = memref.load %arg2[%c9] : memref<25xf32, #tpu.memory_space<smem>>
    %69 = vector.extract_strided_slice %19 {offsets = [0, 1, 4], sizes = [1, 16, 16], strides = [1, 1, 1]} : vector<1x20x20xf32> to vector<1x16x16xf32>
    %70 = vector.broadcast %68 : f32 to vector<1x16x16xf32>
    %71 = arith.mulf %70, %69 : vector<1x16x16xf32>
    %72 = arith.addf %67, %71 : vector<1x16x16xf32>
    %c10 = arith.constant 10 : index
    %73 = memref.load %arg2[%c10] : memref<25xf32, #tpu.memory_space<smem>>
    %74 = vector.extract_strided_slice %19 {offsets = [0, 2, 0], sizes = [1, 16, 16], strides = [1, 1, 1]} : vector<1x20x20xf32> to vector<1x16x16xf32>
    %75 = vector.broadcast %73 : f32 to vector<1x16x16xf32>
    %76 = arith.mulf %75, %74 : vector<1x16x16xf32>
    %77 = arith.addf %72, %76 : vector<1x16x16xf32>
    %c11 = arith.constant 11 : index
    %78 = memref.load %arg2[%c11] : memref<25xf32, #tpu.memory_space<smem>>
    %79 = vector.extract_strided_slice %19 {offsets = [0, 2, 1], sizes = [1, 16, 16], strides = [1, 1, 1]} : vector<1x20x20xf32> to vector<1x16x16xf32>
    %80 = vector.broadcast %78 : f32 to vector<1x16x16xf32>
    %81 = arith.mulf %80, %79 : vector<1x16x16xf32>
    %82 = arith.addf %77, %81 : vector<1x16x16xf32>
    %c12 = arith.constant 12 : index
    %83 = memref.load %arg2[%c12] : memref<25xf32, #tpu.memory_space<smem>>
    %84 = vector.extract_strided_slice %19 {offsets = [0, 2, 2], sizes = [1, 16, 16], strides = [1, 1, 1]} : vector<1x20x20xf32> to vector<1x16x16xf32>
    %85 = vector.broadcast %83 : f32 to vector<1x16x16xf32>
    %86 = arith.mulf %85, %84 : vector<1x16x16xf32>
    %87 = arith.addf %82, %86 : vector<1x16x16xf32>
    %c13 = arith.constant 13 : index
    %88 = memref.load %arg2[%c13] : memref<25xf32, #tpu.memory_space<smem>>
    %89 = vector.extract_strided_slice %19 {offsets = [0, 2, 3], sizes = [1, 16, 16], strides = [1, 1, 1]} : vector<1x20x20xf32> to vector<1x16x16xf32>
    %90 = vector.broadcast %88 : f32 to vector<1x16x16xf32>
    %91 = arith.mulf %90, %89 : vector<1x16x16xf32>
    %92 = arith.addf %87, %91 : vector<1x16x16xf32>
    %c14 = arith.constant 14 : index
    %93 = memref.load %arg2[%c14] : memref<25xf32, #tpu.memory_space<smem>>
    %94 = vector.extract_strided_slice %19 {offsets = [0, 2, 4], sizes = [1, 16, 16], strides = [1, 1, 1]} : vector<1x20x20xf32> to vector<1x16x16xf32>
    %95 = vector.broadcast %93 : f32 to vector<1x16x16xf32>
    %96 = arith.mulf %95, %94 : vector<1x16x16xf32>
    %97 = arith.addf %92, %96 : vector<1x16x16xf32>
    %c15 = arith.constant 15 : index
    %98 = memref.load %arg2[%c15] : memref<25xf32, #tpu.memory_space<smem>>
    %99 = vector.extract_strided_slice %19 {offsets = [0, 3, 0], sizes = [1, 16, 16], strides = [1, 1, 1]} : vector<1x20x20xf32> to vector<1x16x16xf32>
    %100 = vector.broadcast %98 : f32 to vector<1x16x16xf32>
    %101 = arith.mulf %100, %99 : vector<1x16x16xf32>
    %102 = arith.addf %97, %101 : vector<1x16x16xf32>
    %c16 = arith.constant 16 : index
    %103 = memref.load %arg2[%c16] : memref<25xf32, #tpu.memory_space<smem>>
    %104 = vector.extract_strided_slice %19 {offsets = [0, 3, 1], sizes = [1, 16, 16], strides = [1, 1, 1]} : vector<1x20x20xf32> to vector<1x16x16xf32>
    %105 = vector.broadcast %103 : f32 to vector<1x16x16xf32>
    %106 = arith.mulf %105, %104 : vector<1x16x16xf32>
    %107 = arith.addf %102, %106 : vector<1x16x16xf32>
    %c17 = arith.constant 17 : index
    %108 = memref.load %arg2[%c17] : memref<25xf32, #tpu.memory_space<smem>>
    %109 = vector.extract_strided_slice %19 {offsets = [0, 3, 2], sizes = [1, 16, 16], strides = [1, 1, 1]} : vector<1x20x20xf32> to vector<1x16x16xf32>
    %110 = vector.broadcast %108 : f32 to vector<1x16x16xf32>
    %111 = arith.mulf %110, %109 : vector<1x16x16xf32>
    %112 = arith.addf %107, %111 : vector<1x16x16xf32>
    %c18 = arith.constant 18 : index
    %113 = memref.load %arg2[%c18] : memref<25xf32, #tpu.memory_space<smem>>
    %114 = vector.extract_strided_slice %19 {offsets = [0, 3, 3], sizes = [1, 16, 16], strides = [1, 1, 1]} : vector<1x20x20xf32> to vector<1x16x16xf32>
    %115 = vector.broadcast %113 : f32 to vector<1x16x16xf32>
    %116 = arith.mulf %115, %114 : vector<1x16x16xf32>
    %117 = arith.addf %112, %116 : vector<1x16x16xf32>
    %c19 = arith.constant 19 : index
    %118 = memref.load %arg2[%c19] : memref<25xf32, #tpu.memory_space<smem>>
    %119 = vector.extract_strided_slice %19 {offsets = [0, 3, 4], sizes = [1, 16, 16], strides = [1, 1, 1]} : vector<1x20x20xf32> to vector<1x16x16xf32>
    %120 = vector.broadcast %118 : f32 to vector<1x16x16xf32>
    %121 = arith.mulf %120, %119 : vector<1x16x16xf32>
    %122 = arith.addf %117, %121 : vector<1x16x16xf32>
    %c20 = arith.constant 20 : index
    %123 = memref.load %arg2[%c20] : memref<25xf32, #tpu.memory_space<smem>>
    %124 = vector.extract_strided_slice %19 {offsets = [0, 4, 0], sizes = [1, 16, 16], strides = [1, 1, 1]} : vector<1x20x20xf32> to vector<1x16x16xf32>
    %125 = vector.broadcast %123 : f32 to vector<1x16x16xf32>
    %126 = arith.mulf %125, %124 : vector<1x16x16xf32>
    %127 = arith.addf %122, %126 : vector<1x16x16xf32>
    %c21 = arith.constant 21 : index
    %128 = memref.load %arg2[%c21] : memref<25xf32, #tpu.memory_space<smem>>
    %129 = vector.extract_strided_slice %19 {offsets = [0, 4, 1], sizes = [1, 16, 16], strides = [1, 1, 1]} : vector<1x20x20xf32> to vector<1x16x16xf32>
    %130 = vector.broadcast %128 : f32 to vector<1x16x16xf32>
    %131 = arith.mulf %130, %129 : vector<1x16x16xf32>
    %132 = arith.addf %127, %131 : vector<1x16x16xf32>
    %c22 = arith.constant 22 : index
    %133 = memref.load %arg2[%c22] : memref<25xf32, #tpu.memory_space<smem>>
    %134 = vector.extract_strided_slice %19 {offsets = [0, 4, 2], sizes = [1, 16, 16], strides = [1, 1, 1]} : vector<1x20x20xf32> to vector<1x16x16xf32>
    %135 = vector.broadcast %133 : f32 to vector<1x16x16xf32>
    %136 = arith.mulf %135, %134 : vector<1x16x16xf32>
    %137 = arith.addf %132, %136 : vector<1x16x16xf32>
    %c23 = arith.constant 23 : index
    %138 = memref.load %arg2[%c23] : memref<25xf32, #tpu.memory_space<smem>>
    %139 = vector.extract_strided_slice %19 {offsets = [0, 4, 3], sizes = [1, 16, 16], strides = [1, 1, 1]} : vector<1x20x20xf32> to vector<1x16x16xf32>
    %140 = vector.broadcast %138 : f32 to vector<1x16x16xf32>
    %141 = arith.mulf %140, %139 : vector<1x16x16xf32>
    %142 = arith.addf %137, %141 : vector<1x16x16xf32>
    %c24 = arith.constant 24 : index
    %143 = memref.load %arg2[%c24] : memref<25xf32, #tpu.memory_space<smem>>
    %144 = vector.extract_strided_slice %19 {offsets = [0, 4, 4], sizes = [1, 16, 16], strides = [1, 1, 1]} : vector<1x20x20xf32> to vector<1x16x16xf32>
    %145 = vector.broadcast %143 : f32 to vector<1x16x16xf32>
    %146 = arith.mulf %145, %144 : vector<1x16x16xf32>
    %147 = arith.addf %142, %146 : vector<1x16x16xf32>
    %148 = vector.broadcast %0 : f32 to vector<1x16x16xf32>
    %149 = arith.mulf %8, %148 : vector<1x16x16xf32>
    %150 = arith.addf %7, %149 : vector<1x16x16xf32>
    %151 = arith.subf %150, %147 : vector<1x16x16xf32>
    %152 = vector.extract_strided_slice %151 {offsets = [0, 2, 0], sizes = [1, 1, 16], strides = [1, 1, 1]} : vector<1x16x16xf32> to vector<1x1x16xf32>
    %153 = vector.extract_strided_slice %151 {offsets = [0, 1, 0], sizes = [1, 1, 16], strides = [1, 1, 1]} : vector<1x16x16xf32> to vector<1x1x16xf32>
    %154 = vector.extract_strided_slice %151 {offsets = [0, 14, 0], sizes = [1, 1, 16], strides = [1, 1, 1]} : vector<1x16x16xf32> to vector<1x1x16xf32>
    %155 = vector.extract_strided_slice %151 {offsets = [0, 13, 0], sizes = [1, 1, 16], strides = [1, 1, 1]} : vector<1x16x16xf32> to vector<1x1x16xf32>
    %156 = tpu.concatenate %152, %153, %151, %154, %155 in 1 : vector<1x1x16xf32>, vector<1x1x16xf32>, vector<1x16x16xf32>, vector<1x1x16xf32>, vector<1x1x16xf32> -> vector<1x20x16xf32>
    %157 = vector.extract_strided_slice %156 {offsets = [0, 0, 2], sizes = [1, 20, 1], strides = [1, 1, 1]} : vector<1x20x16xf32> to vector<1x20x1xf32>
    %158 = vector.extract_strided_slice %156 {offsets = [0, 0, 1], sizes = [1, 20, 1], strides = [1, 1, 1]} : vector<1x20x16xf32> to vector<1x20x1xf32>
    %159 = vector.extract_strided_slice %156 {offsets = [0, 0, 14], sizes = [1, 20, 1], strides = [1, 1, 1]} : vector<1x20x16xf32> to vector<1x20x1xf32>
    %160 = vector.extract_strided_slice %156 {offsets = [0, 0, 13], sizes = [1, 20, 1], strides = [1, 1, 1]} : vector<1x20x16xf32> to vector<1x20x1xf32>
    %161 = tpu.concatenate %157, %158, %156, %159, %160 in 2 : vector<1x20x1xf32>, vector<1x20x1xf32>, vector<1x20x16xf32>, vector<1x20x1xf32>, vector<1x20x1xf32> -> vector<1x20x20xf32>
    %cst_16 = arith.constant 0.000000e+00 : f32
    %162 = vector.broadcast %cst_16 : f32 to vector<1x16x16xf32>
    %163 = vector.broadcast %3 : f32 to vector<1x16x16xf32>
    %164 = arith.addf %162, %163 : vector<1x16x16xf32>
    %c0_17 = arith.constant 0 : index
    %165 = memref.load %arg3[%c0_17] : memref<25xf32, #tpu.memory_space<smem>>
    %166 = vector.extract_strided_slice %161 {offsets = [0, 0, 0], sizes = [1, 16, 16], strides = [1, 1, 1]} : vector<1x20x20xf32> to vector<1x16x16xf32>
    %167 = vector.broadcast %165 : f32 to vector<1x16x16xf32>
    %168 = arith.mulf %167, %166 : vector<1x16x16xf32>
    %169 = arith.addf %164, %168 : vector<1x16x16xf32>
    %c1_18 = arith.constant 1 : index
    %170 = memref.load %arg3[%c1_18] : memref<25xf32, #tpu.memory_space<smem>>
    %171 = vector.extract_strided_slice %161 {offsets = [0, 0, 1], sizes = [1, 16, 16], strides = [1, 1, 1]} : vector<1x20x20xf32> to vector<1x16x16xf32>
    %172 = vector.broadcast %170 : f32 to vector<1x16x16xf32>
    %173 = arith.mulf %172, %171 : vector<1x16x16xf32>
    %174 = arith.addf %169, %173 : vector<1x16x16xf32>
    %c2_19 = arith.constant 2 : index
    %175 = memref.load %arg3[%c2_19] : memref<25xf32, #tpu.memory_space<smem>>
    %176 = vector.extract_strided_slice %161 {offsets = [0, 0, 2], sizes = [1, 16, 16], strides = [1, 1, 1]} : vector<1x20x20xf32> to vector<1x16x16xf32>
    %177 = vector.broadcast %175 : f32 to vector<1x16x16xf32>
    %178 = arith.mulf %177, %176 : vector<1x16x16xf32>
    %179 = arith.addf %174, %178 : vector<1x16x16xf32>
    %c3_20 = arith.constant 3 : index
    %180 = memref.load %arg3[%c3_20] : memref<25xf32, #tpu.memory_space<smem>>
    %181 = vector.extract_strided_slice %161 {offsets = [0, 0, 3], sizes = [1, 16, 16], strides = [1, 1, 1]} : vector<1x20x20xf32> to vector<1x16x16xf32>
    %182 = vector.broadcast %180 : f32 to vector<1x16x16xf32>
    %183 = arith.mulf %182, %181 : vector<1x16x16xf32>
    %184 = arith.addf %179, %183 : vector<1x16x16xf32>
    %c4_21 = arith.constant 4 : index
    %185 = memref.load %arg3[%c4_21] : memref<25xf32, #tpu.memory_space<smem>>
    %186 = vector.extract_strided_slice %161 {offsets = [0, 0, 4], sizes = [1, 16, 16], strides = [1, 1, 1]} : vector<1x20x20xf32> to vector<1x16x16xf32>
    %187 = vector.broadcast %185 : f32 to vector<1x16x16xf32>
    %188 = arith.mulf %187, %186 : vector<1x16x16xf32>
    %189 = arith.addf %184, %188 : vector<1x16x16xf32>
    %c5_22 = arith.constant 5 : index
    %190 = memref.load %arg3[%c5_22] : memref<25xf32, #tpu.memory_space<smem>>
    %191 = vector.extract_strided_slice %161 {offsets = [0, 1, 0], sizes = [1, 16, 16], strides = [1, 1, 1]} : vector<1x20x20xf32> to vector<1x16x16xf32>
    %192 = vector.broadcast %190 : f32 to vector<1x16x16xf32>
    %193 = arith.mulf %192, %191 : vector<1x16x16xf32>
    %194 = arith.addf %189, %193 : vector<1x16x16xf32>
    %c6_23 = arith.constant 6 : index
    %195 = memref.load %arg3[%c6_23] : memref<25xf32, #tpu.memory_space<smem>>
    %196 = vector.extract_strided_slice %161 {offsets = [0, 1, 1], sizes = [1, 16, 16], strides = [1, 1, 1]} : vector<1x20x20xf32> to vector<1x16x16xf32>
    %197 = vector.broadcast %195 : f32 to vector<1x16x16xf32>
    %198 = arith.mulf %197, %196 : vector<1x16x16xf32>
    %199 = arith.addf %194, %198 : vector<1x16x16xf32>
    %c7_24 = arith.constant 7 : index
    %200 = memref.load %arg3[%c7_24] : memref<25xf32, #tpu.memory_space<smem>>
    %201 = vector.extract_strided_slice %161 {offsets = [0, 1, 2], sizes = [1, 16, 16], strides = [1, 1, 1]} : vector<1x20x20xf32> to vector<1x16x16xf32>
    %202 = vector.broadcast %200 : f32 to vector<1x16x16xf32>
    %203 = arith.mulf %202, %201 : vector<1x16x16xf32>
    %204 = arith.addf %199, %203 : vector<1x16x16xf32>
    %c8_25 = arith.constant 8 : index
    %205 = memref.load %arg3[%c8_25] : memref<25xf32, #tpu.memory_space<smem>>
    %206 = vector.extract_strided_slice %161 {offsets = [0, 1, 3], sizes = [1, 16, 16], strides = [1, 1, 1]} : vector<1x20x20xf32> to vector<1x16x16xf32>
    %207 = vector.broadcast %205 : f32 to vector<1x16x16xf32>
    %208 = arith.mulf %207, %206 : vector<1x16x16xf32>
    %209 = arith.addf %204, %208 : vector<1x16x16xf32>
    %c9_26 = arith.constant 9 : index
    %210 = memref.load %arg3[%c9_26] : memref<25xf32, #tpu.memory_space<smem>>
    %211 = vector.extract_strided_slice %161 {offsets = [0, 1, 4], sizes = [1, 16, 16], strides = [1, 1, 1]} : vector<1x20x20xf32> to vector<1x16x16xf32>
    %212 = vector.broadcast %210 : f32 to vector<1x16x16xf32>
    %213 = arith.mulf %212, %211 : vector<1x16x16xf32>
    %214 = arith.addf %209, %213 : vector<1x16x16xf32>
    %c10_27 = arith.constant 10 : index
    %215 = memref.load %arg3[%c10_27] : memref<25xf32, #tpu.memory_space<smem>>
    %216 = vector.extract_strided_slice %161 {offsets = [0, 2, 0], sizes = [1, 16, 16], strides = [1, 1, 1]} : vector<1x20x20xf32> to vector<1x16x16xf32>
    %217 = vector.broadcast %215 : f32 to vector<1x16x16xf32>
    %218 = arith.mulf %217, %216 : vector<1x16x16xf32>
    %219 = arith.addf %214, %218 : vector<1x16x16xf32>
    %c11_28 = arith.constant 11 : index
    %220 = memref.load %arg3[%c11_28] : memref<25xf32, #tpu.memory_space<smem>>
    %221 = vector.extract_strided_slice %161 {offsets = [0, 2, 1], sizes = [1, 16, 16], strides = [1, 1, 1]} : vector<1x20x20xf32> to vector<1x16x16xf32>
    %222 = vector.broadcast %220 : f32 to vector<1x16x16xf32>
    %223 = arith.mulf %222, %221 : vector<1x16x16xf32>
    %224 = arith.addf %219, %223 : vector<1x16x16xf32>
    %c12_29 = arith.constant 12 : index
    %225 = memref.load %arg3[%c12_29] : memref<25xf32, #tpu.memory_space<smem>>
    %226 = vector.extract_strided_slice %161 {offsets = [0, 2, 2], sizes = [1, 16, 16], strides = [1, 1, 1]} : vector<1x20x20xf32> to vector<1x16x16xf32>
    %227 = vector.broadcast %225 : f32 to vector<1x16x16xf32>
    %228 = arith.mulf %227, %226 : vector<1x16x16xf32>
    %229 = arith.addf %224, %228 : vector<1x16x16xf32>
    %c13_30 = arith.constant 13 : index
    %230 = memref.load %arg3[%c13_30] : memref<25xf32, #tpu.memory_space<smem>>
    %231 = vector.extract_strided_slice %161 {offsets = [0, 2, 3], sizes = [1, 16, 16], strides = [1, 1, 1]} : vector<1x20x20xf32> to vector<1x16x16xf32>
    %232 = vector.broadcast %230 : f32 to vector<1x16x16xf32>
    %233 = arith.mulf %232, %231 : vector<1x16x16xf32>
    %234 = arith.addf %229, %233 : vector<1x16x16xf32>
    %c14_31 = arith.constant 14 : index
    %235 = memref.load %arg3[%c14_31] : memref<25xf32, #tpu.memory_space<smem>>
    %236 = vector.extract_strided_slice %161 {offsets = [0, 2, 4], sizes = [1, 16, 16], strides = [1, 1, 1]} : vector<1x20x20xf32> to vector<1x16x16xf32>
    %237 = vector.broadcast %235 : f32 to vector<1x16x16xf32>
    %238 = arith.mulf %237, %236 : vector<1x16x16xf32>
    %239 = arith.addf %234, %238 : vector<1x16x16xf32>
    %c15_32 = arith.constant 15 : index
    %240 = memref.load %arg3[%c15_32] : memref<25xf32, #tpu.memory_space<smem>>
    %241 = vector.extract_strided_slice %161 {offsets = [0, 3, 0], sizes = [1, 16, 16], strides = [1, 1, 1]} : vector<1x20x20xf32> to vector<1x16x16xf32>
    %242 = vector.broadcast %240 : f32 to vector<1x16x16xf32>
    %243 = arith.mulf %242, %241 : vector<1x16x16xf32>
    %244 = arith.addf %239, %243 : vector<1x16x16xf32>
    %c16_33 = arith.constant 16 : index
    %245 = memref.load %arg3[%c16_33] : memref<25xf32, #tpu.memory_space<smem>>
    %246 = vector.extract_strided_slice %161 {offsets = [0, 3, 1], sizes = [1, 16, 16], strides = [1, 1, 1]} : vector<1x20x20xf32> to vector<1x16x16xf32>
    %247 = vector.broadcast %245 : f32 to vector<1x16x16xf32>
    %248 = arith.mulf %247, %246 : vector<1x16x16xf32>
    %249 = arith.addf %244, %248 : vector<1x16x16xf32>
    %c17_34 = arith.constant 17 : index
    %250 = memref.load %arg3[%c17_34] : memref<25xf32, #tpu.memory_space<smem>>
    %251 = vector.extract_strided_slice %161 {offsets = [0, 3, 2], sizes = [1, 16, 16], strides = [1, 1, 1]} : vector<1x20x20xf32> to vector<1x16x16xf32>
    %252 = vector.broadcast %250 : f32 to vector<1x16x16xf32>
    %253 = arith.mulf %252, %251 : vector<1x16x16xf32>
    %254 = arith.addf %249, %253 : vector<1x16x16xf32>
    %c18_35 = arith.constant 18 : index
    %255 = memref.load %arg3[%c18_35] : memref<25xf32, #tpu.memory_space<smem>>
    %256 = vector.extract_strided_slice %161 {offsets = [0, 3, 3], sizes = [1, 16, 16], strides = [1, 1, 1]} : vector<1x20x20xf32> to vector<1x16x16xf32>
    %257 = vector.broadcast %255 : f32 to vector<1x16x16xf32>
    %258 = arith.mulf %257, %256 : vector<1x16x16xf32>
    %259 = arith.addf %254, %258 : vector<1x16x16xf32>
    %c19_36 = arith.constant 19 : index
    %260 = memref.load %arg3[%c19_36] : memref<25xf32, #tpu.memory_space<smem>>
    %261 = vector.extract_strided_slice %161 {offsets = [0, 3, 4], sizes = [1, 16, 16], strides = [1, 1, 1]} : vector<1x20x20xf32> to vector<1x16x16xf32>
    %262 = vector.broadcast %260 : f32 to vector<1x16x16xf32>
    %263 = arith.mulf %262, %261 : vector<1x16x16xf32>
    %264 = arith.addf %259, %263 : vector<1x16x16xf32>
    %c20_37 = arith.constant 20 : index
    %265 = memref.load %arg3[%c20_37] : memref<25xf32, #tpu.memory_space<smem>>
    %266 = vector.extract_strided_slice %161 {offsets = [0, 4, 0], sizes = [1, 16, 16], strides = [1, 1, 1]} : vector<1x20x20xf32> to vector<1x16x16xf32>
    %267 = vector.broadcast %265 : f32 to vector<1x16x16xf32>
    %268 = arith.mulf %267, %266 : vector<1x16x16xf32>
    %269 = arith.addf %264, %268 : vector<1x16x16xf32>
    %c21_38 = arith.constant 21 : index
    %270 = memref.load %arg3[%c21_38] : memref<25xf32, #tpu.memory_space<smem>>
    %271 = vector.extract_strided_slice %161 {offsets = [0, 4, 1], sizes = [1, 16, 16], strides = [1, 1, 1]} : vector<1x20x20xf32> to vector<1x16x16xf32>
    %272 = vector.broadcast %270 : f32 to vector<1x16x16xf32>
    %273 = arith.mulf %272, %271 : vector<1x16x16xf32>
    %274 = arith.addf %269, %273 : vector<1x16x16xf32>
    %c22_39 = arith.constant 22 : index
    %275 = memref.load %arg3[%c22_39] : memref<25xf32, #tpu.memory_space<smem>>
    %276 = vector.extract_strided_slice %161 {offsets = [0, 4, 2], sizes = [1, 16, 16], strides = [1, 1, 1]} : vector<1x20x20xf32> to vector<1x16x16xf32>
    %277 = vector.broadcast %275 : f32 to vector<1x16x16xf32>
    %278 = arith.mulf %277, %276 : vector<1x16x16xf32>
    %279 = arith.addf %274, %278 : vector<1x16x16xf32>
    %c23_40 = arith.constant 23 : index
    %280 = memref.load %arg3[%c23_40] : memref<25xf32, #tpu.memory_space<smem>>
    %281 = vector.extract_strided_slice %161 {offsets = [0, 4, 3], sizes = [1, 16, 16], strides = [1, 1, 1]} : vector<1x20x20xf32> to vector<1x16x16xf32>
    %282 = vector.broadcast %280 : f32 to vector<1x16x16xf32>
    %283 = arith.mulf %282, %281 : vector<1x16x16xf32>
    %284 = arith.addf %279, %283 : vector<1x16x16xf32>
    %c24_41 = arith.constant 24 : index
    %285 = memref.load %arg3[%c24_41] : memref<25xf32, #tpu.memory_space<smem>>
    %286 = vector.extract_strided_slice %161 {offsets = [0, 4, 4], sizes = [1, 16, 16], strides = [1, 1, 1]} : vector<1x20x20xf32> to vector<1x16x16xf32>
    %287 = vector.broadcast %285 : f32 to vector<1x16x16xf32>
    %288 = arith.mulf %287, %286 : vector<1x16x16xf32>
    %289 = arith.addf %284, %288 : vector<1x16x16xf32>
    %290 = vector.broadcast %1 : f32 to vector<1x16x16xf32>
    %291 = arith.subf %289, %290 : vector<1x16x16xf32>
    %cst_42 = arith.constant 0.000000e+00 : f32
    %292 = vector.broadcast %cst_42 : f32 to vector<1x16x16xf32>
    %293 = arith.maximumf %291, %292 : vector<1x16x16xf32>
    %c0_43 = arith.constant 0 : index
    %c0_44 = arith.constant 0 : index
    %c0_45 = arith.constant 0 : index
    %294 = vector.load %arg10[%c0_43, %c0_44, %c0_45] : memref<1x16x16xf32, #tpu.memory_space<vmem>>, vector<1x16x16xf32>
    tpu.vector_store %arg10[%c0_43, %c0_44, %c0_45], %293 {strides = array<i32>} : memref<1x16x16xf32, #tpu.memory_space<vmem>>, vector<1x16x16xf32>,
    %c0_46 = arith.constant 0 : index
    %c0_47 = arith.constant 0 : index
    %c0_48 = arith.constant 0 : index
    %295 = vector.load %arg9[%c0_46, %c0_47, %c0_48] : memref<1x16x16xf32, #tpu.memory_space<vmem>>, vector<1x16x16xf32>
    %296 = vector.extract_strided_slice %295 {offsets = [0, 2, 0], sizes = [1, 1, 16], strides = [1, 1, 1]} : vector<1x16x16xf32> to vector<1x1x16xf32>
    %297 = vector.extract_strided_slice %295 {offsets = [0, 1, 0], sizes = [1, 1, 16], strides = [1, 1, 1]} : vector<1x16x16xf32> to vector<1x1x16xf32>
    %298 = vector.extract_strided_slice %295 {offsets = [0, 14, 0], sizes = [1, 1, 16], strides = [1, 1, 1]} : vector<1x16x16xf32> to vector<1x1x16xf32>
    %299 = vector.extract_strided_slice %295 {offsets = [0, 13, 0], sizes = [1, 1, 16], strides = [1, 1, 1]} : vector<1x16x16xf32> to vector<1x1x16xf32>
    %300 = tpu.concatenate %296, %297, %295, %298, %299 in 1 : vector<1x1x16xf32>, vector<1x1x16xf32>, vector<1x16x16xf32>, vector<1x1x16xf32>, vector<1x1x16xf32> -> vector<1x20x16xf32>
    %301 = vector.extract_strided_slice %300 {offsets = [0, 0, 2], sizes = [1, 20, 1], strides = [1, 1, 1]} : vector<1x20x16xf32> to vector<1x20x1xf32>
    %302 = vector.extract_strided_slice %300 {offsets = [0, 0, 1], sizes = [1, 20, 1], strides = [1, 1, 1]} : vector<1x20x16xf32> to vector<1x20x1xf32>
    %303 = vector.extract_strided_slice %300 {offsets = [0, 0, 14], sizes = [1, 20, 1], strides = [1, 1, 1]} : vector<1x20x16xf32> to vector<1x20x1xf32>
    %304 = vector.extract_strided_slice %300 {offsets = [0, 0, 13], sizes = [1, 20, 1], strides = [1, 1, 1]} : vector<1x20x16xf32> to vector<1x20x1xf32>
    %305 = tpu.concatenate %301, %302, %300, %303, %304 in 2 : vector<1x20x1xf32>, vector<1x20x1xf32>, vector<1x20x16xf32>, vector<1x20x1xf32>, vector<1x20x1xf32> -> vector<1x20x20xf32>
    %cst_49 = arith.constant 0.000000e+00 : f32
    %306 = vector.broadcast %cst_49 : f32 to vector<1x16x16xf32>
    %307 = vector.broadcast %5 : f32 to vector<1x16x16xf32>
    %308 = arith.addf %306, %307 : vector<1x16x16xf32>
    %c0_50 = arith.constant 0 : index
    %309 = memref.load %arg4[%c0_50] : memref<25xf32, #tpu.memory_space<smem>>
    %310 = vector.extract_strided_slice %305 {offsets = [0, 0, 0], sizes = [1, 16, 16], strides = [1, 1, 1]} : vector<1x20x20xf32> to vector<1x16x16xf32>
    %311 = vector.broadcast %309 : f32 to vector<1x16x16xf32>
    %312 = arith.mulf %311, %310 : vector<1x16x16xf32>
    %313 = arith.addf %308, %312 : vector<1x16x16xf32>
    %c1_51 = arith.constant 1 : index
    %314 = memref.load %arg4[%c1_51] : memref<25xf32, #tpu.memory_space<smem>>
    %315 = vector.extract_strided_slice %305 {offsets = [0, 0, 1], sizes = [1, 16, 16], strides = [1, 1, 1]} : vector<1x20x20xf32> to vector<1x16x16xf32>
    %316 = vector.broadcast %314 : f32 to vector<1x16x16xf32>
    %317 = arith.mulf %316, %315 : vector<1x16x16xf32>
    %318 = arith.addf %313, %317 : vector<1x16x16xf32>
    %c2_52 = arith.constant 2 : index
    %319 = memref.load %arg4[%c2_52] : memref<25xf32, #tpu.memory_space<smem>>
    %320 = vector.extract_strided_slice %305 {offsets = [0, 0, 2], sizes = [1, 16, 16], strides = [1, 1, 1]} : vector<1x20x20xf32> to vector<1x16x16xf32>
    %321 = vector.broadcast %319 : f32 to vector<1x16x16xf32>
    %322 = arith.mulf %321, %320 : vector<1x16x16xf32>
    %323 = arith.addf %318, %322 : vector<1x16x16xf32>
    %c3_53 = arith.constant 3 : index
    %324 = memref.load %arg4[%c3_53] : memref<25xf32, #tpu.memory_space<smem>>
    %325 = vector.extract_strided_slice %305 {offsets = [0, 0, 3], sizes = [1, 16, 16], strides = [1, 1, 1]} : vector<1x20x20xf32> to vector<1x16x16xf32>
    %326 = vector.broadcast %324 : f32 to vector<1x16x16xf32>
    %327 = arith.mulf %326, %325 : vector<1x16x16xf32>
    %328 = arith.addf %323, %327 : vector<1x16x16xf32>
    %c4_54 = arith.constant 4 : index
    %329 = memref.load %arg4[%c4_54] : memref<25xf32, #tpu.memory_space<smem>>
    %330 = vector.extract_strided_slice %305 {offsets = [0, 0, 4], sizes = [1, 16, 16], strides = [1, 1, 1]} : vector<1x20x20xf32> to vector<1x16x16xf32>
    %331 = vector.broadcast %329 : f32 to vector<1x16x16xf32>
    %332 = arith.mulf %331, %330 : vector<1x16x16xf32>
    %333 = arith.addf %328, %332 : vector<1x16x16xf32>
    %c5_55 = arith.constant 5 : index
    %334 = memref.load %arg4[%c5_55] : memref<25xf32, #tpu.memory_space<smem>>
    %335 = vector.extract_strided_slice %305 {offsets = [0, 1, 0], sizes = [1, 16, 16], strides = [1, 1, 1]} : vector<1x20x20xf32> to vector<1x16x16xf32>
    %336 = vector.broadcast %334 : f32 to vector<1x16x16xf32>
    %337 = arith.mulf %336, %335 : vector<1x16x16xf32>
    %338 = arith.addf %333, %337 : vector<1x16x16xf32>
    %c6_56 = arith.constant 6 : index
    %339 = memref.load %arg4[%c6_56] : memref<25xf32, #tpu.memory_space<smem>>
    %340 = vector.extract_strided_slice %305 {offsets = [0, 1, 1], sizes = [1, 16, 16], strides = [1, 1, 1]} : vector<1x20x20xf32> to vector<1x16x16xf32>
    %341 = vector.broadcast %339 : f32 to vector<1x16x16xf32>
    %342 = arith.mulf %341, %340 : vector<1x16x16xf32>
    %343 = arith.addf %338, %342 : vector<1x16x16xf32>
    %c7_57 = arith.constant 7 : index
    %344 = memref.load %arg4[%c7_57] : memref<25xf32, #tpu.memory_space<smem>>
    %345 = vector.extract_strided_slice %305 {offsets = [0, 1, 2], sizes = [1, 16, 16], strides = [1, 1, 1]} : vector<1x20x20xf32> to vector<1x16x16xf32>
    %346 = vector.broadcast %344 : f32 to vector<1x16x16xf32>
    %347 = arith.mulf %346, %345 : vector<1x16x16xf32>
    %348 = arith.addf %343, %347 : vector<1x16x16xf32>
    %c8_58 = arith.constant 8 : index
    %349 = memref.load %arg4[%c8_58] : memref<25xf32, #tpu.memory_space<smem>>
    %350 = vector.extract_strided_slice %305 {offsets = [0, 1, 3], sizes = [1, 16, 16], strides = [1, 1, 1]} : vector<1x20x20xf32> to vector<1x16x16xf32>
    %351 = vector.broadcast %349 : f32 to vector<1x16x16xf32>
    %352 = arith.mulf %351, %350 : vector<1x16x16xf32>
    %353 = arith.addf %348, %352 : vector<1x16x16xf32>
    %c9_59 = arith.constant 9 : index
    %354 = memref.load %arg4[%c9_59] : memref<25xf32, #tpu.memory_space<smem>>
    %355 = vector.extract_strided_slice %305 {offsets = [0, 1, 4], sizes = [1, 16, 16], strides = [1, 1, 1]} : vector<1x20x20xf32> to vector<1x16x16xf32>
    %356 = vector.broadcast %354 : f32 to vector<1x16x16xf32>
    %357 = arith.mulf %356, %355 : vector<1x16x16xf32>
    %358 = arith.addf %353, %357 : vector<1x16x16xf32>
    %c10_60 = arith.constant 10 : index
    %359 = memref.load %arg4[%c10_60] : memref<25xf32, #tpu.memory_space<smem>>
    %360 = vector.extract_strided_slice %305 {offsets = [0, 2, 0], sizes = [1, 16, 16], strides = [1, 1, 1]} : vector<1x20x20xf32> to vector<1x16x16xf32>
    %361 = vector.broadcast %359 : f32 to vector<1x16x16xf32>
    %362 = arith.mulf %361, %360 : vector<1x16x16xf32>
    %363 = arith.addf %358, %362 : vector<1x16x16xf32>
    %c11_61 = arith.constant 11 : index
    %364 = memref.load %arg4[%c11_61] : memref<25xf32, #tpu.memory_space<smem>>
    %365 = vector.extract_strided_slice %305 {offsets = [0, 2, 1], sizes = [1, 16, 16], strides = [1, 1, 1]} : vector<1x20x20xf32> to vector<1x16x16xf32>
    %366 = vector.broadcast %364 : f32 to vector<1x16x16xf32>
    %367 = arith.mulf %366, %365 : vector<1x16x16xf32>
    %368 = arith.addf %363, %367 : vector<1x16x16xf32>
    %c12_62 = arith.constant 12 : index
    %369 = memref.load %arg4[%c12_62] : memref<25xf32, #tpu.memory_space<smem>>
    %370 = vector.extract_strided_slice %305 {offsets = [0, 2, 2], sizes = [1, 16, 16], strides = [1, 1, 1]} : vector<1x20x20xf32> to vector<1x16x16xf32>
    %371 = vector.broadcast %369 : f32 to vector<1x16x16xf32>
    %372 = arith.mulf %371, %370 : vector<1x16x16xf32>
    %373 = arith.addf %368, %372 : vector<1x16x16xf32>
    %c13_63 = arith.constant 13 : index
    %374 = memref.load %arg4[%c13_63] : memref<25xf32, #tpu.memory_space<smem>>
    %375 = vector.extract_strided_slice %305 {offsets = [0, 2, 3], sizes = [1, 16, 16], strides = [1, 1, 1]} : vector<1x20x20xf32> to vector<1x16x16xf32>
    %376 = vector.broadcast %374 : f32 to vector<1x16x16xf32>
    %377 = arith.mulf %376, %375 : vector<1x16x16xf32>
    %378 = arith.addf %373, %377 : vector<1x16x16xf32>
    %c14_64 = arith.constant 14 : index
    %379 = memref.load %arg4[%c14_64] : memref<25xf32, #tpu.memory_space<smem>>
    %380 = vector.extract_strided_slice %305 {offsets = [0, 2, 4], sizes = [1, 16, 16], strides = [1, 1, 1]} : vector<1x20x20xf32> to vector<1x16x16xf32>
    %381 = vector.broadcast %379 : f32 to vector<1x16x16xf32>
    %382 = arith.mulf %381, %380 : vector<1x16x16xf32>
    %383 = arith.addf %378, %382 : vector<1x16x16xf32>
    %c15_65 = arith.constant 15 : index
    %384 = memref.load %arg4[%c15_65] : memref<25xf32, #tpu.memory_space<smem>>
    %385 = vector.extract_strided_slice %305 {offsets = [0, 3, 0], sizes = [1, 16, 16], strides = [1, 1, 1]} : vector<1x20x20xf32> to vector<1x16x16xf32>
    %386 = vector.broadcast %384 : f32 to vector<1x16x16xf32>
    %387 = arith.mulf %386, %385 : vector<1x16x16xf32>
    %388 = arith.addf %383, %387 : vector<1x16x16xf32>
    %c16_66 = arith.constant 16 : index
    %389 = memref.load %arg4[%c16_66] : memref<25xf32, #tpu.memory_space<smem>>
    %390 = vector.extract_strided_slice %305 {offsets = [0, 3, 1], sizes = [1, 16, 16], strides = [1, 1, 1]} : vector<1x20x20xf32> to vector<1x16x16xf32>
    %391 = vector.broadcast %389 : f32 to vector<1x16x16xf32>
    %392 = arith.mulf %391, %390 : vector<1x16x16xf32>
    %393 = arith.addf %388, %392 : vector<1x16x16xf32>
    %c17_67 = arith.constant 17 : index
    %394 = memref.load %arg4[%c17_67] : memref<25xf32, #tpu.memory_space<smem>>
    %395 = vector.extract_strided_slice %305 {offsets = [0, 3, 2], sizes = [1, 16, 16], strides = [1, 1, 1]} : vector<1x20x20xf32> to vector<1x16x16xf32>
    %396 = vector.broadcast %394 : f32 to vector<1x16x16xf32>
    %397 = arith.mulf %396, %395 : vector<1x16x16xf32>
    %398 = arith.addf %393, %397 : vector<1x16x16xf32>
    %c18_68 = arith.constant 18 : index
    %399 = memref.load %arg4[%c18_68] : memref<25xf32, #tpu.memory_space<smem>>
    %400 = vector.extract_strided_slice %305 {offsets = [0, 3, 3], sizes = [1, 16, 16], strides = [1, 1, 1]} : vector<1x20x20xf32> to vector<1x16x16xf32>
    %401 = vector.broadcast %399 : f32 to vector<1x16x16xf32>
    %402 = arith.mulf %401, %400 : vector<1x16x16xf32>
    %403 = arith.addf %398, %402 : vector<1x16x16xf32>
    %c19_69 = arith.constant 19 : index
    %404 = memref.load %arg4[%c19_69] : memref<25xf32, #tpu.memory_space<smem>>
    %405 = vector.extract_strided_slice %305 {offsets = [0, 3, 4], sizes = [1, 16, 16], strides = [1, 1, 1]} : vector<1x20x20xf32> to vector<1x16x16xf32>
    %406 = vector.broadcast %404 : f32 to vector<1x16x16xf32>
    %407 = arith.mulf %406, %405 : vector<1x16x16xf32>
    %408 = arith.addf %403, %407 : vector<1x16x16xf32>
    %c20_70 = arith.constant 20 : index
    %409 = memref.load %arg4[%c20_70] : memref<25xf32, #tpu.memory_space<smem>>
    %410 = vector.extract_strided_slice %305 {offsets = [0, 4, 0], sizes = [1, 16, 16], strides = [1, 1, 1]} : vector<1x20x20xf32> to vector<1x16x16xf32>
    %411 = vector.broadcast %409 : f32 to vector<1x16x16xf32>
    %412 = arith.mulf %411, %410 : vector<1x16x16xf32>
    %413 = arith.addf %408, %412 : vector<1x16x16xf32>
    %c21_71 = arith.constant 21 : index
    %414 = memref.load %arg4[%c21_71] : memref<25xf32, #tpu.memory_space<smem>>
    %415 = vector.extract_strided_slice %305 {offsets = [0, 4, 1], sizes = [1, 16, 16], strides = [1, 1, 1]} : vector<1x20x20xf32> to vector<1x16x16xf32>
    %416 = vector.broadcast %414 : f32 to vector<1x16x16xf32>
    %417 = arith.mulf %416, %415 : vector<1x16x16xf32>
    %418 = arith.addf %413, %417 : vector<1x16x16xf32>
    %c22_72 = arith.constant 22 : index
    %419 = memref.load %arg4[%c22_72] : memref<25xf32, #tpu.memory_space<smem>>
    %420 = vector.extract_strided_slice %305 {offsets = [0, 4, 2], sizes = [1, 16, 16], strides = [1, 1, 1]} : vector<1x20x20xf32> to vector<1x16x16xf32>
    %421 = vector.broadcast %419 : f32 to vector<1x16x16xf32>
    %422 = arith.mulf %421, %420 : vector<1x16x16xf32>
    %423 = arith.addf %418, %422 : vector<1x16x16xf32>
    %c23_73 = arith.constant 23 : index
    %424 = memref.load %arg4[%c23_73] : memref<25xf32, #tpu.memory_space<smem>>
    %425 = vector.extract_strided_slice %305 {offsets = [0, 4, 3], sizes = [1, 16, 16], strides = [1, 1, 1]} : vector<1x20x20xf32> to vector<1x16x16xf32>
    %426 = vector.broadcast %424 : f32 to vector<1x16x16xf32>
    %427 = arith.mulf %426, %425 : vector<1x16x16xf32>
    %428 = arith.addf %423, %427 : vector<1x16x16xf32>
    %c24_74 = arith.constant 24 : index
    %429 = memref.load %arg4[%c24_74] : memref<25xf32, #tpu.memory_space<smem>>
    %430 = vector.extract_strided_slice %305 {offsets = [0, 4, 4], sizes = [1, 16, 16], strides = [1, 1, 1]} : vector<1x20x20xf32> to vector<1x16x16xf32>
    %431 = vector.broadcast %429 : f32 to vector<1x16x16xf32>
    %432 = arith.mulf %431, %430 : vector<1x16x16xf32>
    %433 = arith.addf %428, %432 : vector<1x16x16xf32>
    %434 = vector.broadcast %4 : f32 to vector<1x16x16xf32>
    %435 = arith.mulf %8, %434 : vector<1x16x16xf32>
    %436 = arith.addf %7, %435 : vector<1x16x16xf32>
    %437 = arith.subf %436, %433 : vector<1x16x16xf32>
    %438 = vector.extract_strided_slice %437 {offsets = [0, 2, 0], sizes = [1, 1, 16], strides = [1, 1, 1]} : vector<1x16x16xf32> to vector<1x1x16xf32>
    %439 = vector.extract_strided_slice %437 {offsets = [0, 1, 0], sizes = [1, 1, 16], strides = [1, 1, 1]} : vector<1x16x16xf32> to vector<1x1x16xf32>
    %440 = vector.extract_strided_slice %437 {offsets = [0, 14, 0], sizes = [1, 1, 16], strides = [1, 1, 1]} : vector<1x16x16xf32> to vector<1x1x16xf32>
    %441 = vector.extract_strided_slice %437 {offsets = [0, 13, 0], sizes = [1, 1, 16], strides = [1, 1, 1]} : vector<1x16x16xf32> to vector<1x1x16xf32>
    %442 = tpu.concatenate %438, %439, %437, %440, %441 in 1 : vector<1x1x16xf32>, vector<1x1x16xf32>, vector<1x16x16xf32>, vector<1x1x16xf32>, vector<1x1x16xf32> -> vector<1x20x16xf32>
    %443 = vector.extract_strided_slice %442 {offsets = [0, 0, 2], sizes = [1, 20, 1], strides = [1, 1, 1]} : vector<1x20x16xf32> to vector<1x20x1xf32>
    %444 = vector.extract_strided_slice %442 {offsets = [0, 0, 1], sizes = [1, 20, 1], strides = [1, 1, 1]} : vector<1x20x16xf32> to vector<1x20x1xf32>
    %445 = vector.extract_strided_slice %442 {offsets = [0, 0, 14], sizes = [1, 20, 1], strides = [1, 1, 1]} : vector<1x20x16xf32> to vector<1x20x1xf32>
    %446 = vector.extract_strided_slice %442 {offsets = [0, 0, 13], sizes = [1, 20, 1], strides = [1, 1, 1]} : vector<1x20x16xf32> to vector<1x20x1xf32>
    %447 = tpu.concatenate %443, %444, %442, %445, %446 in 2 : vector<1x20x1xf32>, vector<1x20x1xf32>, vector<1x20x16xf32>, vector<1x20x1xf32>, vector<1x20x1xf32> -> vector<1x20x20xf32>
    %cst_75 = arith.constant 0.000000e+00 : f32
    %448 = vector.broadcast %cst_75 : f32 to vector<1x16x16xf32>
    %449 = vector.broadcast %6 : f32 to vector<1x16x16xf32>
    %450 = arith.addf %448, %449 : vector<1x16x16xf32>
    %c0_76 = arith.constant 0 : index
    %451 = memref.load %arg5[%c0_76] : memref<25xf32, #tpu.memory_space<smem>>
    %452 = vector.extract_strided_slice %447 {offsets = [0, 0, 0], sizes = [1, 16, 16], strides = [1, 1, 1]} : vector<1x20x20xf32> to vector<1x16x16xf32>
    %453 = vector.broadcast %451 : f32 to vector<1x16x16xf32>
    %454 = arith.mulf %453, %452 : vector<1x16x16xf32>
    %455 = arith.addf %450, %454 : vector<1x16x16xf32>
    %c1_77 = arith.constant 1 : index
    %456 = memref.load %arg5[%c1_77] : memref<25xf32, #tpu.memory_space<smem>>
    %457 = vector.extract_strided_slice %447 {offsets = [0, 0, 1], sizes = [1, 16, 16], strides = [1, 1, 1]} : vector<1x20x20xf32> to vector<1x16x16xf32>
    %458 = vector.broadcast %456 : f32 to vector<1x16x16xf32>
    %459 = arith.mulf %458, %457 : vector<1x16x16xf32>
    %460 = arith.addf %455, %459 : vector<1x16x16xf32>
    %c2_78 = arith.constant 2 : index
    %461 = memref.load %arg5[%c2_78] : memref<25xf32, #tpu.memory_space<smem>>
    %462 = vector.extract_strided_slice %447 {offsets = [0, 0, 2], sizes = [1, 16, 16], strides = [1, 1, 1]} : vector<1x20x20xf32> to vector<1x16x16xf32>
    %463 = vector.broadcast %461 : f32 to vector<1x16x16xf32>
    %464 = arith.mulf %463, %462 : vector<1x16x16xf32>
    %465 = arith.addf %460, %464 : vector<1x16x16xf32>
    %c3_79 = arith.constant 3 : index
    %466 = memref.load %arg5[%c3_79] : memref<25xf32, #tpu.memory_space<smem>>
    %467 = vector.extract_strided_slice %447 {offsets = [0, 0, 3], sizes = [1, 16, 16], strides = [1, 1, 1]} : vector<1x20x20xf32> to vector<1x16x16xf32>
    %468 = vector.broadcast %466 : f32 to vector<1x16x16xf32>
    %469 = arith.mulf %468, %467 : vector<1x16x16xf32>
    %470 = arith.addf %465, %469 : vector<1x16x16xf32>
    %c4_80 = arith.constant 4 : index
    %471 = memref.load %arg5[%c4_80] : memref<25xf32, #tpu.memory_space<smem>>
    %472 = vector.extract_strided_slice %447 {offsets = [0, 0, 4], sizes = [1, 16, 16], strides = [1, 1, 1]} : vector<1x20x20xf32> to vector<1x16x16xf32>
    %473 = vector.broadcast %471 : f32 to vector<1x16x16xf32>
    %474 = arith.mulf %473, %472 : vector<1x16x16xf32>
    %475 = arith.addf %470, %474 : vector<1x16x16xf32>
    %c5_81 = arith.constant 5 : index
    %476 = memref.load %arg5[%c5_81] : memref<25xf32, #tpu.memory_space<smem>>
    %477 = vector.extract_strided_slice %447 {offsets = [0, 1, 0], sizes = [1, 16, 16], strides = [1, 1, 1]} : vector<1x20x20xf32> to vector<1x16x16xf32>
    %478 = vector.broadcast %476 : f32 to vector<1x16x16xf32>
    %479 = arith.mulf %478, %477 : vector<1x16x16xf32>
    %480 = arith.addf %475, %479 : vector<1x16x16xf32>
    %c6_82 = arith.constant 6 : index
    %481 = memref.load %arg5[%c6_82] : memref<25xf32, #tpu.memory_space<smem>>
    %482 = vector.extract_strided_slice %447 {offsets = [0, 1, 1], sizes = [1, 16, 16], strides = [1, 1, 1]} : vector<1x20x20xf32> to vector<1x16x16xf32>
    %483 = vector.broadcast %481 : f32 to vector<1x16x16xf32>
    %484 = arith.mulf %483, %482 : vector<1x16x16xf32>
    %485 = arith.addf %480, %484 : vector<1x16x16xf32>
    %c7_83 = arith.constant 7 : index
    %486 = memref.load %arg5[%c7_83] : memref<25xf32, #tpu.memory_space<smem>>
    %487 = vector.extract_strided_slice %447 {offsets = [0, 1, 2], sizes = [1, 16, 16], strides = [1, 1, 1]} : vector<1x20x20xf32> to vector<1x16x16xf32>
    %488 = vector.broadcast %486 : f32 to vector<1x16x16xf32>
    %489 = arith.mulf %488, %487 : vector<1x16x16xf32>
    %490 = arith.addf %485, %489 : vector<1x16x16xf32>
    %c8_84 = arith.constant 8 : index
    %491 = memref.load %arg5[%c8_84] : memref<25xf32, #tpu.memory_space<smem>>
    %492 = vector.extract_strided_slice %447 {offsets = [0, 1, 3], sizes = [1, 16, 16], strides = [1, 1, 1]} : vector<1x20x20xf32> to vector<1x16x16xf32>
    %493 = vector.broadcast %491 : f32 to vector<1x16x16xf32>
    %494 = arith.mulf %493, %492 : vector<1x16x16xf32>
    %495 = arith.addf %490, %494 : vector<1x16x16xf32>
    %c9_85 = arith.constant 9 : index
    %496 = memref.load %arg5[%c9_85] : memref<25xf32, #tpu.memory_space<smem>>
    %497 = vector.extract_strided_slice %447 {offsets = [0, 1, 4], sizes = [1, 16, 16], strides = [1, 1, 1]} : vector<1x20x20xf32> to vector<1x16x16xf32>
    %498 = vector.broadcast %496 : f32 to vector<1x16x16xf32>
    %499 = arith.mulf %498, %497 : vector<1x16x16xf32>
    %500 = arith.addf %495, %499 : vector<1x16x16xf32>
    %c10_86 = arith.constant 10 : index
    %501 = memref.load %arg5[%c10_86] : memref<25xf32, #tpu.memory_space<smem>>
    %502 = vector.extract_strided_slice %447 {offsets = [0, 2, 0], sizes = [1, 16, 16], strides = [1, 1, 1]} : vector<1x20x20xf32> to vector<1x16x16xf32>
    %503 = vector.broadcast %501 : f32 to vector<1x16x16xf32>
    %504 = arith.mulf %503, %502 : vector<1x16x16xf32>
    %505 = arith.addf %500, %504 : vector<1x16x16xf32>
    %c11_87 = arith.constant 11 : index
    %506 = memref.load %arg5[%c11_87] : memref<25xf32, #tpu.memory_space<smem>>
    %507 = vector.extract_strided_slice %447 {offsets = [0, 2, 1], sizes = [1, 16, 16], strides = [1, 1, 1]} : vector<1x20x20xf32> to vector<1x16x16xf32>
    %508 = vector.broadcast %506 : f32 to vector<1x16x16xf32>
    %509 = arith.mulf %508, %507 : vector<1x16x16xf32>
    %510 = arith.addf %505, %509 : vector<1x16x16xf32>
    %c12_88 = arith.constant 12 : index
    %511 = memref.load %arg5[%c12_88] : memref<25xf32, #tpu.memory_space<smem>>
    %512 = vector.extract_strided_slice %447 {offsets = [0, 2, 2], sizes = [1, 16, 16], strides = [1, 1, 1]} : vector<1x20x20xf32> to vector<1x16x16xf32>
    %513 = vector.broadcast %511 : f32 to vector<1x16x16xf32>
    %514 = arith.mulf %513, %512 : vector<1x16x16xf32>
    %515 = arith.addf %510, %514 : vector<1x16x16xf32>
    %c13_89 = arith.constant 13 : index
    %516 = memref.load %arg5[%c13_89] : memref<25xf32, #tpu.memory_space<smem>>
    %517 = vector.extract_strided_slice %447 {offsets = [0, 2, 3], sizes = [1, 16, 16], strides = [1, 1, 1]} : vector<1x20x20xf32> to vector<1x16x16xf32>
    %518 = vector.broadcast %516 : f32 to vector<1x16x16xf32>
    %519 = arith.mulf %518, %517 : vector<1x16x16xf32>
    %520 = arith.addf %515, %519 : vector<1x16x16xf32>
    %c14_90 = arith.constant 14 : index
    %521 = memref.load %arg5[%c14_90] : memref<25xf32, #tpu.memory_space<smem>>
    %522 = vector.extract_strided_slice %447 {offsets = [0, 2, 4], sizes = [1, 16, 16], strides = [1, 1, 1]} : vector<1x20x20xf32> to vector<1x16x16xf32>
    %523 = vector.broadcast %521 : f32 to vector<1x16x16xf32>
    %524 = arith.mulf %523, %522 : vector<1x16x16xf32>
    %525 = arith.addf %520, %524 : vector<1x16x16xf32>
    %c15_91 = arith.constant 15 : index
    %526 = memref.load %arg5[%c15_91] : memref<25xf32, #tpu.memory_space<smem>>
    %527 = vector.extract_strided_slice %447 {offsets = [0, 3, 0], sizes = [1, 16, 16], strides = [1, 1, 1]} : vector<1x20x20xf32> to vector<1x16x16xf32>
    %528 = vector.broadcast %526 : f32 to vector<1x16x16xf32>
    %529 = arith.mulf %528, %527 : vector<1x16x16xf32>
    %530 = arith.addf %525, %529 : vector<1x16x16xf32>
    %c16_92 = arith.constant 16 : index
    %531 = memref.load %arg5[%c16_92] : memref<25xf32, #tpu.memory_space<smem>>
    %532 = vector.extract_strided_slice %447 {offsets = [0, 3, 1], sizes = [1, 16, 16], strides = [1, 1, 1]} : vector<1x20x20xf32> to vector<1x16x16xf32>
    %533 = vector.broadcast %531 : f32 to vector<1x16x16xf32>
    %534 = arith.mulf %533, %532 : vector<1x16x16xf32>
    %535 = arith.addf %530, %534 : vector<1x16x16xf32>
    %c17_93 = arith.constant 17 : index
    %536 = memref.load %arg5[%c17_93] : memref<25xf32, #tpu.memory_space<smem>>
    %537 = vector.extract_strided_slice %447 {offsets = [0, 3, 2], sizes = [1, 16, 16], strides = [1, 1, 1]} : vector<1x20x20xf32> to vector<1x16x16xf32>
    %538 = vector.broadcast %536 : f32 to vector<1x16x16xf32>
    %539 = arith.mulf %538, %537 : vector<1x16x16xf32>
    %540 = arith.addf %535, %539 : vector<1x16x16xf32>
    %c18_94 = arith.constant 18 : index
    %541 = memref.load %arg5[%c18_94] : memref<25xf32, #tpu.memory_space<smem>>
    %542 = vector.extract_strided_slice %447 {offsets = [0, 3, 3], sizes = [1, 16, 16], strides = [1, 1, 1]} : vector<1x20x20xf32> to vector<1x16x16xf32>
    %543 = vector.broadcast %541 : f32 to vector<1x16x16xf32>
    %544 = arith.mulf %543, %542 : vector<1x16x16xf32>
    %545 = arith.addf %540, %544 : vector<1x16x16xf32>
    %c19_95 = arith.constant 19 : index
    %546 = memref.load %arg5[%c19_95] : memref<25xf32, #tpu.memory_space<smem>>
    %547 = vector.extract_strided_slice %447 {offsets = [0, 3, 4], sizes = [1, 16, 16], strides = [1, 1, 1]} : vector<1x20x20xf32> to vector<1x16x16xf32>
    %548 = vector.broadcast %546 : f32 to vector<1x16x16xf32>
    %549 = arith.mulf %548, %547 : vector<1x16x16xf32>
    %550 = arith.addf %545, %549 : vector<1x16x16xf32>
    %c20_96 = arith.constant 20 : index
    %551 = memref.load %arg5[%c20_96] : memref<25xf32, #tpu.memory_space<smem>>
    %552 = vector.extract_strided_slice %447 {offsets = [0, 4, 0], sizes = [1, 16, 16], strides = [1, 1, 1]} : vector<1x20x20xf32> to vector<1x16x16xf32>
    %553 = vector.broadcast %551 : f32 to vector<1x16x16xf32>
    %554 = arith.mulf %553, %552 : vector<1x16x16xf32>
    %555 = arith.addf %550, %554 : vector<1x16x16xf32>
    %c21_97 = arith.constant 21 : index
    %556 = memref.load %arg5[%c21_97] : memref<25xf32, #tpu.memory_space<smem>>
    %557 = vector.extract_strided_slice %447 {offsets = [0, 4, 1], sizes = [1, 16, 16], strides = [1, 1, 1]} : vector<1x20x20xf32> to vector<1x16x16xf32>
    %558 = vector.broadcast %556 : f32 to vector<1x16x16xf32>
    %559 = arith.mulf %558, %557 : vector<1x16x16xf32>
    %560 = arith.addf %555, %559 : vector<1x16x16xf32>
    %c22_98 = arith.constant 22 : index
    %561 = memref.load %arg5[%c22_98] : memref<25xf32, #tpu.memory_space<smem>>
    %562 = vector.extract_strided_slice %447 {offsets = [0, 4, 2], sizes = [1, 16, 16], strides = [1, 1, 1]} : vector<1x20x20xf32> to vector<1x16x16xf32>
    %563 = vector.broadcast %561 : f32 to vector<1x16x16xf32>
    %564 = arith.mulf %563, %562 : vector<1x16x16xf32>
    %565 = arith.addf %560, %564 : vector<1x16x16xf32>
    %c23_99 = arith.constant 23 : index
    %566 = memref.load %arg5[%c23_99] : memref<25xf32, #tpu.memory_space<smem>>
    %567 = vector.extract_strided_slice %447 {offsets = [0, 4, 3], sizes = [1, 16, 16], strides = [1, 1, 1]} : vector<1x20x20xf32> to vector<1x16x16xf32>
    %568 = vector.broadcast %566 : f32 to vector<1x16x16xf32>
    %569 = arith.mulf %568, %567 : vector<1x16x16xf32>
    %570 = arith.addf %565, %569 : vector<1x16x16xf32>
    %c24_100 = arith.constant 24 : index
    %571 = memref.load %arg5[%c24_100] : memref<25xf32, #tpu.memory_space<smem>>
    %572 = vector.extract_strided_slice %447 {offsets = [0, 4, 4], sizes = [1, 16, 16], strides = [1, 1, 1]} : vector<1x20x20xf32> to vector<1x16x16xf32>
    %573 = vector.broadcast %571 : f32 to vector<1x16x16xf32>
    %574 = arith.mulf %573, %572 : vector<1x16x16xf32>
    %575 = arith.addf %570, %574 : vector<1x16x16xf32>
    %c0_101 = arith.constant 0 : index
    %c0_102 = arith.constant 0 : index
    %c0_103 = arith.constant 0 : index
    %576 = vector.load %arg11[%c0_101, %c0_102, %c0_103] : memref<1x16x16xf32, #tpu.memory_space<vmem>>, vector<1x16x16xf32>
    tpu.vector_store %arg11[%c0_101, %c0_102, %c0_103], %575 {strides = array<i32>} : memref<1x16x16xf32, #tpu.memory_space<vmem>>, vector<1x16x16xf32>,
    return
  }
  func.func @transform_0(%arg0: i32) -> i32 {
    %c0_i32 = arith.constant 0 : i32
    %c0_i32_0 = arith.constant 0 : i32
    return %c0_i32 : i32
  }
  func.func @transform_1(%arg0: i32) -> i32 {
    %c0_i32 = arith.constant 0 : i32
    %c0_i32_0 = arith.constant 0 : i32
    return %c0_i32 : i32
  }
  func.func @transform_2(%arg0: i32) -> i32 {
    %c0_i32 = arith.constant 0 : i32
    %c0_i32_0 = arith.constant 0 : i32
    return %c0_i32 : i32
  }
  func.func @transform_3(%arg0: i32) -> i32 {
    %c0_i32 = arith.constant 0 : i32
    %c0_i32_0 = arith.constant 0 : i32
    return %c0_i32 : i32
  }
  func.func @transform_4(%arg0: i32) -> i32 {
    %c0_i32 = arith.constant 0 : i32
    %c0_i32_0 = arith.constant 0 : i32
    return %c0_i32 : i32
  }
  func.func @transform_5(%arg0: i32) -> (i32, i32, i32) {
    %c0_i32 = arith.constant 0 : i32
    %c0_i32_0 = arith.constant 0 : i32
    %c0_i32_1 = arith.constant 0 : i32
    return %arg0, %c0_i32, %c0_i32_0 : i32, i32, i32
  }
  func.func @transform_6(%arg0: i32) -> (i32, i32, i32) {
    %c0_i32 = arith.constant 0 : i32
    %c0_i32_0 = arith.constant 0 : i32
    %c0_i32_1 = arith.constant 0 : i32
    return %arg0, %c0_i32, %c0_i32_0 : i32, i32, i32
  }
  func.func @transform_7(%arg0: i32) -> (i32, i32, i32) {
    %c0_i32 = arith.constant 0 : i32
    %c0_i32_0 = arith.constant 0 : i32
    %c0_i32_1 = arith.constant 0 : i32
    return %arg0, %c0_i32, %c0_i32_0 : i32, i32, i32
  }
  func.func @transform_8(%arg0: i32) -> (i32, i32, i32) {
    %c0_i32 = arith.constant 0 : i32
    %c0_i32_0 = arith.constant 0 : i32
    %c0_i32_1 = arith.constant 0 : i32
    return %arg0, %c0_i32, %c0_i32_0 : i32, i32, i32
  }
  func.func @transform_9(%arg0: i32) -> (i32, i32, i32) {
    %c0_i32 = arith.constant 0 : i32
    %c0_i32_0 = arith.constant 0 : i32
    %c0_i32_1 = arith.constant 0 : i32
    return %arg0, %c0_i32, %c0_i32_0 : i32, i32, i32
  }
  func.func @transform_10(%arg0: i32) -> (i32, i32, i32) {
    %c0_i32 = arith.constant 0 : i32
    %c0_i32_0 = arith.constant 0 : i32
    %c0_i32_1 = arith.constant 0 : i32
    return %arg0, %c0_i32, %c0_i32_0 : i32, i32, i32
  }
}

module attributes {stable_mosaic.version = 11 : i64} {
  func.func @_stage2_kernel(%arg0: i32, %arg1: memref<3xf32, #tpu.memory_space<smem>>, %arg2: memref<25xf32, #tpu.memory_space<smem>>, %arg3: memref<25xf32, #tpu.memory_space<smem>>, %arg4: memref<1x16x16xf32, #tpu.memory_space<vmem>>, %arg5: memref<1x16x16xf32, #tpu.memory_space<vmem>>, %arg6: memref<1x16x16xf32, #tpu.memory_space<vmem>>, %arg7: memref<1x16x16xf32, #tpu.memory_space<vmem>>, %arg8: memref<1x16x16xf32, #tpu.memory_space<vmem>>) attributes {dimension_semantics = [#tpu.dimension_semantics<parallel>], iteration_bounds = array<i64: 2>, scalar_prefetch = 0 : i64, scratch_operands = 0 : i64, tpu.core_type = #tpu.core_type<tc>, window_params = [{transform_indices = @transform_0, window_bounds = array<i64: 3>}, {transform_indices = @transform_1, window_bounds = array<i64: 25>}, {transform_indices = @transform_2, window_bounds = array<i64: 25>}, {transform_indices = @transform_3, window_bounds = array<i64: 1, 16, 16>}, {transform_indices = @transform_4, window_bounds = array<i64: 1, 16, 16>}, {transform_indices = @transform_5, window_bounds = array<i64: 1, 16, 16>}, {transform_indices = @transform_6, window_bounds = array<i64: 1, 16, 16>}, {transform_indices = @transform_7, window_bounds = array<i64: 1, 16, 16>}]} {
    %c0 = arith.constant 0 : index
    %0 = memref.load %arg1[%c0] : memref<3xf32, #tpu.memory_space<smem>>
    %c1 = arith.constant 1 : index
    %1 = memref.load %arg1[%c1] : memref<3xf32, #tpu.memory_space<smem>>
    %c2 = arith.constant 2 : index
    %2 = memref.load %arg1[%c2] : memref<3xf32, #tpu.memory_space<smem>>
    %c0_0 = arith.constant 0 : index
    %c0_1 = arith.constant 0 : index
    %c0_2 = arith.constant 0 : index
    %3 = vector.load %arg6[%c0_0, %c0_1, %c0_2] : memref<1x16x16xf32, #tpu.memory_space<vmem>>, vector<1x16x16xf32>
    %4 = vector.extract_strided_slice %3 {offsets = [0, 2, 0], sizes = [1, 1, 16], strides = [1, 1, 1]} : vector<1x16x16xf32> to vector<1x1x16xf32>
    %5 = vector.extract_strided_slice %3 {offsets = [0, 1, 0], sizes = [1, 1, 16], strides = [1, 1, 1]} : vector<1x16x16xf32> to vector<1x1x16xf32>
    %6 = vector.extract_strided_slice %3 {offsets = [0, 14, 0], sizes = [1, 1, 16], strides = [1, 1, 1]} : vector<1x16x16xf32> to vector<1x1x16xf32>
    %7 = vector.extract_strided_slice %3 {offsets = [0, 13, 0], sizes = [1, 1, 16], strides = [1, 1, 1]} : vector<1x16x16xf32> to vector<1x1x16xf32>
    %8 = tpu.concatenate %4, %5, %3, %6, %7 in 1 : vector<1x1x16xf32>, vector<1x1x16xf32>, vector<1x16x16xf32>, vector<1x1x16xf32>, vector<1x1x16xf32> -> vector<1x20x16xf32>
    %9 = vector.extract_strided_slice %8 {offsets = [0, 0, 2], sizes = [1, 20, 1], strides = [1, 1, 1]} : vector<1x20x16xf32> to vector<1x20x1xf32>
    %10 = vector.extract_strided_slice %8 {offsets = [0, 0, 1], sizes = [1, 20, 1], strides = [1, 1, 1]} : vector<1x20x16xf32> to vector<1x20x1xf32>
    %11 = vector.extract_strided_slice %8 {offsets = [0, 0, 14], sizes = [1, 20, 1], strides = [1, 1, 1]} : vector<1x20x16xf32> to vector<1x20x1xf32>
    %12 = vector.extract_strided_slice %8 {offsets = [0, 0, 13], sizes = [1, 20, 1], strides = [1, 1, 1]} : vector<1x20x16xf32> to vector<1x20x1xf32>
    %13 = tpu.concatenate %9, %10, %8, %11, %12 in 2 : vector<1x20x1xf32>, vector<1x20x1xf32>, vector<1x20x16xf32>, vector<1x20x1xf32>, vector<1x20x1xf32> -> vector<1x20x20xf32>
    %cst = arith.constant 0.000000e+00 : f32
    %14 = vector.broadcast %cst : f32 to vector<1x16x16xf32>
    %15 = vector.broadcast %1 : f32 to vector<1x16x16xf32>
    %16 = arith.addf %14, %15 : vector<1x16x16xf32>
    %c0_3 = arith.constant 0 : index
    %17 = memref.load %arg2[%c0_3] : memref<25xf32, #tpu.memory_space<smem>>
    %18 = vector.extract_strided_slice %13 {offsets = [0, 0, 0], sizes = [1, 16, 16], strides = [1, 1, 1]} : vector<1x20x20xf32> to vector<1x16x16xf32>
    %19 = vector.broadcast %17 : f32 to vector<1x16x16xf32>
    %20 = arith.mulf %19, %18 : vector<1x16x16xf32>
    %21 = arith.addf %16, %20 : vector<1x16x16xf32>
    %c1_4 = arith.constant 1 : index
    %22 = memref.load %arg2[%c1_4] : memref<25xf32, #tpu.memory_space<smem>>
    %23 = vector.extract_strided_slice %13 {offsets = [0, 0, 1], sizes = [1, 16, 16], strides = [1, 1, 1]} : vector<1x20x20xf32> to vector<1x16x16xf32>
    %24 = vector.broadcast %22 : f32 to vector<1x16x16xf32>
    %25 = arith.mulf %24, %23 : vector<1x16x16xf32>
    %26 = arith.addf %21, %25 : vector<1x16x16xf32>
    %c2_5 = arith.constant 2 : index
    %27 = memref.load %arg2[%c2_5] : memref<25xf32, #tpu.memory_space<smem>>
    %28 = vector.extract_strided_slice %13 {offsets = [0, 0, 2], sizes = [1, 16, 16], strides = [1, 1, 1]} : vector<1x20x20xf32> to vector<1x16x16xf32>
    %29 = vector.broadcast %27 : f32 to vector<1x16x16xf32>
    %30 = arith.mulf %29, %28 : vector<1x16x16xf32>
    %31 = arith.addf %26, %30 : vector<1x16x16xf32>
    %c3 = arith.constant 3 : index
    %32 = memref.load %arg2[%c3] : memref<25xf32, #tpu.memory_space<smem>>
    %33 = vector.extract_strided_slice %13 {offsets = [0, 0, 3], sizes = [1, 16, 16], strides = [1, 1, 1]} : vector<1x20x20xf32> to vector<1x16x16xf32>
    %34 = vector.broadcast %32 : f32 to vector<1x16x16xf32>
    %35 = arith.mulf %34, %33 : vector<1x16x16xf32>
    %36 = arith.addf %31, %35 : vector<1x16x16xf32>
    %c4 = arith.constant 4 : index
    %37 = memref.load %arg2[%c4] : memref<25xf32, #tpu.memory_space<smem>>
    %38 = vector.extract_strided_slice %13 {offsets = [0, 0, 4], sizes = [1, 16, 16], strides = [1, 1, 1]} : vector<1x20x20xf32> to vector<1x16x16xf32>
    %39 = vector.broadcast %37 : f32 to vector<1x16x16xf32>
    %40 = arith.mulf %39, %38 : vector<1x16x16xf32>
    %41 = arith.addf %36, %40 : vector<1x16x16xf32>
    %c5 = arith.constant 5 : index
    %42 = memref.load %arg2[%c5] : memref<25xf32, #tpu.memory_space<smem>>
    %43 = vector.extract_strided_slice %13 {offsets = [0, 1, 0], sizes = [1, 16, 16], strides = [1, 1, 1]} : vector<1x20x20xf32> to vector<1x16x16xf32>
    %44 = vector.broadcast %42 : f32 to vector<1x16x16xf32>
    %45 = arith.mulf %44, %43 : vector<1x16x16xf32>
    %46 = arith.addf %41, %45 : vector<1x16x16xf32>
    %c6 = arith.constant 6 : index
    %47 = memref.load %arg2[%c6] : memref<25xf32, #tpu.memory_space<smem>>
    %48 = vector.extract_strided_slice %13 {offsets = [0, 1, 1], sizes = [1, 16, 16], strides = [1, 1, 1]} : vector<1x20x20xf32> to vector<1x16x16xf32>
    %49 = vector.broadcast %47 : f32 to vector<1x16x16xf32>
    %50 = arith.mulf %49, %48 : vector<1x16x16xf32>
    %51 = arith.addf %46, %50 : vector<1x16x16xf32>
    %c7 = arith.constant 7 : index
    %52 = memref.load %arg2[%c7] : memref<25xf32, #tpu.memory_space<smem>>
    %53 = vector.extract_strided_slice %13 {offsets = [0, 1, 2], sizes = [1, 16, 16], strides = [1, 1, 1]} : vector<1x20x20xf32> to vector<1x16x16xf32>
    %54 = vector.broadcast %52 : f32 to vector<1x16x16xf32>
    %55 = arith.mulf %54, %53 : vector<1x16x16xf32>
    %56 = arith.addf %51, %55 : vector<1x16x16xf32>
    %c8 = arith.constant 8 : index
    %57 = memref.load %arg2[%c8] : memref<25xf32, #tpu.memory_space<smem>>
    %58 = vector.extract_strided_slice %13 {offsets = [0, 1, 3], sizes = [1, 16, 16], strides = [1, 1, 1]} : vector<1x20x20xf32> to vector<1x16x16xf32>
    %59 = vector.broadcast %57 : f32 to vector<1x16x16xf32>
    %60 = arith.mulf %59, %58 : vector<1x16x16xf32>
    %61 = arith.addf %56, %60 : vector<1x16x16xf32>
    %c9 = arith.constant 9 : index
    %62 = memref.load %arg2[%c9] : memref<25xf32, #tpu.memory_space<smem>>
    %63 = vector.extract_strided_slice %13 {offsets = [0, 1, 4], sizes = [1, 16, 16], strides = [1, 1, 1]} : vector<1x20x20xf32> to vector<1x16x16xf32>
    %64 = vector.broadcast %62 : f32 to vector<1x16x16xf32>
    %65 = arith.mulf %64, %63 : vector<1x16x16xf32>
    %66 = arith.addf %61, %65 : vector<1x16x16xf32>
    %c10 = arith.constant 10 : index
    %67 = memref.load %arg2[%c10] : memref<25xf32, #tpu.memory_space<smem>>
    %68 = vector.extract_strided_slice %13 {offsets = [0, 2, 0], sizes = [1, 16, 16], strides = [1, 1, 1]} : vector<1x20x20xf32> to vector<1x16x16xf32>
    %69 = vector.broadcast %67 : f32 to vector<1x16x16xf32>
    %70 = arith.mulf %69, %68 : vector<1x16x16xf32>
    %71 = arith.addf %66, %70 : vector<1x16x16xf32>
    %c11 = arith.constant 11 : index
    %72 = memref.load %arg2[%c11] : memref<25xf32, #tpu.memory_space<smem>>
    %73 = vector.extract_strided_slice %13 {offsets = [0, 2, 1], sizes = [1, 16, 16], strides = [1, 1, 1]} : vector<1x20x20xf32> to vector<1x16x16xf32>
    %74 = vector.broadcast %72 : f32 to vector<1x16x16xf32>
    %75 = arith.mulf %74, %73 : vector<1x16x16xf32>
    %76 = arith.addf %71, %75 : vector<1x16x16xf32>
    %c12 = arith.constant 12 : index
    %77 = memref.load %arg2[%c12] : memref<25xf32, #tpu.memory_space<smem>>
    %78 = vector.extract_strided_slice %13 {offsets = [0, 2, 2], sizes = [1, 16, 16], strides = [1, 1, 1]} : vector<1x20x20xf32> to vector<1x16x16xf32>
    %79 = vector.broadcast %77 : f32 to vector<1x16x16xf32>
    %80 = arith.mulf %79, %78 : vector<1x16x16xf32>
    %81 = arith.addf %76, %80 : vector<1x16x16xf32>
    %c13 = arith.constant 13 : index
    %82 = memref.load %arg2[%c13] : memref<25xf32, #tpu.memory_space<smem>>
    %83 = vector.extract_strided_slice %13 {offsets = [0, 2, 3], sizes = [1, 16, 16], strides = [1, 1, 1]} : vector<1x20x20xf32> to vector<1x16x16xf32>
    %84 = vector.broadcast %82 : f32 to vector<1x16x16xf32>
    %85 = arith.mulf %84, %83 : vector<1x16x16xf32>
    %86 = arith.addf %81, %85 : vector<1x16x16xf32>
    %c14 = arith.constant 14 : index
    %87 = memref.load %arg2[%c14] : memref<25xf32, #tpu.memory_space<smem>>
    %88 = vector.extract_strided_slice %13 {offsets = [0, 2, 4], sizes = [1, 16, 16], strides = [1, 1, 1]} : vector<1x20x20xf32> to vector<1x16x16xf32>
    %89 = vector.broadcast %87 : f32 to vector<1x16x16xf32>
    %90 = arith.mulf %89, %88 : vector<1x16x16xf32>
    %91 = arith.addf %86, %90 : vector<1x16x16xf32>
    %c15 = arith.constant 15 : index
    %92 = memref.load %arg2[%c15] : memref<25xf32, #tpu.memory_space<smem>>
    %93 = vector.extract_strided_slice %13 {offsets = [0, 3, 0], sizes = [1, 16, 16], strides = [1, 1, 1]} : vector<1x20x20xf32> to vector<1x16x16xf32>
    %94 = vector.broadcast %92 : f32 to vector<1x16x16xf32>
    %95 = arith.mulf %94, %93 : vector<1x16x16xf32>
    %96 = arith.addf %91, %95 : vector<1x16x16xf32>
    %c16 = arith.constant 16 : index
    %97 = memref.load %arg2[%c16] : memref<25xf32, #tpu.memory_space<smem>>
    %98 = vector.extract_strided_slice %13 {offsets = [0, 3, 1], sizes = [1, 16, 16], strides = [1, 1, 1]} : vector<1x20x20xf32> to vector<1x16x16xf32>
    %99 = vector.broadcast %97 : f32 to vector<1x16x16xf32>
    %100 = arith.mulf %99, %98 : vector<1x16x16xf32>
    %101 = arith.addf %96, %100 : vector<1x16x16xf32>
    %c17 = arith.constant 17 : index
    %102 = memref.load %arg2[%c17] : memref<25xf32, #tpu.memory_space<smem>>
    %103 = vector.extract_strided_slice %13 {offsets = [0, 3, 2], sizes = [1, 16, 16], strides = [1, 1, 1]} : vector<1x20x20xf32> to vector<1x16x16xf32>
    %104 = vector.broadcast %102 : f32 to vector<1x16x16xf32>
    %105 = arith.mulf %104, %103 : vector<1x16x16xf32>
    %106 = arith.addf %101, %105 : vector<1x16x16xf32>
    %c18 = arith.constant 18 : index
    %107 = memref.load %arg2[%c18] : memref<25xf32, #tpu.memory_space<smem>>
    %108 = vector.extract_strided_slice %13 {offsets = [0, 3, 3], sizes = [1, 16, 16], strides = [1, 1, 1]} : vector<1x20x20xf32> to vector<1x16x16xf32>
    %109 = vector.broadcast %107 : f32 to vector<1x16x16xf32>
    %110 = arith.mulf %109, %108 : vector<1x16x16xf32>
    %111 = arith.addf %106, %110 : vector<1x16x16xf32>
    %c19 = arith.constant 19 : index
    %112 = memref.load %arg2[%c19] : memref<25xf32, #tpu.memory_space<smem>>
    %113 = vector.extract_strided_slice %13 {offsets = [0, 3, 4], sizes = [1, 16, 16], strides = [1, 1, 1]} : vector<1x20x20xf32> to vector<1x16x16xf32>
    %114 = vector.broadcast %112 : f32 to vector<1x16x16xf32>
    %115 = arith.mulf %114, %113 : vector<1x16x16xf32>
    %116 = arith.addf %111, %115 : vector<1x16x16xf32>
    %c20 = arith.constant 20 : index
    %117 = memref.load %arg2[%c20] : memref<25xf32, #tpu.memory_space<smem>>
    %118 = vector.extract_strided_slice %13 {offsets = [0, 4, 0], sizes = [1, 16, 16], strides = [1, 1, 1]} : vector<1x20x20xf32> to vector<1x16x16xf32>
    %119 = vector.broadcast %117 : f32 to vector<1x16x16xf32>
    %120 = arith.mulf %119, %118 : vector<1x16x16xf32>
    %121 = arith.addf %116, %120 : vector<1x16x16xf32>
    %c21 = arith.constant 21 : index
    %122 = memref.load %arg2[%c21] : memref<25xf32, #tpu.memory_space<smem>>
    %123 = vector.extract_strided_slice %13 {offsets = [0, 4, 1], sizes = [1, 16, 16], strides = [1, 1, 1]} : vector<1x20x20xf32> to vector<1x16x16xf32>
    %124 = vector.broadcast %122 : f32 to vector<1x16x16xf32>
    %125 = arith.mulf %124, %123 : vector<1x16x16xf32>
    %126 = arith.addf %121, %125 : vector<1x16x16xf32>
    %c22 = arith.constant 22 : index
    %127 = memref.load %arg2[%c22] : memref<25xf32, #tpu.memory_space<smem>>
    %128 = vector.extract_strided_slice %13 {offsets = [0, 4, 2], sizes = [1, 16, 16], strides = [1, 1, 1]} : vector<1x20x20xf32> to vector<1x16x16xf32>
    %129 = vector.broadcast %127 : f32 to vector<1x16x16xf32>
    %130 = arith.mulf %129, %128 : vector<1x16x16xf32>
    %131 = arith.addf %126, %130 : vector<1x16x16xf32>
    %c23 = arith.constant 23 : index
    %132 = memref.load %arg2[%c23] : memref<25xf32, #tpu.memory_space<smem>>
    %133 = vector.extract_strided_slice %13 {offsets = [0, 4, 3], sizes = [1, 16, 16], strides = [1, 1, 1]} : vector<1x20x20xf32> to vector<1x16x16xf32>
    %134 = vector.broadcast %132 : f32 to vector<1x16x16xf32>
    %135 = arith.mulf %134, %133 : vector<1x16x16xf32>
    %136 = arith.addf %131, %135 : vector<1x16x16xf32>
    %c24 = arith.constant 24 : index
    %137 = memref.load %arg2[%c24] : memref<25xf32, #tpu.memory_space<smem>>
    %138 = vector.extract_strided_slice %13 {offsets = [0, 4, 4], sizes = [1, 16, 16], strides = [1, 1, 1]} : vector<1x20x20xf32> to vector<1x16x16xf32>
    %139 = vector.broadcast %137 : f32 to vector<1x16x16xf32>
    %140 = arith.mulf %139, %138 : vector<1x16x16xf32>
    %141 = arith.addf %136, %140 : vector<1x16x16xf32>
    %c0_6 = arith.constant 0 : index
    %c0_7 = arith.constant 0 : index
    %c0_8 = arith.constant 0 : index
    %142 = vector.load %arg7[%c0_6, %c0_7, %c0_8] : memref<1x16x16xf32, #tpu.memory_space<vmem>>, vector<1x16x16xf32>
    %143 = vector.extract_strided_slice %142 {offsets = [0, 2, 0], sizes = [1, 1, 16], strides = [1, 1, 1]} : vector<1x16x16xf32> to vector<1x1x16xf32>
    %144 = vector.extract_strided_slice %142 {offsets = [0, 1, 0], sizes = [1, 1, 16], strides = [1, 1, 1]} : vector<1x16x16xf32> to vector<1x1x16xf32>
    %145 = vector.extract_strided_slice %142 {offsets = [0, 14, 0], sizes = [1, 1, 16], strides = [1, 1, 1]} : vector<1x16x16xf32> to vector<1x1x16xf32>
    %146 = vector.extract_strided_slice %142 {offsets = [0, 13, 0], sizes = [1, 1, 16], strides = [1, 1, 1]} : vector<1x16x16xf32> to vector<1x1x16xf32>
    %147 = tpu.concatenate %143, %144, %142, %145, %146 in 1 : vector<1x1x16xf32>, vector<1x1x16xf32>, vector<1x16x16xf32>, vector<1x1x16xf32>, vector<1x1x16xf32> -> vector<1x20x16xf32>
    %148 = vector.extract_strided_slice %147 {offsets = [0, 0, 2], sizes = [1, 20, 1], strides = [1, 1, 1]} : vector<1x20x16xf32> to vector<1x20x1xf32>
    %149 = vector.extract_strided_slice %147 {offsets = [0, 0, 1], sizes = [1, 20, 1], strides = [1, 1, 1]} : vector<1x20x16xf32> to vector<1x20x1xf32>
    %150 = vector.extract_strided_slice %147 {offsets = [0, 0, 14], sizes = [1, 20, 1], strides = [1, 1, 1]} : vector<1x20x16xf32> to vector<1x20x1xf32>
    %151 = vector.extract_strided_slice %147 {offsets = [0, 0, 13], sizes = [1, 20, 1], strides = [1, 1, 1]} : vector<1x20x16xf32> to vector<1x20x1xf32>
    %152 = tpu.concatenate %148, %149, %147, %150, %151 in 2 : vector<1x20x1xf32>, vector<1x20x1xf32>, vector<1x20x16xf32>, vector<1x20x1xf32>, vector<1x20x1xf32> -> vector<1x20x20xf32>
    %cst_9 = arith.constant 0.000000e+00 : f32
    %153 = vector.broadcast %cst_9 : f32 to vector<1x16x16xf32>
    %154 = vector.broadcast %2 : f32 to vector<1x16x16xf32>
    %155 = arith.addf %153, %154 : vector<1x16x16xf32>
    %c0_10 = arith.constant 0 : index
    %156 = memref.load %arg3[%c0_10] : memref<25xf32, #tpu.memory_space<smem>>
    %157 = vector.extract_strided_slice %152 {offsets = [0, 0, 0], sizes = [1, 16, 16], strides = [1, 1, 1]} : vector<1x20x20xf32> to vector<1x16x16xf32>
    %158 = vector.broadcast %156 : f32 to vector<1x16x16xf32>
    %159 = arith.mulf %158, %157 : vector<1x16x16xf32>
    %160 = arith.addf %155, %159 : vector<1x16x16xf32>
    %c1_11 = arith.constant 1 : index
    %161 = memref.load %arg3[%c1_11] : memref<25xf32, #tpu.memory_space<smem>>
    %162 = vector.extract_strided_slice %152 {offsets = [0, 0, 1], sizes = [1, 16, 16], strides = [1, 1, 1]} : vector<1x20x20xf32> to vector<1x16x16xf32>
    %163 = vector.broadcast %161 : f32 to vector<1x16x16xf32>
    %164 = arith.mulf %163, %162 : vector<1x16x16xf32>
    %165 = arith.addf %160, %164 : vector<1x16x16xf32>
    %c2_12 = arith.constant 2 : index
    %166 = memref.load %arg3[%c2_12] : memref<25xf32, #tpu.memory_space<smem>>
    %167 = vector.extract_strided_slice %152 {offsets = [0, 0, 2], sizes = [1, 16, 16], strides = [1, 1, 1]} : vector<1x20x20xf32> to vector<1x16x16xf32>
    %168 = vector.broadcast %166 : f32 to vector<1x16x16xf32>
    %169 = arith.mulf %168, %167 : vector<1x16x16xf32>
    %170 = arith.addf %165, %169 : vector<1x16x16xf32>
    %c3_13 = arith.constant 3 : index
    %171 = memref.load %arg3[%c3_13] : memref<25xf32, #tpu.memory_space<smem>>
    %172 = vector.extract_strided_slice %152 {offsets = [0, 0, 3], sizes = [1, 16, 16], strides = [1, 1, 1]} : vector<1x20x20xf32> to vector<1x16x16xf32>
    %173 = vector.broadcast %171 : f32 to vector<1x16x16xf32>
    %174 = arith.mulf %173, %172 : vector<1x16x16xf32>
    %175 = arith.addf %170, %174 : vector<1x16x16xf32>
    %c4_14 = arith.constant 4 : index
    %176 = memref.load %arg3[%c4_14] : memref<25xf32, #tpu.memory_space<smem>>
    %177 = vector.extract_strided_slice %152 {offsets = [0, 0, 4], sizes = [1, 16, 16], strides = [1, 1, 1]} : vector<1x20x20xf32> to vector<1x16x16xf32>
    %178 = vector.broadcast %176 : f32 to vector<1x16x16xf32>
    %179 = arith.mulf %178, %177 : vector<1x16x16xf32>
    %180 = arith.addf %175, %179 : vector<1x16x16xf32>
    %c5_15 = arith.constant 5 : index
    %181 = memref.load %arg3[%c5_15] : memref<25xf32, #tpu.memory_space<smem>>
    %182 = vector.extract_strided_slice %152 {offsets = [0, 1, 0], sizes = [1, 16, 16], strides = [1, 1, 1]} : vector<1x20x20xf32> to vector<1x16x16xf32>
    %183 = vector.broadcast %181 : f32 to vector<1x16x16xf32>
    %184 = arith.mulf %183, %182 : vector<1x16x16xf32>
    %185 = arith.addf %180, %184 : vector<1x16x16xf32>
    %c6_16 = arith.constant 6 : index
    %186 = memref.load %arg3[%c6_16] : memref<25xf32, #tpu.memory_space<smem>>
    %187 = vector.extract_strided_slice %152 {offsets = [0, 1, 1], sizes = [1, 16, 16], strides = [1, 1, 1]} : vector<1x20x20xf32> to vector<1x16x16xf32>
    %188 = vector.broadcast %186 : f32 to vector<1x16x16xf32>
    %189 = arith.mulf %188, %187 : vector<1x16x16xf32>
    %190 = arith.addf %185, %189 : vector<1x16x16xf32>
    %c7_17 = arith.constant 7 : index
    %191 = memref.load %arg3[%c7_17] : memref<25xf32, #tpu.memory_space<smem>>
    %192 = vector.extract_strided_slice %152 {offsets = [0, 1, 2], sizes = [1, 16, 16], strides = [1, 1, 1]} : vector<1x20x20xf32> to vector<1x16x16xf32>
    %193 = vector.broadcast %191 : f32 to vector<1x16x16xf32>
    %194 = arith.mulf %193, %192 : vector<1x16x16xf32>
    %195 = arith.addf %190, %194 : vector<1x16x16xf32>
    %c8_18 = arith.constant 8 : index
    %196 = memref.load %arg3[%c8_18] : memref<25xf32, #tpu.memory_space<smem>>
    %197 = vector.extract_strided_slice %152 {offsets = [0, 1, 3], sizes = [1, 16, 16], strides = [1, 1, 1]} : vector<1x20x20xf32> to vector<1x16x16xf32>
    %198 = vector.broadcast %196 : f32 to vector<1x16x16xf32>
    %199 = arith.mulf %198, %197 : vector<1x16x16xf32>
    %200 = arith.addf %195, %199 : vector<1x16x16xf32>
    %c9_19 = arith.constant 9 : index
    %201 = memref.load %arg3[%c9_19] : memref<25xf32, #tpu.memory_space<smem>>
    %202 = vector.extract_strided_slice %152 {offsets = [0, 1, 4], sizes = [1, 16, 16], strides = [1, 1, 1]} : vector<1x20x20xf32> to vector<1x16x16xf32>
    %203 = vector.broadcast %201 : f32 to vector<1x16x16xf32>
    %204 = arith.mulf %203, %202 : vector<1x16x16xf32>
    %205 = arith.addf %200, %204 : vector<1x16x16xf32>
    %c10_20 = arith.constant 10 : index
    %206 = memref.load %arg3[%c10_20] : memref<25xf32, #tpu.memory_space<smem>>
    %207 = vector.extract_strided_slice %152 {offsets = [0, 2, 0], sizes = [1, 16, 16], strides = [1, 1, 1]} : vector<1x20x20xf32> to vector<1x16x16xf32>
    %208 = vector.broadcast %206 : f32 to vector<1x16x16xf32>
    %209 = arith.mulf %208, %207 : vector<1x16x16xf32>
    %210 = arith.addf %205, %209 : vector<1x16x16xf32>
    %c11_21 = arith.constant 11 : index
    %211 = memref.load %arg3[%c11_21] : memref<25xf32, #tpu.memory_space<smem>>
    %212 = vector.extract_strided_slice %152 {offsets = [0, 2, 1], sizes = [1, 16, 16], strides = [1, 1, 1]} : vector<1x20x20xf32> to vector<1x16x16xf32>
    %213 = vector.broadcast %211 : f32 to vector<1x16x16xf32>
    %214 = arith.mulf %213, %212 : vector<1x16x16xf32>
    %215 = arith.addf %210, %214 : vector<1x16x16xf32>
    %c12_22 = arith.constant 12 : index
    %216 = memref.load %arg3[%c12_22] : memref<25xf32, #tpu.memory_space<smem>>
    %217 = vector.extract_strided_slice %152 {offsets = [0, 2, 2], sizes = [1, 16, 16], strides = [1, 1, 1]} : vector<1x20x20xf32> to vector<1x16x16xf32>
    %218 = vector.broadcast %216 : f32 to vector<1x16x16xf32>
    %219 = arith.mulf %218, %217 : vector<1x16x16xf32>
    %220 = arith.addf %215, %219 : vector<1x16x16xf32>
    %c13_23 = arith.constant 13 : index
    %221 = memref.load %arg3[%c13_23] : memref<25xf32, #tpu.memory_space<smem>>
    %222 = vector.extract_strided_slice %152 {offsets = [0, 2, 3], sizes = [1, 16, 16], strides = [1, 1, 1]} : vector<1x20x20xf32> to vector<1x16x16xf32>
    %223 = vector.broadcast %221 : f32 to vector<1x16x16xf32>
    %224 = arith.mulf %223, %222 : vector<1x16x16xf32>
    %225 = arith.addf %220, %224 : vector<1x16x16xf32>
    %c14_24 = arith.constant 14 : index
    %226 = memref.load %arg3[%c14_24] : memref<25xf32, #tpu.memory_space<smem>>
    %227 = vector.extract_strided_slice %152 {offsets = [0, 2, 4], sizes = [1, 16, 16], strides = [1, 1, 1]} : vector<1x20x20xf32> to vector<1x16x16xf32>
    %228 = vector.broadcast %226 : f32 to vector<1x16x16xf32>
    %229 = arith.mulf %228, %227 : vector<1x16x16xf32>
    %230 = arith.addf %225, %229 : vector<1x16x16xf32>
    %c15_25 = arith.constant 15 : index
    %231 = memref.load %arg3[%c15_25] : memref<25xf32, #tpu.memory_space<smem>>
    %232 = vector.extract_strided_slice %152 {offsets = [0, 3, 0], sizes = [1, 16, 16], strides = [1, 1, 1]} : vector<1x20x20xf32> to vector<1x16x16xf32>
    %233 = vector.broadcast %231 : f32 to vector<1x16x16xf32>
    %234 = arith.mulf %233, %232 : vector<1x16x16xf32>
    %235 = arith.addf %230, %234 : vector<1x16x16xf32>
    %c16_26 = arith.constant 16 : index
    %236 = memref.load %arg3[%c16_26] : memref<25xf32, #tpu.memory_space<smem>>
    %237 = vector.extract_strided_slice %152 {offsets = [0, 3, 1], sizes = [1, 16, 16], strides = [1, 1, 1]} : vector<1x20x20xf32> to vector<1x16x16xf32>
    %238 = vector.broadcast %236 : f32 to vector<1x16x16xf32>
    %239 = arith.mulf %238, %237 : vector<1x16x16xf32>
    %240 = arith.addf %235, %239 : vector<1x16x16xf32>
    %c17_27 = arith.constant 17 : index
    %241 = memref.load %arg3[%c17_27] : memref<25xf32, #tpu.memory_space<smem>>
    %242 = vector.extract_strided_slice %152 {offsets = [0, 3, 2], sizes = [1, 16, 16], strides = [1, 1, 1]} : vector<1x20x20xf32> to vector<1x16x16xf32>
    %243 = vector.broadcast %241 : f32 to vector<1x16x16xf32>
    %244 = arith.mulf %243, %242 : vector<1x16x16xf32>
    %245 = arith.addf %240, %244 : vector<1x16x16xf32>
    %c18_28 = arith.constant 18 : index
    %246 = memref.load %arg3[%c18_28] : memref<25xf32, #tpu.memory_space<smem>>
    %247 = vector.extract_strided_slice %152 {offsets = [0, 3, 3], sizes = [1, 16, 16], strides = [1, 1, 1]} : vector<1x20x20xf32> to vector<1x16x16xf32>
    %248 = vector.broadcast %246 : f32 to vector<1x16x16xf32>
    %249 = arith.mulf %248, %247 : vector<1x16x16xf32>
    %250 = arith.addf %245, %249 : vector<1x16x16xf32>
    %c19_29 = arith.constant 19 : index
    %251 = memref.load %arg3[%c19_29] : memref<25xf32, #tpu.memory_space<smem>>
    %252 = vector.extract_strided_slice %152 {offsets = [0, 3, 4], sizes = [1, 16, 16], strides = [1, 1, 1]} : vector<1x20x20xf32> to vector<1x16x16xf32>
    %253 = vector.broadcast %251 : f32 to vector<1x16x16xf32>
    %254 = arith.mulf %253, %252 : vector<1x16x16xf32>
    %255 = arith.addf %250, %254 : vector<1x16x16xf32>
    %c20_30 = arith.constant 20 : index
    %256 = memref.load %arg3[%c20_30] : memref<25xf32, #tpu.memory_space<smem>>
    %257 = vector.extract_strided_slice %152 {offsets = [0, 4, 0], sizes = [1, 16, 16], strides = [1, 1, 1]} : vector<1x20x20xf32> to vector<1x16x16xf32>
    %258 = vector.broadcast %256 : f32 to vector<1x16x16xf32>
    %259 = arith.mulf %258, %257 : vector<1x16x16xf32>
    %260 = arith.addf %255, %259 : vector<1x16x16xf32>
    %c21_31 = arith.constant 21 : index
    %261 = memref.load %arg3[%c21_31] : memref<25xf32, #tpu.memory_space<smem>>
    %262 = vector.extract_strided_slice %152 {offsets = [0, 4, 1], sizes = [1, 16, 16], strides = [1, 1, 1]} : vector<1x20x20xf32> to vector<1x16x16xf32>
    %263 = vector.broadcast %261 : f32 to vector<1x16x16xf32>
    %264 = arith.mulf %263, %262 : vector<1x16x16xf32>
    %265 = arith.addf %260, %264 : vector<1x16x16xf32>
    %c22_32 = arith.constant 22 : index
    %266 = memref.load %arg3[%c22_32] : memref<25xf32, #tpu.memory_space<smem>>
    %267 = vector.extract_strided_slice %152 {offsets = [0, 4, 2], sizes = [1, 16, 16], strides = [1, 1, 1]} : vector<1x20x20xf32> to vector<1x16x16xf32>
    %268 = vector.broadcast %266 : f32 to vector<1x16x16xf32>
    %269 = arith.mulf %268, %267 : vector<1x16x16xf32>
    %270 = arith.addf %265, %269 : vector<1x16x16xf32>
    %c23_33 = arith.constant 23 : index
    %271 = memref.load %arg3[%c23_33] : memref<25xf32, #tpu.memory_space<smem>>
    %272 = vector.extract_strided_slice %152 {offsets = [0, 4, 3], sizes = [1, 16, 16], strides = [1, 1, 1]} : vector<1x20x20xf32> to vector<1x16x16xf32>
    %273 = vector.broadcast %271 : f32 to vector<1x16x16xf32>
    %274 = arith.mulf %273, %272 : vector<1x16x16xf32>
    %275 = arith.addf %270, %274 : vector<1x16x16xf32>
    %c24_34 = arith.constant 24 : index
    %276 = memref.load %arg3[%c24_34] : memref<25xf32, #tpu.memory_space<smem>>
    %277 = vector.extract_strided_slice %152 {offsets = [0, 4, 4], sizes = [1, 16, 16], strides = [1, 1, 1]} : vector<1x20x20xf32> to vector<1x16x16xf32>
    %278 = vector.broadcast %276 : f32 to vector<1x16x16xf32>
    %279 = arith.mulf %278, %277 : vector<1x16x16xf32>
    %280 = arith.addf %275, %279 : vector<1x16x16xf32>
    %c0_35 = arith.constant 0 : index
    %c0_36 = arith.constant 0 : index
    %c0_37 = arith.constant 0 : index
    %281 = vector.load %arg4[%c0_35, %c0_36, %c0_37] : memref<1x16x16xf32, #tpu.memory_space<vmem>>, vector<1x16x16xf32>
    %c0_38 = arith.constant 0 : index
    %c0_39 = arith.constant 0 : index
    %c0_40 = arith.constant 0 : index
    %282 = vector.load %arg5[%c0_38, %c0_39, %c0_40] : memref<1x16x16xf32, #tpu.memory_space<vmem>>, vector<1x16x16xf32>
    %283 = arith.subf %282, %141 : vector<1x16x16xf32>
    %284 = arith.subf %283, %280 : vector<1x16x16xf32>
    %285 = vector.broadcast %0 : f32 to vector<1x16x16xf32>
    %286 = arith.mulf %285, %284 : vector<1x16x16xf32>
    %287 = arith.addf %281, %286 : vector<1x16x16xf32>
    %c0_41 = arith.constant 0 : index
    %c0_42 = arith.constant 0 : index
    %c0_43 = arith.constant 0 : index
    %288 = vector.load %arg8[%c0_41, %c0_42, %c0_43] : memref<1x16x16xf32, #tpu.memory_space<vmem>>, vector<1x16x16xf32>
    tpu.vector_store %arg8[%c0_41, %c0_42, %c0_43], %287 {strides = array<i32>} : memref<1x16x16xf32, #tpu.memory_space<vmem>>, vector<1x16x16xf32>,
    return
  }
  func.func @transform_0(%arg0: i32) -> i32 {
    %c0_i32 = arith.constant 0 : i32
    %c0_i32_0 = arith.constant 0 : i32
    return %c0_i32 : i32
  }
  func.func @transform_1(%arg0: i32) -> i32 {
    %c0_i32 = arith.constant 0 : i32
    %c0_i32_0 = arith.constant 0 : i32
    return %c0_i32 : i32
  }
  func.func @transform_2(%arg0: i32) -> i32 {
    %c0_i32 = arith.constant 0 : i32
    %c0_i32_0 = arith.constant 0 : i32
    return %c0_i32 : i32
  }
  func.func @transform_3(%arg0: i32) -> (i32, i32, i32) {
    %c0_i32 = arith.constant 0 : i32
    %c0_i32_0 = arith.constant 0 : i32
    %c0_i32_1 = arith.constant 0 : i32
    return %arg0, %c0_i32, %c0_i32_0 : i32, i32, i32
  }
  func.func @transform_4(%arg0: i32) -> (i32, i32, i32) {
    %c0_i32 = arith.constant 0 : i32
    %c0_i32_0 = arith.constant 0 : i32
    %c0_i32_1 = arith.constant 0 : i32
    return %arg0, %c0_i32, %c0_i32_0 : i32, i32, i32
  }
  func.func @transform_5(%arg0: i32) -> (i32, i32, i32) {
    %c0_i32 = arith.constant 0 : i32
    %c0_i32_0 = arith.constant 0 : i32
    %c0_i32_1 = arith.constant 0 : i32
    return %arg0, %c0_i32, %c0_i32_0 : i32, i32, i32
  }
  func.func @transform_6(%arg0: i32) -> (i32, i32, i32) {
    %c0_i32 = arith.constant 0 : i32
    %c0_i32_0 = arith.constant 0 : i32
    %c0_i32_1 = arith.constant 0 : i32
    return %arg0, %c0_i32, %c0_i32_0 : i32, i32, i32
  }
  func.func @transform_7(%arg0: i32) -> (i32, i32, i32) {
    %c0_i32 = arith.constant 0 : i32
    %c0_i32_0 = arith.constant 0 : i32
    %c0_i32_1 = arith.constant 0 : i32
    return %arg0, %c0_i32, %c0_i32_0 : i32, i32, i32
  }
}

</mosaic_0001>

<llo_original>
// kernel: custom-call.70
$region0: #{custom-call.70}
  %s0 = inlined_call_operand.vmem [shape: f32[256,2], index: 0, kind: input, shape index: {}]
  %s1 = inlined_call_operand.vmem [shape: f32[256,2], index: 1, kind: output, shape index: {0}]
  %s2 = inlined_call_operand.vmem [shape: f32[2], index: 2, kind: output, shape index: {1}]
  %3 = xla_tuple %s1, %s2
  $region1: #{custom-call.70} parent=0
    #allocation0 [shape = 'u8[131072]{0}', space=vmem, size = 0x20000, scoped, tag = 'operand span for operand 0']
    #allocation1 [shape = 'u8[131072]{0}', space=vmem, size = 0x20000, scoped, tag = 'operand span for operand 1']
    #allocation2 [shape = 'u8[4096]{0}', space=vmem, size = 0x1000, scoped, tag = 'operand span for operand 2']
    #allocation3 [shape = 'u8[512]{0}', space=vmem, size = 0x400, scoped, tag = 'packed  for operand 2']
    #allocation4 [shape = 'f32[256,128]{1,0}', space=vmem, size = 0x20000, scoped, tag = 'scratch for Householder reflectors']
    // Predicated region
    $region2: #{custom-call.70} parent=1 // pred_check
      _
    $region3: #{custom-call.70} parent=1 // pred_check_branch
      %5 = sbr.rel (0) target = $region5
    $region4: #{custom-call.70} parent=1 // pred_region
      // Predicated region
      $region6: #{custom-call.70} parent=4 // pred_check
        _
      $region7: #{custom-call.70} parent=4 // pred_check_branch
        %7 = sbr.rel (0) target = $region9
      $region8: #{custom-call.70} parent=4 // pred_region
        // Predicated region
        $region21: #{custom-call.70} parent=8 // pred_check
          _
        $region22: #{custom-call.70} parent=8 // pred_check_branch
          %85 = sbr.rel (0) target = $region24
        $region23: #{custom-call.70} parent=8 // pred_region
          loop: start=0, step=1, limit=1
          $region25: #{custom-call.70} parent=23 // loop_pre_header
            _
          $region26: #{custom-call.70} parent=23 // loop_header
            %s87 = sphi 0, %s91
            %p88 = scmp.ge.s32.totalorder %s87, 1
            %s92 = sphi %s0, %s0
            %s93 = sphi [#allocation0], [#allocation0]
          $region27: #{custom-call.70} parent=23 // loop_header_branch
            %90 = sbr.rel (%p88) target = $region31
          $region28: #{custom-call.70} parent=23 // loop_body
            %v94 = vld [vmem:[%s92] sm:$0xff]
            %95 = vst [vmem:[%s93] sm:$0xff] %v94
            %v96 = vld [vmem:[%s92 + $0x8] sm:$0xff]
            %97 = vst [vmem:[%s93 + $0x8] sm:$0xff] %v96
            %v98 = vld [vmem:[%s92 + $0x10] sm:$0xff]
            %99 = vst [vmem:[%s93 + $0x10] sm:$0xff] %v98
            %v100 = vld [vmem:[%s92 + $0x18] sm:$0xff]
            %101 = vst [vmem:[%s93 + $0x18] sm:$0xff] %v100
            %v102 = vld [vmem:[%s92 + $0x20] sm:$0xff]
            %103 = vst [vmem:[%s93 + $0x20] sm:$0xff] %v102
            %v104 = vld [vmem:[%s92 + $0x28] sm:$0xff]
            %105 = vst [vmem:[%s93 + $0x28] sm:$0xff] %v104
            %v106 = vld [vmem:[%s92 + $0x30] sm:$0xff]
            %107 = vst [vmem:[%s93 + $0x30] sm:$0xff] %v106
            %v108 = vld [vmem:[%s92 + $0x38] sm:$0xff]
            %109 = vst [vmem:[%s93 + $0x38] sm:$0xff] %v108
            %v110 = vld [vmem:[%s92 + $0x40] sm:$0xff]
            %111 = vst [vmem:[%s93 + $0x40] sm:$0xff] %v110
            %v112 = vld [vmem:[%s92 + $0x48] sm:$0xff]
            %113 = vst [vmem:[%s93 + $0x48] sm:$0xff] %v112
            %v114 = vld [vmem:[%s92 + $0x50] sm:$0xff]
            %115 = vst [vmem:[%s93 + $0x50] sm:$0xff] %v114
            %v116 = vld [vmem:[%s92 + $0x58] sm:$0xff]
            %117 = vst [vmem:[%s93 + $0x58] sm:$0xff] %v116
            %v118 = vld [vmem:[%s92 + $0x60] sm:$0xff]
            %119 = vst [vmem:[%s93 + $0x60] sm:$0xff] %v118
            %v120 = vld [vmem:[%s92 + $0x68] sm:$0xff]
            %121 = vst [vmem:[%s93 + $0x68] sm:$0xff] %v120
            %v122 = vld [vmem:[%s92 + $0x70] sm:$0xff]
            %123 = vst [vmem:[%s93 + $0x70] sm:$0xff] %v122
            %v124 = vld [vmem:[%s92 + $0x78] sm:$0xff]
            %125 = vst [vmem:[%s93 + $0x78] sm:$0xff] %v124
            %v126 = vld [vmem:[%s92 + $0x80] sm:$0xff]
            %127 = vst [vmem:[%s93 + $0x80] sm:$0xff] %v126
            %v128 = vld [vmem:[%s92 + $0x88] sm:$0xff]
            %129 = vst [vmem:[%s93 + $0x88] sm:$0xff] %v128
            %v130 = vld [vmem:[%s92 + $0x90] sm:$0xff]
            %131 = vst [vmem:[%s93 + $0x90] sm:$0xff] %v130
            %v132 = vld [vmem:[%s92 + $0x98] sm:$0xff]
            %133 = vst [vmem:[%s93 + $0x98] sm:$0xff] %v132
            %v134 = vld [vmem:[%s92 + $0xa0] sm:$0xff]
            %135 = vst [vmem:[%s93 + $0xa0] sm:$0xff] %v134
            %v136 = vld [vmem:[%s92 + $0xa8] sm:$0xff]
            %137 = vst [vmem:[%s93 + $0xa8] sm:$0xff] %v136
            %v138 = vld [vmem:[%s92 + $0xb0] sm:$0xff]
            %139 = vst [vmem:[%s93 + $0xb0] sm:$0xff] %v138
            %v140 = vld [vmem:[%s92 + $0xb8] sm:$0xff]
            %141 = vst [vmem:[%s93 + $0xb8] sm:$0xff] %v140
            %v142 = vld [vmem:[%s92 + $0xc0] sm:$0xff]
            %143 = vst [vmem:[%s93 + $0xc0] sm:$0xff] %v142
            %v144 = vld [vmem:[%s92 + $0xc8] sm:$0xff]
            %145 = vst [vmem:[%s93 + $0xc8] sm:$0xff] %v144
            %v146 = vld [vmem:[%s92 + $0xd0] sm:$0xff]
            %147 = vst [vmem:[%s93 + $0xd0] sm:$0xff] %v146
            %v148 = vld [vmem:[%s92 + $0xd8] sm:$0xff]
            %149 = vst [vmem:[%s93 + $0xd8] sm:$0xff] %v148
            %v150 = vld [vmem:[%s92 + $0xe0] sm:$0xff]
            %151 = vst [vmem:[%s93 + $0xe0] sm:$0xff] %v150
            %v152 = vld [vmem:[%s92 + $0xe8] sm:$0xff]
            %153 = vst [vmem:[%s93 + $0xe8] sm:$0xff] %v152
            %v154 = vld [vmem:[%s92 + $0xf0] sm:$0xff]
            %155 = vst [vmem:[%s93 + $0xf0] sm:$0xff] %v154
            %v156 = vld [vmem:[%s92 + $0xf8] sm:$0xff]
            %157 = vst [vmem:[%s93 + $0xf8] sm:$0xff] %v156
          $region29: #{custom-call.70} parent=23 // loop_footer
            %s91 = sadd.s32 1, %s87
          $region30: #{custom-call.70} parent=23 // loop_footer_branch
            %86 = sbr.rel target = $region26
          $region31: #{custom-call.70} parent=23 // loop_exit
            _
        $region24: #{custom-call.70} parent=8 // pred_fallthru
          _
        // Predicated region
        $region32: #{custom-call.70} parent=8 // pred_check
          _
        $region33: #{custom-call.70} parent=8 // pred_check_branch
          %159 = sbr.rel target = $region35
        $region34: #{custom-call.70} parent=8 // pred_region
          _
        $region35: #{custom-call.70} parent=8 // pred_fallthru
          _
      $region9: #{custom-call.70} parent=4 // pred_fallthru
        _
      // Predicated region
      $region10: #{custom-call.70} parent=4 // pred_check
        _
      $region11: #{custom-call.70} parent=4 // pred_check_branch
        %9 = sbr.rel target = $region13
      $region12: #{custom-call.70} parent=4 // pred_region
        %s11 = ssub.s32 256, 1
        loop: start=0, step=1, limit=1
        $region14: #{custom-call.70} parent=12 // loop_pre_header
          _
        $region15: #{custom-call.70} parent=12 // loop_header
          %s13 = sphi 0, %s17
          %p14 = scmp.ge.s32.totalorder %s13, 1
          %s18 = sphi %s0, %s0
          %s19 = sphi [#allocation0], [#allocation0]
        $region16: #{custom-call.70} parent=12 // loop_header_branch
          %16 = sbr.rel (%p14) target = $region20
        $region17: #{custom-call.70} parent=12 // loop_body
          %v20 = vld [vmem:[%s18] sm:%s11]
          %21 = vst [vmem:[%s19] sm:%s11] %v20
          %v22 = vld [vmem:[%s18 + $0x8] sm:%s11]
          %23 = vst [vmem:[%s19 + $0x8] sm:%s11] %v22
          %v24 = vld [vmem:[%s18 + $0x10] sm:%s11]
          %25 = vst [vmem:[%s19 + $0x10] sm:%s11] %v24
          %v26 = vld [vmem:[%s18 + $0x18] sm:%s11]
          %27 = vst [vmem:[%s19 + $0x18] sm:%s11] %v26
          %v28 = vld [vmem:[%s18 + $0x20] sm:%s11]
          %29 = vst [vmem:[%s19 + $0x20] sm:%s11] %v28
          %v30 = vld [vmem:[%s18 + $0x28] sm:%s11]
          %31 = vst [vmem:[%s19 + $0x28] sm:%s11] %v30
          %v32 = vld [vmem:[%s18 + $0x30] sm:%s11]
          %33 = vst [vmem:[%s19 + $0x30] sm:%s11] %v32
          %v34 = vld [vmem:[%s18 + $0x38] sm:%s11]
          %35 = vst [vmem:[%s19 + $0x38] sm:%s11] %v34
          %v36 = vld [vmem:[%s18 + $0x40] sm:%s11]
          %37 = vst [vmem:[%s19 + $0x40] sm:%s11] %v36
          %v38 = vld [vmem:[%s18 + $0x48] sm:%s11]
          %39 = vst [vmem:[%s19 + $0x48] sm:%s11] %v38
          %v40 = vld [vmem:[%s18 + $0x50] sm:%s11]
          %41 = vst [vmem:[%s19 + $0x50] sm:%s11] %v40
          %v42 = vld [vmem:[%s18 + $0x58] sm:%s11]
          %43 = vst [vmem:[%s19 + $0x58] sm:%s11] %v42
          %v44 = vld [vmem:[%s18 + $0x60] sm:%s11]
          %45 = vst [vmem:[%s19 + $0x60] sm:%s11] %v44
          %v46 = vld [vmem:[%s18 + $0x68] sm:%s11]
          %47 = vst [vmem:[%s19 + $0x68] sm:%s11] %v46
          %v48 = vld [vmem:[%s18 + $0x70] sm:%s11]
          %49 = vst [vmem:[%s19 + $0x70] sm:%s11] %v48
          %v50 = vld [vmem:[%s18 + $0x78] sm:%s11]
          %51 = vst [vmem:[%s19 + $0x78] sm:%s11] %v50
          %v52 = vld [vmem:[%s18 + $0x80] sm:%s11]
          %53 = vst [vmem:[%s19 + $0x80] sm:%s11] %v52
          %v54 = vld [vmem:[%s18 + $0x88] sm:%s11]
          %55 = vst [vmem:[%s19 + $0x88] sm:%s11] %v54
          %v56 = vld [vmem:[%s18 + $0x90] sm:%s11]
          %57 = vst [vmem:[%s19 + $0x90] sm:%s11] %v56
          %v58 = vld [vmem:[%s18 + $0x98] sm:%s11]
          %59 = vst [vmem:[%s19 + $0x98] sm:%s11] %v58
          %v60 = vld [vmem:[%s18 + $0xa0] sm:%s11]
          %61 = vst [vmem:[%s19 + $0xa0] sm:%s11] %v60
          %v62 = vld [vmem:[%s18 + $0xa8] sm:%s11]
          %63 = vst [vmem:[%s19 + $0xa8] sm:%s11] %v62
          %v64 = vld [vmem:[%s18 + $0xb0] sm:%s11]
          %65 = vst [vmem:[%s19 + $0xb0] sm:%s11] %v64
          %v66 = vld [vmem:[%s18 + $0xb8] sm:%s11]
          %67 = vst [vmem:[%s19 + $0xb8] sm:%s11] %v66
          %v68 = vld [vmem:[%s18 + $0xc0] sm:%s11]
          %69 = vst [vmem:[%s19 + $0xc0] sm:%s11] %v68
          %v70 = vld [vmem:[%s18 + $0xc8] sm:%s11]
          %71 = vst [vmem:[%s19 + $0xc8] sm:%s11] %v70
          %v72 = vld [vmem:[%s18 + $0xd0] sm:%s11]
          %73 = vst [vmem:[%s19 + $0xd0] sm:%s11] %v72
          %v74 = vld [vmem:[%s18 + $0xd8] sm:%s11]
          %75 = vst [vmem:[%s19 + $0xd8] sm:%s11] %v74
          %v76 = vld [vmem:[%s18 + $0xe0] sm:%s11]
          %77 = vst [vmem:[%s19 + $0xe0] sm:%s11] %v76
          %v78 = vld [vmem:[%s18 + $0xe8] sm:%s11]
          %79 = vst [vmem:[%s19 + $0xe8] sm:%s11] %v78
          %v80 = vld [vmem:[%s18 + $0xf0] sm:%s11]
          %81 = vst [vmem:[%s19 + $0xf0] sm:%s11] %v80
          %v82 = vld [vmem:[%s18 + $0xf8] sm:%s11]
          %83 = vst [vmem:[%s19 + $0xf8] sm:%s11] %v82
        $region18: #{custom-call.70} parent=12 // loop_footer
          %s17 = sadd.s32 1, %s13
        $region19: #{custom-call.70} parent=12 // loop_footer_branch
          %12 = sbr.rel target = $region15
        $region20: #{custom-call.70} parent=12 // loop_exit
          _
      $region13: #{custom-call.70} parent=4 // pred_fallthru
        _
    $region5: #{custom-call.70} parent=1 // pred_fallthru
      _
    %160 = vnop
    %v161 = vld [vmem:[#allocation0] sm:$0xff]
    %162 = vst [vmem:[#allocation1] sm:$0xff] %v161
    %s163 = scalar_lea.vmem [#allocation1], 8
    %s164 = scalar_lea.vmem [#allocation0], 8
    %v165 = vld [vmem:[%s164] sm:$0xff]
    %166 = vst [vmem:[%s163] sm:$0xff] %v165
    %s167 = scalar_lea.vmem [#allocation1], 16
    %s168 = scalar_lea.vmem [#allocation0], 16
    %v169 = vld [vmem:[%s168] sm:$0xff]
    %170 = vst [vmem:[%s167] sm:$0xff] %v169
    %s171 = scalar_lea.vmem [#allocation1], 24
    %s172 = scalar_lea.vmem [#allocation0], 24
    %v173 = vld [vmem:[%s172] sm:$0xff]
    %174 = vst [vmem:[%s171] sm:$0xff] %v173
    %s175 = scalar_lea.vmem [#allocation1], 32
    %s176 = scalar_lea.vmem [#allocation0], 32
    %v177 = vld [vmem:[%s176] sm:$0xff]
    %178 = vst [vmem:[%s175] sm:$0xff] %v177
    %s179 = scalar_lea.vmem [#allocation1], 40
    %s180 = scalar_lea.vmem [#allocation0], 40
    %v181 = vld [vmem:[%s180] sm:$0xff]
    %182 = vst [vmem:[%s179] sm:$0xff] %v181
    %s183 = scalar_lea.vmem [#allocation1], 48
    %s184 = scalar_lea.vmem [#allocation0], 48
    %v185 = vld [vmem:[%s184] sm:$0xff]
    %186 = vst [vmem:[%s183] sm:$0xff] %v185
    %s187 = scalar_lea.vmem [#allocation1], 56
    %s188 = scalar_lea.vmem [#allocation0], 56
    %v189 = vld [vmem:[%s188] sm:$0xff]
    %190 = vst [vmem:[%s187] sm:$0xff] %v189
    %s191 = scalar_lea.vmem [#allocation1], 64
    %s192 = scalar_lea.vmem [#allocation0], 64
    %v193 = vld [vmem:[%s192] sm:$0xff]
    %194 = vst [vmem:[%s191] sm:$0xff] %v193
    %s195 = scalar_lea.vmem [#allocation1], 72
    %s196 = scalar_lea.vmem [#allocation0], 72
    %v197 = vld [vmem:[%s196] sm:$0xff]
    %198 = vst [vmem:[%s195] sm:$0xff] %v197
    %s199 = scalar_lea.vmem [#allocation1], 80
    %s200 = scalar_lea.vmem [#allocation0], 80
    %v201 = vld [vmem:[%s200] sm:$0xff]
    %202 = vst [vmem:[%s199] sm:$0xff] %v201
    %s203 = scalar_lea.vmem [#allocation1], 88
    %s204 = scalar_lea.vmem [#allocation0], 88
    %v205 = vld [vmem:[%s204] sm:$0xff]
    %206 = vst [vmem:[%s203] sm:$0xff] %v205
    %s207 = scalar_lea.vmem [#allocation1], 96
    %s208 = scalar_lea.vmem [#allocation0], 96
    %v209 = vld [vmem:[%s208] sm:$0xff]
    %210 = vst [vmem:[%s207] sm:$0xff] %v209
    %s211 = scalar_lea.vmem [#allocation1], 104
    %s212 = scalar_lea.vmem [#allocation0], 104
    %v213 = vld [vmem:[%s212] sm:$0xff]
    %214 = vst [vmem:[%s211] sm:$0xff] %v213
    %s215 = scalar_lea.vmem [#allocation1], 112
    %s216 = scalar_lea.vmem [#allocation0], 112
    %v217 = vld [vmem:[%s216] sm:$0xff]
    %218 = vst [vmem:[%s215] sm:$0xff] %v217
    %s219 = scalar_lea.vmem [#allocation1], 120
    %s220 = scalar_lea.vmem [#allocation0], 120
    %v221 = vld [vmem:[%s220] sm:$0xff]
    %222 = vst [vmem:[%s219] sm:$0xff] %v221
    %s223 = scalar_lea.vmem [#allocation1], 128
    %s224 = scalar_lea.vmem [#allocation0], 128
    %v225 = vld [vmem:[%s224] sm:$0xff]
    %226 = vst [vmem:[%s223] sm:$0xff] %v225
    %s227 = scalar_lea.vmem [#allocation1], 136
    %s228 = scalar_lea.vmem [#allocation0], 136
    %v229 = vld [vmem:[%s228] sm:$0xff]
    %230 = vst [vmem:[%s227] sm:$0xff] %v229
    %s231 = scalar_lea.vmem [#allocation1], 144
    %s232 = scalar_lea.vmem [#allocation0], 144
    %v233 = vld [vmem:[%s232] sm:$0xff]
    %234 = vst [vmem:[%s231] sm:$0xff] %v233
    %s235 = scalar_lea.vmem [#allocation1], 152
    %s236 = scalar_lea.vmem [#allocation0], 152
    %v237 = vld [vmem:[%s236] sm:$0xff]
    %238 = vst [vmem:[%s235] sm:$0xff] %v237
    %s239 = scalar_lea.vmem [#allocation1], 160
    %s240 = scalar_lea.vmem [#allocation0], 160
    %v241 = vld [vmem:[%s240] sm:$0xff]
    %242 = vst [vmem:[%s239] sm:$0xff] %v241
    %s243 = scalar_lea.vmem [#allocation1], 168
    %s244 = scalar_lea.vmem [#allocation0], 168
    %v245 = vld [vmem:[%s244] sm:$0xff]
    %246 = vst [vmem:[%s243] sm:$0xff] %v245
    %s247 = scalar_lea.vmem [#allocation1], 176
    %s248 = scalar_lea.vmem [#allocation0], 176
    %v249 = vld [vmem:[%s248] sm:$0xff]
    %250 = vst [vmem:[%s247] sm:$0xff] %v249
    %s251 = scalar_lea.vmem [#allocation1], 184
    %s252 = scalar_lea.vmem [#allocation0], 184
    %v253 = vld [vmem:[%s252] sm:$0xff]
    %254 = vst [vmem:[%s251] sm:$0xff] %v253
    %s255 = scalar_lea.vmem [#allocation1], 192
    %s256 = scalar_lea.vmem [#allocation0], 192
    %v257 = vld [vmem:[%s256] sm:$0xff]
    %258 = vst [vmem:[%s255] sm:$0xff] %v257
    %s259 = scalar_lea.vmem [#allocation1], 200
    %s260 = scalar_lea.vmem [#allocation0], 200
    %v261 = vld [vmem:[%s260] sm:$0xff]
    %262 = vst [vmem:[%s259] sm:$0xff] %v261
    %s263 = scalar_lea.vmem [#allocation1], 208
    %s264 = scalar_lea.vmem [#allocation0], 208
    %v265 = vld [vmem:[%s264] sm:$0xff]
    %266 = vst [vmem:[%s263] sm:$0xff] %v265
    %s267 = scalar_lea.vmem [#allocation1], 216
    %s268 = scalar_lea.vmem [#allocation0], 216
    %v269 = vld [vmem:[%s268] sm:$0xff]
    %270 = vst [vmem:[%s267] sm:$0xff] %v269
    %s271 = scalar_lea.vmem [#allocation1], 224
    %s272 = scalar_lea.vmem [#allocation0], 224
    %v273 = vld [vmem:[%s272] sm:$0xff]
    %274 = vst [vmem:[%s271] sm:$0xff] %v273
    %s275 = scalar_lea.vmem [#allocation1], 232
    %s276 = scalar_lea.vmem [#allocation0], 232
    %v277 = vld [vmem:[%s276] sm:$0xff]
    %278 = vst [vmem:[%s275] sm:$0xff] %v277
    %s279 = scalar_lea.vmem [#allocation1], 240
    %s280 = scalar_lea.vmem [#allocation0], 240
    %v281 = vld [vmem:[%s280] sm:$0xff]
    %282 = vst [vmem:[%s279] sm:$0xff] %v281
    %s283 = scalar_lea.vmem [#allocation1], 248
    %s284 = scalar_lea.vmem [#allocation0], 248
    %v285 = vld [vmem:[%s284] sm:$0xff]
    %286 = vst [vmem:[%s283] sm:$0xff] %v285
    %287 = vst [vmem:[#allocation2] sm:$0x1] 0.0
    loop: start=0, step=1, limit=2
    $region36: #{custom-call.70} parent=1 // loop_pre_header
      _
    $region37: #{custom-call.70} parent=1 // loop_header
      %s289 = sphi 0, %s293
      %p290 = scmp.ge.s32.totalorder %s289, 2
    $region38: #{custom-call.70} parent=1 // loop_header_branch
      %292 = sbr.rel (%p290) target = $region42
    $region39: #{custom-call.70} parent=1 // loop_body
      %v294 = vld [vmem:[#allocation1] sm:$0xff]
      %v295 = vlaneseq
      %v296 = vshrl.u32 %v295, 7
      %v298 = vstv %s289
      %vm299 = vcmp.gt.s32.totalorder %v296, %v298
      %v300 = vsel %vm299, %v294, 0.0
      %v301 = vmul.f32 %v300, %v300
      %s302 = scalar_lea.vmem [#allocation1], 8
      %v303 = vld [vmem:[%s302] sm:$0xff]
      %v304 = vlaneseq
      %v305 = vshrl.u32 %v304, 7
      %v306 = vadd.s32 %v305, 8
      %v307 = vstv %s289
      %vm308 = vcmp.gt.s32.totalorder %v306, %v307
      %v309 = vsel %vm308, %v303, 0.0
      %v310 = vmul.f32 %v309, %v309
      %v311 = vadd.f32 %v301, %v310
      %s312 = scalar_lea.vmem [#allocation1], 16
      %v313 = vld [vmem:[%s312] sm:$0xff]
      %v314 = vlaneseq
      %v315 = vshrl.u32 %v314, 7
      %v316 = vadd.s32 %v315, 16
      %v317 = vstv %s289
      %vm318 = vcmp.gt.s32.totalorder %v316, %v317
      %v319 = vsel %vm318, %v313, 0.0
      %v320 = vmul.f32 %v319, %v319
      %v321 = vadd.f32 %v311, %v320
      %s322 = scalar_lea.vmem [#allocation1], 24
      %v323 = vld [vmem:[%s322] sm:$0xff]
      %v324 = vlaneseq
      %v325 = vshrl.u32 %v324, 7
      %v326 = vadd.s32 %v325, 24
      %v327 = vstv %s289
      %vm328 = vcmp.gt.s32.totalorder %v326, %v327
      %v329 = vsel %vm328, %v323, 0.0
      %v330 = vmul.f32 %v329, %v329
      %v331 = vadd.f32 %v321, %v330
      %s332 = scalar_lea.vmem [#allocation1], 32
      %v333 = vld [vmem:[%s332] sm:$0xff]
      %v334 = vlaneseq
      %v335 = vshrl.u32 %v334, 7
      %v336 = vadd.s32 %v335, 32
      %v337 = vstv %s289
      %vm338 = vcmp.gt.s32.totalorder %v336, %v337
      %v339 = vsel %vm338, %v333, 0.0
      %v340 = vmul.f32 %v339, %v339
      %v341 = vadd.f32 %v331, %v340
      %s342 = scalar_lea.vmem [#allocation1], 40
      %v343 = vld [vmem:[%s342] sm:$0xff]
      %v344 = vlaneseq
      %v345 = vshrl.u32 %v344, 7
      %v346 = vadd.s32 %v345, 40
      %v347 = vstv %s289
      %vm348 = vcmp.gt.s32.totalorder %v346, %v347
      %v349 = vsel %vm348, %v343, 0.0
      %v350 = vmul.f32 %v349, %v349
      %v351 = vadd.f32 %v341, %v350
      %s352 = scalar_lea.vmem [#allocation1], 48
      %v353 = vld [vmem:[%s352] sm:$0xff]
      %v354 = vlaneseq
      %v355 = vshrl.u32 %v354, 7
      %v356 = vadd.s32 %v355, 48
      %v357 = vstv %s289
      %vm358 = vcmp.gt.s32.totalorder %v356, %v357
      %v359 = vsel %vm358, %v353, 0.0
      %v360 = vmul.f32 %v359, %v359
      %v361 = vadd.f32 %v351, %v360
      %s362 = scalar_lea.vmem [#allocation1], 56
      %v363 = vld [vmem:[%s362] sm:$0xff]
      %v364 = vlaneseq
      %v365 = vshrl.u32 %v364, 7
      %v366 = vadd.s32 %v365, 56
      %v367 = vstv %s289
      %vm368 = vcmp.gt.s32.totalorder %v366, %v367
      %v369 = vsel %vm368, %v363, 0.0
      %v370 = vmul.f32 %v369, %v369
      %v371 = vadd.f32 %v361, %v370
      %s372 = scalar_lea.vmem [#allocation1], 64
      %v373 = vld [vmem:[%s372] sm:$0xff]
      %v374 = vlaneseq
      %v375 = vshrl.u32 %v374, 7
      %v376 = vadd.s32 %v375, 64
      %v377 = vstv %s289
      %vm378 = vcmp.gt.s32.totalorder %v376, %v377
      %v379 = vsel %vm378, %v373, 0.0
      %v380 = vmul.f32 %v379, %v379
      %v381 = vadd.f32 %v371, %v380
      %s382 = scalar_lea.vmem [#allocation1], 72
      %v383 = vld [vmem:[%s382] sm:$0xff]
      %v384 = vlaneseq
      %v385 = vshrl.u32 %v384, 7
      %v386 = vadd.s32 %v385, 72
      %v387 = vstv %s289
      %vm388 = vcmp.gt.s32.totalorder %v386, %v387
      %v389 = vsel %vm388, %v383, 0.0
      %v390 = vmul.f32 %v389, %v389
      %v391 = vadd.f32 %v381, %v390
      %s392 = scalar_lea.vmem [#allocation1], 80
      %v393 = vld [vmem:[%s392] sm:$0xff]
      %v394 = vlaneseq
      %v395 = vshrl.u32 %v394, 7
      %v396 = vadd.s32 %v395, 80
      %v397 = vstv %s289
      %vm398 = vcmp.gt.s32.totalorder %v396, %v397
      %v399 = vsel %vm398, %v393, 0.0
      %v400 = vmul.f32 %v399, %v399
      %v401 = vadd.f32 %v391, %v400
      %s402 = scalar_lea.vmem [#allocation1], 88
      %v403 = vld [vmem:[%s402] sm:$0xff]
      %v404 = vlaneseq
      %v405 = vshrl.u32 %v404, 7
      %v406 = vadd.s32 %v405, 88
      %v407 = vstv %s289
      %vm408 = vcmp.gt.s32.totalorder %v406, %v407
      %v409 = vsel %vm408, %v403, 0.0
      %v410 = vmul.f32 %v409, %v409
      %v411 = vadd.f32 %v401, %v410
      %s412 = scalar_lea.vmem [#allocation1], 96
      %v413 = vld [vmem:[%s412] sm:$0xff]
      %v414 = vlaneseq
      %v415 = vshrl.u32 %v414, 7
      %v416 = vadd.s32 %v415, 96
      %v417 = vstv %s289
      %vm418 = vcmp.gt.s32.totalorder %v416, %v417
      %v419 = vsel %vm418, %v413, 0.0
      %v420 = vmul.f32 %v419, %v419
      %v421 = vadd.f32 %v411, %v420
      %s422 = scalar_lea.vmem [#allocation1], 104
      %v423 = vld [vmem:[%s422] sm:$0xff]
      %v424 = vlaneseq
      %v425 = vshrl.u32 %v424, 7
      %v426 = vadd.s32 %v425, 104
      %v427 = vstv %s289
      %vm428 = vcmp.gt.s32.totalorder %v426, %v427
      %v429 = vsel %vm428, %v423, 0.0
      %v430 = vmul.f32 %v429, %v429
      %v431 = vadd.f32 %v421, %v430
      %s432 = scalar_lea.vmem [#allocation1], 112
      %v433 = vld [vmem:[%s432] sm:$0xff]
      %v434 = vlaneseq
      %v435 = vshrl.u32 %v434, 7
      %v436 = vadd.s32 %v435, 112
      %v437 = vstv %s289
      %vm438 = vcmp.gt.s32.totalorder %v436, %v437
      %v439 = vsel %vm438, %v433, 0.0
      %v440 = vmul.f32 %v439, %v439
      %v441 = vadd.f32 %v431, %v440
      %s442 = scalar_lea.vmem [#allocation1], 120
      %v443 = vld [vmem:[%s442] sm:$0xff]
      %v444 = vlaneseq
      %v445 = vshrl.u32 %v444, 7
      %v446 = vadd.s32 %v445, 120
      %v447 = vstv %s289
      %vm448 = vcmp.gt.s32.totalorder %v446, %v447
      %v449 = vsel %vm448, %v443, 0.0
      %v450 = vmul.f32 %v449, %v449
      %v451 = vadd.f32 %v441, %v450
      %s452 = scalar_lea.vmem [#allocation1], 128
      %v453 = vld [vmem:[%s452] sm:$0xff]
      %v454 = vlaneseq
      %v455 = vshrl.u32 %v454, 7
      %v456 = vadd.s32 %v455, 128
      %v457 = vstv %s289
      %vm458 = vcmp.gt.s32.totalorder %v456, %v457
      %v459 = vsel %vm458, %v453, 0.0
      %v460 = vmul.f32 %v459, %v459
      %v461 = vadd.f32 %v451, %v460
      %s462 = scalar_lea.vmem [#allocation1], 136
      %v463 = vld [vmem:[%s462] sm:$0xff]
      %v464 = vlaneseq
      %v465 = vshrl.u32 %v464, 7
      %v466 = vadd.s32 %v465, 136
      %v467 = vstv %s289
      %vm468 = vcmp.gt.s32.totalorder %v466, %v467
      %v469 = vsel %vm468, %v463, 0.0
      %v470 = vmul.f32 %v469, %v469
      %v471 = vadd.f32 %v461, %v470
      %s472 = scalar_lea.vmem [#allocation1], 144
      %v473 = vld [vmem:[%s472] sm:$0xff]
      %v474 = vlaneseq
      %v475 = vshrl.u32 %v474, 7
      %v476 = vadd.s32 %v475, 144
      %v477 = vstv %s289
      %vm478 = vcmp.gt.s32.totalorder %v476, %v477
      %v479 = vsel %vm478, %v473, 0.0
      %v480 = vmul.f32 %v479, %v479
      %v481 = vadd.f32 %v471, %v480
      %s482 = scalar_lea.vmem [#allocation1], 152
      %v483 = vld [vmem:[%s482] sm:$0xff]
      %v484 = vlaneseq
      %v485 = vshrl.u32 %v484, 7
      %v486 = vadd.s32 %v485, 152
      %v487 = vstv %s289
      %vm488 = vcmp.gt.s32.totalorder %v486, %v487
      %v489 = vsel %vm488, %v483, 0.0
      %v490 = vmul.f32 %v489, %v489
      %v491 = vadd.f32 %v481, %v490
      %s492 = scalar_lea.vmem [#allocation1], 160
      %v493 = vld [vmem:[%s492] sm:$0xff]
      %v494 = vlaneseq
      %v495 = vshrl.u32 %v494, 7
      %v496 = vadd.s32 %v495, 160
      %v497 = vstv %s289
      %vm498 = vcmp.gt.s32.totalorder %v496, %v497
      %v499 = vsel %vm498, %v493, 0.0
      %v500 = vmul.f32 %v499, %v499
      %v501 = vadd.f32 %v491, %v500
      %s502 = scalar_lea.vmem [#allocation1], 168
      %v503 = vld [vmem:[%s502] sm:$0xff]
      %v504 = vlaneseq
      %v505 = vshrl.u32 %v504, 7
      %v506 = vadd.s32 %v505, 168
      %v507 = vstv %s289
      %vm508 = vcmp.gt.s32.totalorder %v506, %v507
      %v509 = vsel %vm508, %v503, 0.0
      %v510 = vmul.f32 %v509, %v509
      %v511 = vadd.f32 %v501, %v510
      %s512 = scalar_lea.vmem [#allocation1], 176
      %v513 = vld [vmem:[%s512] sm:$0xff]
      %v514 = vlaneseq
      %v515 = vshrl.u32 %v514, 7
      %v516 = vadd.s32 %v515, 176
      %v517 = vstv %s289
      %vm518 = vcmp.gt.s32.totalorder %v516, %v517
      %v519 = vsel %vm518, %v513, 0.0
      %v520 = vmul.f32 %v519, %v519
      %v521 = vadd.f32 %v511, %v520
      %s522 = scalar_lea.vmem [#allocation1], 184
      %v523 = vld [vmem:[%s522] sm:$0xff]
      %v524 = vlaneseq
      %v525 = vshrl.u32 %v524, 7
      %v526 = vadd.s32 %v525, 184
      %v527 = vstv %s289
      %vm528 = vcmp.gt.s32.totalorder %v526, %v527
      %v529 = vsel %vm528, %v523, 0.0
      %v530 = vmul.f32 %v529, %v529
      %v531 = vadd.f32 %v521, %v530
      %s532 = scalar_lea.vmem [#allocation1], 192
      %v533 = vld [vmem:[%s532] sm:$0xff]
      %v534 = vlaneseq
      %v535 = vshrl.u32 %v534, 7
      %v536 = vadd.s32 %v535, 192
      %v537 = vstv %s289
      %vm538 = vcmp.gt.s32.totalorder %v536, %v537
      %v539 = vsel %vm538, %v533, 0.0
      %v540 = vmul.f32 %v539, %v539
      %v541 = vadd.f32 %v531, %v540
      %s542 = scalar_lea.vmem [#allocation1], 200
      %v543 = vld [vmem:[%s542] sm:$0xff]
      %v544 = vlaneseq
      %v545 = vshrl.u32 %v544, 7
      %v546 = vadd.s32 %v545, 200
      %v547 = vstv %s289
      %vm548 = vcmp.gt.s32.totalorder %v546, %v547
      %v549 = vsel %vm548, %v543, 0.0
      %v550 = vmul.f32 %v549, %v549
      %v551 = vadd.f32 %v541, %v550
      %s552 = scalar_lea.vmem [#allocation1], 208
      %v553 = vld [vmem:[%s552] sm:$0xff]
      %v554 = vlaneseq
      %v555 = vshrl.u32 %v554, 7
      %v556 = vadd.s32 %v555, 208
      %v557 = vstv %s289
      %vm558 = vcmp.gt.s32.totalorder %v556, %v557
      %v559 = vsel %vm558, %v553, 0.0
      %v560 = vmul.f32 %v559, %v559
      %v561 = vadd.f32 %v551, %v560
      %s562 = scalar_lea.vmem [#allocation1], 216
      %v563 = vld [vmem:[%s562] sm:$0xff]
      %v564 = vlaneseq
      %v565 = vshrl.u32 %v564, 7
      %v566 = vadd.s32 %v565, 216
      %v567 = vstv %s289
      %vm568 = vcmp.gt.s32.totalorder %v566, %v567
      %v569 = vsel %vm568, %v563, 0.0
      %v570 = vmul.f32 %v569, %v569
      %v571 = vadd.f32 %v561, %v570
      %s572 = scalar_lea.vmem [#allocation1], 224
      %v573 = vld [vmem:[%s572] sm:$0xff]
      %v574 = vlaneseq
      %v575 = vshrl.u32 %v574, 7
      %v576 = vadd.s32 %v575, 224
      %v577 = vstv %s289
      %vm578 = vcmp.gt.s32.totalorder %v576, %v577
      %v579 = vsel %vm578, %v573, 0.0
      %v580 = vmul.f32 %v579, %v579
      %v581 = vadd.f32 %v571, %v580
      %s582 = scalar_lea.vmem [#allocation1], 232
      %v583 = vld [vmem:[%s582] sm:$0xff]
      %v584 = vlaneseq
      %v585 = vshrl.u32 %v584, 7
      %v586 = vadd.s32 %v585, 232
      %v587 = vstv %s289
      %vm588 = vcmp.gt.s32.totalorder %v586, %v587
      %v589 = vsel %vm588, %v583, 0.0
      %v590 = vmul.f32 %v589, %v589
      %v591 = vadd.f32 %v581, %v590
      %s592 = scalar_lea.vmem [#allocation1], 240
      %v593 = vld [vmem:[%s592] sm:$0xff]
      %v594 = vlaneseq
      %v595 = vshrl.u32 %v594, 7
      %v596 = vadd.s32 %v595, 240
      %v597 = vstv %s289
      %vm598 = vcmp.gt.s32.totalorder %v596, %v597
      %v599 = vsel %vm598, %v593, 0.0
      %v600 = vmul.f32 %v599, %v599
      %v601 = vadd.f32 %v591, %v600
      %s602 = scalar_lea.vmem [#allocation1], 248
      %v603 = vld [vmem:[%s602] sm:$0xff]
      %v604 = vlaneseq
      %v605 = vshrl.u32 %v604, 7
      %v606 = vadd.s32 %v605, 248
      %v607 = vstv %s289
      %vm608 = vcmp.gt.s32.totalorder %v606, %v607
      %vm609 = vcmp.lt.s32.totalorder %v606, 256
      %vm610 = vmand %vm608, %vm609
      %v611 = vsel %vm610, %v603, 0.0
      %v612 = vmul.f32 %v611, %v611
      %v613 = vadd.f32 %v601, %v612
      %v614 = vrot.slane %v613, 4
      %v615 = vadd.f32 %v613, %v614
      %v616 = vrot.slane %v615, 2
      %v617 = vadd.f32 %v615, %v616
      %v618 = vrot.slane %v617, 1
      %v619 = vadd.f32 %v617, %v618
      %v620 = vrsqrt.pop %v619
      %v621 = vmul.f32 %v619, %v620
      %vm622 = vcmp.eq.f32.partialorder %v619, inf
      %v623 = vsel %vm622, %v619, %v621
      %vm624 = vcmp.eq.f32.partialorder %v619, 0.0
      %v625 = vand.u32 %v619, 2147483648
      %v626 = vsel %vm624, %v625, %v623
      %vm627 = vcmp.eq.f32.partialorder %v619, 0.0
      %s628 = sshrl.u32 %s289, 3
      %s629 = sand.u32 %s289, 7
      %s630 = smul.addr %s628, 8
      %s631 = sadd.s32 %s629, %s630
      %s632 = scalar_lea.vmem [#allocation1], %s631
      %v633 = vld [vmem:[%s632] ss:$0 sm:$0xff]
      %v634 = vand.u32 2147483647, %v633
      %v635 = vmax.f32 %v634, 0.0
      %v636 = vand.u32 2147483647, %v626
      %v637 = vmax.f32 %v635, %v636
      %v638 = vrcp.pop %v637
      %v639 = vmul.f32 %v634, %v638
      %v640 = vmul.f32 %v639, %v639
      %v641 = vrcp.pop %v637
      %v642 = vmul.f32 0.0, %v641
      %v643 = vmul.f32 %v642, %v642
      %v644 = vadd.f32 %v640, %v643
      %v645 = vrcp.pop %v637
      %v646 = vmul.f32 %v636, %v645
      %v647 = vmul.f32 %v646, %v646
      %v648 = vadd.f32 %v644, %v647
      %vm649 = vcmp.eq.f32.partialorder %v637, 0.0
      %v650 = vrsqrt.pop %v648
      %v651 = vmul.f32 %v648, %v650
      %vm652 = vcmp.eq.f32.partialorder %v648, inf
      %v653 = vsel %vm652, %v648, %v651
      %vm654 = vcmp.eq.f32.partialorder %v648, 0.0
      %v655 = vand.u32 %v648, 2147483648
      %v656 = vsel %vm654, %v655, %v653
      %v657 = vmul.f32 %v637, %v656
      %v658 = vsel %vm649, 0.0, %v657
      %vm659 = vcmp.lt.f32.partialorder %v633, 0.0
      %v660 = vxor.u32 %v658, 2147483648
      %v661 = vsel %vm659, %v658, %v660
      %v662 = vsub.f32 %v661, %v633
      %v663 = vrcp.pop %v661
      %v664 = vmul.f32 %v662, %v663
      %v665 = vsel %vm627, %v633, %v661
      %v666 = vsel %vm627, 0.0, %v664
      %v667 = vsub.f32 %v633, %v665
      %s668 = smov [#allocation1]
      %v669 = vlaneseq
      %v670 = vshrl.u32 %v669, 7
      %v671 = vmov %v670
      %v672 = vld [vmem:[%s668] sm:$0xff]
      %v674 = vstv %s289
      %vm675 = vcmp.gt.s32.totalorder %v671, %v674
      %v676 = vsel %vm675, %v672, 0.0
      %v677 = vrcp.pop %v667
      %v678 = vmul.f32 %v676, %v677
      %v679 = vsel %vm627, 0.0, %v678
      %v680 = vstv %s289
      %v681 = vlaneseq
      %v682 = vand.u32 %v681, 127
      %vm683 = vcmp.eq.s32.totalorder %v682, %v680
      %v684 = vsel %vm683, %v679, 0.0
      %685 = vadd.xlane.f32.xlu0 %v684
      %v686 = vpop.xlane.xlu0 %685
      %687 = vst [vmem:[#allocation4] sm:$0xff] %v686
      %s688 = scalar_lea.vmem %s668, 8
      %v689 = vld [vmem:[%s688] sm:$0xff]
      %v690 = vadd.s32 %v671, 8
      %v691 = vstv %s289
      %vm692 = vcmp.gt.s32.totalorder %v690, %v691
      %v693 = vsel %vm692, %v689, 0.0
      %v694 = vrcp.pop %v667
      %v695 = vmul.f32 %v693, %v694
      %v696 = vsel %vm627, 0.0, %v695
      %v697 = vstv %s289
      %v698 = vlaneseq
      %v699 = vand.u32 %v698, 127
      %vm700 = vcmp.eq.s32.totalorder %v699, %v697
      %v701 = vsel %vm700, %v696, 0.0
      %702 = vadd.xlane.f32.xlu0 %v701
      %v703 = vpop.xlane.xlu0 %702
      %s704 = scalar_lea.vmem [#allocation4], 8
      %705 = vst [vmem:[%s704] sm:$0xff] %v703
      %s706 = scalar_lea.vmem %s668, 16
      %v707 = vld [vmem:[%s706] sm:$0xff]
      %v708 = vadd.s32 %v671, 16
      %v709 = vstv %s289
      %vm710 = vcmp.gt.s32.totalorder %v708, %v709
      %v711 = vsel %vm710, %v707, 0.0
      %v712 = vrcp.pop %v667
      %v713 = vmul.f32 %v711, %v712
      %v714 = vsel %vm627, 0.0, %v713
      %v715 = vstv %s289
      %v716 = vlaneseq
      %v717 = vand.u32 %v716, 127
      %vm718 = vcmp.eq.s32.totalorder %v717, %v715
      %v719 = vsel %vm718, %v714, 0.0
      %720 = vadd.xlane.f32.xlu0 %v719
      %v721 = vpop.xlane.xlu0 %720
      %s722 = scalar_lea.vmem [#allocation4], 16
      %723 = vst [vmem:[%s722] sm:$0xff] %v721
      %s724 = scalar_lea.vmem %s668, 24
      %v725 = vld [vmem:[%s724] sm:$0xff]
      %v726 = vadd.s32 %v671, 24
      %v727 = vstv %s289
      %vm728 = vcmp.gt.s32.totalorder %v726, %v727
      %v729 = vsel %vm728, %v725, 0.0
      %v730 = vrcp.pop %v667
      %v731 = vmul.f32 %v729, %v730
      %v732 = vsel %vm627, 0.0, %v731
      %v733 = vstv %s289
      %v734 = vlaneseq
      %v735 = vand.u32 %v734, 127
      %vm736 = vcmp.eq.s32.totalorder %v735, %v733
      %v737 = vsel %vm736, %v732, 0.0
      %738 = vadd.xlane.f32.xlu0 %v737
      %v739 = vpop.xlane.xlu0 %738
      %s740 = scalar_lea.vmem [#allocation4], 24
      %741 = vst [vmem:[%s740] sm:$0xff] %v739
      %s742 = scalar_lea.vmem %s668, 32
      %v743 = vld [vmem:[%s742] sm:$0xff]
      %v744 = vadd.s32 %v671, 32
      %v745 = vstv %s289
      %vm746 = vcmp.gt.s32.totalorder %v744, %v745
      %v747 = vsel %vm746, %v743, 0.0
      %v748 = vrcp.pop %v667
      %v749 = vmul.f32 %v747, %v748
      %v750 = vsel %vm627, 0.0, %v749
      %v751 = vstv %s289
      %v752 = vlaneseq
      %v753 = vand.u32 %v752, 127
      %vm754 = vcmp.eq.s32.totalorder %v753, %v751
      %v755 = vsel %vm754, %v750, 0.0
      %756 = vadd.xlane.f32.xlu0 %v755
      %v757 = vpop.xlane.xlu0 %756
      %s758 = scalar_lea.vmem [#allocation4], 32
      %759 = vst [vmem:[%s758] sm:$0xff] %v757
      %s760 = scalar_lea.vmem %s668, 40
      %v761 = vld [vmem:[%s760] sm:$0xff]
      %v762 = vadd.s32 %v671, 40
      %v763 = vstv %s289
      %vm764 = vcmp.gt.s32.totalorder %v762, %v763
      %v765 = vsel %vm764, %v761, 0.0
      %v766 = vrcp.pop %v667
      %v767 = vmul.f32 %v765, %v766
      %v768 = vsel %vm627, 0.0, %v767
      %v769 = vstv %s289
      %v770 = vlaneseq
      %v771 = vand.u32 %v770, 127
      %vm772 = vcmp.eq.s32.totalorder %v771, %v769
      %v773 = vsel %vm772, %v768, 0.0
      %774 = vadd.xlane.f32.xlu0 %v773
      %v775 = vpop.xlane.xlu0 %774
      %s776 = scalar_lea.vmem [#allocation4], 40
      %777 = vst [vmem:[%s776] sm:$0xff] %v775
      %s778 = scalar_lea.vmem %s668, 48
      %v779 = vld [vmem:[%s778] sm:$0xff]
      %v780 = vadd.s32 %v671, 48
      %v781 = vstv %s289
      %vm782 = vcmp.gt.s32.totalorder %v780, %v781
      %v783 = vsel %vm782, %v779, 0.0
      %v784 = vrcp.pop %v667
      %v785 = vmul.f32 %v783, %v784
      %v786 = vsel %vm627, 0.0, %v785
      %v787 = vstv %s289
      %v788 = vlaneseq
      %v789 = vand.u32 %v788, 127
      %vm790 = vcmp.eq.s32.totalorder %v789, %v787
      %v791 = vsel %vm790, %v786, 0.0
      %792 = vadd.xlane.f32.xlu0 %v791
      %v793 = vpop.xlane.xlu0 %792
      %s794 = scalar_lea.vmem [#allocation4], 48
      %795 = vst [vmem:[%s794] sm:$0xff] %v793
      %s796 = scalar_lea.vmem %s668, 56
      %v797 = vld [vmem:[%s796] sm:$0xff]
      %v798 = vadd.s32 %v671, 56
      %v799 = vstv %s289
      %vm800 = vcmp.gt.s32.totalorder %v798, %v799
      %v801 = vsel %vm800, %v797, 0.0
      %v802 = vrcp.pop %v667
      %v803 = vmul.f32 %v801, %v802
      %v804 = vsel %vm627, 0.0, %v803
      %v805 = vstv %s289
      %v806 = vlaneseq
      %v807 = vand.u32 %v806, 127
      %vm808 = vcmp.eq.s32.totalorder %v807, %v805
      %v809 = vsel %vm808, %v804, 0.0
      %810 = vadd.xlane.f32.xlu0 %v809
      %v811 = vpop.xlane.xlu0 %810
      %s812 = scalar_lea.vmem [#allocation4], 56
      %813 = vst [vmem:[%s812] sm:$0xff] %v811
      %s814 = scalar_lea.vmem %s668, 64
      %v815 = vld [vmem:[%s814] sm:$0xff]
      %v816 = vadd.s32 %v671, 64
      %v817 = vstv %s289
      %vm818 = vcmp.gt.s32.totalorder %v816, %v817
      %v819 = vsel %vm818, %v815, 0.0
      %v820 = vrcp.pop %v667
      %v821 = vmul.f32 %v819, %v820
      %v822 = vsel %vm627, 0.0, %v821
      %v823 = vstv %s289
      %v824 = vlaneseq
      %v825 = vand.u32 %v824, 127
      %vm826 = vcmp.eq.s32.totalorder %v825, %v823
      %v827 = vsel %vm826, %v822, 0.0
      %828 = vadd.xlane.f32.xlu0 %v827
      %v829 = vpop.xlane.xlu0 %828
      %s830 = scalar_lea.vmem [#allocation4], 64
      %831 = vst [vmem:[%s830] sm:$0xff] %v829
      %s832 = scalar_lea.vmem %s668, 72
      %v833 = vld [vmem:[%s832] sm:$0xff]
      %v834 = vadd.s32 %v671, 72
      %v835 = vstv %s289
      %vm836 = vcmp.gt.s32.totalorder %v834, %v835
      %v837 = vsel %vm836, %v833, 0.0
      %v838 = vrcp.pop %v667
      %v839 = vmul.f32 %v837, %v838
      %v840 = vsel %vm627, 0.0, %v839
      %v841 = vstv %s289
      %v842 = vlaneseq
      %v843 = vand.u32 %v842, 127
      %vm844 = vcmp.eq.s32.totalorder %v843, %v841
      %v845 = vsel %vm844, %v840, 0.0
      %846 = vadd.xlane.f32.xlu0 %v845
      %v847 = vpop.xlane.xlu0 %846
      %s848 = scalar_lea.vmem [#allocation4], 72
      %849 = vst [vmem:[%s848] sm:$0xff] %v847
      %s850 = scalar_lea.vmem %s668, 80
      %v851 = vld [vmem:[%s850] sm:$0xff]
      %v852 = vadd.s32 %v671, 80
      %v853 = vstv %s289
      %vm854 = vcmp.gt.s32.totalorder %v852, %v853
      %v855 = vsel %vm854, %v851, 0.0
      %v856 = vrcp.pop %v667
      %v857 = vmul.f32 %v855, %v856
      %v858 = vsel %vm627, 0.0, %v857
      %v859 = vstv %s289
      %v860 = vlaneseq
      %v861 = vand.u32 %v860, 127
      %vm862 = vcmp.eq.s32.totalorder %v861, %v859
      %v863 = vsel %vm862, %v858, 0.0
      %864 = vadd.xlane.f32.xlu0 %v863
      %v865 = vpop.xlane.xlu0 %864
      %s866 = scalar_lea.vmem [#allocation4], 80
      %867 = vst [vmem:[%s866] sm:$0xff] %v865
      %s868 = scalar_lea.vmem %s668, 88
      %v869 = vld [vmem:[%s868] sm:$0xff]
      %v870 = vadd.s32 %v671, 88
      %v871 = vstv %s289
      %vm872 = vcmp.gt.s32.totalorder %v870, %v871
      %v873 = vsel %vm872, %v869, 0.0
      %v874 = vrcp.pop %v667
      %v875 = vmul.f32 %v873, %v874
      %v876 = vsel %vm627, 0.0, %v875
      %v877 = vstv %s289
      %v878 = vlaneseq
      %v879 = vand.u32 %v878, 127
      %vm880 = vcmp.eq.s32.totalorder %v879, %v877
      %v881 = vsel %vm880, %v876, 0.0
      %882 = vadd.xlane.f32.xlu0 %v881
      %v883 = vpop.xlane.xlu0 %882
      %s884 = scalar_lea.vmem [#allocation4], 88
      %885 = vst [vmem:[%s884] sm:$0xff] %v883
      %s886 = scalar_lea.vmem %s668, 96
      %v887 = vld [vmem:[%s886] sm:$0xff]
      %v888 = vadd.s32 %v671, 96
      %v889 = vstv %s289
      %vm890 = vcmp.gt.s32.totalorder %v888, %v889
      %v891 = vsel %vm890, %v887, 0.0
      %v892 = vrcp.pop %v667
      %v893 = vmul.f32 %v891, %v892
      %v894 = vsel %vm627, 0.0, %v893
      %v895 = vstv %s289
      %v896 = vlaneseq
      %v897 = vand.u32 %v896, 127
      %vm898 = vcmp.eq.s32.totalorder %v897, %v895
      %v899 = vsel %vm898, %v894, 0.0
      %900 = vadd.xlane.f32.xlu0 %v899
      %v901 = vpop.xlane.xlu0 %900
      %s902 = scalar_lea.vmem [#allocation4], 96
      %903 = vst [vmem:[%s902] sm:$0xff] %v901
      %s904 = scalar_lea.vmem %s668, 104
      %v905 = vld [vmem:[%s904] sm:$0xff]
      %v906 = vadd.s32 %v671, 104
      %v907 = vstv %s289
      %vm908 = vcmp.gt.s32.totalorder %v906, %v907
      %v909 = vsel %vm908, %v905, 0.0
      %v910 = vrcp.pop %v667
      %v911 = vmul.f32 %v909, %v910
      %v912 = vsel %vm627, 0.0, %v911
      %v913 = vstv %s289
      %v914 = vlaneseq
      %v915 = vand.u32 %v914, 127
      %vm916 = vcmp.eq.s32.totalorder %v915, %v913
      %v917 = vsel %vm916, %v912, 0.0
      %918 = vadd.xlane.f32.xlu0 %v917
      %v919 = vpop.xlane.xlu0 %918
      %s920 = scalar_lea.vmem [#allocation4], 104
      %921 = vst [vmem:[%s920] sm:$0xff] %v919
      %s922 = scalar_lea.vmem %s668, 112
      %v923 = vld [vmem:[%s922] sm:$0xff]
      %v924 = vadd.s32 %v671, 112
      %v925 = vstv %s289
      %vm926 = vcmp.gt.s32.totalorder %v924, %v925
      %v927 = vsel %vm926, %v923, 0.0
      %v928 = vrcp.pop %v667
      %v929 = vmul.f32 %v927, %v928
      %v930 = vsel %vm627, 0.0, %v929
      %v931 = vstv %s289
      %v932 = vlaneseq
      %v933 = vand.u32 %v932, 127
      %vm934 = vcmp.eq.s32.totalorder %v933, %v931
      %v935 = vsel %vm934, %v930, 0.0
      %936 = vadd.xlane.f32.xlu0 %v935
      %v937 = vpop.xlane.xlu0 %936
      %s938 = scalar_lea.vmem [#allocation4], 112
      %939 = vst [vmem:[%s938] sm:$0xff] %v937
      %s940 = scalar_lea.vmem %s668, 120
      %v941 = vld [vmem:[%s940] sm:$0xff]
      %v942 = vadd.s32 %v671, 120
      %v943 = vstv %s289
      %vm944 = vcmp.gt.s32.totalorder %v942, %v943
      %v945 = vsel %vm944, %v941, 0.0
      %v946 = vrcp.pop %v667
      %v947 = vmul.f32 %v945, %v946
      %v948 = vsel %vm627, 0.0, %v947
      %v949 = vstv %s289
      %v950 = vlaneseq
      %v951 = vand.u32 %v950, 127
      %vm952 = vcmp.eq.s32.totalorder %v951, %v949
      %v953 = vsel %vm952, %v948, 0.0
      %954 = vadd.xlane.f32.xlu0 %v953
      %v955 = vpop.xlane.xlu0 %954
      %s956 = scalar_lea.vmem [#allocation4], 120
      %957 = vst [vmem:[%s956] sm:$0xff] %v955
      %s958 = scalar_lea.vmem %s668, 128
      %v959 = vld [vmem:[%s958] sm:$0xff]
      %v960 = vadd.s32 %v671, 128
      %v961 = vstv %s289
      %vm962 = vcmp.gt.s32.totalorder %v960, %v961
      %v963 = vsel %vm962, %v959, 0.0
      %v964 = vrcp.pop %v667
      %v965 = vmul.f32 %v963, %v964
      %v966 = vsel %vm627, 0.0, %v965
      %v967 = vstv %s289
      %v968 = vlaneseq
      %v969 = vand.u32 %v968, 127
      %vm970 = vcmp.eq.s32.totalorder %v969, %v967
      %v971 = vsel %vm970, %v966, 0.0
      %972 = vadd.xlane.f32.xlu0 %v971
      %v973 = vpop.xlane.xlu0 %972
      %s974 = scalar_lea.vmem [#allocation4], 128
      %975 = vst [vmem:[%s974] sm:$0xff] %v973
      %s976 = scalar_lea.vmem %s668, 136
      %v977 = vld [vmem:[%s976] sm:$0xff]
      %v978 = vadd.s32 %v671, 136
      %v979 = vstv %s289
      %vm980 = vcmp.gt.s32.totalorder %v978, %v979
      %v981 = vsel %vm980, %v977, 0.0
      %v982 = vrcp.pop %v667
      %v983 = vmul.f32 %v981, %v982
      %v984 = vsel %vm627, 0.0, %v983
      %v985 = vstv %s289
      %v986 = vlaneseq
      %v987 = vand.u32 %v986, 127
      %vm988 = vcmp.eq.s32.totalorder %v987, %v985
      %v989 = vsel %vm988, %v984, 0.0
      %990 = vadd.xlane.f32.xlu0 %v989
      %v991 = vpop.xlane.xlu0 %990
      %s992 = scalar_lea.vmem [#allocation4], 136
      %993 = vst [vmem:[%s992] sm:$0xff] %v991
      %s994 = scalar_lea.vmem %s668, 144
      %v995 = vld [vmem:[%s994] sm:$0xff]
      %v996 = vadd.s32 %v671, 144
      %v997 = vstv %s289
      %vm998 = vcmp.gt.s32.totalorder %v996, %v997
      %v999 = vsel %vm998, %v995, 0.0
      %v1000 = vrcp.pop %v667
      %v1001 = vmul.f32 %v999, %v1000
      %v1002 = vsel %vm627, 0.0, %v1001
      %v1003 = vstv %s289
      %v1004 = vlaneseq
      %v1005 = vand.u32 %v1004, 127
      %vm1006 = vcmp.eq.s32.totalorder %v1005, %v1003
      %v1007 = vsel %vm1006, %v1002, 0.0
      %1008 = vadd.xlane.f32.xlu0 %v1007
      %v1009 = vpop.xlane.xlu0 %1008
      %s1010 = scalar_lea.vmem [#allocation4], 144
      %1011 = vst [vmem:[%s1010] sm:$0xff] %v1009
      %s1012 = scalar_lea.vmem %s668, 152
      %v1013 = vld [vmem:[%s1012] sm:$0xff]
      %v1014 = vadd.s32 %v671, 152
      %v1015 = vstv %s289
      %vm1016 = vcmp.gt.s32.totalorder %v1014, %v1015
      %v1017 = vsel %vm1016, %v1013, 0.0
      %v1018 = vrcp.pop %v667
      %v1019 = vmul.f32 %v1017, %v1018
      %v1020 = vsel %vm627, 0.0, %v1019
      %v1021 = vstv %s289
      %v1022 = vlaneseq
      %v1023 = vand.u32 %v1022, 127
      %vm1024 = vcmp.eq.s32.totalorder %v1023, %v1021
      %v1025 = vsel %vm1024, %v1020, 0.0
      %1026 = vadd.xlane.f32.xlu0 %v1025
      %v1027 = vpop.xlane.xlu0 %1026
      %s1028 = scalar_lea.vmem [#allocation4], 152
      %1029 = vst [vmem:[%s1028] sm:$0xff] %v1027
      %s1030 = scalar_lea.vmem %s668, 160
      %v1031 = vld [vmem:[%s1030] sm:$0xff]
      %v1032 = vadd.s32 %v671, 160
      %v1033 = vstv %s289
      %vm1034 = vcmp.gt.s32.totalorder %v1032, %v1033
      %v1035 = vsel %vm1034, %v1031, 0.0
      %v1036 = vrcp.pop %v667
      %v1037 = vmul.f32 %v1035, %v1036
      %v1038 = vsel %vm627, 0.0, %v1037
      %v1039 = vstv %s289
      %v1040 = vlaneseq
      %v1041 = vand.u32 %v1040, 127
      %vm1042 = vcmp.eq.s32.totalorder %v1041, %v1039
      %v1043 = vsel %vm1042, %v1038, 0.0
      %1044 = vadd.xlane.f32.xlu0 %v1043
      %v1045 = vpop.xlane.xlu0 %1044
      %s1046 = scalar_lea.vmem [#allocation4], 160
      %1047 = vst [vmem:[%s1046] sm:$0xff] %v1045
      %s1048 = scalar_lea.vmem %s668, 168
      %v1049 = vld [vmem:[%s1048] sm:$0xff]
      %v1050 = vadd.s32 %v671, 168
      %v1051 = vstv %s289
      %vm1052 = vcmp.gt.s32.totalorder %v1050, %v1051
      %v1053 = vsel %vm1052, %v1049, 0.0
      %v1054 = vrcp.pop %v667
      %v1055 = vmul.f32 %v1053, %v1054
      %v1056 = vsel %vm627, 0.0, %v1055
      %v1057 = vstv %s289
      %v1058 = vlaneseq
      %v1059 = vand.u32 %v1058, 127
      %vm1060 = vcmp.eq.s32.totalorder %v1059, %v1057
      %v1061 = vsel %vm1060, %v1056, 0.0
      %1062 = vadd.xlane.f32.xlu0 %v1061
      %v1063 = vpop.xlane.xlu0 %1062
      %s1064 = scalar_lea.vmem [#allocation4], 168
      %1065 = vst [vmem:[%s1064] sm:$0xff] %v1063
      %s1066 = scalar_lea.vmem %s668, 176
      %v1067 = vld [vmem:[%s1066] sm:$0xff]
      %v1068 = vadd.s32 %v671, 176
      %v1069 = vstv %s289
      %vm1070 = vcmp.gt.s32.totalorder %v1068, %v1069
      %v1071 = vsel %vm1070, %v1067, 0.0
      %v1072 = vrcp.pop %v667
      %v1073 = vmul.f32 %v1071, %v1072
      %v1074 = vsel %vm627, 0.0, %v1073
      %v1075 = vstv %s289
      %v1076 = vlaneseq
      %v1077 = vand.u32 %v1076, 127
      %vm1078 = vcmp.eq.s32.totalorder %v1077, %v1075
      %v1079 = vsel %vm1078, %v1074, 0.0
      %1080 = vadd.xlane.f32.xlu0 %v1079
      %v1081 = vpop.xlane.xlu0 %1080
      %s1082 = scalar_lea.vmem [#allocation4], 176
      %1083 = vst [vmem:[%s1082] sm:$0xff] %v1081
      %s1084 = scalar_lea.vmem %s668, 184
      %v1085 = vld [vmem:[%s1084] sm:$0xff]
      %v1086 = vadd.s32 %v671, 184
      %v1087 = vstv %s289
      %vm1088 = vcmp.gt.s32.totalorder %v1086, %v1087
      %v1089 = vsel %vm1088, %v1085, 0.0
      %v1090 = vrcp.pop %v667
      %v1091 = vmul.f32 %v1089, %v1090
      %v1092 = vsel %vm627, 0.0, %v1091
      %v1093 = vstv %s289
      %v1094 = vlaneseq
      %v1095 = vand.u32 %v1094, 127
      %vm1096 = vcmp.eq.s32.totalorder %v1095, %v1093
      %v1097 = vsel %vm1096, %v1092, 0.0
      %1098 = vadd.xlane.f32.xlu0 %v1097
      %v1099 = vpop.xlane.xlu0 %1098
      %s1100 = scalar_lea.vmem [#allocation4], 184
      %1101 = vst [vmem:[%s1100] sm:$0xff] %v1099
      %s1102 = scalar_lea.vmem %s668, 192
      %v1103 = vld [vmem:[%s1102] sm:$0xff]
      %v1104 = vadd.s32 %v671, 192
      %v1105 = vstv %s289
      %vm1106 = vcmp.gt.s32.totalorder %v1104, %v1105
      %v1107 = vsel %vm1106, %v1103, 0.0
      %v1108 = vrcp.pop %v667
      %v1109 = vmul.f32 %v1107, %v1108
      %v1110 = vsel %vm627, 0.0, %v1109
      %v1111 = vstv %s289
      %v1112 = vlaneseq
      %v1113 = vand.u32 %v1112, 127
      %vm1114 = vcmp.eq.s32.totalorder %v1113, %v1111
      %v1115 = vsel %vm1114, %v1110, 0.0
      %1116 = vadd.xlane.f32.xlu0 %v1115
      %v1117 = vpop.xlane.xlu0 %1116
      %s1118 = scalar_lea.vmem [#allocation4], 192
      %1119 = vst [vmem:[%s1118] sm:$0xff] %v1117
      %s1120 = scalar_lea.vmem %s668, 200
      %v1121 = vld [vmem:[%s1120] sm:$0xff]
      %v1122 = vadd.s32 %v671, 200
      %v1123 = vstv %s289
      %vm1124 = vcmp.gt.s32.totalorder %v1122, %v1123
      %v1125 = vsel %vm1124, %v1121, 0.0
      %v1126 = vrcp.pop %v667
      %v1127 = vmul.f32 %v1125, %v1126
      %v1128 = vsel %vm627, 0.0, %v1127
      %v1129 = vstv %s289
      %v1130 = vlaneseq
      %v1131 = vand.u32 %v1130, 127
      %vm1132 = vcmp.eq.s32.totalorder %v1131, %v1129
      %v1133 = vsel %vm1132, %v1128, 0.0
      %1134 = vadd.xlane.f32.xlu0 %v1133
      %v1135 = vpop.xlane.xlu0 %1134
      %s1136 = scalar_lea.vmem [#allocation4], 200
      %1137 = vst [vmem:[%s1136] sm:$0xff] %v1135
      %s1138 = scalar_lea.vmem %s668, 208
      %v1139 = vld [vmem:[%s1138] sm:$0xff]
      %v1140 = vadd.s32 %v671, 208
      %v1141 = vstv %s289
      %vm1142 = vcmp.gt.s32.totalorder %v1140, %v1141
      %v1143 = vsel %vm1142, %v1139, 0.0
      %v1144 = vrcp.pop %v667
      %v1145 = vmul.f32 %v1143, %v1144
      %v1146 = vsel %vm627, 0.0, %v1145
      %v1147 = vstv %s289
      %v1148 = vlaneseq
      %v1149 = vand.u32 %v1148, 127
      %vm1150 = vcmp.eq.s32.totalorder %v1149, %v1147
      %v1151 = vsel %vm1150, %v1146, 0.0
      %1152 = vadd.xlane.f32.xlu0 %v1151
      %v1153 = vpop.xlane.xlu0 %1152
      %s1154 = scalar_lea.vmem [#allocation4], 208
      %1155 = vst [vmem:[%s1154] sm:$0xff] %v1153
      %s1156 = scalar_lea.vmem %s668, 216
      %v1157 = vld [vmem:[%s1156] sm:$0xff]
      %v1158 = vadd.s32 %v671, 216
      %v1159 = vstv %s289
      %vm1160 = vcmp.gt.s32.totalorder %v1158, %v1159
      %v1161 = vsel %vm1160, %v1157, 0.0
      %v1162 = vrcp.pop %v667
      %v1163 = vmul.f32 %v1161, %v1162
      %v1164 = vsel %vm627, 0.0, %v1163
      %v1165 = vstv %s289
      %v1166 = vlaneseq
      %v1167 = vand.u32 %v1166, 127
      %vm1168 = vcmp.eq.s32.totalorder %v1167, %v1165
      %v1169 = vsel %vm1168, %v1164, 0.0
      %1170 = vadd.xlane.f32.xlu0 %v1169
      %v1171 = vpop.xlane.xlu0 %1170
      %s1172 = scalar_lea.vmem [#allocation4], 216
      %1173 = vst [vmem:[%s1172] sm:$0xff] %v1171
      %s1174 = scalar_lea.vmem %s668, 224
      %v1175 = vld [vmem:[%s1174] sm:$0xff]
      %v1176 = vadd.s32 %v671, 224
      %v1177 = vstv %s289
      %vm1178 = vcmp.gt.s32.totalorder %v1176, %v1177
      %v1179 = vsel %vm1178, %v1175, 0.0
      %v1180 = vrcp.pop %v667
      %v1181 = vmul.f32 %v1179, %v1180
      %v1182 = vsel %vm627, 0.0, %v1181
      %v1183 = vstv %s289
      %v1184 = vlaneseq
      %v1185 = vand.u32 %v1184, 127
      %vm1186 = vcmp.eq.s32.totalorder %v1185, %v1183
      %v1187 = vsel %vm1186, %v1182, 0.0
      %1188 = vadd.xlane.f32.xlu0 %v1187
      %v1189 = vpop.xlane.xlu0 %1188
      %s1190 = scalar_lea.vmem [#allocation4], 224
      %1191 = vst [vmem:[%s1190] sm:$0xff] %v1189
      %s1192 = scalar_lea.vmem %s668, 232
      %v1193 = vld [vmem:[%s1192] sm:$0xff]
      %v1194 = vadd.s32 %v671, 232
      %v1195 = vstv %s289
      %vm1196 = vcmp.gt.s32.totalorder %v1194, %v1195
      %v1197 = vsel %vm1196, %v1193, 0.0
      %v1198 = vrcp.pop %v667
      %v1199 = vmul.f32 %v1197, %v1198
      %v1200 = vsel %vm627, 0.0, %v1199
      %v1201 = vstv %s289
      %v1202 = vlaneseq
      %v1203 = vand.u32 %v1202, 127
      %vm1204 = vcmp.eq.s32.totalorder %v1203, %v1201
      %v1205 = vsel %vm1204, %v1200, 0.0
      %1206 = vadd.xlane.f32.xlu0 %v1205
      %v1207 = vpop.xlane.xlu0 %1206
      %s1208 = scalar_lea.vmem [#allocation4], 232
      %1209 = vst [vmem:[%s1208] sm:$0xff] %v1207
      %s1210 = scalar_lea.vmem %s668, 240
      %v1211 = vld [vmem:[%s1210] sm:$0xff]
      %v1212 = vadd.s32 %v671, 240
      %v1213 = vstv %s289
      %vm1214 = vcmp.gt.s32.totalorder %v1212, %v1213
      %v1215 = vsel %vm1214, %v1211, 0.0
      %v1216 = vrcp.pop %v667
      %v1217 = vmul.f32 %v1215, %v1216
      %v1218 = vsel %vm627, 0.0, %v1217
      %v1219 = vstv %s289
      %v1220 = vlaneseq
      %v1221 = vand.u32 %v1220, 127
      %vm1222 = vcmp.eq.s32.totalorder %v1221, %v1219
      %v1223 = vsel %vm1222, %v1218, 0.0
      %1224 = vadd.xlane.f32.xlu0 %v1223
      %v1225 = vpop.xlane.xlu0 %1224
      %s1226 = scalar_lea.vmem [#allocation4], 240
      %1227 = vst [vmem:[%s1226] sm:$0xff] %v1225
      %s1228 = scalar_lea.vmem %s668, 248
      %v1229 = vld [vmem:[%s1228] sm:$0xff]
      %v1230 = vadd.s32 %v671, 248
      %v1231 = vstv %s289
      %vm1232 = vcmp.gt.s32.totalorder %v1230, %v1231
      %vm1233 = vcmp.lt.s32.totalorder %v1230, 256
      %vm1234 = vmand %vm1232, %vm1233
      %v1235 = vsel %vm1234, %v1229, 0.0
      %v1236 = vrcp.pop %v667
      %v1237 = vmul.f32 %v1235, %v1236
      %v1238 = vsel %vm627, 0.0, %v1237
      %v1239 = vstv %s289
      %v1240 = vlaneseq
      %v1241 = vand.u32 %v1240, 127
      %vm1242 = vcmp.eq.s32.totalorder %v1241, %v1239
      %v1243 = vsel %vm1242, %v1238, 0.0
      %1244 = vadd.xlane.f32.xlu0 %v1243
      %v1245 = vpop.xlane.xlu0 %1244
      %s1246 = scalar_lea.vmem [#allocation4], 248
      %1247 = vst [vmem:[%s1246] sm:$0xff] %v1245
      %s1248 = scalar_lea.vmem [#allocation4], %s289
      %1249 = vst [vmem:[%s1248] sm:$0x1] 1.0
      %v1250 = vstv %s289
      %v1251 = vlaneseq
      %v1252 = vand.u32 %v1251, 127
      %vm1253 = vcmp.eq.s32.totalorder %v1252, %v1250
      %v1254 = vsel %vm1253, %v666, 0.0
      %1255 = vadd.xlane.f32.xlu0 %v1254
      %v1256 = vpop.xlane.xlu0 %1255
      %v1257 = vstv %s289
      %v1258 = vlaneseq
      %v1259 = vand.u32 %v1258, 127
      %vm1260 = vcmp.eq.s32.totalorder %v1259, %v1257
      %v1261 = vld [vmem:[#allocation2] ss:$0 sm:$0xff]
      %v1262 = vsel %vm1260, %v1256, %v1261
      %1263 = vst [vmem:[#allocation2] sm:$0x1] %v1262
      %s1264 = smov [#allocation1]
      %s1265 = smov [#allocation4]
      %v1266 = vlaneseq
      %v1267 = vshrl.u32 %v1266, 7
      %v1268 = vmov %v1267
      %v1270 = vld [vmem:[%s1265] sm:$0xff]
      %v1271 = vld [vmem:[%s1264] sm:$0xff]
      %v1272 = vmul.f32 %v1270, %v1271
      %v1273 = vadd.s32 %v1268, 8
      %s1274 = scalar_lea.vmem %s1265, 8
      %v1275 = vld [vmem:[%s1274] sm:$0xff]
      %s1276 = scalar_lea.vmem %s1264, 8
      %v1277 = vld [vmem:[%s1276] sm:$0xff]
      %v1278 = vmul.f32 %v1275, %v1277
      %v1279 = vadd.f32 %v1272, %v1278
      %v1280 = vadd.s32 %v1268, 16
      %s1281 = scalar_lea.vmem %s1265, 16
      %v1282 = vld [vmem:[%s1281] sm:$0xff]
      %s1283 = scalar_lea.vmem %s1264, 16
      %v1284 = vld [vmem:[%s1283] sm:$0xff]
      %v1285 = vmul.f32 %v1282, %v1284
      %v1286 = vadd.f32 %v1279, %v1285
      %v1287 = vadd.s32 %v1268, 24
      %s1288 = scalar_lea.vmem %s1265, 24
      %v1289 = vld [vmem:[%s1288] sm:$0xff]
      %s1290 = scalar_lea.vmem %s1264, 24
      %v1291 = vld [vmem:[%s1290] sm:$0xff]
      %v1292 = vmul.f32 %v1289, %v1291
      %v1293 = vadd.f32 %v1286, %v1292
      %v1294 = vadd.s32 %v1268, 32
      %s1295 = scalar_lea.vmem %s1265, 32
      %v1296 = vld [vmem:[%s1295] sm:$0xff]
      %s1297 = scalar_lea.vmem %s1264, 32
      %v1298 = vld [vmem:[%s1297] sm:$0xff]
      %v1299 = vmul.f32 %v1296, %v1298
      %v1300 = vadd.f32 %v1293, %v1299
      %v1301 = vadd.s32 %v1268, 40
      %s1302 = scalar_lea.vmem %s1265, 40
      %v1303 = vld [vmem:[%s1302] sm:$0xff]
      %s1304 = scalar_lea.vmem %s1264, 40
      %v1305 = vld [vmem:[%s1304] sm:$0xff]
      %v1306 = vmul.f32 %v1303, %v1305
      %v1307 = vadd.f32 %v1300, %v1306
      %v1308 = vadd.s32 %v1268, 48
      %s1309 = scalar_lea.vmem %s1265, 48
      %v1310 = vld [vmem:[%s1309] sm:$0xff]
      %s1311 = scalar_lea.vmem %s1264, 48
      %v1312 = vld [vmem:[%s1311] sm:$0xff]
      %v1313 = vmul.f32 %v1310, %v1312
      %v1314 = vadd.f32 %v1307, %v1313
      %v1315 = vadd.s32 %v1268, 56
      %s1316 = scalar_lea.vmem %s1265, 56
      %v1317 = vld [vmem:[%s1316] sm:$0xff]
      %s1318 = scalar_lea.vmem %s1264, 56
      %v1319 = vld [vmem:[%s1318] sm:$0xff]
      %v1320 = vmul.f32 %v1317, %v1319
      %v1321 = vadd.f32 %v1314, %v1320
      %v1322 = vadd.s32 %v1268, 64
      %s1323 = scalar_lea.vmem %s1265, 64
      %v1324 = vld [vmem:[%s1323] sm:$0xff]
      %s1325 = scalar_lea.vmem %s1264, 64
      %v1326 = vld [vmem:[%s1325] sm:$0xff]
      %v1327 = vmul.f32 %v1324, %v1326
      %v1328 = vadd.f32 %v1321, %v1327
      %v1329 = vadd.s32 %v1268, 72
      %s1330 = scalar_lea.vmem %s1265, 72
      %v1331 = vld [vmem:[%s1330] sm:$0xff]
      %s1332 = scalar_lea.vmem %s1264, 72
      %v1333 = vld [vmem:[%s1332] sm:$0xff]
      %v1334 = vmul.f32 %v1331, %v1333
      %v1335 = vadd.f32 %v1328, %v1334
      %v1336 = vadd.s32 %v1268, 80
      %s1337 = scalar_lea.vmem %s1265, 80
      %v1338 = vld [vmem:[%s1337] sm:$0xff]
      %s1339 = scalar_lea.vmem %s1264, 80
      %v1340 = vld [vmem:[%s1339] sm:$0xff]
      %v1341 = vmul.f32 %v1338, %v1340
      %v1342 = vadd.f32 %v1335, %v1341
      %v1343 = vadd.s32 %v1268, 88
      %s1344 = scalar_lea.vmem %s1265, 88
      %v1345 = vld [vmem:[%s1344] sm:$0xff]
      %s1346 = scalar_lea.vmem %s1264, 88
      %v1347 = vld [vmem:[%s1346] sm:$0xff]
      %v1348 = vmul.f32 %v1345, %v1347
      %v1349 = vadd.f32 %v1342, %v1348
      %v1350 = vadd.s32 %v1268, 96
      %s1351 = scalar_lea.vmem %s1265, 96
      %v1352 = vld [vmem:[%s1351] sm:$0xff]
      %s1353 = scalar_lea.vmem %s1264, 96
      %v1354 = vld [vmem:[%s1353] sm:$0xff]
      %v1355 = vmul.f32 %v1352, %v1354
      %v1356 = vadd.f32 %v1349, %v1355
      %v1357 = vadd.s32 %v1268, 104
      %s1358 = scalar_lea.vmem %s1265, 104
      %v1359 = vld [vmem:[%s1358] sm:$0xff]
      %s1360 = scalar_lea.vmem %s1264, 104
      %v1361 = vld [vmem:[%s1360] sm:$0xff]
      %v1362 = vmul.f32 %v1359, %v1361
      %v1363 = vadd.f32 %v1356, %v1362
      %v1364 = vadd.s32 %v1268, 112
      %s1365 = scalar_lea.vmem %s1265, 112
      %v1366 = vld [vmem:[%s1365] sm:$0xff]
      %s1367 = scalar_lea.vmem %s1264, 112
      %v1368 = vld [vmem:[%s1367] sm:$0xff]
      %v1369 = vmul.f32 %v1366, %v1368
      %v1370 = vadd.f32 %v1363, %v1369
      %v1371 = vadd.s32 %v1268, 120
      %s1372 = scalar_lea.vmem %s1265, 120
      %v1373 = vld [vmem:[%s1372] sm:$0xff]
      %s1374 = scalar_lea.vmem %s1264, 120
      %v1375 = vld [vmem:[%s1374] sm:$0xff]
      %v1376 = vmul.f32 %v1373, %v1375
      %v1377 = vadd.f32 %v1370, %v1376
      %v1378 = vadd.s32 %v1268, 128
      %s1379 = scalar_lea.vmem %s1265, 128
      %v1380 = vld [vmem:[%s1379] sm:$0xff]
      %s1381 = scalar_lea.vmem %s1264, 128
      %v1382 = vld [vmem:[%s1381] sm:$0xff]
      %v1383 = vmul.f32 %v1380, %v1382
      %v1384 = vadd.f32 %v1377, %v1383
      %v1385 = vadd.s32 %v1268, 136
      %s1386 = scalar_lea.vmem %s1265, 136
      %v1387 = vld [vmem:[%s1386] sm:$0xff]
      %s1388 = scalar_lea.vmem %s1264, 136
      %v1389 = vld [vmem:[%s1388] sm:$0xff]
      %v1390 = vmul.f32 %v1387, %v1389
      %v1391 = vadd.f32 %v1384, %v1390
      %v1392 = vadd.s32 %v1268, 144
      %s1393 = scalar_lea.vmem %s1265, 144
      %v1394 = vld [vmem:[%s1393] sm:$0xff]
      %s1395 = scalar_lea.vmem %s1264, 144
      %v1396 = vld [vmem:[%s1395] sm:$0xff]
      %v1397 = vmul.f32 %v1394, %v1396
      %v1398 = vadd.f32 %v1391, %v1397
      %v1399 = vadd.s32 %v1268, 152
      %s1400 = scalar_lea.vmem %s1265, 152
      %v1401 = vld [vmem:[%s1400] sm:$0xff]
      %s1402 = scalar_lea.vmem %s1264, 152
      %v1403 = vld [vmem:[%s1402] sm:$0xff]
      %v1404 = vmul.f32 %v1401, %v1403
      %v1405 = vadd.f32 %v1398, %v1404
      %v1406 = vadd.s32 %v1268, 160
      %s1407 = scalar_lea.vmem %s1265, 160
      %v1408 = vld [vmem:[%s1407] sm:$0xff]
      %s1409 = scalar_lea.vmem %s1264, 160
      %v1410 = vld [vmem:[%s1409] sm:$0xff]
      %v1411 = vmul.f32 %v1408, %v1410
      %v1412 = vadd.f32 %v1405, %v1411
      %v1413 = vadd.s32 %v1268, 168
      %s1414 = scalar_lea.vmem %s1265, 168
      %v1415 = vld [vmem:[%s1414] sm:$0xff]
      %s1416 = scalar_lea.vmem %s1264, 168
      %v1417 = vld [vmem:[%s1416] sm:$0xff]
      %v1418 = vmul.f32 %v1415, %v1417
      %v1419 = vadd.f32 %v1412, %v1418
      %v1420 = vadd.s32 %v1268, 176
      %s1421 = scalar_lea.vmem %s1265, 176
      %v1422 = vld [vmem:[%s1421] sm:$0xff]
      %s1423 = scalar_lea.vmem %s1264, 176
      %v1424 = vld [vmem:[%s1423] sm:$0xff]
      %v1425 = vmul.f32 %v1422, %v1424
      %v1426 = vadd.f32 %v1419, %v1425
      %v1427 = vadd.s32 %v1268, 184
      %s1428 = scalar_lea.vmem %s1265, 184
      %v1429 = vld [vmem:[%s1428] sm:$0xff]
      %s1430 = scalar_lea.vmem %s1264, 184
      %v1431 = vld [vmem:[%s1430] sm:$0xff]
      %v1432 = vmul.f32 %v1429, %v1431
      %v1433 = vadd.f32 %v1426, %v1432
      %v1434 = vadd.s32 %v1268, 192
      %s1435 = scalar_lea.vmem %s1265, 192
      %v1436 = vld [vmem:[%s1435] sm:$0xff]
      %s1437 = scalar_lea.vmem %s1264, 192
      %v1438 = vld [vmem:[%s1437] sm:$0xff]
      %v1439 = vmul.f32 %v1436, %v1438
      %v1440 = vadd.f32 %v1433, %v1439
      %v1441 = vadd.s32 %v1268, 200
      %s1442 = scalar_lea.vmem %s1265, 200
      %v1443 = vld [vmem:[%s1442] sm:$0xff]
      %s1444 = scalar_lea.vmem %s1264, 200
      %v1445 = vld [vmem:[%s1444] sm:$0xff]
      %v1446 = vmul.f32 %v1443, %v1445
      %v1447 = vadd.f32 %v1440, %v1446
      %v1448 = vadd.s32 %v1268, 208
      %s1449 = scalar_lea.vmem %s1265, 208
      %v1450 = vld [vmem:[%s1449] sm:$0xff]
      %s1451 = scalar_lea.vmem %s1264, 208
      %v1452 = vld [vmem:[%s1451] sm:$0xff]
      %v1453 = vmul.f32 %v1450, %v1452
      %v1454 = vadd.f32 %v1447, %v1453
      %v1455 = vadd.s32 %v1268, 216
      %s1456 = scalar_lea.vmem %s1265, 216
      %v1457 = vld [vmem:[%s1456] sm:$0xff]
      %s1458 = scalar_lea.vmem %s1264, 216
      %v1459 = vld [vmem:[%s1458] sm:$0xff]
      %v1460 = vmul.f32 %v1457, %v1459
      %v1461 = vadd.f32 %v1454, %v1460
      %v1462 = vadd.s32 %v1268, 224
      %s1463 = scalar_lea.vmem %s1265, 224
      %v1464 = vld [vmem:[%s1463] sm:$0xff]
      %s1465 = scalar_lea.vmem %s1264, 224
      %v1466 = vld [vmem:[%s1465] sm:$0xff]
      %v1467 = vmul.f32 %v1464, %v1466
      %v1468 = vadd.f32 %v1461, %v1467
      %v1469 = vadd.s32 %v1268, 232
      %s1470 = scalar_lea.vmem %s1265, 232
      %v1471 = vld [vmem:[%s1470] sm:$0xff]
      %s1472 = scalar_lea.vmem %s1264, 232
      %v1473 = vld [vmem:[%s1472] sm:$0xff]
      %v1474 = vmul.f32 %v1471, %v1473
      %v1475 = vadd.f32 %v1468, %v1474
      %v1476 = vadd.s32 %v1268, 240
      %s1477 = scalar_lea.vmem %s1265, 240
      %v1478 = vld [vmem:[%s1477] sm:$0xff]
      %s1479 = scalar_lea.vmem %s1264, 240
      %v1480 = vld [vmem:[%s1479] sm:$0xff]
      %v1481 = vmul.f32 %v1478, %v1480
      %v1482 = vadd.f32 %v1475, %v1481
      %v1483 = vadd.s32 %v1268, 248
      %s1484 = scalar_lea.vmem %s1265, 248
      %v1485 = vld [vmem:[%s1484] sm:$0xff]
      %s1486 = scalar_lea.vmem %s1264, 248
      %v1487 = vld [vmem:[%s1486] sm:$0xff]
      %v1488 = vmul.f32 %v1485, %v1487
      %vm1489 = vcmp.lt.s32.totalorder %v1483, 256
      %v1490 = vsel %vm1489, %v1488, 0.0
      %v1491 = vadd.f32 %v1482, %v1490
      %v1492 = vrot.slane %v1491, 4
      %v1493 = vadd.f32 %v1491, %v1492
      %v1494 = vrot.slane %v1493, 2
      %v1495 = vadd.f32 %v1493, %v1494
      %v1496 = vrot.slane %v1495, 1
      %v1497 = vadd.f32 %v1495, %v1496
      %s1498 = smov %s1264
      %s1499 = smov %s1265
      %v1500 = vlaneseq
      %v1501 = vshrl.u32 %v1500, 7
      %v1502 = vmov %v1501
      %v1503 = vmul.f32 %v1497, %v1256
      %v1505 = vlaneseq
      %v1506 = vand.u32 %v1505, 127
      %v1507 = vld [vmem:[%s1499] sm:$0xff]
      %v1508 = vmul.f32 %v1507, %v1503
      %v1509 = vld [vmem:[%s1498] sm:$0xff]
      %v1510 = vstv %s289
      %vm1511 = vcmp.gt.s32.totalorder %v1506, %v1510
      %v1512 = vsub.f32 %v1509, %v1508
      %v1513 = vsel %vm1511, %v1512, %v1509
      %v1514 = vstv %s289
      %v1515 = vlaneseq
      %v1516 = vand.u32 %v1515, 127
      %vm1517 = vcmp.eq.s32.totalorder %v1516, %v1514
      %v1518 = vstv %s289
      %vm1519 = vcmp.ge.s32.totalorder %v1502, %v1518
      %vm1520 = vmand %vm1517, %vm1519
      %v1521 = vsel %vm1520, %v1507, %v1513
      %1522 = vst [vmem:[%s1498] sm:$0xff] %v1521
      %v1523 = vadd.s32 %v1502, 8
      %v1524 = vlaneseq
      %v1525 = vand.u32 %v1524, 127
      %s1526 = scalar_lea.vmem %s1499, 8
      %v1527 = vld [vmem:[%s1526] sm:$0xff]
      %v1528 = vmul.f32 %v1527, %v1503
      %s1529 = scalar_lea.vmem %s1498, 8
      %v1530 = vld [vmem:[%s1529] sm:$0xff]
      %v1531 = vstv %s289
      %vm1532 = vcmp.gt.s32.totalorder %v1525, %v1531
      %v1533 = vsub.f32 %v1530, %v1528
      %v1534 = vsel %vm1532, %v1533, %v1530
      %v1535 = vstv %s289
      %v1536 = vlaneseq
      %v1537 = vand.u32 %v1536, 127
      %vm1538 = vcmp.eq.s32.totalorder %v1537, %v1535
      %v1539 = vstv %s289
      %vm1540 = vcmp.ge.s32.totalorder %v1523, %v1539
      %vm1541 = vmand %vm1538, %vm1540
      %v1542 = vsel %vm1541, %v1527, %v1534
      %1543 = vst [vmem:[%s1529] sm:$0xff] %v1542
      %v1544 = vadd.s32 %v1502, 16
      %v1545 = vlaneseq
      %v1546 = vand.u32 %v1545, 127
      %s1547 = scalar_lea.vmem %s1499, 16
      %v1548 = vld [vmem:[%s1547] sm:$0xff]
      %v1549 = vmul.f32 %v1548, %v1503
      %s1550 = scalar_lea.vmem %s1498, 16
      %v1551 = vld [vmem:[%s1550] sm:$0xff]
      %v1552 = vstv %s289
      %vm1553 = vcmp.gt.s32.totalorder %v1546, %v1552
      %v1554 = vsub.f32 %v1551, %v1549
      %v1555 = vsel %vm1553, %v1554, %v1551
      %v1556 = vstv %s289
      %v1557 = vlaneseq
      %v1558 = vand.u32 %v1557, 127
      %vm1559 = vcmp.eq.s32.totalorder %v1558, %v1556
      %v1560 = vstv %s289
      %vm1561 = vcmp.ge.s32.totalorder %v1544, %v1560
      %vm1562 = vmand %vm1559, %vm1561
      %v1563 = vsel %vm1562, %v1548, %v1555
      %1564 = vst [vmem:[%s1550] sm:$0xff] %v1563
      %v1565 = vadd.s32 %v1502, 24
      %v1566 = vlaneseq
      %v1567 = vand.u32 %v1566, 127
      %s1568 = scalar_lea.vmem %s1499, 24
      %v1569 = vld [vmem:[%s1568] sm:$0xff]
      %v1570 = vmul.f32 %v1569, %v1503
      %s1571 = scalar_lea.vmem %s1498, 24
      %v1572 = vld [vmem:[%s1571] sm:$0xff]
      %v1573 = vstv %s289
      %vm1574 = vcmp.gt.s32.totalorder %v1567, %v1573
      %v1575 = vsub.f32 %v1572, %v1570
      %v1576 = vsel %vm1574, %v1575, %v1572
      %v1577 = vstv %s289
      %v1578 = vlaneseq
      %v1579 = vand.u32 %v1578, 127
      %vm1580 = vcmp.eq.s32.totalorder %v1579, %v1577
      %v1581 = vstv %s289
      %vm1582 = vcmp.ge.s32.totalorder %v1565, %v1581
      %vm1583 = vmand %vm1580, %vm1582
      %v1584 = vsel %vm1583, %v1569, %v1576
      %1585 = vst [vmem:[%s1571] sm:$0xff] %v1584
      %v1586 = vadd.s32 %v1502, 32
      %v1587 = vlaneseq
      %v1588 = vand.u32 %v1587, 127
      %s1589 = scalar_lea.vmem %s1499, 32
      %v1590 = vld [vmem:[%s1589] sm:$0xff]
      %v1591 = vmul.f32 %v1590, %v1503
      %s1592 = scalar_lea.vmem %s1498, 32
      %v1593 = vld [vmem:[%s1592] sm:$0xff]
      %v1594 = vstv %s289
      %vm1595 = vcmp.gt.s32.totalorder %v1588, %v1594
      %v1596 = vsub.f32 %v1593, %v1591
      %v1597 = vsel %vm1595, %v1596, %v1593
      %v1598 = vstv %s289
      %v1599 = vlaneseq
      %v1600 = vand.u32 %v1599, 127
      %vm1601 = vcmp.eq.s32.totalorder %v1600, %v1598
      %v1602 = vstv %s289
      %vm1603 = vcmp.ge.s32.totalorder %v1586, %v1602
      %vm1604 = vmand %vm1601, %vm1603
      %v1605 = vsel %vm1604, %v1590, %v1597
      %1606 = vst [vmem:[%s1592] sm:$0xff] %v1605
      %v1607 = vadd.s32 %v1502, 40
      %v1608 = vlaneseq
      %v1609 = vand.u32 %v1608, 127
      %s1610 = scalar_lea.vmem %s1499, 40
      %v1611 = vld [vmem:[%s1610] sm:$0xff]
      %v1612 = vmul.f32 %v1611, %v1503
      %s1613 = scalar_lea.vmem %s1498, 40
      %v1614 = vld [vmem:[%s1613] sm:$0xff]
      %v1615 = vstv %s289
      %vm1616 = vcmp.gt.s32.totalorder %v1609, %v1615
      %v1617 = vsub.f32 %v1614, %v1612
      %v1618 = vsel %vm1616, %v1617, %v1614
      %v1619 = vstv %s289
      %v1620 = vlaneseq
      %v1621 = vand.u32 %v1620, 127
      %vm1622 = vcmp.eq.s32.totalorder %v1621, %v1619
      %v1623 = vstv %s289
      %vm1624 = vcmp.ge.s32.totalorder %v1607, %v1623
      %vm1625 = vmand %vm1622, %vm1624
      %v1626 = vsel %vm1625, %v1611, %v1618
      %1627 = vst [vmem:[%s1613] sm:$0xff] %v1626
      %v1628 = vadd.s32 %v1502, 48
      %v1629 = vlaneseq
      %v1630 = vand.u32 %v1629, 127
      %s1631 = scalar_lea.vmem %s1499, 48
      %v1632 = vld [vmem:[%s1631] sm:$0xff]
      %v1633 = vmul.f32 %v1632, %v1503
      %s1634 = scalar_lea.vmem %s1498, 48
      %v1635 = vld [vmem:[%s1634] sm:$0xff]
      %v1636 = vstv %s289
      %vm1637 = vcmp.gt.s32.totalorder %v1630, %v1636
      %v1638 = vsub.f32 %v1635, %v1633
      %v1639 = vsel %vm1637, %v1638, %v1635
      %v1640 = vstv %s289
      %v1641 = vlaneseq
      %v1642 = vand.u32 %v1641, 127
      %vm1643 = vcmp.eq.s32.totalorder %v1642, %v1640
      %v1644 = vstv %s289
      %vm1645 = vcmp.ge.s32.totalorder %v1628, %v1644
      %vm1646 = vmand %vm1643, %vm1645
      %v1647 = vsel %vm1646, %v1632, %v1639
      %1648 = vst [vmem:[%s1634] sm:$0xff] %v1647
      %v1649 = vadd.s32 %v1502, 56
      %v1650 = vlaneseq
      %v1651 = vand.u32 %v1650, 127
      %s1652 = scalar_lea.vmem %s1499, 56
      %v1653 = vld [vmem:[%s1652] sm:$0xff]
      %v1654 = vmul.f32 %v1653, %v1503
      %s1655 = scalar_lea.vmem %s1498, 56
      %v1656 = vld [vmem:[%s1655] sm:$0xff]
      %v1657 = vstv %s289
      %vm1658 = vcmp.gt.s32.totalorder %v1651, %v1657
      %v1659 = vsub.f32 %v1656, %v1654
      %v1660 = vsel %vm1658, %v1659, %v1656
      %v1661 = vstv %s289
      %v1662 = vlaneseq
      %v1663 = vand.u32 %v1662, 127
      %vm1664 = vcmp.eq.s32.totalorder %v1663, %v1661
      %v1665 = vstv %s289
      %vm1666 = vcmp.ge.s32.totalorder %v1649, %v1665
      %vm1667 = vmand %vm1664, %vm1666
      %v1668 = vsel %vm1667, %v1653, %v1660
      %1669 = vst [vmem:[%s1655] sm:$0xff] %v1668
      %v1670 = vadd.s32 %v1502, 64
      %v1671 = vlaneseq
      %v1672 = vand.u32 %v1671, 127
      %s1673 = scalar_lea.vmem %s1499, 64
      %v1674 = vld [vmem:[%s1673] sm:$0xff]
      %v1675 = vmul.f32 %v1674, %v1503
      %s1676 = scalar_lea.vmem %s1498, 64
      %v1677 = vld [vmem:[%s1676] sm:$0xff]
      %v1678 = vstv %s289
      %vm1679 = vcmp.gt.s32.totalorder %v1672, %v1678
      %v1680 = vsub.f32 %v1677, %v1675
      %v1681 = vsel %vm1679, %v1680, %v1677
      %v1682 = vstv %s289
      %v1683 = vlaneseq
      %v1684 = vand.u32 %v1683, 127
      %vm1685 = vcmp.eq.s32.totalorder %v1684, %v1682
      %v1686 = vstv %s289
      %vm1687 = vcmp.ge.s32.totalorder %v1670, %v1686
      %vm1688 = vmand %vm1685, %vm1687
      %v1689 = vsel %vm1688, %v1674, %v1681
      %1690 = vst [vmem:[%s1676] sm:$0xff] %v1689
      %v1691 = vadd.s32 %v1502, 72
      %v1692 = vlaneseq
      %v1693 = vand.u32 %v1692, 127
      %s1694 = scalar_lea.vmem %s1499, 72
      %v1695 = vld [vmem:[%s1694] sm:$0xff]
      %v1696 = vmul.f32 %v1695, %v1503
      %s1697 = scalar_lea.vmem %s1498, 72
      %v1698 = vld [vmem:[%s1697] sm:$0xff]
      %v1699 = vstv %s289
      %vm1700 = vcmp.gt.s32.totalorder %v1693, %v1699
      %v1701 = vsub.f32 %v1698, %v1696
      %v1702 = vsel %vm1700, %v1701, %v1698
      %v1703 = vstv %s289
      %v1704 = vlaneseq
      %v1705 = vand.u32 %v1704, 127
      %vm1706 = vcmp.eq.s32.totalorder %v1705, %v1703
      %v1707 = vstv %s289
      %vm1708 = vcmp.ge.s32.totalorder %v1691, %v1707
      %vm1709 = vmand %vm1706, %vm1708
      %v1710 = vsel %vm1709, %v1695, %v1702
      %1711 = vst [vmem:[%s1697] sm:$0xff] %v1710
      %v1712 = vadd.s32 %v1502, 80
      %v1713 = vlaneseq
      %v1714 = vand.u32 %v1713, 127
      %s1715 = scalar_lea.vmem %s1499, 80
      %v1716 = vld [vmem:[%s1715] sm:$0xff]
      %v1717 = vmul.f32 %v1716, %v1503
      %s1718 = scalar_lea.vmem %s1498, 80
      %v1719 = vld [vmem:[%s1718] sm:$0xff]
      %v1720 = vstv %s289
      %vm1721 = vcmp.gt.s32.totalorder %v1714, %v1720
      %v1722 = vsub.f32 %v1719, %v1717
      %v1723 = vsel %vm1721, %v1722, %v1719
      %v1724 = vstv %s289
      %v1725 = vlaneseq
      %v1726 = vand.u32 %v1725, 127
      %vm1727 = vcmp.eq.s32.totalorder %v1726, %v1724
      %v1728 = vstv %s289
      %vm1729 = vcmp.ge.s32.totalorder %v1712, %v1728
      %vm1730 = vmand %vm1727, %vm1729
      %v1731 = vsel %vm1730, %v1716, %v1723
      %1732 = vst [vmem:[%s1718] sm:$0xff] %v1731
      %v1733 = vadd.s32 %v1502, 88
      %v1734 = vlaneseq
      %v1735 = vand.u32 %v1734, 127
      %s1736 = scalar_lea.vmem %s1499, 88
      %v1737 = vld [vmem:[%s1736] sm:$0xff]
      %v1738 = vmul.f32 %v1737, %v1503
      %s1739 = scalar_lea.vmem %s1498, 88
      %v1740 = vld [vmem:[%s1739] sm:$0xff]
      %v1741 = vstv %s289
      %vm1742 = vcmp.gt.s32.totalorder %v1735, %v1741
      %v1743 = vsub.f32 %v1740, %v1738
      %v1744 = vsel %vm1742, %v1743, %v1740
      %v1745 = vstv %s289
      %v1746 = vlaneseq
      %v1747 = vand.u32 %v1746, 127
      %vm1748 = vcmp.eq.s32.totalorder %v1747, %v1745
      %v1749 = vstv %s289
      %vm1750 = vcmp.ge.s32.totalorder %v1733, %v1749
      %vm1751 = vmand %vm1748, %vm1750
      %v1752 = vsel %vm1751, %v1737, %v1744
      %1753 = vst [vmem:[%s1739] sm:$0xff] %v1752
      %v1754 = vadd.s32 %v1502, 96
      %v1755 = vlaneseq
      %v1756 = vand.u32 %v1755, 127
      %s1757 = scalar_lea.vmem %s1499, 96
      %v1758 = vld [vmem:[%s1757] sm:$0xff]
      %v1759 = vmul.f32 %v1758, %v1503
      %s1760 = scalar_lea.vmem %s1498, 96
      %v1761 = vld [vmem:[%s1760] sm:$0xff]
      %v1762 = vstv %s289
      %vm1763 = vcmp.gt.s32.totalorder %v1756, %v1762
      %v1764 = vsub.f32 %v1761, %v1759
      %v1765 = vsel %vm1763, %v1764, %v1761
      %v1766 = vstv %s289
      %v1767 = vlaneseq
      %v1768 = vand.u32 %v1767, 127
      %vm1769 = vcmp.eq.s32.totalorder %v1768, %v1766
      %v1770 = vstv %s289
      %vm1771 = vcmp.ge.s32.totalorder %v1754, %v1770
      %vm1772 = vmand %vm1769, %vm1771
      %v1773 = vsel %vm1772, %v1758, %v1765
      %1774 = vst [vmem:[%s1760] sm:$0xff] %v1773
      %v1775 = vadd.s32 %v1502, 104
      %v1776 = vlaneseq
      %v1777 = vand.u32 %v1776, 127
      %s1778 = scalar_lea.vmem %s1499, 104
      %v1779 = vld [vmem:[%s1778] sm:$0xff]
      %v1780 = vmul.f32 %v1779, %v1503
      %s1781 = scalar_lea.vmem %s1498, 104
      %v1782 = vld [vmem:[%s1781] sm:$0xff]
      %v1783 = vstv %s289
      %vm1784 = vcmp.gt.s32.totalorder %v1777, %v1783
      %v1785 = vsub.f32 %v1782, %v1780
      %v1786 = vsel %vm1784, %v1785, %v1782
      %v1787 = vstv %s289
      %v1788 = vlaneseq
      %v1789 = vand.u32 %v1788, 127
      %vm1790 = vcmp.eq.s32.totalorder %v1789, %v1787
      %v1791 = vstv %s289
      %vm1792 = vcmp.ge.s32.totalorder %v1775, %v1791
      %vm1793 = vmand %vm1790, %vm1792
      %v1794 = vsel %vm1793, %v1779, %v1786
      %1795 = vst [vmem:[%s1781] sm:$0xff] %v1794
      %v1796 = vadd.s32 %v1502, 112
      %v1797 = vlaneseq
      %v1798 = vand.u32 %v1797, 127
      %s1799 = scalar_lea.vmem %s1499, 112
      %v1800 = vld [vmem:[%s1799] sm:$0xff]
      %v1801 = vmul.f32 %v1800, %v1503
      %s1802 = scalar_lea.vmem %s1498, 112
      %v1803 = vld [vmem:[%s1802] sm:$0xff]
      %v1804 = vstv %s289
      %vm1805 = vcmp.gt.s32.totalorder %v1798, %v1804
      %v1806 = vsub.f32 %v1803, %v1801
      %v1807 = vsel %vm1805, %v1806, %v1803
      %v1808 = vstv %s289
      %v1809 = vlaneseq
      %v1810 = vand.u32 %v1809, 127
      %vm1811 = vcmp.eq.s32.totalorder %v1810, %v1808
      %v1812 = vstv %s289
      %vm1813 = vcmp.ge.s32.totalorder %v1796, %v1812
      %vm1814 = vmand %vm1811, %vm1813
      %v1815 = vsel %vm1814, %v1800, %v1807
      %1816 = vst [vmem:[%s1802] sm:$0xff] %v1815
      %v1817 = vadd.s32 %v1502, 120
      %v1818 = vlaneseq
      %v1819 = vand.u32 %v1818, 127
      %s1820 = scalar_lea.vmem %s1499, 120
      %v1821 = vld [vmem:[%s1820] sm:$0xff]
      %v1822 = vmul.f32 %v1821, %v1503
      %s1823 = scalar_lea.vmem %s1498, 120
      %v1824 = vld [vmem:[%s1823] sm:$0xff]
      %v1825 = vstv %s289
      %vm1826 = vcmp.gt.s32.totalorder %v1819, %v1825
      %v1827 = vsub.f32 %v1824, %v1822
      %v1828 = vsel %vm1826, %v1827, %v1824
      %v1829 = vstv %s289
      %v1830 = vlaneseq
      %v1831 = vand.u32 %v1830, 127
      %vm1832 = vcmp.eq.s32.totalorder %v1831, %v1829
      %v1833 = vstv %s289
      %vm1834 = vcmp.ge.s32.totalorder %v1817, %v1833
      %vm1835 = vmand %vm1832, %vm1834
      %v1836 = vsel %vm1835, %v1821, %v1828
      %1837 = vst [vmem:[%s1823] sm:$0xff] %v1836
      %v1838 = vadd.s32 %v1502, 128
      %v1839 = vlaneseq
      %v1840 = vand.u32 %v1839, 127
      %s1841 = scalar_lea.vmem %s1499, 128
      %v1842 = vld [vmem:[%s1841] sm:$0xff]
      %v1843 = vmul.f32 %v1842, %v1503
      %s1844 = scalar_lea.vmem %s1498, 128
      %v1845 = vld [vmem:[%s1844] sm:$0xff]
      %v1846 = vstv %s289
      %vm1847 = vcmp.gt.s32.totalorder %v1840, %v1846
      %v1848 = vsub.f32 %v1845, %v1843
      %v1849 = vsel %vm1847, %v1848, %v1845
      %v1850 = vstv %s289
      %v1851 = vlaneseq
      %v1852 = vand.u32 %v1851, 127
      %vm1853 = vcmp.eq.s32.totalorder %v1852, %v1850
      %v1854 = vstv %s289
      %vm1855 = vcmp.ge.s32.totalorder %v1838, %v1854
      %vm1856 = vmand %vm1853, %vm1855
      %v1857 = vsel %vm1856, %v1842, %v1849
      %1858 = vst [vmem:[%s1844] sm:$0xff] %v1857
      %v1859 = vadd.s32 %v1502, 136
      %v1860 = vlaneseq
      %v1861 = vand.u32 %v1860, 127
      %s1862 = scalar_lea.vmem %s1499, 136
      %v1863 = vld [vmem:[%s1862] sm:$0xff]
      %v1864 = vmul.f32 %v1863, %v1503
      %s1865 = scalar_lea.vmem %s1498, 136
      %v1866 = vld [vmem:[%s1865] sm:$0xff]
      %v1867 = vstv %s289
      %vm1868 = vcmp.gt.s32.totalorder %v1861, %v1867
      %v1869 = vsub.f32 %v1866, %v1864
      %v1870 = vsel %vm1868, %v1869, %v1866
      %v1871 = vstv %s289
      %v1872 = vlaneseq
      %v1873 = vand.u32 %v1872, 127
      %vm1874 = vcmp.eq.s32.totalorder %v1873, %v1871
      %v1875 = vstv %s289
      %vm1876 = vcmp.ge.s32.totalorder %v1859, %v1875
      %vm1877 = vmand %vm1874, %vm1876
      %v1878 = vsel %vm1877, %v1863, %v1870
      %1879 = vst [vmem:[%s1865] sm:$0xff] %v1878
      %v1880 = vadd.s32 %v1502, 144
      %v1881 = vlaneseq
      %v1882 = vand.u32 %v1881, 127
      %s1883 = scalar_lea.vmem %s1499, 144
      %v1884 = vld [vmem:[%s1883] sm:$0xff]
      %v1885 = vmul.f32 %v1884, %v1503
      %s1886 = scalar_lea.vmem %s1498, 144
      %v1887 = vld [vmem:[%s1886] sm:$0xff]
      %v1888 = vstv %s289
      %vm1889 = vcmp.gt.s32.totalorder %v1882, %v1888
      %v1890 = vsub.f32 %v1887, %v1885
      %v1891 = vsel %vm1889, %v1890, %v1887
      %v1892 = vstv %s289
      %v1893 = vlaneseq
      %v1894 = vand.u32 %v1893, 127
      %vm1895 = vcmp.eq.s32.totalorder %v1894, %v1892
      %v1896 = vstv %s289
      %vm1897 = vcmp.ge.s32.totalorder %v1880, %v1896
      %vm1898 = vmand %vm1895, %vm1897
      %v1899 = vsel %vm1898, %v1884, %v1891
      %1900 = vst [vmem:[%s1886] sm:$0xff] %v1899
      %v1901 = vadd.s32 %v1502, 152
      %v1902 = vlaneseq
      %v1903 = vand.u32 %v1902, 127
      %s1904 = scalar_lea.vmem %s1499, 152
      %v1905 = vld [vmem:[%s1904] sm:$0xff]
      %v1906 = vmul.f32 %v1905, %v1503
      %s1907 = scalar_lea.vmem %s1498, 152
      %v1908 = vld [vmem:[%s1907] sm:$0xff]
      %v1909 = vstv %s289
      %vm1910 = vcmp.gt.s32.totalorder %v1903, %v1909
      %v1911 = vsub.f32 %v1908, %v1906
      %v1912 = vsel %vm1910, %v1911, %v1908
      %v1913 = vstv %s289
      %v1914 = vlaneseq
      %v1915 = vand.u32 %v1914, 127
      %vm1916 = vcmp.eq.s32.totalorder %v1915, %v1913
      %v1917 = vstv %s289
      %vm1918 = vcmp.ge.s32.totalorder %v1901, %v1917
      %vm1919 = vmand %vm1916, %vm1918
      %v1920 = vsel %vm1919, %v1905, %v1912
      %1921 = vst [vmem:[%s1907] sm:$0xff] %v1920
      %v1922 = vadd.s32 %v1502, 160
      %v1923 = vlaneseq
      %v1924 = vand.u32 %v1923, 127
      %s1925 = scalar_lea.vmem %s1499, 160
      %v1926 = vld [vmem:[%s1925] sm:$0xff]
      %v1927 = vmul.f32 %v1926, %v1503
      %s1928 = scalar_lea.vmem %s1498, 160
      %v1929 = vld [vmem:[%s1928] sm:$0xff]
      %v1930 = vstv %s289
      %vm1931 = vcmp.gt.s32.totalorder %v1924, %v1930
      %v1932 = vsub.f32 %v1929, %v1927
      %v1933 = vsel %vm1931, %v1932, %v1929
      %v1934 = vstv %s289
      %v1935 = vlaneseq
      %v1936 = vand.u32 %v1935, 127
      %vm1937 = vcmp.eq.s32.totalorder %v1936, %v1934
      %v1938 = vstv %s289
      %vm1939 = vcmp.ge.s32.totalorder %v1922, %v1938
      %vm1940 = vmand %vm1937, %vm1939
      %v1941 = vsel %vm1940, %v1926, %v1933
      %1942 = vst [vmem:[%s1928] sm:$0xff] %v1941
      %v1943 = vadd.s32 %v1502, 168
      %v1944 = vlaneseq
      %v1945 = vand.u32 %v1944, 127
      %s1946 = scalar_lea.vmem %s1499, 168
      %v1947 = vld [vmem:[%s1946] sm:$0xff]
      %v1948 = vmul.f32 %v1947, %v1503
      %s1949 = scalar_lea.vmem %s1498, 168
      %v1950 = vld [vmem:[%s1949] sm:$0xff]
      %v1951 = vstv %s289
      %vm1952 = vcmp.gt.s32.totalorder %v1945, %v1951
      %v1953 = vsub.f32 %v1950, %v1948
      %v1954 = vsel %vm1952, %v1953, %v1950
      %v1955 = vstv %s289
      %v1956 = vlaneseq
      %v1957 = vand.u32 %v1956, 127
      %vm1958 = vcmp.eq.s32.totalorder %v1957, %v1955
      %v1959 = vstv %s289
      %vm1960 = vcmp.ge.s32.totalorder %v1943, %v1959
      %vm1961 = vmand %vm1958, %vm1960
      %v1962 = vsel %vm1961, %v1947, %v1954
      %1963 = vst [vmem:[%s1949] sm:$0xff] %v1962
      %v1964 = vadd.s32 %v1502, 176
      %v1965 = vlaneseq
      %v1966 = vand.u32 %v1965, 127
      %s1967 = scalar_lea.vmem %s1499, 176
      %v1968 = vld [vmem:[%s1967] sm:$0xff]
      %v1969 = vmul.f32 %v1968, %v1503
      %s1970 = scalar_lea.vmem %s1498, 176
      %v1971 = vld [vmem:[%s1970] sm:$0xff]
      %v1972 = vstv %s289
      %vm1973 = vcmp.gt.s32.totalorder %v1966, %v1972
      %v1974 = vsub.f32 %v1971, %v1969
      %v1975 = vsel %vm1973, %v1974, %v1971
      %v1976 = vstv %s289
      %v1977 = vlaneseq
      %v1978 = vand.u32 %v1977, 127
      %vm1979 = vcmp.eq.s32.totalorder %v1978, %v1976
      %v1980 = vstv %s289
      %vm1981 = vcmp.ge.s32.totalorder %v1964, %v1980
      %vm1982 = vmand %vm1979, %vm1981
      %v1983 = vsel %vm1982, %v1968, %v1975
      %1984 = vst [vmem:[%s1970] sm:$0xff] %v1983
      %v1985 = vadd.s32 %v1502, 184
      %v1986 = vlaneseq
      %v1987 = vand.u32 %v1986, 127
      %s1988 = scalar_lea.vmem %s1499, 184
      %v1989 = vld [vmem:[%s1988] sm:$0xff]
      %v1990 = vmul.f32 %v1989, %v1503
      %s1991 = scalar_lea.vmem %s1498, 184
      %v1992 = vld [vmem:[%s1991] sm:$0xff]
      %v1993 = vstv %s289
      %vm1994 = vcmp.gt.s32.totalorder %v1987, %v1993
      %v1995 = vsub.f32 %v1992, %v1990
      %v1996 = vsel %vm1994, %v1995, %v1992
      %v1997 = vstv %s289
      %v1998 = vlaneseq
      %v1999 = vand.u32 %v1998, 127
      %vm2000 = vcmp.eq.s32.totalorder %v1999, %v1997
      %v2001 = vstv %s289
      %vm2002 = vcmp.ge.s32.totalorder %v1985, %v2001
      %vm2003 = vmand %vm2000, %vm2002
      %v2004 = vsel %vm2003, %v1989, %v1996
      %2005 = vst [vmem:[%s1991] sm:$0xff] %v2004
      %v2006 = vadd.s32 %v1502, 192
      %v2007 = vlaneseq
      %v2008 = vand.u32 %v2007, 127
      %s2009 = scalar_lea.vmem %s1499, 192
      %v2010 = vld [vmem:[%s2009] sm:$0xff]
      %v2011 = vmul.f32 %v2010, %v1503
      %s2012 = scalar_lea.vmem %s1498, 192
      %v2013 = vld [vmem:[%s2012] sm:$0xff]
      %v2014 = vstv %s289
      %vm2015 = vcmp.gt.s32.totalorder %v2008, %v2014
      %v2016 = vsub.f32 %v2013, %v2011
      %v2017 = vsel %vm2015, %v2016, %v2013
      %v2018 = vstv %s289
      %v2019 = vlaneseq
      %v2020 = vand.u32 %v2019, 127
      %vm2021 = vcmp.eq.s32.totalorder %v2020, %v2018
      %v2022 = vstv %s289
      %vm2023 = vcmp.ge.s32.totalorder %v2006, %v2022
      %vm2024 = vmand %vm2021, %vm2023
      %v2025 = vsel %vm2024, %v2010, %v2017
      %2026 = vst [vmem:[%s2012] sm:$0xff] %v2025
      %v2027 = vadd.s32 %v1502, 200
      %v2028 = vlaneseq
      %v2029 = vand.u32 %v2028, 127
      %s2030 = scalar_lea.vmem %s1499, 200
      %v2031 = vld [vmem:[%s2030] sm:$0xff]
      %v2032 = vmul.f32 %v2031, %v1503
      %s2033 = scalar_lea.vmem %s1498, 200
      %v2034 = vld [vmem:[%s2033] sm:$0xff]
      %v2035 = vstv %s289
      %vm2036 = vcmp.gt.s32.totalorder %v2029, %v2035
      %v2037 = vsub.f32 %v2034, %v2032
      %v2038 = vsel %vm2036, %v2037, %v2034
      %v2039 = vstv %s289
      %v2040 = vlaneseq
      %v2041 = vand.u32 %v2040, 127
      %vm2042 = vcmp.eq.s32.totalorder %v2041, %v2039
      %v2043 = vstv %s289
      %vm2044 = vcmp.ge.s32.totalorder %v2027, %v2043
      %vm2045 = vmand %vm2042, %vm2044
      %v2046 = vsel %vm2045, %v2031, %v2038
      %2047 = vst [vmem:[%s2033] sm:$0xff] %v2046
      %v2048 = vadd.s32 %v1502, 208
      %v2049 = vlaneseq
      %v2050 = vand.u32 %v2049, 127
      %s2051 = scalar_lea.vmem %s1499, 208
      %v2052 = vld [vmem:[%s2051] sm:$0xff]
      %v2053 = vmul.f32 %v2052, %v1503
      %s2054 = scalar_lea.vmem %s1498, 208
      %v2055 = vld [vmem:[%s2054] sm:$0xff]
      %v2056 = vstv %s289
      %vm2057 = vcmp.gt.s32.totalorder %v2050, %v2056
      %v2058 = vsub.f32 %v2055, %v2053
      %v2059 = vsel %vm2057, %v2058, %v2055
      %v2060 = vstv %s289
      %v2061 = vlaneseq
      %v2062 = vand.u32 %v2061, 127
      %vm2063 = vcmp.eq.s32.totalorder %v2062, %v2060
      %v2064 = vstv %s289
      %vm2065 = vcmp.ge.s32.totalorder %v2048, %v2064
      %vm2066 = vmand %vm2063, %vm2065
      %v2067 = vsel %vm2066, %v2052, %v2059
      %2068 = vst [vmem:[%s2054] sm:$0xff] %v2067
      %v2069 = vadd.s32 %v1502, 216
      %v2070 = vlaneseq
      %v2071 = vand.u32 %v2070, 127
      %s2072 = scalar_lea.vmem %s1499, 216
      %v2073 = vld [vmem:[%s2072] sm:$0xff]
      %v2074 = vmul.f32 %v2073, %v1503
      %s2075 = scalar_lea.vmem %s1498, 216
      %v2076 = vld [vmem:[%s2075] sm:$0xff]
      %v2077 = vstv %s289
      %vm2078 = vcmp.gt.s32.totalorder %v2071, %v2077
      %v2079 = vsub.f32 %v2076, %v2074
      %v2080 = vsel %vm2078, %v2079, %v2076
      %v2081 = vstv %s289
      %v2082 = vlaneseq
      %v2083 = vand.u32 %v2082, 127
      %vm2084 = vcmp.eq.s32.totalorder %v2083, %v2081
      %v2085 = vstv %s289
      %vm2086 = vcmp.ge.s32.totalorder %v2069, %v2085
      %vm2087 = vmand %vm2084, %vm2086
      %v2088 = vsel %vm2087, %v2073, %v2080
      %2089 = vst [vmem:[%s2075] sm:$0xff] %v2088
      %v2090 = vadd.s32 %v1502, 224
      %v2091 = vlaneseq
      %v2092 = vand.u32 %v2091, 127
      %s2093 = scalar_lea.vmem %s1499, 224
      %v2094 = vld [vmem:[%s2093] sm:$0xff]
      %v2095 = vmul.f32 %v2094, %v1503
      %s2096 = scalar_lea.vmem %s1498, 224
      %v2097 = vld [vmem:[%s2096] sm:$0xff]
      %v2098 = vstv %s289
      %vm2099 = vcmp.gt.s32.totalorder %v2092, %v2098
      %v2100 = vsub.f32 %v2097, %v2095
      %v2101 = vsel %vm2099, %v2100, %v2097
      %v2102 = vstv %s289
      %v2103 = vlaneseq
      %v2104 = vand.u32 %v2103, 127
      %vm2105 = vcmp.eq.s32.totalorder %v2104, %v2102
      %v2106 = vstv %s289
      %vm2107 = vcmp.ge.s32.totalorder %v2090, %v2106
      %vm2108 = vmand %vm2105, %vm2107
      %v2109 = vsel %vm2108, %v2094, %v2101
      %2110 = vst [vmem:[%s2096] sm:$0xff] %v2109
      %v2111 = vadd.s32 %v1502, 232
      %v2112 = vlaneseq
      %v2113 = vand.u32 %v2112, 127
      %s2114 = scalar_lea.vmem %s1499, 232
      %v2115 = vld [vmem:[%s2114] sm:$0xff]
      %v2116 = vmul.f32 %v2115, %v1503
      %s2117 = scalar_lea.vmem %s1498, 232
      %v2118 = vld [vmem:[%s2117] sm:$0xff]
      %v2119 = vstv %s289
      %vm2120 = vcmp.gt.s32.totalorder %v2113, %v2119
      %v2121 = vsub.f32 %v2118, %v2116
      %v2122 = vsel %vm2120, %v2121, %v2118
      %v2123 = vstv %s289
      %v2124 = vlaneseq
      %v2125 = vand.u32 %v2124, 127
      %vm2126 = vcmp.eq.s32.totalorder %v2125, %v2123
      %v2127 = vstv %s289
      %vm2128 = vcmp.ge.s32.totalorder %v2111, %v2127
      %vm2129 = vmand %vm2126, %vm2128
      %v2130 = vsel %vm2129, %v2115, %v2122
      %2131 = vst [vmem:[%s2117] sm:$0xff] %v2130
      %v2132 = vadd.s32 %v1502, 240
      %v2133 = vlaneseq
      %v2134 = vand.u32 %v2133, 127
      %s2135 = scalar_lea.vmem %s1499, 240
      %v2136 = vld [vmem:[%s2135] sm:$0xff]
      %v2137 = vmul.f32 %v2136, %v1503
      %s2138 = scalar_lea.vmem %s1498, 240
      %v2139 = vld [vmem:[%s2138] sm:$0xff]
      %v2140 = vstv %s289
      %vm2141 = vcmp.gt.s32.totalorder %v2134, %v2140
      %v2142 = vsub.f32 %v2139, %v2137
      %v2143 = vsel %vm2141, %v2142, %v2139
      %v2144 = vstv %s289
      %v2145 = vlaneseq
      %v2146 = vand.u32 %v2145, 127
      %vm2147 = vcmp.eq.s32.totalorder %v2146, %v2144
      %v2148 = vstv %s289
      %vm2149 = vcmp.ge.s32.totalorder %v2132, %v2148
      %vm2150 = vmand %vm2147, %vm2149
      %v2151 = vsel %vm2150, %v2136, %v2143
      %2152 = vst [vmem:[%s2138] sm:$0xff] %v2151
      %v2153 = vadd.s32 %v1502, 248
      %v2154 = vlaneseq
      %v2155 = vand.u32 %v2154, 127
      %s2156 = scalar_lea.vmem %s1499, 248
      %v2157 = vld [vmem:[%s2156] sm:$0xff]
      %v2158 = vmul.f32 %v2157, %v1503
      %s2159 = scalar_lea.vmem %s1498, 248
      %v2160 = vld [vmem:[%s2159] sm:$0xff]
      %v2161 = vstv %s289
      %vm2162 = vcmp.gt.s32.totalorder %v2155, %v2161
      %v2163 = vsub.f32 %v2160, %v2158
      %v2164 = vsel %vm2162, %v2163, %v2160
      %v2165 = vstv %s289
      %v2166 = vlaneseq
      %v2167 = vand.u32 %v2166, 127
      %vm2168 = vcmp.eq.s32.totalorder %v2167, %v2165
      %v2169 = vstv %s289
      %vm2170 = vcmp.ge.s32.totalorder %v2153, %v2169
      %vm2171 = vmand %vm2168, %vm2170
      %v2172 = vsel %vm2171, %v2157, %v2164
      %2173 = vst [vmem:[%s2159] sm:$0xff] %v2172
      %s2174 = scalar_lea.vmem %s1498, %s289
      %v2175 = vld [vmem:[%s2174] ss:$0 sm:$0xff]
      %v2176 = vstv %s289
      %v2177 = vlaneseq
      %v2178 = vand.u32 %v2177, 127
      %vm2179 = vcmp.eq.s32.totalorder %v2178, %v2176
      %v2180 = vsel %vm2179, %v665, %v2175
      %2181 = vst [vmem:[%s2174] sm:$0x1] %v2180
    $region40: #{custom-call.70} parent=1 // loop_footer
      %s293 = sadd.s32 1, %s289
    $region41: #{custom-call.70} parent=1 // loop_footer_branch
      %288 = sbr.rel target = $region37
    $region42: #{custom-call.70} parent=1 // loop_exit
      _
    %s2183 = sshll.u32 1, 1
    %s2184 = ssub.s32 %s2183, 1
    %v2186 = vld [vmem:[#allocation2] sm:%s2184]
    %s2187 = sshll.u32 1, 1
    %s2188 = ssub.s32 %s2187, 1
    %2189 = vst [vmem:[#allocation3] sm:%s2188] %v2186
    // Predicated region
    $region43: #{custom-call.70} parent=1 // pred_check
      _
    $region44: #{custom-call.70} parent=1 // pred_check_branch
      %2191 = sbr.rel (0) target = $region46
    $region45: #{custom-call.70} parent=1 // pred_region
      // Predicated region
      $region47: #{custom-call.70} parent=45 // pred_check
        _
      $region48: #{custom-call.70} parent=45 // pred_check_branch
        %2193 = sbr.rel (0) target = $region50
      $region49: #{custom-call.70} parent=45 // pred_region
        // Predicated region
        $region62: #{custom-call.70} parent=49 // pred_check
          _
        $region63: #{custom-call.70} parent=49 // pred_check_branch
          %2271 = sbr.rel (0) target = $region65
        $region64: #{custom-call.70} parent=49 // pred_region
          loop: start=0, step=1, limit=1
          $region66: #{custom-call.70} parent=64 // loop_pre_header
            _
          $region67: #{custom-call.70} parent=64 // loop_header
            %s2273 = sphi 0, %s2277
            %p2274 = scmp.ge.s32.totalorder %s2273, 1
            %s2278 = sphi [#allocation1], [#allocation1]
            %s2279 = sphi %s1, %s1
          $region68: #{custom-call.70} parent=64 // loop_header_branch
            %2276 = sbr.rel (%p2274) target = $region72
          $region69: #{custom-call.70} parent=64 // loop_body
            %v2280 = vld [vmem:[%s2278] sm:$0xff]
            %2281 = vst [vmem:[%s2279] sm:$0xff] %v2280
            %v2282 = vld [vmem:[%s2278 + $0x8] sm:$0xff]
            %2283 = vst [vmem:[%s2279 + $0x8] sm:$0xff] %v2282
            %v2284 = vld [vmem:[%s2278 + $0x10] sm:$0xff]
            %2285 = vst [vmem:[%s2279 + $0x10] sm:$0xff] %v2284
            %v2286 = vld [vmem:[%s2278 + $0x18] sm:$0xff]
            %2287 = vst [vmem:[%s2279 + $0x18] sm:$0xff] %v2286
            %v2288 = vld [vmem:[%s2278 + $0x20] sm:$0xff]
            %2289 = vst [vmem:[%s2279 + $0x20] sm:$0xff] %v2288
            %v2290 = vld [vmem:[%s2278 + $0x28] sm:$0xff]
            %2291 = vst [vmem:[%s2279 + $0x28] sm:$0xff] %v2290
            %v2292 = vld [vmem:[%s2278 + $0x30] sm:$0xff]
            %2293 = vst [vmem:[%s2279 + $0x30] sm:$0xff] %v2292
            %v2294 = vld [vmem:[%s2278 + $0x38] sm:$0xff]
            %2295 = vst [vmem:[%s2279 + $0x38] sm:$0xff] %v2294
            %v2296 = vld [vmem:[%s2278 + $0x40] sm:$0xff]
            %2297 = vst [vmem:[%s2279 + $0x40] sm:$0xff] %v2296
            %v2298 = vld [vmem:[%s2278 + $0x48] sm:$0xff]
            %2299 = vst [vmem:[%s2279 + $0x48] sm:$0xff] %v2298
            %v2300 = vld [vmem:[%s2278 + $0x50] sm:$0xff]
            %2301 = vst [vmem:[%s2279 + $0x50] sm:$0xff] %v2300
            %v2302 = vld [vmem:[%s2278 + $0x58] sm:$0xff]
            %2303 = vst [vmem:[%s2279 + $0x58] sm:$0xff] %v2302
            %v2304 = vld [vmem:[%s2278 + $0x60] sm:$0xff]
            %2305 = vst [vmem:[%s2279 + $0x60] sm:$0xff] %v2304
            %v2306 = vld [vmem:[%s2278 + $0x68] sm:$0xff]
            %2307 = vst [vmem:[%s2279 + $0x68] sm:$0xff] %v2306
            %v2308 = vld [vmem:[%s2278 + $0x70] sm:$0xff]
            %2309 = vst [vmem:[%s2279 + $0x70] sm:$0xff] %v2308
            %v2310 = vld [vmem:[%s2278 + $0x78] sm:$0xff]
            %2311 = vst [vmem:[%s2279 + $0x78] sm:$0xff] %v2310
            %v2312 = vld [vmem:[%s2278 + $0x80] sm:$0xff]
            %2313 = vst [vmem:[%s2279 + $0x80] sm:$0xff] %v2312
            %v2314 = vld [vmem:[%s2278 + $0x88] sm:$0xff]
            %2315 = vst [vmem:[%s2279 + $0x88] sm:$0xff] %v2314
            %v2316 = vld [vmem:[%s2278 + $0x90] sm:$0xff]
            %2317 = vst [vmem:[%s2279 + $0x90] sm:$0xff] %v2316
            %v2318 = vld [vmem:[%s2278 + $0x98] sm:$0xff]
            %2319 = vst [vmem:[%s2279 + $0x98] sm:$0xff] %v2318
            %v2320 = vld [vmem:[%s2278 + $0xa0] sm:$0xff]
            %2321 = vst [vmem:[%s2279 + $0xa0] sm:$0xff] %v2320
            %v2322 = vld [vmem:[%s2278 + $0xa8] sm:$0xff]
            %2323 = vst [vmem:[%s2279 + $0xa8] sm:$0xff] %v2322
            %v2324 = vld [vmem:[%s2278 + $0xb0] sm:$0xff]
            %2325 = vst [vmem:[%s2279 + $0xb0] sm:$0xff] %v2324
            %v2326 = vld [vmem:[%s2278 + $0xb8] sm:$0xff]
            %2327 = vst [vmem:[%s2279 + $0xb8] sm:$0xff] %v2326
            %v2328 = vld [vmem:[%s2278 + $0xc0] sm:$0xff]
            %2329 = vst [vmem:[%s2279 + $0xc0] sm:$0xff] %v2328
            %v2330 = vld [vmem:[%s2278 + $0xc8] sm:$0xff]
            %2331 = vst [vmem:[%s2279 + $0xc8] sm:$0xff] %v2330
            %v2332 = vld [vmem:[%s2278 + $0xd0] sm:$0xff]
            %2333 = vst [vmem:[%s2279 + $0xd0] sm:$0xff] %v2332
            %v2334 = vld [vmem:[%s2278 + $0xd8] sm:$0xff]
            %2335 = vst [vmem:[%s2279 + $0xd8] sm:$0xff] %v2334
            %v2336 = vld [vmem:[%s2278 + $0xe0] sm:$0xff]
            %2337 = vst [vmem:[%s2279 + $0xe0] sm:$0xff] %v2336
            %v2338 = vld [vmem:[%s2278 + $0xe8] sm:$0xff]
            %2339 = vst [vmem:[%s2279 + $0xe8] sm:$0xff] %v2338
            %v2340 = vld [vmem:[%s2278 + $0xf0] sm:$0xff]
            %2341 = vst [vmem:[%s2279 + $0xf0] sm:$0xff] %v2340
            %v2342 = vld [vmem:[%s2278 + $0xf8] sm:$0xff]
            %2343 = vst [vmem:[%s2279 + $0xf8] sm:$0xff] %v2342
          $region70: #{custom-call.70} parent=64 // loop_footer
            %s2277 = sadd.s32 1, %s2273
          $region71: #{custom-call.70} parent=64 // loop_footer_branch
            %2272 = sbr.rel target = $region67
          $region72: #{custom-call.70} parent=64 // loop_exit
            _
        $region65: #{custom-call.70} parent=49 // pred_fallthru
          _
        // Predicated region
        $region73: #{custom-call.70} parent=49 // pred_check
          _
        $region74: #{custom-call.70} parent=49 // pred_check_branch
          %2345 = sbr.rel target = $region76
        $region75: #{custom-call.70} parent=49 // pred_region
          _
        $region76: #{custom-call.70} parent=49 // pred_fallthru
          _
      $region50: #{custom-call.70} parent=45 // pred_fallthru
        _
      // Predicated region
      $region51: #{custom-call.70} parent=45 // pred_check
        _
      $region52: #{custom-call.70} parent=45 // pred_check_branch
        %2195 = sbr.rel target = $region54
      $region53: #{custom-call.70} parent=45 // pred_region
        %s2197 = ssub.s32 256, 1
        loop: start=0, step=1, limit=1
        $region55: #{custom-call.70} parent=53 // loop_pre_header
          _
        $region56: #{custom-call.70} parent=53 // loop_header
          %s2199 = sphi 0, %s2203
          %p2200 = scmp.ge.s32.totalorder %s2199, 1
          %s2204 = sphi [#allocation1], [#allocation1]
          %s2205 = sphi %s1, %s1
        $region57: #{custom-call.70} parent=53 // loop_header_branch
          %2202 = sbr.rel (%p2200) target = $region61
        $region58: #{custom-call.70} parent=53 // loop_body
          %v2206 = vld [vmem:[%s2204] sm:%s2197]
          %2207 = vst [vmem:[%s2205] sm:%s2197] %v2206
          %v2208 = vld [vmem:[%s2204 + $0x8] sm:%s2197]
          %2209 = vst [vmem:[%s2205 + $0x8] sm:%s2197] %v2208
          %v2210 = vld [vmem:[%s2204 + $0x10] sm:%s2197]
          %2211 = vst [vmem:[%s2205 + $0x10] sm:%s2197] %v2210
          %v2212 = vld [vmem:[%s2204 + $0x18] sm:%s2197]
          %2213 = vst [vmem:[%s2205 + $0x18] sm:%s2197] %v2212
          %v2214 = vld [vmem:[%s2204 + $0x20] sm:%s2197]
          %2215 = vst [vmem:[%s2205 + $0x20] sm:%s2197] %v2214
          %v2216 = vld [vmem:[%s2204 + $0x28] sm:%s2197]
          %2217 = vst [vmem:[%s2205 + $0x28] sm:%s2197] %v2216
          %v2218 = vld [vmem:[%s2204 + $0x30] sm:%s2197]
          %2219 = vst [vmem:[%s2205 + $0x30] sm:%s2197] %v2218
          %v2220 = vld [vmem:[%s2204 + $0x38] sm:%s2197]
          %2221 = vst [vmem:[%s2205 + $0x38] sm:%s2197] %v2220
          %v2222 = vld [vmem:[%s2204 + $0x40] sm:%s2197]
          %2223 = vst [vmem:[%s2205 + $0x40] sm:%s2197] %v2222
          %v2224 = vld [vmem:[%s2204 + $0x48] sm:%s2197]
          %2225 = vst [vmem:[%s2205 + $0x48] sm:%s2197] %v2224
          %v2226 = vld [vmem:[%s2204 + $0x50] sm:%s2197]
          %2227 = vst [vmem:[%s2205 + $0x50] sm:%s2197] %v2226
          %v2228 = vld [vmem:[%s2204 + $0x58] sm:%s2197]
          %2229 = vst [vmem:[%s2205 + $0x58] sm:%s2197] %v2228
          %v2230 = vld [vmem:[%s2204 + $0x60] sm:%s2197]
          %2231 = vst [vmem:[%s2205 + $0x60] sm:%s2197] %v2230
          %v2232 = vld [vmem:[%s2204 + $0x68] sm:%s2197]
          %2233 = vst [vmem:[%s2205 + $0x68] sm:%s2197] %v2232
          %v2234 = vld [vmem:[%s2204 + $0x70] sm:%s2197]
          %2235 = vst [vmem:[%s2205 + $0x70] sm:%s2197] %v2234
          %v2236 = vld [vmem:[%s2204 + $0x78] sm:%s2197]
          %2237 = vst [vmem:[%s2205 + $0x78] sm:%s2197] %v2236
          %v2238 = vld [vmem:[%s2204 + $0x80] sm:%s2197]
          %2239 = vst [vmem:[%s2205 + $0x80] sm:%s2197] %v2238
          %v2240 = vld [vmem:[%s2204 + $0x88] sm:%s2197]
          %2241 = vst [vmem:[%s2205 + $0x88] sm:%s2197] %v2240
          %v2242 = vld [vmem:[%s2204 + $0x90] sm:%s2197]
          %2243 = vst [vmem:[%s2205 + $0x90] sm:%s2197] %v2242
          %v2244 = vld [vmem:[%s2204 + $0x98] sm:%s2197]
          %2245 = vst [vmem:[%s2205 + $0x98] sm:%s2197] %v2244
          %v2246 = vld [vmem:[%s2204 + $0xa0] sm:%s2197]
          %2247 = vst [vmem:[%s2205 + $0xa0] sm:%s2197] %v2246
          %v2248 = vld [vmem:[%s2204 + $0xa8] sm:%s2197]
          %2249 = vst [vmem:[%s2205 + $0xa8] sm:%s2197] %v2248
          %v2250 = vld [vmem:[%s2204 + $0xb0] sm:%s2197]
          %2251 = vst [vmem:[%s2205 + $0xb0] sm:%s2197] %v2250
          %v2252 = vld [vmem:[%s2204 + $0xb8] sm:%s2197]
          %2253 = vst [vmem:[%s2205 + $0xb8] sm:%s2197] %v2252
          %v2254 = vld [vmem:[%s2204 + $0xc0] sm:%s2197]
          %2255 = vst [vmem:[%s2205 + $0xc0] sm:%s2197] %v2254
          %v2256 = vld [vmem:[%s2204 + $0xc8] sm:%s2197]
          %2257 = vst [vmem:[%s2205 + $0xc8] sm:%s2197] %v2256
          %v2258 = vld [vmem:[%s2204 + $0xd0] sm:%s2197]
          %2259 = vst [vmem:[%s2205 + $0xd0] sm:%s2197] %v2258
          %v2260 = vld [vmem:[%s2204 + $0xd8] sm:%s2197]
          %2261 = vst [vmem:[%s2205 + $0xd8] sm:%s2197] %v2260
          %v2262 = vld [vmem:[%s2204 + $0xe0] sm:%s2197]
          %2263 = vst [vmem:[%s2205 + $0xe0] sm:%s2197] %v2262
          %v2264 = vld [vmem:[%s2204 + $0xe8] sm:%s2197]
          %2265 = vst [vmem:[%s2205 + $0xe8] sm:%s2197] %v2264
          %v2266 = vld [vmem:[%s2204 + $0xf0] sm:%s2197]
          %2267 = vst [vmem:[%s2205 + $0xf0] sm:%s2197] %v2266
          %v2268 = vld [vmem:[%s2204 + $0xf8] sm:%s2197]
          %2269 = vst [vmem:[%s2205 + $0xf8] sm:%s2197] %v2268
        $region59: #{custom-call.70} parent=53 // loop_footer
          %s2203 = sadd.s32 1, %s2199
        $region60: #{custom-call.70} parent=53 // loop_footer_branch
          %2198 = sbr.rel target = $region56
        $region61: #{custom-call.70} parent=53 // loop_exit
          _
      $region54: #{custom-call.70} parent=45 // pred_fallthru
        _
    $region46: #{custom-call.70} parent=1 // pred_fallthru
      _
    %2346 = vnop
    // Predicated region
    $region77: #{custom-call.70} parent=1 // pred_check
      _
    $region78: #{custom-call.70} parent=1 // pred_check_branch
      %2348 = sbr.rel (0) target = $region80
    $region79: #{custom-call.70} parent=1 // pred_region
      // Predicated region
      $region81: #{custom-call.70} parent=79 // pred_check
        _
      $region82: #{custom-call.70} parent=79 // pred_check_branch
        %2350 = sbr.rel (0) target = $region84
      $region83: #{custom-call.70} parent=79 // pred_region
        // Predicated region
        $region85: #{custom-call.70} parent=83 // pred_check
          _
        $region86: #{custom-call.70} parent=83 // pred_check_branch
          %2352 = sbr.rel target = $region88
        $region87: #{custom-call.70} parent=83 // pred_region
          // Predicated region
          $region100: #{custom-call.70} parent=87 // pred_check
            _
          $region101: #{custom-call.70} parent=87 // pred_check_branch
            %2368 = sbr.rel (0) target = $region103
          $region102: #{custom-call.70} parent=87 // pred_region
            %s2370 = ssub.s32 2, 1
            loop: start=0, step=1, limit=1
            $region104: #{custom-call.70} parent=102 // loop_pre_header
              _
            $region105: #{custom-call.70} parent=102 // loop_header
              %s2372 = sphi 0, %s2376
              %p2373 = scmp.ge.s32.totalorder %s2372, 1
              %s2377 = sphi [#allocation3], [#allocation3]
              %s2378 = sphi %s2, %s2
            $region106: #{custom-call.70} parent=102 // loop_header_branch
              %2375 = sbr.rel (%p2373) target = $region110
            $region107: #{custom-call.70} parent=102 // loop_body
              %v2379 = vld [vmem:[%s2377] sm:%s2370]
              %2380 = vst [vmem:[%s2378] sm:%s2370] %v2379
            $region108: #{custom-call.70} parent=102 // loop_footer
              %s2376 = sadd.s32 1, %s2372
            $region109: #{custom-call.70} parent=102 // loop_footer_branch
              %2371 = sbr.rel target = $region105
            $region110: #{custom-call.70} parent=102 // loop_exit
              _
          $region103: #{custom-call.70} parent=87 // pred_fallthru
            _
        $region88: #{custom-call.70} parent=83 // pred_fallthru
          _
        // Predicated region
        $region89: #{custom-call.70} parent=83 // pred_check
          _
        $region90: #{custom-call.70} parent=83 // pred_check_branch
          %2354 = sbr.rel (0) target = $region92
        $region91: #{custom-call.70} parent=83 // pred_region
          %s2356 = ssub.s32 2, 1
          loop: start=0, step=1, limit=1
          $region93: #{custom-call.70} parent=91 // loop_pre_header
            _
          $region94: #{custom-call.70} parent=91 // loop_header
            %s2358 = sphi 0, %s2362
            %p2359 = scmp.ge.s32.totalorder %s2358, 1
            %s2363 = sphi [#allocation3], [#allocation3]
            %s2364 = sphi %s2, %s2
          $region95: #{custom-call.70} parent=91 // loop_header_branch
            %2361 = sbr.rel (%p2359) target = $region99
          $region96: #{custom-call.70} parent=91 // loop_body
            %v2365 = vld [vmem:[%s2363] sm:%s2356]
            %2366 = vst [vmem:[%s2364] sm:%s2356] %v2365
          $region97: #{custom-call.70} parent=91 // loop_footer
            %s2362 = sadd.s32 1, %s2358
          $region98: #{custom-call.70} parent=91 // loop_footer_branch
            %2357 = sbr.rel target = $region94
          $region99: #{custom-call.70} parent=91 // loop_exit
            _
        $region92: #{custom-call.70} parent=83 // pred_fallthru
          _
      $region84: #{custom-call.70} parent=79 // pred_fallthru
        _
      %2381 = vnop
    $region80: #{custom-call.70} parent=1 // pred_fallthru
      _
    // Predicated region
    $region111: #{custom-call.70} parent=1 // pred_check
      _
    $region112: #{custom-call.70} parent=1 // pred_check_branch
      %2383 = sbr.rel (0) target = $region114
    $region113: #{custom-call.70} parent=1 // pred_region
      _
    $region114: #{custom-call.70} parent=1 // pred_fallthru
      _

// kernel: custom-call.71
$region0: #{custom-call.71}
  %s0 = inlined_call_operand.vmem [shape: f32[2,2], index: 0, kind: input, shape index: {}]
  %s1 = inlined_call_operand.vmem [shape: f32[2,2], index: 1, kind: output, shape index: {}]
  $region1: #{custom-call.71} parent=0
    #allocation0 [shape = 'u8[4096]{0}', space=vmem, size = 0x1000, scoped, tag = 'operand span for operand 0']
    #allocation1 [shape = 'u8[1024]{0}', space=vmem, size = 0x400, scoped, tag = 'packed  for operand 0']
    #allocation2 [shape = 'u8[4096]{0}', space=vmem, size = 0x1000, scoped, tag = 'operand span for operand 1']
    #allocation3 [shape = 'u8[1024]{0}', space=vmem, size = 0x400, scoped, tag = 'packed  for operand 1']
    %p3 = scmp.gt.s32.totalorder 2, 0
    // Predicated region
    $region2: #{custom-call.71} parent=1 // pred_check
      %p4 = pneg %p3
    $region3: #{custom-call.71} parent=1 // pred_check_branch
      %6 = sbr.rel (%p4) target = $region5
    $region4: #{custom-call.71} parent=1 // pred_region
      %s7 = sshra.s32 2, 3
      %p8 = scmp.gt.s32.totalorder %s7, 0
      // Predicated region
      $region6: #{custom-call.71} parent=4 // pred_check
        %p9 = pneg %p8
      $region7: #{custom-call.71} parent=4 // pred_check_branch
        %11 = sbr.rel (%p9) target = $region9
      $region8: #{custom-call.71} parent=4 // pred_region
        %s12 = ssub.s32 %s7, 1
        %s13 = smul.u32 %s12, 128
        %s14 = sshra.s32 %s13, 4
        %s15 = scalar_lea.vmem %s0, %s14
        %v16 = vld [vmem:[%s0] sm:$0xff]
        // While loop
        $region10: #{custom-call.71} parent=8 // loop_pre_header
          _
        $region11: #{custom-call.71} parent=8 // loop_header
          %s17 = sphi %s0, %s39
          %s18 = sphi [#allocation1], %s40
          %v19 = vphi %v16, %v41
          %s20 = ssub.s32 %s15, 64
          %p21 = scmp.gt.s32.totalorder %s17, %s20
        $region12: #{custom-call.71} parent=8 // loop_header_branch
          %23 = sbr.rel (%p21) target = $region16
        $region13: #{custom-call.71} parent=8 // loop_body
          %24 = vst [vmem:[%s18] sm:$0xff] %v19
          %v25 = vld [vmem:[%s17 + $0x8] sm:$0xff]
          %26 = vst [vmem:[%s18 + $0x8] sm:$0xff] %v25
          %v27 = vld [vmem:[%s17 + $0x10] sm:$0xff]
          %28 = vst [vmem:[%s18 + $0x10] sm:$0xff] %v27
          %v29 = vld [vmem:[%s17 + $0x18] sm:$0xff]
          %30 = vst [vmem:[%s18 + $0x18] sm:$0xff] %v29
          %v31 = vld [vmem:[%s17 + $0x20] sm:$0xff]
          %32 = vst [vmem:[%s18 + $0x20] sm:$0xff] %v31
          %v33 = vld [vmem:[%s17 + $0x28] sm:$0xff]
          %34 = vst [vmem:[%s18 + $0x28] sm:$0xff] %v33
          %v35 = vld [vmem:[%s17 + $0x30] sm:$0xff]
          %36 = vst [vmem:[%s18 + $0x30] sm:$0xff] %v35
          %v37 = vld [vmem:[%s17 + $0x38] sm:$0xff]
          %38 = vst [vmem:[%s18 + $0x38] sm:$0xff] %v37
        $region14: #{custom-call.71} parent=8 // loop_footer
          %s39 = scalar_lea.vmem %s17, 64
          %s40 = scalar_lea.vmem %s18, 64
          %v41 = vld [vmem:[%s17 + $0x40] sm:$0xff]
        $region15: #{custom-call.71} parent=8 // loop_footer_branch
          %42 = sbr.rel target = $region11
        $region16: #{custom-call.71} parent=8 // loop_exit
          _
        // While loop
        $region17: #{custom-call.71} parent=8 // loop_pre_header
          _
        $region18: #{custom-call.71} parent=8 // loop_header
          %s43 = sphi %s17, %s51
          %s44 = sphi %s18, %s52
          %v45 = vphi %v19, %v45
          %p46 = scmp.gt.s32.totalorder %s43, %s15
        $region19: #{custom-call.71} parent=8 // loop_header_branch
          %48 = sbr.rel (%p46) target = $region23
        $region20: #{custom-call.71} parent=8 // loop_body
          %v49 = vld [vmem:[%s43] sm:$0xff]
          %50 = vst [vmem:[%s44] sm:$0xff] %v49
        $region21: #{custom-call.71} parent=8 // loop_footer
          %s51 = scalar_lea.vmem %s43, 8
          %s52 = scalar_lea.vmem %s44, 8
        $region22: #{custom-call.71} parent=8 // loop_footer_branch
          %53 = sbr.rel target = $region18
        $region23: #{custom-call.71} parent=8 // loop_exit
          _
      $region9: #{custom-call.71} parent=4 // pred_fallthru
        _
      %s54 = sand.u32 2, 7
      %s55 = sshll.u32 1, %s54
      %s56 = ssub.s32 %s55, 1
      %s57 = smul.u32 %s7, 128
      %s58 = sshra.s32 %s57, 4
      %s59 = scalar_lea.vmem [#allocation1], %s58
      %s60 = smul.u32 %s7, 128
      %s61 = sshra.s32 %s60, 4
      %s62 = scalar_lea.vmem %s0, %s61
      %v63 = vld [vmem:[%s62] sm:%s56]
      %64 = vst [vmem:[%s59] sm:%s56] %v63
    $region5: #{custom-call.71} parent=1 // pred_fallthru
      _
    %s66 = sshll.u32 1, 2
    %s67 = ssub.s32 %s66, 1
    %v68 = vld [vmem:[#allocation1] sm:%s67]
    %69 = vst [vmem:[#allocation0] sm:%s67] %v68
    %v70 = vlaneseq
    %v71 = vand.u32 %v70, 127
    %v72 = vlaneseq
    %v73 = vshrl.u32 %v72, 7
    %vm75 = vcmp.eq.s32.totalorder %v71, %v73
    %v76 = vld [vmem:[#allocation0] sm:$0xff]
    %v77 = vlaneseq
    %v78 = vand.u32 %v77, 127
    %vm79 = vcmp.eq.s32.totalorder %v78, 0
    %v80 = vsel %vm79, %v76, 1.0
    %v81 = vsel %vm75, %v80, 0.0
    %s82 = scalar_lea.vmem [#allocation0], 1
    %v83 = vld [vmem:[%s82] ss:$0 sm:$0xff]
    %vm84 = vcmask 15360
    %v85 = vsel %vm84, %v83, 0.0
    %v86 = vlaneseq
    %v87 = vand.u32 %v86, 127
    %vm88 = vcmp.eq.s32.totalorder %v87, 1
    %v89 = vmul.f32 %v85, %v81
    %90 = vadd.xlane.f32.xlu0 %v89
    %v91 = vpop.xlane.xlu0 %90
    %v92 = vsel %vm88, %v91, %v81
    %93 = vst [vmem:[#allocation2] sm:$0xff] %v92
    %s95 = sshll.u32 1, 2
    %s96 = ssub.s32 %s95, 1
    %v98 = vld [vmem:[#allocation2] sm:%s96]
    %s99 = sshll.u32 1, 2
    %s100 = ssub.s32 %s99, 1
    %101 = vst [vmem:[#allocation3] sm:%s100] %v98
    %p103 = scmp.gt.s32.totalorder 2, 0
    // Predicated region
    $region24: #{custom-call.71} parent=1 // pred_check
      %p104 = pneg %p103
    $region25: #{custom-call.71} parent=1 // pred_check_branch
      %106 = sbr.rel (%p104) target = $region27
    $region26: #{custom-call.71} parent=1 // pred_region
      %s107 = sshra.s32 2, 3
      %p108 = scmp.gt.s32.totalorder %s107, 0
      // Predicated region
      $region28: #{custom-call.71} parent=26 // pred_check
        %p109 = pneg %p108
      $region29: #{custom-call.71} parent=26 // pred_check_branch
        %111 = sbr.rel (%p109) target = $region31
      $region30: #{custom-call.71} parent=26 // pred_region
        %s112 = ssub.s32 %s107, 1
        %s113 = smul.u32 %s112, 128
        %s114 = sshra.s32 %s113, 4
        %s115 = scalar_lea.vmem [#allocation3], %s114
        %v116 = vld [vmem:[#allocation3] sm:$0xff]
        // While loop
        $region32: #{custom-call.71} parent=30 // loop_pre_header
          _
        $region33: #{custom-call.71} parent=30 // loop_header
          %s117 = sphi [#allocation3], %s139
          %s118 = sphi %s1, %s140
          %v119 = vphi %v116, %v141
          %s120 = ssub.s32 %s115, 64
          %p121 = scmp.gt.s32.totalorder %s117, %s120
        $region34: #{custom-call.71} parent=30 // loop_header_branch
          %123 = sbr.rel (%p121) target = $region38
        $region35: #{custom-call.71} parent=30 // loop_body
          %124 = vst [vmem:[%s118] sm:$0xff] %v119
          %v125 = vld [vmem:[%s117 + $0x8] sm:$0xff]
          %126 = vst [vmem:[%s118 + $0x8] sm:$0xff] %v125
          %v127 = vld [vmem:[%s117 + $0x10] sm:$0xff]
          %128 = vst [vmem:[%s118 + $0x10] sm:$0xff] %v127
          %v129 = vld [vmem:[%s117 + $0x18] sm:$0xff]
          %130 = vst [vmem:[%s118 + $0x18] sm:$0xff] %v129
          %v131 = vld [vmem:[%s117 + $0x20] sm:$0xff]
          %132 = vst [vmem:[%s118 + $0x20] sm:$0xff] %v131
          %v133 = vld [vmem:[%s117 + $0x28] sm:$0xff]
          %134 = vst [vmem:[%s118 + $0x28] sm:$0xff] %v133
          %v135 = vld [vmem:[%s117 + $0x30] sm:$0xff]
          %136 = vst [vmem:[%s118 + $0x30] sm:$0xff] %v135
          %v137 = vld [vmem:[%s117 + $0x38] sm:$0xff]
          %138 = vst [vmem:[%s118 + $0x38] sm:$0xff] %v137
        $region36: #{custom-call.71} parent=30 // loop_footer
          %s139 = scalar_lea.vmem %s117, 64
          %s140 = scalar_lea.vmem %s118, 64
          %v141 = vld [vmem:[%s117 + $0x40] sm:$0xff]
        $region37: #{custom-call.71} parent=30 // loop_footer_branch
          %142 = sbr.rel target = $region33
        $region38: #{custom-call.71} parent=30 // loop_exit
          _
        // While loop
        $region39: #{custom-call.71} parent=30 // loop_pre_header
          _
        $region40: #{custom-call.71} parent=30 // loop_header
          %s143 = sphi %s117, %s151
          %s144 = sphi %s118, %s152
          %v145 = vphi %v119, %v145
          %p146 = scmp.gt.s32.totalorder %s143, %s115
        $region41: #{custom-call.71} parent=30 // loop_header_branch
          %148 = sbr.rel (%p146) target = $region45
        $region42: #{custom-call.71} parent=30 // loop_body
          %v149 = vld [vmem:[%s143] sm:$0xff]
          %150 = vst [vmem:[%s144] sm:$0xff] %v149
        $region43: #{custom-call.71} parent=30 // loop_footer
          %s151 = scalar_lea.vmem %s143, 8
          %s152 = scalar_lea.vmem %s144, 8
        $region44: #{custom-call.71} parent=30 // loop_footer_branch
          %153 = sbr.rel target = $region40
        $region45: #{custom-call.71} parent=30 // loop_exit
          _
      $region31: #{custom-call.71} parent=26 // pred_fallthru
        _
      %s154 = sand.u32 2, 7
      %s155 = sshll.u32 1, %s154
      %s156 = ssub.s32 %s155, 1
      %s157 = smul.u32 %s107, 128
      %s158 = sshra.s32 %s157, 4
      %s159 = scalar_lea.vmem %s1, %s158
      %s160 = smul.u32 %s107, 128
      %s161 = sshra.s32 %s160, 4
      %s162 = scalar_lea.vmem [#allocation3], %s161
      %v163 = vld [vmem:[%s162] sm:%s156]
      %164 = vst [vmem:[%s159] sm:%s156] %v163
    $region27: #{custom-call.71} parent=1 // pred_fallthru
      _

// kernel: custom-call.94
$region0: #{custom-call.94}
  %s0 = inlined_call_operand.vmem [shape: f32[4,2], index: 0, kind: input, shape index: {}]
  %s1 = inlined_call_operand.vmem [shape: f32[4,2], index: 1, kind: output, shape index: {0}]
  %s2 = inlined_call_operand.vmem [shape: f32[2], index: 2, kind: output, shape index: {1}]
  %3 = xla_tuple %s1, %s2
  $region1: #{custom-call.94} parent=0
    #allocation0 [shape = 'u8[4096]{0}', space=vmem, size = 0x1000, scoped, tag = 'operand span for operand 0']
    #allocation1 [shape = 'u8[2048]{0}', space=vmem, size = 0x800, scoped, tag = 'packed  for operand 0']
    #allocation2 [shape = 'u8[4096]{0}', space=vmem, size = 0x1000, scoped, tag = 'operand span for operand 1']
    #allocation3 [shape = 'u8[2048]{0}', space=vmem, size = 0x800, scoped, tag = 'packed  for operand 1']
    #allocation4 [shape = 'u8[4096]{0}', space=vmem, size = 0x1000, scoped, tag = 'operand span for operand 2']
    #allocation5 [shape = 'u8[512]{0}', space=vmem, size = 0x400, scoped, tag = 'packed  for operand 2']
    #allocation6 [shape = 'f32[4,128]{1,0}', space=vmem, size = 0x1000, scoped, tag = 'scratch for Householder reflectors']
    // Predicated region
    $region2: #{custom-call.94} parent=1 // pred_check
      _
    $region3: #{custom-call.94} parent=1 // pred_check_branch
      %5 = sbr.rel (0) target = $region5
    $region4: #{custom-call.94} parent=1 // pred_region
      // Predicated region
      $region6: #{custom-call.94} parent=4 // pred_check
        _
      $region7: #{custom-call.94} parent=4 // pred_check_branch
        %7 = sbr.rel target = $region9
      $region8: #{custom-call.94} parent=4 // pred_region
        // Predicated region
        $region21: #{custom-call.94} parent=8 // pred_check
          _
        $region22: #{custom-call.94} parent=8 // pred_check_branch
          %23 = sbr.rel (0) target = $region24
        $region23: #{custom-call.94} parent=8 // pred_region
          %s25 = ssub.s32 16, 1
          loop: start=0, step=1, limit=1
          $region25: #{custom-call.94} parent=23 // loop_pre_header
            _
          $region26: #{custom-call.94} parent=23 // loop_header
            %s27 = sphi 0, %s31
            %p28 = scmp.ge.s32.totalorder %s27, 1
            %s32 = sphi %s0, %s0
            %s33 = sphi [#allocation1], [#allocation1]
          $region27: #{custom-call.94} parent=23 // loop_header_branch
            %30 = sbr.rel (%p28) target = $region31
          $region28: #{custom-call.94} parent=23 // loop_body
            %v34 = vld [vmem:[%s32] sm:%s25]
            %35 = vst [vmem:[%s33] sm:%s25] %v34
          $region29: #{custom-call.94} parent=23 // loop_footer
            %s31 = sadd.s32 1, %s27
          $region30: #{custom-call.94} parent=23 // loop_footer_branch
            %26 = sbr.rel target = $region26
          $region31: #{custom-call.94} parent=23 // loop_exit
            _
        $region24: #{custom-call.94} parent=8 // pred_fallthru
          _
      $region9: #{custom-call.94} parent=4 // pred_fallthru
        _
      // Predicated region
      $region10: #{custom-call.94} parent=4 // pred_check
        _
      $region11: #{custom-call.94} parent=4 // pred_check_branch
        %9 = sbr.rel (0) target = $region13
      $region12: #{custom-call.94} parent=4 // pred_region
        %s11 = ssub.s32 16, 1
        loop: start=0, step=1, limit=1
        $region14: #{custom-call.94} parent=12 // loop_pre_header
          _
        $region15: #{custom-call.94} parent=12 // loop_header
          %s13 = sphi 0, %s17
          %p14 = scmp.ge.s32.totalorder %s13, 1
          %s18 = sphi %s0, %s0
          %s19 = sphi [#allocation1], [#allocation1]
        $region16: #{custom-call.94} parent=12 // loop_header_branch
          %16 = sbr.rel (%p14) target = $region20
        $region17: #{custom-call.94} parent=12 // loop_body
          %v20 = vld [vmem:[%s18] sm:%s11]
          %21 = vst [vmem:[%s19] sm:%s11] %v20
        $region18: #{custom-call.94} parent=12 // loop_footer
          %s17 = sadd.s32 1, %s13
        $region19: #{custom-call.94} parent=12 // loop_footer_branch
          %12 = sbr.rel target = $region15
        $region20: #{custom-call.94} parent=12 // loop_exit
          _
      $region13: #{custom-call.94} parent=4 // pred_fallthru
        _
    $region5: #{custom-call.94} parent=1 // pred_fallthru
      _
    %36 = vnop
    %s38 = sshll.u32 1, 4
    %s39 = ssub.s32 %s38, 1
    %v40 = vld [vmem:[#allocation1] sm:%s39]
    %41 = vst [vmem:[#allocation0] sm:%s39] %v40
    %v42 = vld [vmem:[#allocation0] sm:$0xff]
    %43 = vst [vmem:[#allocation2] sm:$0xff] %v42
    %44 = vst [vmem:[#allocation4] sm:$0x1] 0.0
    loop: start=0, step=1, limit=2
    $region32: #{custom-call.94} parent=1 // loop_pre_header
      _
    $region33: #{custom-call.94} parent=1 // loop_header
      %s46 = sphi 0, %s50
      %p47 = scmp.ge.s32.totalorder %s46, 2
    $region34: #{custom-call.94} parent=1 // loop_header_branch
      %49 = sbr.rel (%p47) target = $region38
    $region35: #{custom-call.94} parent=1 // loop_body
      %v51 = vld [vmem:[#allocation2] sm:$0xff]
      %v52 = vlaneseq
      %v53 = vshrl.u32 %v52, 7
      %v55 = vstv %s46
      %vm56 = vcmp.gt.s32.totalorder %v53, %v55
      %vm57 = vcmp.lt.s32.totalorder %v53, 4
      %vm58 = vmand %vm56, %vm57
      %v59 = vsel %vm58, %v51, 0.0
      %v60 = vmul.f32 %v59, %v59
      %v61 = vrot.slane %v60, 4
      %v62 = vadd.f32 %v60, %v61
      %v63 = vrot.slane %v62, 2
      %v64 = vadd.f32 %v62, %v63
      %v65 = vrot.slane %v64, 1
      %v66 = vadd.f32 %v64, %v65
      %v67 = vrsqrt.pop %v66
      %v68 = vmul.f32 %v66, %v67
      %vm69 = vcmp.eq.f32.partialorder %v66, inf
      %v70 = vsel %vm69, %v66, %v68
      %vm71 = vcmp.eq.f32.partialorder %v66, 0.0
      %v72 = vand.u32 %v66, 2147483648
      %v73 = vsel %vm71, %v72, %v70
      %vm74 = vcmp.eq.f32.partialorder %v66, 0.0
      %s75 = sshrl.u32 %s46, 3
      %s76 = sand.u32 %s46, 7
      %s77 = smul.addr %s75, 8
      %s78 = sadd.s32 %s76, %s77
      %s79 = scalar_lea.vmem [#allocation2], %s78
      %v80 = vld [vmem:[%s79] ss:$0 sm:$0xff]
      %v81 = vand.u32 2147483647, %v80
      %v82 = vmax.f32 %v81, 0.0
      %v83 = vand.u32 2147483647, %v73
      %v84 = vmax.f32 %v82, %v83
      %v85 = vrcp.pop %v84
      %v86 = vmul.f32 %v81, %v85
      %v87 = vmul.f32 %v86, %v86
      %v88 = vrcp.pop %v84
      %v89 = vmul.f32 0.0, %v88
      %v90 = vmul.f32 %v89, %v89
      %v91 = vadd.f32 %v87, %v90
      %v92 = vrcp.pop %v84
      %v93 = vmul.f32 %v83, %v92
      %v94 = vmul.f32 %v93, %v93
      %v95 = vadd.f32 %v91, %v94
      %vm96 = vcmp.eq.f32.partialorder %v84, 0.0
      %v97 = vrsqrt.pop %v95
      %v98 = vmul.f32 %v95, %v97
      %vm99 = vcmp.eq.f32.partialorder %v95, inf
      %v100 = vsel %vm99, %v95, %v98
      %vm101 = vcmp.eq.f32.partialorder %v95, 0.0
      %v102 = vand.u32 %v95, 2147483648
      %v103 = vsel %vm101, %v102, %v100
      %v104 = vmul.f32 %v84, %v103
      %v105 = vsel %vm96, 0.0, %v104
      %vm106 = vcmp.lt.f32.partialorder %v80, 0.0
      %v107 = vxor.u32 %v105, 2147483648
      %v108 = vsel %vm106, %v105, %v107
      %v109 = vsub.f32 %v108, %v80
      %v110 = vrcp.pop %v108
      %v111 = vmul.f32 %v109, %v110
      %v112 = vsel %vm74, %v80, %v108
      %v113 = vsel %vm74, 0.0, %v111
      %v114 = vsub.f32 %v80, %v112
      %s115 = smov [#allocation2]
      %v116 = vlaneseq
      %v117 = vshrl.u32 %v116, 7
      %v118 = vmov %v117
      %v119 = vld [vmem:[%s115] sm:$0xff]
      %v121 = vstv %s46
      %vm122 = vcmp.gt.s32.totalorder %v118, %v121
      %vm123 = vcmp.lt.s32.totalorder %v118, 4
      %vm124 = vmand %vm122, %vm123
      %v125 = vsel %vm124, %v119, 0.0
      %v126 = vrcp.pop %v114
      %v127 = vmul.f32 %v125, %v126
      %v128 = vsel %vm74, 0.0, %v127
      %v129 = vstv %s46
      %v130 = vlaneseq
      %v131 = vand.u32 %v130, 127
      %vm132 = vcmp.eq.s32.totalorder %v131, %v129
      %v133 = vsel %vm132, %v128, 0.0
      %134 = vadd.xlane.f32.xlu0 %v133
      %v135 = vpop.xlane.xlu0 %134
      %136 = vst [vmem:[#allocation6] sm:$0xff] %v135
      %s137 = scalar_lea.vmem [#allocation6], %s46
      %138 = vst [vmem:[%s137] sm:$0x1] 1.0
      %v139 = vstv %s46
      %v140 = vlaneseq
      %v141 = vand.u32 %v140, 127
      %vm142 = vcmp.eq.s32.totalorder %v141, %v139
      %v143 = vsel %vm142, %v113, 0.0
      %144 = vadd.xlane.f32.xlu0 %v143
      %v145 = vpop.xlane.xlu0 %144
      %v146 = vstv %s46
      %v147 = vlaneseq
      %v148 = vand.u32 %v147, 127
      %vm149 = vcmp.eq.s32.totalorder %v148, %v146
      %v150 = vld [vmem:[#allocation4] ss:$0 sm:$0xff]
      %v151 = vsel %vm149, %v145, %v150
      %152 = vst [vmem:[#allocation4] sm:$0x1] %v151
      %s153 = smov [#allocation2]
      %s154 = smov [#allocation6]
      %v155 = vlaneseq
      %v156 = vshrl.u32 %v155, 7
      %v157 = vmov %v156
      %v159 = vld [vmem:[%s154] sm:$0xff]
      %v160 = vld [vmem:[%s153] sm:$0xff]
      %v161 = vmul.f32 %v159, %v160
      %vm162 = vcmp.lt.s32.totalorder %v157, 4
      %v163 = vsel %vm162, %v161, 0.0
      %v164 = vrot.slane %v163, 4
      %v165 = vadd.f32 %v163, %v164
      %v166 = vrot.slane %v165, 2
      %v167 = vadd.f32 %v165, %v166
      %v168 = vrot.slane %v167, 1
      %v169 = vadd.f32 %v167, %v168
      %s170 = smov %s153
      %s171 = smov %s154
      %v172 = vlaneseq
      %v173 = vshrl.u32 %v172, 7
      %v174 = vmov %v173
      %v175 = vmul.f32 %v169, %v145
      %v177 = vlaneseq
      %v178 = vand.u32 %v177, 127
      %v179 = vld [vmem:[%s171] sm:$0xff]
      %v180 = vmul.f32 %v179, %v175
      %v181 = vld [vmem:[%s170] sm:$0xff]
      %v182 = vstv %s46
      %vm183 = vcmp.gt.s32.totalorder %v178, %v182
      %v184 = vsub.f32 %v181, %v180
      %v185 = vsel %vm183, %v184, %v181
      %v186 = vstv %s46
      %v187 = vlaneseq
      %v188 = vand.u32 %v187, 127
      %vm189 = vcmp.eq.s32.totalorder %v188, %v186
      %v190 = vstv %s46
      %vm191 = vcmp.ge.s32.totalorder %v174, %v190
      %vm192 = vmand %vm189, %vm191
      %v193 = vsel %vm192, %v179, %v185
      %194 = vst [vmem:[%s170] sm:$0xff] %v193
      %s195 = scalar_lea.vmem %s170, %s46
      %v196 = vld [vmem:[%s195] ss:$0 sm:$0xff]
      %v197 = vstv %s46
      %v198 = vlaneseq
      %v199 = vand.u32 %v198, 127
      %vm200 = vcmp.eq.s32.totalorder %v199, %v197
      %v201 = vsel %vm200, %v112, %v196
      %202 = vst [vmem:[%s195] sm:$0x1] %v201
    $region36: #{custom-call.94} parent=1 // loop_footer
      %s50 = sadd.s32 1, %s46
    $region37: #{custom-call.94} parent=1 // loop_footer_branch
      %45 = sbr.rel target = $region33
    $region38: #{custom-call.94} parent=1 // loop_exit
      _
    %s204 = sshll.u32 1, 4
    %s205 = ssub.s32 %s204, 1
    %v207 = vld [vmem:[#allocation2] sm:%s205]
    %s208 = sshll.u32 1, 4
    %s209 = ssub.s32 %s208, 1
    %210 = vst [vmem:[#allocation3] sm:%s209] %v207
    %s212 = sshll.u32 1, 1
    %s213 = ssub.s32 %s212, 1
    %v215 = vld [vmem:[#allocation4] sm:%s213]
    %s216 = sshll.u32 1, 1
    %s217 = ssub.s32 %s216, 1
    %218 = vst [vmem:[#allocation5] sm:%s217] %v215
    // Predicated region
    $region39: #{custom-call.94} parent=1 // pred_check
      _
    $region40: #{custom-call.94} parent=1 // pred_check_branch
      %220 = sbr.rel (0) target = $region42
    $region41: #{custom-call.94} parent=1 // pred_region
      // Predicated region
      $region43: #{custom-call.94} parent=41 // pred_check
        _
      $region44: #{custom-call.94} parent=41 // pred_check_branch
        %222 = sbr.rel target = $region46
      $region45: #{custom-call.94} parent=41 // pred_region
        // Predicated region
        $region58: #{custom-call.94} parent=45 // pred_check
          _
        $region59: #{custom-call.94} parent=45 // pred_check_branch
          %238 = sbr.rel (0) target = $region61
        $region60: #{custom-call.94} parent=45 // pred_region
          %s240 = ssub.s32 16, 1
          loop: start=0, step=1, limit=1
          $region62: #{custom-call.94} parent=60 // loop_pre_header
            _
          $region63: #{custom-call.94} parent=60 // loop_header
            %s242 = sphi 0, %s246
            %p243 = scmp.ge.s32.totalorder %s242, 1
            %s247 = sphi [#allocation3], [#allocation3]
            %s248 = sphi %s1, %s1
          $region64: #{custom-call.94} parent=60 // loop_header_branch
            %245 = sbr.rel (%p243) target = $region68
          $region65: #{custom-call.94} parent=60 // loop_body
            %v249 = vld [vmem:[%s247] sm:%s240]
            %250 = vst [vmem:[%s248] sm:%s240] %v249
          $region66: #{custom-call.94} parent=60 // loop_footer
            %s246 = sadd.s32 1, %s242
          $region67: #{custom-call.94} parent=60 // loop_footer_branch
            %241 = sbr.rel target = $region63
          $region68: #{custom-call.94} parent=60 // loop_exit
            _
        $region61: #{custom-call.94} parent=45 // pred_fallthru
          _
      $region46: #{custom-call.94} parent=41 // pred_fallthru
        _
      // Predicated region
      $region47: #{custom-call.94} parent=41 // pred_check
        _
      $region48: #{custom-call.94} parent=41 // pred_check_branch
        %224 = sbr.rel (0) target = $region50
      $region49: #{custom-call.94} parent=41 // pred_region
        %s226 = ssub.s32 16, 1
        loop: start=0, step=1, limit=1
        $region51: #{custom-call.94} parent=49 // loop_pre_header
          _
        $region52: #{custom-call.94} parent=49 // loop_header
          %s228 = sphi 0, %s232
          %p229 = scmp.ge.s32.totalorder %s228, 1
          %s233 = sphi [#allocation3], [#allocation3]
          %s234 = sphi %s1, %s1
        $region53: #{custom-call.94} parent=49 // loop_header_branch
          %231 = sbr.rel (%p229) target = $region57
        $region54: #{custom-call.94} parent=49 // loop_body
          %v235 = vld [vmem:[%s233] sm:%s226]
          %236 = vst [vmem:[%s234] sm:%s226] %v235
        $region55: #{custom-call.94} parent=49 // loop_footer
          %s232 = sadd.s32 1, %s228
        $region56: #{custom-call.94} parent=49 // loop_footer_branch
          %227 = sbr.rel target = $region52
        $region57: #{custom-call.94} parent=49 // loop_exit
          _
      $region50: #{custom-call.94} parent=41 // pred_fallthru
        _
    $region42: #{custom-call.94} parent=1 // pred_fallthru
      _
    %251 = vnop
    // Predicated region
    $region69: #{custom-call.94} parent=1 // pred_check
      _
    $region70: #{custom-call.94} parent=1 // pred_check_branch
      %253 = sbr.rel (0) target = $region72
    $region71: #{custom-call.94} parent=1 // pred_region
      // Predicated region
      $region73: #{custom-call.94} parent=71 // pred_check
        _
      $region74: #{custom-call.94} parent=71 // pred_check_branch
        %255 = sbr.rel (0) target = $region76
      $region75: #{custom-call.94} parent=71 // pred_region
        // Predicated region
        $region77: #{custom-call.94} parent=75 // pred_check
          _
        $region78: #{custom-call.94} parent=75 // pred_check_branch
          %257 = sbr.rel target = $region80
        $region79: #{custom-call.94} parent=75 // pred_region
          // Predicated region
          $region92: #{custom-call.94} parent=79 // pred_check
            _
          $region93: #{custom-call.94} parent=79 // pred_check_branch
            %273 = sbr.rel (0) target = $region95
          $region94: #{custom-call.94} parent=79 // pred_region
            %s275 = ssub.s32 2, 1
            loop: start=0, step=1, limit=1
            $region96: #{custom-call.94} parent=94 // loop_pre_header
              _
            $region97: #{custom-call.94} parent=94 // loop_header
              %s277 = sphi 0, %s281
              %p278 = scmp.ge.s32.totalorder %s277, 1
              %s282 = sphi [#allocation5], [#allocation5]
              %s283 = sphi %s2, %s2
            $region98: #{custom-call.94} parent=94 // loop_header_branch
              %280 = sbr.rel (%p278) target = $region102
            $region99: #{custom-call.94} parent=94 // loop_body
              %v284 = vld [vmem:[%s282] sm:%s275]
              %285 = vst [vmem:[%s283] sm:%s275] %v284
            $region100: #{custom-call.94} parent=94 // loop_footer
              %s281 = sadd.s32 1, %s277
            $region101: #{custom-call.94} parent=94 // loop_footer_branch
              %276 = sbr.rel target = $region97
            $region102: #{custom-call.94} parent=94 // loop_exit
              _
          $region95: #{custom-call.94} parent=79 // pred_fallthru
            _
        $region80: #{custom-call.94} parent=75 // pred_fallthru
          _
        // Predicated region
        $region81: #{custom-call.94} parent=75 // pred_check
          _
        $region82: #{custom-call.94} parent=75 // pred_check_branch
          %259 = sbr.rel (0) target = $region84
        $region83: #{custom-call.94} parent=75 // pred_region
          %s261 = ssub.s32 2, 1
          loop: start=0, step=1, limit=1
          $region85: #{custom-call.94} parent=83 // loop_pre_header
            _
          $region86: #{custom-call.94} parent=83 // loop_header
            %s263 = sphi 0, %s267
            %p264 = scmp.ge.s32.totalorder %s263, 1
            %s268 = sphi [#allocation5], [#allocation5]
            %s269 = sphi %s2, %s2
          $region87: #{custom-call.94} parent=83 // loop_header_branch
            %266 = sbr.rel (%p264) target = $region91
          $region88: #{custom-call.94} parent=83 // loop_body
            %v270 = vld [vmem:[%s268] sm:%s261]
            %271 = vst [vmem:[%s269] sm:%s261] %v270
          $region89: #{custom-call.94} parent=83 // loop_footer
            %s267 = sadd.s32 1, %s263
          $region90: #{custom-call.94} parent=83 // loop_footer_branch
            %262 = sbr.rel target = $region86
          $region91: #{custom-call.94} parent=83 // loop_exit
            _
        $region84: #{custom-call.94} parent=75 // pred_fallthru
          _
      $region76: #{custom-call.94} parent=71 // pred_fallthru
        _
      %286 = vnop
    $region72: #{custom-call.94} parent=1 // pred_fallthru
      _
    // Predicated region
    $region103: #{custom-call.94} parent=1 // pred_check
      _
    $region104: #{custom-call.94} parent=1 // pred_check_branch
      %288 = sbr.rel (0) target = $region106
    $region105: #{custom-call.94} parent=1 // pred_region
      _
    $region106: #{custom-call.94} parent=1 // pred_fallthru
      _

// kernel: custom-call.96
$region0: #{custom-call.96}
  %s0 = inlined_call_operand.vmem [shape: f32[2,2], index: 0, kind: input, shape index: {}]
  %s1 = inlined_call_operand.vmem [shape: f32[2,2], index: 1, kind: output, shape index: {}]
  $region1: #{custom-call.96} parent=0
    #allocation0 [shape = 'u8[4096]{0}', space=vmem, size = 0x1000, scoped, tag = 'operand span for operand 0']
    #allocation1 [shape = 'u8[1024]{0}', space=vmem, size = 0x400, scoped, tag = 'packed  for operand 0']
    #allocation2 [shape = 'u8[4096]{0}', space=vmem, size = 0x1000, scoped, tag = 'operand span for operand 1']
    #allocation3 [shape = 'u8[1024]{0}', space=vmem, size = 0x400, scoped, tag = 'packed  for operand 1']
    // Predicated region
    $region2: #{custom-call.96} parent=1 // pred_check
      _
    $region3: #{custom-call.96} parent=1 // pred_check_branch
      %3 = sbr.rel (0) target = $region5
    $region4: #{custom-call.96} parent=1 // pred_region
      // Predicated region
      $region6: #{custom-call.96} parent=4 // pred_check
        _
      $region7: #{custom-call.96} parent=4 // pred_check_branch
        %5 = sbr.rel target = $region9
      $region8: #{custom-call.96} parent=4 // pred_region
        // Predicated region
        $region21: #{custom-call.96} parent=8 // pred_check
          _
        $region22: #{custom-call.96} parent=8 // pred_check_branch
          %21 = sbr.rel (0) target = $region24
        $region23: #{custom-call.96} parent=8 // pred_region
          %s23 = ssub.s32 4, 1
          loop: start=0, step=1, limit=1
          $region25: #{custom-call.96} parent=23 // loop_pre_header
            _
          $region26: #{custom-call.96} parent=23 // loop_header
            %s25 = sphi 0, %s29
            %p26 = scmp.ge.s32.totalorder %s25, 1
            %s30 = sphi %s0, %s0
            %s31 = sphi [#allocation1], [#allocation1]
          $region27: #{custom-call.96} parent=23 // loop_header_branch
            %28 = sbr.rel (%p26) target = $region31
          $region28: #{custom-call.96} parent=23 // loop_body
            %v32 = vld [vmem:[%s30] sm:%s23]
            %33 = vst [vmem:[%s31] sm:%s23] %v32
          $region29: #{custom-call.96} parent=23 // loop_footer
            %s29 = sadd.s32 1, %s25
          $region30: #{custom-call.96} parent=23 // loop_footer_branch
            %24 = sbr.rel target = $region26
          $region31: #{custom-call.96} parent=23 // loop_exit
            _
        $region24: #{custom-call.96} parent=8 // pred_fallthru
          _
      $region9: #{custom-call.96} parent=4 // pred_fallthru
        _
      // Predicated region
      $region10: #{custom-call.96} parent=4 // pred_check
        _
      $region11: #{custom-call.96} parent=4 // pred_check_branch
        %7 = sbr.rel (0) target = $region13
      $region12: #{custom-call.96} parent=4 // pred_region
        %s9 = ssub.s32 4, 1
        loop: start=0, step=1, limit=1
        $region14: #{custom-call.96} parent=12 // loop_pre_header
          _
        $region15: #{custom-call.96} parent=12 // loop_header
          %s11 = sphi 0, %s15
          %p12 = scmp.ge.s32.totalorder %s11, 1
          %s16 = sphi %s0, %s0
          %s17 = sphi [#allocation1], [#allocation1]
        $region16: #{custom-call.96} parent=12 // loop_header_branch
          %14 = sbr.rel (%p12) target = $region20
        $region17: #{custom-call.96} parent=12 // loop_body
          %v18 = vld [vmem:[%s16] sm:%s9]
          %19 = vst [vmem:[%s17] sm:%s9] %v18
        $region18: #{custom-call.96} parent=12 // loop_footer
          %s15 = sadd.s32 1, %s11
        $region19: #{custom-call.96} parent=12 // loop_footer_branch
          %10 = sbr.rel target = $region15
        $region20: #{custom-call.96} parent=12 // loop_exit
          _
      $region13: #{custom-call.96} parent=4 // pred_fallthru
        _
    $region5: #{custom-call.96} parent=1 // pred_fallthru
      _
    %34 = vnop
    %s36 = sshll.u32 1, 2
    %s37 = ssub.s32 %s36, 1
    %v38 = vld [vmem:[#allocation1] sm:%s37]
    %39 = vst [vmem:[#allocation0] sm:%s37] %v38
    %40 = vst [vmem:[#allocation2] sm:$0xff] 0.0
    %vm41 = vcmask 7168
    %v42 = vld [vmem:[#allocation2] ss:$0 sm:$0xff]
    %v43 = vld [vmem:[#allocation0] ss:$0 sm:$0xff]
    %v44 = vmul.f32 %v42, %v42
    %45 = vadd.xlane.f32.xlu0 %v44
    %v46 = vpop.xlane.xlu0 %45
    %v47 = vsub.f32 %v43, %v46
    %v48 = vrsqrt.pop %v47
    %v49 = vld [vmem:[#allocation0] sm:$0xff]
    %v50 = vld [vmem:[#allocation2] sm:$0xff]
    %v51 = vmul.f32 %v50, %v42
    %52 = vadd.xlane.f32.xlu0 %v51
    %v53 = vpop.xlane.xlu0 %52
    %v54 = vsub.f32 %v49, %v53
    %v55 = vmul.f32 %v54, %v48
    %v56 = vsel %vm41, %v55, 0.0
    %v57 = vadd.f32 %v50, %v56
    %58 = vst [vmem:[#allocation2] sm:$0xff] %v57
    %vm59 = vcmask 15368
    %s60 = scalar_lea.vmem [#allocation2], 1
    %v61 = vld [vmem:[%s60] ss:$0 sm:$0xff]
    %s62 = scalar_lea.vmem [#allocation0], 1
    %v63 = vld [vmem:[%s62] ss:$0 sm:$0xff]
    %v64 = vmul.f32 %v61, %v61
    %65 = vadd.xlane.f32.xlu0 %v64
    %v66 = vpop.xlane.xlu0 %65
    %v67 = vsub.f32 %v63, %v66
    %v68 = vrsqrt.pop %v67
    %v69 = vld [vmem:[#allocation0] sm:$0xff]
    %v70 = vld [vmem:[#allocation2] sm:$0xff]
    %v71 = vmul.f32 %v70, %v61
    %72 = vadd.xlane.f32.xlu0 %v71
    %v73 = vpop.xlane.xlu0 %72
    %v74 = vsub.f32 %v69, %v73
    %v75 = vmul.f32 %v74, %v68
    %vm76 = vcmask 1047553
    %vm77 = vmand %vm59, %vm76
    %v78 = vsel %vm77, %v75, 0.0
    %v79 = vadd.f32 %v70, %v78
    %80 = vst [vmem:[#allocation2] sm:$0xff] %v79
    %s82 = sshll.u32 1, 2
    %s83 = ssub.s32 %s82, 1
    %v85 = vld [vmem:[#allocation2] sm:%s83]
    %s86 = sshll.u32 1, 2
    %s87 = ssub.s32 %s86, 1
    %88 = vst [vmem:[#allocation3] sm:%s87] %v85
    // Predicated region
    $region32: #{custom-call.96} parent=1 // pred_check
      _
    $region33: #{custom-call.96} parent=1 // pred_check_branch
      %90 = sbr.rel (0) target = $region35
    $region34: #{custom-call.96} parent=1 // pred_region
      // Predicated region
      $region36: #{custom-call.96} parent=34 // pred_check
        _
      $region37: #{custom-call.96} parent=34 // pred_check_branch
        %92 = sbr.rel target = $region39
      $region38: #{custom-call.96} parent=34 // pred_region
        // Predicated region
        $region51: #{custom-call.96} parent=38 // pred_check
          _
        $region52: #{custom-call.96} parent=38 // pred_check_branch
          %108 = sbr.rel (0) target = $region54
        $region53: #{custom-call.96} parent=38 // pred_region
          %s110 = ssub.s32 4, 1
          loop: start=0, step=1, limit=1
          $region55: #{custom-call.96} parent=53 // loop_pre_header
            _
          $region56: #{custom-call.96} parent=53 // loop_header
            %s112 = sphi 0, %s116
            %p113 = scmp.ge.s32.totalorder %s112, 1
            %s117 = sphi [#allocation3], [#allocation3]
            %s118 = sphi %s1, %s1
          $region57: #{custom-call.96} parent=53 // loop_header_branch
            %115 = sbr.rel (%p113) target = $region61
          $region58: #{custom-call.96} parent=53 // loop_body
            %v119 = vld [vmem:[%s117] sm:%s110]
            %120 = vst [vmem:[%s118] sm:%s110] %v119
          $region59: #{custom-call.96} parent=53 // loop_footer
            %s116 = sadd.s32 1, %s112
          $region60: #{custom-call.96} parent=53 // loop_footer_branch
            %111 = sbr.rel target = $region56
          $region61: #{custom-call.96} parent=53 // loop_exit
            _
        $region54: #{custom-call.96} parent=38 // pred_fallthru
          _
      $region39: #{custom-call.96} parent=34 // pred_fallthru
        _
      // Predicated region
      $region40: #{custom-call.96} parent=34 // pred_check
        _
      $region41: #{custom-call.96} parent=34 // pred_check_branch
        %94 = sbr.rel (0) target = $region43
      $region42: #{custom-call.96} parent=34 // pred_region
        %s96 = ssub.s32 4, 1
        loop: start=0, step=1, limit=1
        $region44: #{custom-call.96} parent=42 // loop_pre_header
          _
        $region45: #{custom-call.96} parent=42 // loop_header
          %s98 = sphi 0, %s102
          %p99 = scmp.ge.s32.totalorder %s98, 1
          %s103 = sphi [#allocation3], [#allocation3]
          %s104 = sphi %s1, %s1
        $region46: #{custom-call.96} parent=42 // loop_header_branch
          %101 = sbr.rel (%p99) target = $region50
        $region47: #{custom-call.96} parent=42 // loop_body
          %v105 = vld [vmem:[%s103] sm:%s96]
          %106 = vst [vmem:[%s104] sm:%s96] %v105
        $region48: #{custom-call.96} parent=42 // loop_footer
          %s102 = sadd.s32 1, %s98
        $region49: #{custom-call.96} parent=42 // loop_footer_branch
          %97 = sbr.rel target = $region45
        $region50: #{custom-call.96} parent=42 // loop_exit
          _
      $region43: #{custom-call.96} parent=34 // pred_fallthru
        _
    $region35: #{custom-call.96} parent=1 // pred_fallthru
      _
    %121 = vnop

// kernel: custom-call.97
$region0: #{custom-call.97}
  %s0 = inlined_call_operand.vmem [shape: f32[1,2,2], index: 0, kind: input, shape index: {}]
  %s1 = inlined_call_operand.vmem [shape: f32[1,2,2], index: 1, kind: output, shape index: {}]
  $region1: #{custom-call.97} parent=0
    #allocation0 [shape = 'u8[4096]{0}', space=vmem, size = 0x1000, scoped, tag = 'operand span for operand 0']
    #allocation1 [shape = 'u8[1024]{0}', space=vmem, size = 0x400, scoped, tag = 'packed  for operand 0']
    #allocation2 [shape = 'u8[4096]{0}', space=vmem, size = 0x1000, scoped, tag = 'operand span for operand 1']
    #allocation3 [shape = 'u8[1024]{0}', space=vmem, size = 0x400, scoped, tag = 'packed  for operand 1']
    #allocation4 [shape = 'f32[2,2]{1,0}', space=vmem, size = 0x1000, scoped, tag = 'rescaled input a']
    // Predicated region
    $region2: #{custom-call.97} parent=1 // pred_check
      _
    $region3: #{custom-call.97} parent=1 // pred_check_branch
      %3 = sbr.rel (0) target = $region5
    $region4: #{custom-call.97} parent=1 // pred_region
      // Predicated region
      $region6: #{custom-call.97} parent=4 // pred_check
        _
      $region7: #{custom-call.97} parent=4 // pred_check_branch
        %5 = sbr.rel target = $region9
      $region8: #{custom-call.97} parent=4 // pred_region
        // Predicated region
        $region21: #{custom-call.97} parent=8 // pred_check
          _
        $region22: #{custom-call.97} parent=8 // pred_check_branch
          %21 = sbr.rel (0) target = $region24
        $region23: #{custom-call.97} parent=8 // pred_region
          %s23 = ssub.s32 4, 1
          loop: start=0, step=1, limit=1
          $region25: #{custom-call.97} parent=23 // loop_pre_header
            _
          $region26: #{custom-call.97} parent=23 // loop_header
            %s25 = sphi 0, %s29
            %p26 = scmp.ge.s32.totalorder %s25, 1
            %s30 = sphi %s0, %s0
            %s31 = sphi [#allocation1], [#allocation1]
          $region27: #{custom-call.97} parent=23 // loop_header_branch
            %28 = sbr.rel (%p26) target = $region31
          $region28: #{custom-call.97} parent=23 // loop_body
            %v32 = vld [vmem:[%s30] sm:%s23]
            %33 = vst [vmem:[%s31] sm:%s23] %v32
          $region29: #{custom-call.97} parent=23 // loop_footer
            %s29 = sadd.s32 1, %s25
          $region30: #{custom-call.97} parent=23 // loop_footer_branch
            %24 = sbr.rel target = $region26
          $region31: #{custom-call.97} parent=23 // loop_exit
            _
        $region24: #{custom-call.97} parent=8 // pred_fallthru
          _
      $region9: #{custom-call.97} parent=4 // pred_fallthru
        _
      // Predicated region
      $region10: #{custom-call.97} parent=4 // pred_check
        _
      $region11: #{custom-call.97} parent=4 // pred_check_branch
        %7 = sbr.rel (0) target = $region13
      $region12: #{custom-call.97} parent=4 // pred_region
        %s9 = ssub.s32 4, 1
        loop: start=0, step=1, limit=1
        $region14: #{custom-call.97} parent=12 // loop_pre_header
          _
        $region15: #{custom-call.97} parent=12 // loop_header
          %s11 = sphi 0, %s15
          %p12 = scmp.ge.s32.totalorder %s11, 1
          %s16 = sphi %s0, %s0
          %s17 = sphi [#allocation1], [#allocation1]
        $region16: #{custom-call.97} parent=12 // loop_header_branch
          %14 = sbr.rel (%p12) target = $region20
        $region17: #{custom-call.97} parent=12 // loop_body
          %v18 = vld [vmem:[%s16] sm:%s9]
          %19 = vst [vmem:[%s17] sm:%s9] %v18
        $region18: #{custom-call.97} parent=12 // loop_footer
          %s15 = sadd.s32 1, %s11
        $region19: #{custom-call.97} parent=12 // loop_footer_branch
          %10 = sbr.rel target = $region15
        $region20: #{custom-call.97} parent=12 // loop_exit
          _
      $region13: #{custom-call.97} parent=4 // pred_fallthru
        _
    $region5: #{custom-call.97} parent=1 // pred_fallthru
      _
    %34 = vnop
    %s36 = sshll.u32 1, 2
    %s37 = ssub.s32 %s36, 1
    %v38 = vld [vmem:[#allocation1] sm:%s37]
    %39 = vst [vmem:[#allocation0] sm:%s37] %v38
    %v40 = vlaneseq
    %v41 = vand.u32 %v40, 127
    %vm42 = vcmp.lt.s32.totalorder %v41, 2
    %v43 = vlaneseq
    %v44 = vshrl.u32 %v43, 7
    %vm46 = vcmp.eq.s32.totalorder %v44, %v41
    %v47 = vld [vmem:[#allocation0] sm:$0xff]
    %v48 = vsel %vm46, %v47, 0.0
    %49 = vadd.xlane.f32.xlu0 %v48
    %v50 = vpop.xlane.xlu0 %49
    %vm51 = vcmp.ge.s32.totalorder %v44, %v41
    %vm52 = vmand %vm51, %vm42
    %v53 = vsel %vm52, %v47, 0.0
    %v54 = vrcp.pop %v50
    %v55 = vmul.f32 %v53, %v54
    %56 = vst [vmem:[#allocation4] sm:$0xff] %v55
    %v57 = vlaneseq
    %v58 = vand.u32 %v57, 127
    %v59 = vlaneseq
    %v60 = vshrl.u32 %v59, 7
    %vm62 = vcmp.eq.s32.totalorder %v58, %v60
    %v63 = vlaneseq
    %v64 = vand.u32 %v63, 127
    %vm65 = vcmp.eq.s32.totalorder %v64, 0
    %v66 = vsel %vm65, 1.0, -1.0
    %v67 = vsel %vm62, %v66, 0.0
    %s68 = scalar_lea.vmem [#allocation4], 1
    %v69 = vld [vmem:[%s68] ss:$0 sm:$0xff]
    %v70 = vxor.u32 %v69, 2147483648
    %v71 = vlaneseq
    %v72 = vand.u32 %v71, 127
    %vm73 = vcmp.eq.s32.totalorder %v72, 1
    %v74 = vmul.f32 %v70, %v67
    %75 = vadd.xlane.f32.xlu0 %v74
    %v76 = vpop.xlane.xlu0 %75
    %v77 = vsel %vm73, %v76, %v67
    %v78 = vrcp.pop %v50
    %v79 = vmul.f32 %v77, %v78
    %vm80 = vweird.f32 %v50
    %v81 = vsel %vm80, %v77, %v79
    %82 = vst [vmem:[#allocation2] sm:$0xff] %v81
    %s84 = sshll.u32 1, 2
    %s85 = ssub.s32 %s84, 1
    %v87 = vld [vmem:[#allocation2] sm:%s85]
    %s88 = sshll.u32 1, 2
    %s89 = ssub.s32 %s88, 1
    %90 = vst [vmem:[#allocation3] sm:%s89] %v87
    // Predicated region
    $region32: #{custom-call.97} parent=1 // pred_check
      _
    $region33: #{custom-call.97} parent=1 // pred_check_branch
      %92 = sbr.rel (0) target = $region35
    $region34: #{custom-call.97} parent=1 // pred_region
      // Predicated region
      $region36: #{custom-call.97} parent=34 // pred_check
        _
      $region37: #{custom-call.97} parent=34 // pred_check_branch
        %94 = sbr.rel target = $region39
      $region38: #{custom-call.97} parent=34 // pred_region
        // Predicated region
        $region51: #{custom-call.97} parent=38 // pred_check
          _
        $region52: #{custom-call.97} parent=38 // pred_check_branch
          %110 = sbr.rel (0) target = $region54
        $region53: #{custom-call.97} parent=38 // pred_region
          %s112 = ssub.s32 4, 1
          loop: start=0, step=1, limit=1
          $region55: #{custom-call.97} parent=53 // loop_pre_header
            _
          $region56: #{custom-call.97} parent=53 // loop_header
            %s114 = sphi 0, %s118
            %p115 = scmp.ge.s32.totalorder %s114, 1
            %s119 = sphi [#allocation3], [#allocation3]
            %s120 = sphi %s1, %s1
          $region57: #{custom-call.97} parent=53 // loop_header_branch
            %117 = sbr.rel (%p115) target = $region61
          $region58: #{custom-call.97} parent=53 // loop_body
            %v121 = vld [vmem:[%s119] sm:%s112]
            %122 = vst [vmem:[%s120] sm:%s112] %v121
          $region59: #{custom-call.97} parent=53 // loop_footer
            %s118 = sadd.s32 1, %s114
          $region60: #{custom-call.97} parent=53 // loop_footer_branch
            %113 = sbr.rel target = $region56
          $region61: #{custom-call.97} parent=53 // loop_exit
            _
        $region54: #{custom-call.97} parent=38 // pred_fallthru
          _
      $region39: #{custom-call.97} parent=34 // pred_fallthru
        _
      // Predicated region
      $region40: #{custom-call.97} parent=34 // pred_check
        _
      $region41: #{custom-call.97} parent=34 // pred_check_branch
        %96 = sbr.rel (0) target = $region43
      $region42: #{custom-call.97} parent=34 // pred_region
        %s98 = ssub.s32 4, 1
        loop: start=0, step=1, limit=1
        $region44: #{custom-call.97} parent=42 // loop_pre_header
          _
        $region45: #{custom-call.97} parent=42 // loop_header
          %s100 = sphi 0, %s104
          %p101 = scmp.ge.s32.totalorder %s100, 1
          %s105 = sphi [#allocation3], [#allocation3]
          %s106 = sphi %s1, %s1
        $region46: #{custom-call.97} parent=42 // loop_header_branch
          %103 = sbr.rel (%p101) target = $region50
        $region47: #{custom-call.97} parent=42 // loop_body
          %v107 = vld [vmem:[%s105] sm:%s98]
          %108 = vst [vmem:[%s106] sm:%s98] %v107
        $region48: #{custom-call.97} parent=42 // loop_footer
          %s104 = sadd.s32 1, %s100
        $region49: #{custom-call.97} parent=42 // loop_footer_branch
          %99 = sbr.rel target = $region45
        $region50: #{custom-call.97} parent=42 // loop_exit
          _
      $region43: #{custom-call.97} parent=34 // pred_fallthru
        _
    $region35: #{custom-call.97} parent=1 // pred_fallthru
      _
    %123 = vnop

// kernel: reverse.2
$region0: #{reverse.2}
  %s0 = inlined_call_operand.vmem [shape: f32[2], index: 0, kind: input, shape index: {}]
  %s1 = inlined_call_operand.vmem [shape: f32[2], index: 1, kind: output, shape index: {}]
  %v2 = vlaneseq
  %v3 = vsub.s32 1, %v2
  %4 = vset.pattern.permute.xlu0 %v3
  $region1: #{reverse.2} parent=0
    #allocation0 [shape = 'u8[8192]{0}', space=vmem, size = 0x2000, scoped, tag = 'operand span for operand 0']
    #allocation1 [shape = 'u8[1024]{0}', space=vmem, size = 0x400, scoped, tag = 'packed  for operand 0']
    #allocation2 [shape = 'u8[4096]{0}', space=vmem, size = 0x1000, scoped, tag = 'operand span for operand 1']
    #allocation3 [shape = 'u8[512]{0}', space=vmem, size = 0x400, scoped, tag = 'packed  for operand 1']
    %s5 = scalar_lea.vmem [#allocation1], 1
    // Predicated region
    $region2: #{reverse.2} parent=1 // pred_check
      _
    $region3: #{reverse.2} parent=1 // pred_check_branch
      %7 = sbr.rel (0) target = $region5
    $region4: #{reverse.2} parent=1 // pred_region
      // Predicated region
      $region6: #{reverse.2} parent=4 // pred_check
        _
      $region7: #{reverse.2} parent=4 // pred_check_branch
        %9 = sbr.rel target = $region9
      $region8: #{reverse.2} parent=4 // pred_region
        // Predicated region
        $region21: #{reverse.2} parent=8 // pred_check
          _
        $region22: #{reverse.2} parent=8 // pred_check_branch
          %25 = sbr.rel (0) target = $region24
        $region23: #{reverse.2} parent=8 // pred_region
          %s27 = ssub.s32 2, 1
          loop: start=0, step=1, limit=1
          $region25: #{reverse.2} parent=23 // loop_pre_header
            _
          $region26: #{reverse.2} parent=23 // loop_header
            %s29 = sphi 0, %s33
            %p30 = scmp.ge.s32.totalorder %s29, 1
            %s34 = sphi %s0, %s0
            %s35 = sphi %s5, %s5
          $region27: #{reverse.2} parent=23 // loop_header_branch
            %32 = sbr.rel (%p30) target = $region31
          $region28: #{reverse.2} parent=23 // loop_body
            %v36 = vld [vmem:[%s34] sm:%s27]
            %37 = vst [vmem:[%s35] sm:%s27] %v36
          $region29: #{reverse.2} parent=23 // loop_footer
            %s33 = sadd.s32 1, %s29
          $region30: #{reverse.2} parent=23 // loop_footer_branch
            %28 = sbr.rel target = $region26
          $region31: #{reverse.2} parent=23 // loop_exit
            _
        $region24: #{reverse.2} parent=8 // pred_fallthru
          _
      $region9: #{reverse.2} parent=4 // pred_fallthru
        _
      // Predicated region
      $region10: #{reverse.2} parent=4 // pred_check
        _
      $region11: #{reverse.2} parent=4 // pred_check_branch
        %11 = sbr.rel (0) target = $region13
      $region12: #{reverse.2} parent=4 // pred_region
        %s13 = ssub.s32 2, 1
        loop: start=0, step=1, limit=1
        $region14: #{reverse.2} parent=12 // loop_pre_header
          _
        $region15: #{reverse.2} parent=12 // loop_header
          %s15 = sphi 0, %s19
          %p16 = scmp.ge.s32.totalorder %s15, 1
          %s20 = sphi %s0, %s0
          %s21 = sphi %s5, %s5
        $region16: #{reverse.2} parent=12 // loop_header_branch
          %18 = sbr.rel (%p16) target = $region20
        $region17: #{reverse.2} parent=12 // loop_body
          %v22 = vld [vmem:[%s20] sm:%s13]
          %23 = vst [vmem:[%s21] sm:%s13] %v22
        $region18: #{reverse.2} parent=12 // loop_footer
          %s19 = sadd.s32 1, %s15
        $region19: #{reverse.2} parent=12 // loop_footer_branch
          %14 = sbr.rel target = $region15
        $region20: #{reverse.2} parent=12 // loop_exit
          _
      $region13: #{reverse.2} parent=4 // pred_fallthru
        _
    $region5: #{reverse.2} parent=1 // pred_fallthru
      _
    %38 = vnop
    %s40 = sshll.u32 1, 1
    %s41 = ssub.s32 %s40, 1
    %s42 = scalar_lea.vmem [#allocation1], 1
    %v43 = vld [vmem:[%s42] sm:%s41]
    %s44 = scalar_lea.vmem [#allocation0], 8
    %45 = vst [vmem:[%s44] sm:%s41] %v43
    %v46 = vld [vmem:[#allocation1] sm:%s41]
    %47 = vst [vmem:[#allocation0] sm:%s41] %v46
    %s48 = scalar_lea.vmem [#allocation0], 7
    %v49 = vld [vmem:[%s48] ss:$-1 sm:$0xff]
    %v50 = vrot.slane %v49, 7
    %51 = vperm.xlu0 %4, %v50
    %v52 = vpop.permute.xlu0 %51
    %53 = vst [vmem:[#allocation2] sm:$0xff] %v52
    %s54 = scalar_lea.vmem [#allocation0], 8
    %s55 = scalar_lea.vmem %s54, 7 [#allocation0]
    %v56 = vld [vmem:[%s55] ss:$-1 sm:$0xff]
    %v57 = vrot.slane %v56, 7
    %58 = vperm.xlu0 %4, %v57
    %v59 = vpop.permute.xlu0 %58
    %v60 = vlaneseq
    %v61 = vshrl.u32 %v60, 7
    %vm62 = vcmp.lt.s32.totalorder %v61, 1
    %63 = vst.msk [vmem:[#allocation2] sm:$0xff] %vm62, %v59
    %s65 = sshll.u32 1, 1
    %s66 = ssub.s32 %s65, 1
    %v68 = vld [vmem:[#allocation2] sm:%s66]
    %s69 = sshll.u32 1, 1
    %s70 = ssub.s32 %s69, 1
    %71 = vst [vmem:[#allocation3] sm:%s70] %v68
    // Predicated region
    $region32: #{reverse.2} parent=1 // pred_check
      _
    $region33: #{reverse.2} parent=1 // pred_check_branch
      %73 = sbr.rel (0) target = $region35
    $region34: #{reverse.2} parent=1 // pred_region
      // Predicated region
      $region36: #{reverse.2} parent=34 // pred_check
        _
      $region37: #{reverse.2} parent=34 // pred_check_branch
        %75 = sbr.rel target = $region39
      $region38: #{reverse.2} parent=34 // pred_region
        // Predicated region
        $region51: #{reverse.2} parent=38 // pred_check
          _
        $region52: #{reverse.2} parent=38 // pred_check_branch
          %91 = sbr.rel (0) target = $region54
        $region53: #{reverse.2} parent=38 // pred_region
          %s93 = ssub.s32 2, 1
          loop: start=0, step=1, limit=1
          $region55: #{reverse.2} parent=53 // loop_pre_header
            _
          $region56: #{reverse.2} parent=53 // loop_header
            %s95 = sphi 0, %s99
            %p96 = scmp.ge.s32.totalorder %s95, 1
            %s100 = sphi [#allocation3], [#allocation3]
            %s101 = sphi %s1, %s1
          $region57: #{reverse.2} parent=53 // loop_header_branch
            %98 = sbr.rel (%p96) target = $region61
          $region58: #{reverse.2} parent=53 // loop_body
            %v102 = vld [vmem:[%s100] sm:%s93]
            %103 = vst [vmem:[%s101] sm:%s93] %v102
          $region59: #{reverse.2} parent=53 // loop_footer
            %s99 = sadd.s32 1, %s95
          $region60: #{reverse.2} parent=53 // loop_footer_branch
            %94 = sbr.rel target = $region56
          $region61: #{reverse.2} parent=53 // loop_exit
            _
        $region54: #{reverse.2} parent=38 // pred_fallthru
          _
      $region39: #{reverse.2} parent=34 // pred_fallthru
        _
      // Predicated region
      $region40: #{reverse.2} parent=34 // pred_check
        _
      $region41: #{reverse.2} parent=34 // pred_check_branch
        %77 = sbr.rel (0) target = $region43
      $region42: #{reverse.2} parent=34 // pred_region
        %s79 = ssub.s32 2, 1
        loop: start=0, step=1, limit=1
        $region44: #{reverse.2} parent=42 // loop_pre_header
          _
        $region45: #{reverse.2} parent=42 // loop_header
          %s81 = sphi 0, %s85
          %p82 = scmp.ge.s32.totalorder %s81, 1
          %s86 = sphi [#allocation3], [#allocation3]
          %s87 = sphi %s1, %s1
        $region46: #{reverse.2} parent=42 // loop_header_branch
          %84 = sbr.rel (%p82) target = $region50
        $region47: #{reverse.2} parent=42 // loop_body
          %v88 = vld [vmem:[%s86] sm:%s79]
          %89 = vst [vmem:[%s87] sm:%s79] %v88
        $region48: #{reverse.2} parent=42 // loop_footer
          %s85 = sadd.s32 1, %s81
        $region49: #{reverse.2} parent=42 // loop_footer_branch
          %80 = sbr.rel target = $region45
        $region50: #{reverse.2} parent=42 // loop_exit
          _
      $region43: #{reverse.2} parent=34 // pred_fallthru
        _
    $region35: #{reverse.2} parent=1 // pred_fallthru
      _
    %104 = vnop

// kernel: custom-call.18
$region0: #{custom-call.18}
  %s0 = inlined_call_operand.vmem [shape: f32[2,2], index: 0, kind: input, shape index: {}]
  %s1 = inlined_call_operand.vmem [shape: f32[2,2], index: 1, kind: output, shape index: {0}]
  %s2 = inlined_call_operand.vmem [shape: f32[2], index: 2, kind: output, shape index: {1}]
  %3 = xla_tuple %s1, %s2
  $region1: #{custom-call.18} parent=0
    #allocation0 [shape = 'u8[4096]{0}', space=vmem, size = 0x1000, scoped, tag = 'operand span for operand 0']
    #allocation1 [shape = 'u8[1024]{0}', space=vmem, size = 0x400, scoped, tag = 'packed  for operand 0']
    #allocation2 [shape = 'u8[4096]{0}', space=vmem, size = 0x1000, scoped, tag = 'operand span for operand 1']
    #allocation3 [shape = 'u8[1024]{0}', space=vmem, size = 0x400, scoped, tag = 'packed  for operand 1']
    #allocation4 [shape = 'u8[4096]{0}', space=vmem, size = 0x1000, scoped, tag = 'operand span for operand 2']
    #allocation5 [shape = 'u8[512]{0}', space=vmem, size = 0x400, scoped, tag = 'packed  for operand 2']
    #allocation6 [shape = 'f32[2,128]{1,0}', space=vmem, size = 0x1000, scoped, tag = 'scratch for Householder reflectors']
    // Predicated region
    $region2: #{custom-call.18} parent=1 // pred_check
      _
    $region3: #{custom-call.18} parent=1 // pred_check_branch
      %5 = sbr.rel (0) target = $region5
    $region4: #{custom-call.18} parent=1 // pred_region
      // Predicated region
      $region6: #{custom-call.18} parent=4 // pred_check
        _
      $region7: #{custom-call.18} parent=4 // pred_check_branch
        %7 = sbr.rel target = $region9
      $region8: #{custom-call.18} parent=4 // pred_region
        // Predicated region
        $region21: #{custom-call.18} parent=8 // pred_check
          _
        $region22: #{custom-call.18} parent=8 // pred_check_branch
          %23 = sbr.rel (0) target = $region24
        $region23: #{custom-call.18} parent=8 // pred_region
          %s25 = ssub.s32 4, 1
          loop: start=0, step=1, limit=1
          $region25: #{custom-call.18} parent=23 // loop_pre_header
            _
          $region26: #{custom-call.18} parent=23 // loop_header
            %s27 = sphi 0, %s31
            %p28 = scmp.ge.s32.totalorder %s27, 1
            %s32 = sphi %s0, %s0
            %s33 = sphi [#allocation1], [#allocation1]
          $region27: #{custom-call.18} parent=23 // loop_header_branch
            %30 = sbr.rel (%p28) target = $region31
          $region28: #{custom-call.18} parent=23 // loop_body
            %v34 = vld [vmem:[%s32] sm:%s25]
            %35 = vst [vmem:[%s33] sm:%s25] %v34
          $region29: #{custom-call.18} parent=23 // loop_footer
            %s31 = sadd.s32 1, %s27
          $region30: #{custom-call.18} parent=23 // loop_footer_branch
            %26 = sbr.rel target = $region26
          $region31: #{custom-call.18} parent=23 // loop_exit
            _
        $region24: #{custom-call.18} parent=8 // pred_fallthru
          _
      $region9: #{custom-call.18} parent=4 // pred_fallthru
        _
      // Predicated region
      $region10: #{custom-call.18} parent=4 // pred_check
        _
      $region11: #{custom-call.18} parent=4 // pred_check_branch
        %9 = sbr.rel (0) target = $region13
      $region12: #{custom-call.18} parent=4 // pred_region
        %s11 = ssub.s32 4, 1
        loop: start=0, step=1, limit=1
        $region14: #{custom-call.18} parent=12 // loop_pre_header
          _
        $region15: #{custom-call.18} parent=12 // loop_header
          %s13 = sphi 0, %s17
          %p14 = scmp.ge.s32.totalorder %s13, 1
          %s18 = sphi %s0, %s0
          %s19 = sphi [#allocation1], [#allocation1]
        $region16: #{custom-call.18} parent=12 // loop_header_branch
          %16 = sbr.rel (%p14) target = $region20
        $region17: #{custom-call.18} parent=12 // loop_body
          %v20 = vld [vmem:[%s18] sm:%s11]
          %21 = vst [vmem:[%s19] sm:%s11] %v20
        $region18: #{custom-call.18} parent=12 // loop_footer
          %s17 = sadd.s32 1, %s13
        $region19: #{custom-call.18} parent=12 // loop_footer_branch
          %12 = sbr.rel target = $region15
        $region20: #{custom-call.18} parent=12 // loop_exit
          _
      $region13: #{custom-call.18} parent=4 // pred_fallthru
        _
    $region5: #{custom-call.18} parent=1 // pred_fallthru
      _
    %36 = vnop
    %s38 = sshll.u32 1, 2
    %s39 = ssub.s32 %s38, 1
    %v40 = vld [vmem:[#allocation1] sm:%s39]
    %41 = vst [vmem:[#allocation0] sm:%s39] %v40
    %v42 = vld [vmem:[#allocation0] sm:$0xff]
    %43 = vst [vmem:[#allocation2] sm:$0xff] %v42
    %44 = vst [vmem:[#allocation4] sm:$0x1] 0.0
    loop: start=0, step=1, limit=2
    $region32: #{custom-call.18} parent=1 // loop_pre_header
      _
    $region33: #{custom-call.18} parent=1 // loop_header
      %s46 = sphi 0, %s50
      %p47 = scmp.ge.s32.totalorder %s46, 2
    $region34: #{custom-call.18} parent=1 // loop_header_branch
      %49 = sbr.rel (%p47) target = $region38
    $region35: #{custom-call.18} parent=1 // loop_body
      %v51 = vld [vmem:[#allocation2] sm:$0xff]
      %v52 = vlaneseq
      %v53 = vshrl.u32 %v52, 7
      %v55 = vstv %s46
      %vm56 = vcmp.gt.s32.totalorder %v53, %v55
      %vm57 = vcmp.lt.s32.totalorder %v53, 2
      %vm58 = vmand %vm56, %vm57
      %v59 = vsel %vm58, %v51, 0.0
      %v60 = vmul.f32 %v59, %v59
      %v61 = vrot.slane %v60, 4
      %v62 = vadd.f32 %v60, %v61
      %v63 = vrot.slane %v62, 2
      %v64 = vadd.f32 %v62, %v63
      %v65 = vrot.slane %v64, 1
      %v66 = vadd.f32 %v64, %v65
      %v67 = vrsqrt.pop %v66
      %v68 = vmul.f32 %v66, %v67
      %vm69 = vcmp.eq.f32.partialorder %v66, inf
      %v70 = vsel %vm69, %v66, %v68
      %vm71 = vcmp.eq.f32.partialorder %v66, 0.0
      %v72 = vand.u32 %v66, 2147483648
      %v73 = vsel %vm71, %v72, %v70
      %vm74 = vcmp.eq.f32.partialorder %v66, 0.0
      %s75 = sshrl.u32 %s46, 3
      %s76 = sand.u32 %s46, 7
      %s77 = smul.addr %s75, 8
      %s78 = sadd.s32 %s76, %s77
      %s79 = scalar_lea.vmem [#allocation2], %s78
      %v80 = vld [vmem:[%s79] ss:$0 sm:$0xff]
      %v81 = vand.u32 2147483647, %v80
      %v82 = vmax.f32 %v81, 0.0
      %v83 = vand.u32 2147483647, %v73
      %v84 = vmax.f32 %v82, %v83
      %v85 = vrcp.pop %v84
      %v86 = vmul.f32 %v81, %v85
      %v87 = vmul.f32 %v86, %v86
      %v88 = vrcp.pop %v84
      %v89 = vmul.f32 0.0, %v88
      %v90 = vmul.f32 %v89, %v89
      %v91 = vadd.f32 %v87, %v90
      %v92 = vrcp.pop %v84
      %v93 = vmul.f32 %v83, %v92
      %v94 = vmul.f32 %v93, %v93
      %v95 = vadd.f32 %v91, %v94
      %vm96 = vcmp.eq.f32.partialorder %v84, 0.0
      %v97 = vrsqrt.pop %v95
      %v98 = vmul.f32 %v95, %v97
      %vm99 = vcmp.eq.f32.partialorder %v95, inf
      %v100 = vsel %vm99, %v95, %v98
      %vm101 = vcmp.eq.f32.partialorder %v95, 0.0
      %v102 = vand.u32 %v95, 2147483648
      %v103 = vsel %vm101, %v102, %v100
      %v104 = vmul.f32 %v84, %v103
      %v105 = vsel %vm96, 0.0, %v104
      %vm106 = vcmp.lt.f32.partialorder %v80, 0.0
      %v107 = vxor.u32 %v105, 2147483648
      %v108 = vsel %vm106, %v105, %v107
      %v109 = vsub.f32 %v108, %v80
      %v110 = vrcp.pop %v108
      %v111 = vmul.f32 %v109, %v110
      %v112 = vsel %vm74, %v80, %v108
      %v113 = vsel %vm74, 0.0, %v111
      %v114 = vsub.f32 %v80, %v112
      %s115 = smov [#allocation2]
      %v116 = vlaneseq
      %v117 = vshrl.u32 %v116, 7
      %v118 = vmov %v117
      %v119 = vld [vmem:[%s115] sm:$0xff]
      %v121 = vstv %s46
      %vm122 = vcmp.gt.s32.totalorder %v118, %v121
      %vm123 = vcmp.lt.s32.totalorder %v118, 2
      %vm124 = vmand %vm122, %vm123
      %v125 = vsel %vm124, %v119, 0.0
      %v126 = vrcp.pop %v114
      %v127 = vmul.f32 %v125, %v126
      %v128 = vsel %vm74, 0.0, %v127
      %v129 = vstv %s46
      %v130 = vlaneseq
      %v131 = vand.u32 %v130, 127
      %vm132 = vcmp.eq.s32.totalorder %v131, %v129
      %v133 = vsel %vm132, %v128, 0.0
      %134 = vadd.xlane.f32.xlu0 %v133
      %v135 = vpop.xlane.xlu0 %134
      %136 = vst [vmem:[#allocation6] sm:$0xff] %v135
      %s137 = scalar_lea.vmem [#allocation6], %s46
      %138 = vst [vmem:[%s137] sm:$0x1] 1.0
      %v139 = vstv %s46
      %v140 = vlaneseq
      %v141 = vand.u32 %v140, 127
      %vm142 = vcmp.eq.s32.totalorder %v141, %v139
      %v143 = vsel %vm142, %v113, 0.0
      %144 = vadd.xlane.f32.xlu0 %v143
      %v145 = vpop.xlane.xlu0 %144
      %v146 = vstv %s46
      %v147 = vlaneseq
      %v148 = vand.u32 %v147, 127
      %vm149 = vcmp.eq.s32.totalorder %v148, %v146
      %v150 = vld [vmem:[#allocation4] ss:$0 sm:$0xff]
      %v151 = vsel %vm149, %v145, %v150
      %152 = vst [vmem:[#allocation4] sm:$0x1] %v151
      %s153 = smov [#allocation2]
      %s154 = smov [#allocation6]
      %v155 = vlaneseq
      %v156 = vshrl.u32 %v155, 7
      %v157 = vmov %v156
      %v159 = vld [vmem:[%s154] sm:$0xff]
      %v160 = vld [vmem:[%s153] sm:$0xff]
      %v161 = vmul.f32 %v159, %v160
      %vm162 = vcmp.lt.s32.totalorder %v157, 2
      %v163 = vsel %vm162, %v161, 0.0
      %v164 = vrot.slane %v163, 4
      %v165 = vadd.f32 %v163, %v164
      %v166 = vrot.slane %v165, 2
      %v167 = vadd.f32 %v165, %v166
      %v168 = vrot.slane %v167, 1
      %v169 = vadd.f32 %v167, %v168
      %s170 = smov %s153
      %s171 = smov %s154
      %v172 = vlaneseq
      %v173 = vshrl.u32 %v172, 7
      %v174 = vmov %v173
      %v175 = vmul.f32 %v169, %v145
      %v177 = vlaneseq
      %v178 = vand.u32 %v177, 127
      %v179 = vld [vmem:[%s171] sm:$0xff]
      %v180 = vmul.f32 %v179, %v175
      %v181 = vld [vmem:[%s170] sm:$0xff]
      %v182 = vstv %s46
      %vm183 = vcmp.gt.s32.totalorder %v178, %v182
      %v184 = vsub.f32 %v181, %v180
      %v185 = vsel %vm183, %v184, %v181
      %v186 = vstv %s46
      %v187 = vlaneseq
      %v188 = vand.u32 %v187, 127
      %vm189 = vcmp.eq.s32.totalorder %v188, %v186
      %v190 = vstv %s46
      %vm191 = vcmp.ge.s32.totalorder %v174, %v190
      %vm192 = vmand %vm189, %vm191
      %v193 = vsel %vm192, %v179, %v185
      %194 = vst [vmem:[%s170] sm:$0xff] %v193
      %s195 = scalar_lea.vmem %s170, %s46
      %v196 = vld [vmem:[%s195] ss:$0 sm:$0xff]
      %v197 = vstv %s46
      %v198 = vlaneseq
      %v199 = vand.u32 %v198, 127
      %vm200 = vcmp.eq.s32.totalorder %v199, %v197
      %v201 = vsel %vm200, %v112, %v196
      %202 = vst [vmem:[%s195] sm:$0x1] %v201
    $region36: #{custom-call.18} parent=1 // loop_footer
      %s50 = sadd.s32 1, %s46
    $region37: #{custom-call.18} parent=1 // loop_footer_branch
      %45 = sbr.rel target = $region33
    $region38: #{custom-call.18} parent=1 // loop_exit
      _
    %s204 = sshll.u32 1, 2
    %s205 = ssub.s32 %s204, 1
    %v207 = vld [vmem:[#allocation2] sm:%s205]
    %s208 = sshll.u32 1, 2
    %s209 = ssub.s32 %s208, 1
    %210 = vst [vmem:[#allocation3] sm:%s209] %v207
    %s212 = sshll.u32 1, 1
    %s213 = ssub.s32 %s212, 1
    %v215 = vld [vmem:[#allocation4] sm:%s213]
    %s216 = sshll.u32 1, 1
    %s217 = ssub.s32 %s216, 1
    %218 = vst [vmem:[#allocation5] sm:%s217] %v215
    // Predicated region
    $region39: #{custom-call.18} parent=1 // pred_check
      _
    $region40: #{custom-call.18} parent=1 // pred_check_branch
      %220 = sbr.rel (0) target = $region42
    $region41: #{custom-call.18} parent=1 // pred_region
      // Predicated region
      $region43: #{custom-call.18} parent=41 // pred_check
        _
      $region44: #{custom-call.18} parent=41 // pred_check_branch
        %222 = sbr.rel target = $region46
      $region45: #{custom-call.18} parent=41 // pred_region
        // Predicated region
        $region58: #{custom-call.18} parent=45 // pred_check
          _
        $region59: #{custom-call.18} parent=45 // pred_check_branch
          %238 = sbr.rel (0) target = $region61
        $region60: #{custom-call.18} parent=45 // pred_region
          %s240 = ssub.s32 4, 1
          loop: start=0, step=1, limit=1
          $region62: #{custom-call.18} parent=60 // loop_pre_header
            _
          $region63: #{custom-call.18} parent=60 // loop_header
            %s242 = sphi 0, %s246
            %p243 = scmp.ge.s32.totalorder %s242, 1
            %s247 = sphi [#allocation3], [#allocation3]
            %s248 = sphi %s1, %s1
          $region64: #{custom-call.18} parent=60 // loop_header_branch
            %245 = sbr.rel (%p243) target = $region68
          $region65: #{custom-call.18} parent=60 // loop_body
            %v249 = vld [vmem:[%s247] sm:%s240]
            %250 = vst [vmem:[%s248] sm:%s240] %v249
          $region66: #{custom-call.18} parent=60 // loop_footer
            %s246 = sadd.s32 1, %s242
          $region67: #{custom-call.18} parent=60 // loop_footer_branch
            %241 = sbr.rel target = $region63
          $region68: #{custom-call.18} parent=60 // loop_exit
            _
        $region61: #{custom-call.18} parent=45 // pred_fallthru
          _
      $region46: #{custom-call.18} parent=41 // pred_fallthru
        _
      // Predicated region
      $region47: #{custom-call.18} parent=41 // pred_check
        _
      $region48: #{custom-call.18} parent=41 // pred_check_branch
        %224 = sbr.rel (0) target = $region50
      $region49: #{custom-call.18} parent=41 // pred_region
        %s226 = ssub.s32 4, 1
        loop: start=0, step=1, limit=1
        $region51: #{custom-call.18} parent=49 // loop_pre_header
          _
        $region52: #{custom-call.18} parent=49 // loop_header
          %s228 = sphi 0, %s232
          %p229 = scmp.ge.s32.totalorder %s228, 1
          %s233 = sphi [#allocation3], [#allocation3]
          %s234 = sphi %s1, %s1
        $region53: #{custom-call.18} parent=49 // loop_header_branch
          %231 = sbr.rel (%p229) target = $region57
        $region54: #{custom-call.18} parent=49 // loop_body
          %v235 = vld [vmem:[%s233] sm:%s226]
          %236 = vst [vmem:[%s234] sm:%s226] %v235
        $region55: #{custom-call.18} parent=49 // loop_footer
          %s232 = sadd.s32 1, %s228
        $region56: #{custom-call.18} parent=49 // loop_footer_branch
          %227 = sbr.rel target = $region52
        $region57: #{custom-call.18} parent=49 // loop_exit
          _
      $region50: #{custom-call.18} parent=41 // pred_fallthru
        _
    $region42: #{custom-call.18} parent=1 // pred_fallthru
      _
    %251 = vnop
    // Predicated region
    $region69: #{custom-call.18} parent=1 // pred_check
      _
    $region70: #{custom-call.18} parent=1 // pred_check_branch
      %253 = sbr.rel (0) target = $region72
    $region71: #{custom-call.18} parent=1 // pred_region
      // Predicated region
      $region73: #{custom-call.18} parent=71 // pred_check
        _
      $region74: #{custom-call.18} parent=71 // pred_check_branch
        %255 = sbr.rel (0) target = $region76
      $region75: #{custom-call.18} parent=71 // pred_region
        // Predicated region
        $region77: #{custom-call.18} parent=75 // pred_check
          _
        $region78: #{custom-call.18} parent=75 // pred_check_branch
          %257 = sbr.rel target = $region80
        $region79: #{custom-call.18} parent=75 // pred_region
          // Predicated region
          $region92: #{custom-call.18} parent=79 // pred_check
            _
          $region93: #{custom-call.18} parent=79 // pred_check_branch
            %273 = sbr.rel (0) target = $region95
          $region94: #{custom-call.18} parent=79 // pred_region
            %s275 = ssub.s32 2, 1
            loop: start=0, step=1, limit=1
            $region96: #{custom-call.18} parent=94 // loop_pre_header
              _
            $region97: #{custom-call.18} parent=94 // loop_header
              %s277 = sphi 0, %s281
              %p278 = scmp.ge.s32.totalorder %s277, 1
              %s282 = sphi [#allocation5], [#allocation5]
              %s283 = sphi %s2, %s2
            $region98: #{custom-call.18} parent=94 // loop_header_branch
              %280 = sbr.rel (%p278) target = $region102
            $region99: #{custom-call.18} parent=94 // loop_body
              %v284 = vld [vmem:[%s282] sm:%s275]
              %285 = vst [vmem:[%s283] sm:%s275] %v284
            $region100: #{custom-call.18} parent=94 // loop_footer
              %s281 = sadd.s32 1, %s277
            $region101: #{custom-call.18} parent=94 // loop_footer_branch
              %276 = sbr.rel target = $region97
            $region102: #{custom-call.18} parent=94 // loop_exit
              _
          $region95: #{custom-call.18} parent=79 // pred_fallthru
            _
        $region80: #{custom-call.18} parent=75 // pred_fallthru
          _
        // Predicated region
        $region81: #{custom-call.18} parent=75 // pred_check
          _
        $region82: #{custom-call.18} parent=75 // pred_check_branch
          %259 = sbr.rel (0) target = $region84
        $region83: #{custom-call.18} parent=75 // pred_region
          %s261 = ssub.s32 2, 1
          loop: start=0, step=1, limit=1
          $region85: #{custom-call.18} parent=83 // loop_pre_header
            _
          $region86: #{custom-call.18} parent=83 // loop_header
            %s263 = sphi 0, %s267
            %p264 = scmp.ge.s32.totalorder %s263, 1
            %s268 = sphi [#allocation5], [#allocation5]
            %s269 = sphi %s2, %s2
          $region87: #{custom-call.18} parent=83 // loop_header_branch
            %266 = sbr.rel (%p264) target = $region91
          $region88: #{custom-call.18} parent=83 // loop_body
            %v270 = vld [vmem:[%s268] sm:%s261]
            %271 = vst [vmem:[%s269] sm:%s261] %v270
          $region89: #{custom-call.18} parent=83 // loop_footer
            %s267 = sadd.s32 1, %s263
          $region90: #{custom-call.18} parent=83 // loop_footer_branch
            %262 = sbr.rel target = $region86
          $region91: #{custom-call.18} parent=83 // loop_exit
            _
        $region84: #{custom-call.18} parent=75 // pred_fallthru
          _
      $region76: #{custom-call.18} parent=71 // pred_fallthru
        _
      %286 = vnop
    $region72: #{custom-call.18} parent=1 // pred_fallthru
      _
    // Predicated region
    $region103: #{custom-call.18} parent=1 // pred_check
      _
    $region104: #{custom-call.18} parent=1 // pred_check_branch
      %288 = sbr.rel (0) target = $region106
    $region105: #{custom-call.18} parent=1 // pred_region
      _
    $region106: #{custom-call.18} parent=1 // pred_fallthru
      _

// kernel: admm_net_forward.3
$region0: #{admm_net_forward.3}
  #allocation0 [shape = 'u32[]', space=smem, size = 0x4, offset = 0x4, fixed_abs, tag = 'smem constant byte address 0x4 - core index']
  #allocation1 [shape = 'u32[144,128]{1,0:T(1,128)}', space=vmem, size = 0x12000, scoped, tag = 'internal scratch']
  %s0 = inlined_call_operand.vmem [shape: f32[7], index: 0, kind: input, shape index: {}]
  %s1 = inlined_call_operand.vmem [shape: f32[25], index: 1, kind: input, shape index: {}]
  %s2 = inlined_call_operand.vmem [shape: f32[25], index: 2, kind: input, shape index: {}]
  %s3 = inlined_call_operand.vmem [shape: f32[25], index: 3, kind: input, shape index: {}]
  %s4 = inlined_call_operand.vmem [shape: f32[25], index: 4, kind: input, shape index: {}]
  %s5 = inlined_call_operand.vmem [shape: f32[2,16,16], index: 5, kind: input, shape index: {}]
  %s6 = inlined_call_operand.vmem [shape: f32[2,16,16], index: 6, kind: input, shape index: {}, may-alias: {6,7,8}]
  %s7 = inlined_call_operand.vmem [shape: f32[2,16,16], index: 7, kind: input, shape index: {}, may-alias: {6,7,8}]
  %s8 = inlined_call_operand.vmem [shape: f32[2,16,16], index: 8, kind: input, shape index: {}, may-alias: {6,7,8}]
  %s9 = inlined_call_operand.vmem [shape: f32[2,16,16], index: 9, kind: output, shape index: {0}]
  %s10 = inlined_call_operand.vmem [shape: f32[2,16,16], index: 10, kind: output, shape index: {1}]
  %11 = xla_tuple %s9, %s10
  %s12 = sld [smem:[#allocation0]]
  $region97: #{admm_net_forward.3} parent=0
    _
  %s14 = ssub.s32 1, %s12
  %s15 = scalar_select 0, %s14, %s12
  $region1: #{admm_net_forward.3} parent=0
    #allocation2 [shape = 'u8[512]{0}', space=smem, size = 0x200, scoped, tag = 'input window, operand 0, single buffered']
    #allocation3 [shape = 's32[2]{0}', space=sflag, size = 0x8, scoped, tag = 'scoped memory for admm_net_forward.3']
    #allocation4 [shape = 'u8[512]{0}', space=smem, size = 0x200, scoped, tag = 'input window, operand 1, single buffered']
    #allocation5 [shape = 's32[1]{0}', space=sflag, size = 0x4, scoped, tag = 'scoped memory for admm_net_forward.3']
    #allocation6 [shape = 'u8[512]{0}', space=smem, size = 0x200, scoped, tag = 'input window, operand 2, single buffered']
    #allocation7 [shape = 'u8[512]{0}', space=smem, size = 0x200, scoped, tag = 'input window, operand 3, single buffered']
    #allocation8 [shape = 's32[1]{0}', space=sflag, size = 0x4, scoped, tag = 'scoped memory for admm_net_forward.3']
    #allocation9 [shape = 'u8[512]{0}', space=smem, size = 0x200, scoped, tag = 'input window, operand 4, single buffered']
    %16 = vsyncpa [#allocation3], 0
    %17 = vsyncpa [#allocation5], 0
    %18 = vsyncpa [#allocation8], 0
    loop: start=0, step=1, limit=4
    $region2: #{admm_net_forward.3} parent=1 // loop_pre_header
      _
    $region3: #{admm_net_forward.3} parent=1 // loop_header
      %s20 = sphi 0, %s24
      %p21 = scmp.ge.s32.totalorder %s20, 4
      %s28 = sphi 0, %s28
      %s30 = sphi 0, %s28
      %s31 = sphi 0, %s30
      %s45 = sphi 0, %s31
      %s49 = sphi 0, %s49
      %s51 = sphi 0, %s49
      %s52 = sphi 0, %s51
      %s66 = sphi 0, %s52
      %s70 = sphi 0, %s70
      %s72 = sphi 0, %s70
      %s73 = sphi 0, %s72
      %s87 = sphi 0, %s73
      %s91 = sphi 0, %s91
      %s93 = sphi 0, %s91
      %s94 = sphi 0, %s93
      %s108 = sphi 0, %s94
      %s112 = sphi 0, %s112
      %s114 = sphi 0, %s112
      %s115 = sphi 0, %s114
      %s129 = sphi 0, %s115
      %s135 = sphi 0, %s137
      %s138 = sphi 0, %s135
      %s139 = sphi 0, %s138
      %s155 = sphi 0, %s139
      %s161 = sphi 0, %s163
      %s164 = sphi 0, %s161
      %s165 = sphi 0, %s164
      %s181 = sphi 0, %s165
      %s187 = sphi 0, %s189
      %s190 = sphi 0, %s187
      %s191 = sphi 0, %s190
      %s207 = sphi 0, %s191
      %s213 = sphi 0, %s215
      %s216 = sphi 0, %s213
      %s217 = sphi 0, %s216
      %s233 = sphi 0, %s217
      %s239 = sphi 0, %s241
      %s242 = sphi 0, %s239
      %s243 = sphi 0, %s242
      %s259 = sphi 0, %s243
      %s265 = sphi 0, %s267
      %s268 = sphi 0, %s265
      %s269 = sphi 0, %s268
      %s285 = sphi 0, %s269
    $region4: #{admm_net_forward.3} parent=1 // loop_header_branch
      %23 = sbr.rel (%p21) target = $region8
    $region5: #{admm_net_forward.3} parent=1 // loop_body
      %s25 = ssub.s32 %s20, 1
      %s26 = ssub.s32 %s20, 2
      %s27 = sadd.s32 %s20, 1
      %s29 = sadd.s32 %s28, 1
      %p32 = scmp.eq.s32.totalorder %s20, 1
      %p33 = scmp.ne.s32.totalorder %s28, %s30
      %p34 = scmp.eq.s32.totalorder %s20, 0
      %p35 = por %p33, %p34
      %p36 = scmp.ne.s32.totalorder %s28, %s30
      %p37 = scmp.eq.s32.totalorder %s25, 1
      %p38 = por %p36, %p37
      %p39 = scmp.ne.s32.totalorder %s30, %s31
      %p40 = scmp.eq.s32.totalorder %s25, 0
      %p41 = por %p39, %p40
      %p42 = scmp.ne.s32.totalorder %s30, %s31
      %p43 = scmp.eq.s32.totalorder %s26, 1
      %p44 = por %p42, %p43
      %p46 = scmp.ne.s32.totalorder %s31, %s45
      %p47 = scmp.eq.s32.totalorder %s26, 0
      %p48 = por %p46, %p47
      %s50 = sadd.s32 %s49, 1
      %p53 = scmp.eq.s32.totalorder %s20, 1
      %p54 = scmp.ne.s32.totalorder %s49, %s51
      %p55 = scmp.eq.s32.totalorder %s20, 0
      %p56 = por %p54, %p55
      %p57 = scmp.ne.s32.totalorder %s49, %s51
      %p58 = scmp.eq.s32.totalorder %s25, 1
      %p59 = por %p57, %p58
      %p60 = scmp.ne.s32.totalorder %s51, %s52
      %p61 = scmp.eq.s32.totalorder %s25, 0
      %p62 = por %p60, %p61
      %p63 = scmp.ne.s32.totalorder %s51, %s52
      %p64 = scmp.eq.s32.totalorder %s26, 1
      %p65 = por %p63, %p64
      %p67 = scmp.ne.s32.totalorder %s52, %s66
      %p68 = scmp.eq.s32.totalorder %s26, 0
      %p69 = por %p67, %p68
      %s71 = sadd.s32 %s70, 1
      %p74 = scmp.eq.s32.totalorder %s20, 1
      %p75 = scmp.ne.s32.totalorder %s70, %s72
      %p76 = scmp.eq.s32.totalorder %s20, 0
      %p77 = por %p75, %p76
      %p78 = scmp.ne.s32.totalorder %s70, %s72
      %p79 = scmp.eq.s32.totalorder %s25, 1
      %p80 = por %p78, %p79
      %p81 = scmp.ne.s32.totalorder %s72, %s73
      %p82 = scmp.eq.s32.totalorder %s25, 0
      %p83 = por %p81, %p82
      %p84 = scmp.ne.s32.totalorder %s72, %s73
      %p85 = scmp.eq.s32.totalorder %s26, 1
      %p86 = por %p84, %p85
      %p88 = scmp.ne.s32.totalorder %s73, %s87
      %p89 = scmp.eq.s32.totalorder %s26, 0
      %p90 = por %p88, %p89
      %s92 = sadd.s32 %s91, 1
      %p95 = scmp.eq.s32.totalorder %s20, 1
      %p96 = scmp.ne.s32.totalorder %s91, %s93
      %p97 = scmp.eq.s32.totalorder %s20, 0
      %p98 = por %p96, %p97
      %p99 = scmp.ne.s32.totalorder %s91, %s93
      %p100 = scmp.eq.s32.totalorder %s25, 1
      %p101 = por %p99, %p100
      %p102 = scmp.ne.s32.totalorder %s93, %s94
      %p103 = scmp.eq.s32.totalorder %s25, 0
      %p104 = por %p102, %p103
      %p105 = scmp.ne.s32.totalorder %s93, %s94
      %p106 = scmp.eq.s32.totalorder %s26, 1
      %p107 = por %p105, %p106
      %p109 = scmp.ne.s32.totalorder %s94, %s108
      %p110 = scmp.eq.s32.totalorder %s26, 0
      %p111 = por %p109, %p110
      %s113 = sadd.s32 %s112, 1
      %p116 = scmp.eq.s32.totalorder %s20, 1
      %p117 = scmp.ne.s32.totalorder %s112, %s114
      %p118 = scmp.eq.s32.totalorder %s20, 0
      %p119 = por %p117, %p118
      %p120 = scmp.ne.s32.totalorder %s112, %s114
      %p121 = scmp.eq.s32.totalorder %s25, 1
      %p122 = por %p120, %p121
      %p123 = scmp.ne.s32.totalorder %s114, %s115
      %p124 = scmp.eq.s32.totalorder %s25, 0
      %p125 = por %p123, %p124
      %p126 = scmp.ne.s32.totalorder %s114, %s115
      %p127 = scmp.eq.s32.totalorder %s26, 1
      %p128 = por %p126, %p127
      %p130 = scmp.ne.s32.totalorder %s115, %s129
      %p131 = scmp.eq.s32.totalorder %s26, 0
      %p132 = por %p130, %p131
      %s133 = ssub.s32 %s20, %s27
      %p134 = scmp.eq.s32.totalorder %s133, 0
      %s136 = sadd.s32 %s135, 1
      %s137 = scalar_select %p134, %s135, %s136
      %p140 = pneg %p134
      %p141 = scmp.eq.s32.totalorder %s20, 1
      %p142 = por %p140, %p141
      %p143 = scmp.ne.s32.totalorder %s135, %s138
      %p144 = scmp.eq.s32.totalorder %s20, 0
      %p145 = por %p143, %p144
      %p146 = scmp.ne.s32.totalorder %s135, %s138
      %p147 = scmp.eq.s32.totalorder %s25, 1
      %p148 = por %p146, %p147
      %p149 = scmp.ne.s32.totalorder %s138, %s139
      %p150 = scmp.eq.s32.totalorder %s25, 0
      %p151 = por %p149, %p150
      %p152 = scmp.ne.s32.totalorder %s138, %s139
      %p153 = scmp.eq.s32.totalorder %s26, 1
      %p154 = por %p152, %p153
      %p156 = scmp.ne.s32.totalorder %s139, %s155
      %p157 = scmp.eq.s32.totalorder %s26, 0
      %p158 = por %p156, %p157
      %s159 = ssub.s32 %s20, %s27
      %p160 = scmp.eq.s32.totalorder %s159, 0
      %s162 = sadd.s32 %s161, 1
      %s163 = scalar_select %p160, %s161, %s162
      %p166 = pneg %p160
      %p167 = scmp.eq.s32.totalorder %s20, 1
      %p168 = por %p166, %p167
      %p169 = scmp.ne.s32.totalorder %s161, %s164
      %p170 = scmp.eq.s32.totalorder %s20, 0
      %p171 = por %p169, %p170
      %p172 = scmp.ne.s32.totalorder %s161, %s164
      %p173 = scmp.eq.s32.totalorder %s25, 1
      %p174 = por %p172, %p173
      %p175 = scmp.ne.s32.totalorder %s164, %s165
      %p176 = scmp.eq.s32.totalorder %s25, 0
      %p177 = por %p175, %p176
      %p178 = scmp.ne.s32.totalorder %s164, %s165
      %p179 = scmp.eq.s32.totalorder %s26, 1
      %p180 = por %p178, %p179
      %p182 = scmp.ne.s32.totalorder %s165, %s181
      %p183 = scmp.eq.s32.totalorder %s26, 0
      %p184 = por %p182, %p183
      %s185 = ssub.s32 %s20, %s27
      %p186 = scmp.eq.s32.totalorder %s185, 0
      %s188 = sadd.s32 %s187, 1
      %s189 = scalar_select %p186, %s187, %s188
      %p192 = pneg %p186
      %p193 = scmp.eq.s32.totalorder %s20, 1
      %p194 = por %p192, %p193
      %p195 = scmp.ne.s32.totalorder %s187, %s190
      %p196 = scmp.eq.s32.totalorder %s20, 0
      %p197 = por %p195, %p196
      %p198 = scmp.ne.s32.totalorder %s187, %s190
      %p199 = scmp.eq.s32.totalorder %s25, 1
      %p200 = por %p198, %p199
      %p201 = scmp.ne.s32.totalorder %s190, %s191
      %p202 = scmp.eq.s32.totalorder %s25, 0
      %p203 = por %p201, %p202
      %p204 = scmp.ne.s32.totalorder %s190, %s191
      %p205 = scmp.eq.s32.totalorder %s26, 1
      %p206 = por %p204, %p205
      %p208 = scmp.ne.s32.totalorder %s191, %s207
      %p209 = scmp.eq.s32.totalorder %s26, 0
      %p210 = por %p208, %p209
      %s211 = ssub.s32 %s20, %s27
      %p212 = scmp.eq.s32.totalorder %s211, 0
      %s214 = sadd.s32 %s213, 1
      %s215 = scalar_select %p212, %s213, %s214
      %p218 = pneg %p212
      %p219 = scmp.eq.s32.totalorder %s20, 1
      %p220 = por %p218, %p219
      %p221 = scmp.ne.s32.totalorder %s213, %s216
      %p222 = scmp.eq.s32.totalorder %s20, 0
      %p223 = por %p221, %p222
      %p224 = scmp.ne.s32.totalorder %s213, %s216
      %p225 = scmp.eq.s32.totalorder %s25, 1
      %p226 = por %p224, %p225
      %p227 = scmp.ne.s32.totalorder %s216, %s217
      %p228 = scmp.eq.s32.totalorder %s25, 0
      %p229 = por %p227, %p228
      %p230 = scmp.ne.s32.totalorder %s216, %s217
      %p231 = scmp.eq.s32.totalorder %s26, 1
      %p232 = por %p230, %p231
      %p234 = scmp.ne.s32.totalorder %s217, %s233
      %p235 = scmp.eq.s32.totalorder %s26, 0
      %p236 = por %p234, %p235
      %s237 = ssub.s32 %s20, %s27
      %p238 = scmp.eq.s32.totalorder %s237, 0
      %s240 = sadd.s32 %s239, 1
      %s241 = scalar_select %p238, %s239, %s240
      %p244 = pneg %p238
      %p245 = scmp.eq.s32.totalorder %s20, 1
      %p246 = por %p244, %p245
      %p247 = scmp.ne.s32.totalorder %s239, %s242
      %p248 = scmp.eq.s32.totalorder %s20, 0
      %p249 = por %p247, %p248
      %p250 = scmp.ne.s32.totalorder %s239, %s242
      %p251 = scmp.eq.s32.totalorder %s25, 1
      %p252 = por %p250, %p251
      %p253 = scmp.ne.s32.totalorder %s242, %s243
      %p254 = scmp.eq.s32.totalorder %s25, 0
      %p255 = por %p253, %p254
      %p256 = scmp.ne.s32.totalorder %s242, %s243
      %p257 = scmp.eq.s32.totalorder %s26, 1
      %p258 = por %p256, %p257
      %p260 = scmp.ne.s32.totalorder %s243, %s259
      %p261 = scmp.eq.s32.totalorder %s26, 0
      %p262 = por %p260, %p261
      %s263 = ssub.s32 %s20, %s27
      %p264 = scmp.eq.s32.totalorder %s263, 0
      %s266 = sadd.s32 %s265, 1
      %s267 = scalar_select %p264, %s265, %s266
      %p270 = pneg %p264
      %p271 = scmp.eq.s32.totalorder %s20, 1
      %p272 = por %p270, %p271
      %p273 = scmp.ne.s32.totalorder %s265, %s268
      %p274 = scmp.eq.s32.totalorder %s20, 0
      %p275 = por %p273, %p274
      %p276 = scmp.ne.s32.totalorder %s265, %s268
      %p277 = scmp.eq.s32.totalorder %s25, 1
      %p278 = por %p276, %p277
      %p279 = scmp.ne.s32.totalorder %s268, %s269
      %p280 = scmp.eq.s32.totalorder %s25, 0
      %p281 = por %p279, %p280
      %p282 = scmp.ne.s32.totalorder %s268, %s269
      %p283 = scmp.eq.s32.totalorder %s26, 1
      %p284 = por %p282, %p283
      %p286 = scmp.ne.s32.totalorder %s269, %s285
      %p287 = scmp.eq.s32.totalorder %s26, 0
      %p288 = por %p286, %p287
      %p289 = scmp.le.s32.totalorder 1, %s20
      %p290 = scmp.lt.s32.totalorder %s20, 3
      %p291 = pnand %p289, %p290
      %p292 = pneg %p291
      // Predicated region
      $region9: #{admm_net_forward.3} parent=5 // pred_check
        _
      $region10: #{admm_net_forward.3} parent=5 // pred_check_branch
        %294 = sbr.rel (%p291) target = $region12
      $region11: #{admm_net_forward.3} parent=5 // pred_region
        %s295 = ssub.s32 %s20, 1
        // Predicated region
        $region13: #{admm_net_forward.3} parent=11 // pred_check
          %p296 = pneg %p41
        $region14: #{admm_net_forward.3} parent=11 // pred_check_branch
          %298 = sbr.rel (%p296) target = $region16
        $region15: #{admm_net_forward.3} parent=11 // pred_region
          %s300 = ssub.s32 16, 16
          %301 = vsyncadd [#allocation3], %s300
          %s303 = sshll.u32 %s0, 4
          %s304 = int_to_ptr.vmem [resolvable:$true] %s303
          %306 = dma.vmem_to_smem %s304, 16, [#allocation2], [#allocation3]
        $region16: #{admm_net_forward.3} parent=11 // pred_fallthru
          _
        // Predicated region
        $region17: #{admm_net_forward.3} parent=11 // pred_check
          %p307 = pneg %p62
        $region18: #{admm_net_forward.3} parent=11 // pred_check_branch
          %309 = sbr.rel (%p307) target = $region20
        $region19: #{admm_net_forward.3} parent=11 // pred_region
          %s311 = ssub.s32 16, 16
          %312 = vsyncadd [#allocation5], %s311
          %s314 = sshll.u32 %s1, 4
          %s315 = int_to_ptr.vmem [resolvable:$true] %s314
          %317 = dma.vmem_to_smem %s315, 16, [#allocation4], [#allocation5]
        $region20: #{admm_net_forward.3} parent=11 // pred_fallthru
          _
        // Predicated region
        $region21: #{admm_net_forward.3} parent=11 // pred_check
          %p318 = pneg %p83
        $region22: #{admm_net_forward.3} parent=11 // pred_check_branch
          %320 = sbr.rel (%p318) target = $region24
        $region23: #{admm_net_forward.3} parent=11 // pred_region
          %s322 = ssub.s32 16, 16
          %323 = vsyncadd [#allocation5], %s322
          %s325 = sshll.u32 %s2, 4
          %s326 = int_to_ptr.vmem [resolvable:$true] %s325
          %328 = dma.vmem_to_smem %s326, 16, [#allocation6], [#allocation5]
        $region24: #{admm_net_forward.3} parent=11 // pred_fallthru
          _
        // Predicated region
        $region25: #{admm_net_forward.3} parent=11 // pred_check
          %p329 = pneg %p104
        $region26: #{admm_net_forward.3} parent=11 // pred_check_branch
          %331 = sbr.rel (%p329) target = $region28
        $region27: #{admm_net_forward.3} parent=11 // pred_region
          %s333 = ssub.s32 16, 16
          %334 = vsyncadd [#allocation8], %s333
          %s336 = sshll.u32 %s3, 4
          %s337 = int_to_ptr.vmem [resolvable:$true] %s336
          %339 = dma.vmem_to_smem %s337, 16, [#allocation7], [#allocation8]
        $region28: #{admm_net_forward.3} parent=11 // pred_fallthru
          _
        // Predicated region
        $region29: #{admm_net_forward.3} parent=11 // pred_check
          %p340 = pneg %p125
        $region30: #{admm_net_forward.3} parent=11 // pred_check_branch
          %342 = sbr.rel (%p340) target = $region32
        $region31: #{admm_net_forward.3} parent=11 // pred_region
          %s344 = ssub.s32 16, 16
          %345 = vsyncadd [#allocation8], %s344
          %s347 = sshll.u32 %s4, 4
          %s348 = int_to_ptr.vmem [resolvable:$true] %s347
          %350 = dma.vmem_to_smem %s348, 16, [#allocation9], [#allocation8]
        $region32: #{admm_net_forward.3} parent=11 // pred_fallthru
          _
      $region12: #{admm_net_forward.3} parent=5 // pred_fallthru
        _
      %p351 = scmp.lt.s32.totalorder %s20, 2
      // Predicated region
      $region33: #{admm_net_forward.3} parent=5 // pred_check
        %p352 = pneg %p351
      $region34: #{admm_net_forward.3} parent=5 // pred_check_branch
        %354 = sbr.rel (%p352) target = $region36
      $region35: #{admm_net_forward.3} parent=5 // pred_region
        // Predicated region
        $region37: #{admm_net_forward.3} parent=35 // pred_check
          %p355 = pneg %p145
        $region38: #{admm_net_forward.3} parent=35 // pred_check_branch
          %357 = sbr.rel (%p355) target = $region40
        $region39: #{admm_net_forward.3} parent=35 // pred_region
          %p358 = scmp.lt.s32.totalorder %s20, 1
          %s359 = scalar_select %p358, %s20, 1
          %s360 = smul.addr %s359, 2
          %s361 = smul.addr %s360, 8
          %s362 = scalar_lea.vmem %s5, %s361
        $region40: #{admm_net_forward.3} parent=35 // pred_fallthru
          _
        // Predicated region
        $region41: #{admm_net_forward.3} parent=35 // pred_check
          %p363 = pneg %p171
        $region42: #{admm_net_forward.3} parent=35 // pred_check_branch
          %365 = sbr.rel (%p363) target = $region44
        $region43: #{admm_net_forward.3} parent=35 // pred_region
          %p366 = scmp.lt.s32.totalorder %s20, 1
          %s367 = scalar_select %p366, %s20, 1
          %s368 = smul.addr %s367, 2
          %s369 = smul.addr %s368, 8
          %s370 = scalar_lea.vmem %s6, %s369
        $region44: #{admm_net_forward.3} parent=35 // pred_fallthru
          _
        // Predicated region
        $region45: #{admm_net_forward.3} parent=35 // pred_check
          %p371 = pneg %p197
        $region46: #{admm_net_forward.3} parent=35 // pred_check_branch
          %373 = sbr.rel (%p371) target = $region48
        $region47: #{admm_net_forward.3} parent=35 // pred_region
          %p374 = scmp.lt.s32.totalorder %s20, 1
          %s375 = scalar_select %p374, %s20, 1
          %s376 = smul.addr %s375, 2
          %s377 = smul.addr %s376, 8
          %s378 = scalar_lea.vmem %s7, %s377
        $region48: #{admm_net_forward.3} parent=35 // pred_fallthru
          _
        // Predicated region
        $region49: #{admm_net_forward.3} parent=35 // pred_check
          %p379 = pneg %p223
        $region50: #{admm_net_forward.3} parent=35 // pred_check_branch
          %381 = sbr.rel (%p379) target = $region52
        $region51: #{admm_net_forward.3} parent=35 // pred_region
          %p382 = scmp.lt.s32.totalorder %s20, 1
          %s383 = scalar_select %p382, %s20, 1
          %s384 = smul.addr %s383, 2
          %s385 = smul.addr %s384, 8
          %s386 = scalar_lea.vmem %s8, %s385
        $region52: #{admm_net_forward.3} parent=35 // pred_fallthru
          _
      $region36: #{admm_net_forward.3} parent=5 // pred_fallthru
        _
      %p387 = scmp.le.s32.totalorder 1, %s20
      %p388 = scmp.lt.s32.totalorder %s20, 3
      %p389 = pnand %p387, %p388
      %p390 = pneg %p389
      // Predicated region
      $region53: #{admm_net_forward.3} parent=5 // pred_check
        _
      $region54: #{admm_net_forward.3} parent=5 // pred_check_branch
        %392 = sbr.rel (%p389) target = $region56
      $region55: #{admm_net_forward.3} parent=5 // pred_region
        %s393 = ssub.s32 %s20, 1
        // Predicated region
        $region57: #{admm_net_forward.3} parent=55 // pred_check
          %p394 = pneg %p41
        $region58: #{admm_net_forward.3} parent=55 // pred_check_branch
          %396 = sbr.rel (%p394) target = $region60
        $region59: #{admm_net_forward.3} parent=55 // pred_region
          %397 = dma.done [#allocation3], 16
        $region60: #{admm_net_forward.3} parent=55 // pred_fallthru
          _
        // Predicated region
        $region61: #{admm_net_forward.3} parent=55 // pred_check
          %p398 = pneg %p62
        $region62: #{admm_net_forward.3} parent=55 // pred_check_branch
          %400 = sbr.rel (%p398) target = $region64
        $region63: #{admm_net_forward.3} parent=55 // pred_region
          %401 = dma.done [#allocation5], 16
        $region64: #{admm_net_forward.3} parent=55 // pred_fallthru
          _
        // Predicated region
        $region65: #{admm_net_forward.3} parent=55 // pred_check
          %p402 = pneg %p83
        $region66: #{admm_net_forward.3} parent=55 // pred_check_branch
          %404 = sbr.rel (%p402) target = $region68
        $region67: #{admm_net_forward.3} parent=55 // pred_region
          %405 = dma.done [#allocation5], 16
        $region68: #{admm_net_forward.3} parent=55 // pred_fallthru
          _
        // Predicated region
        $region69: #{admm_net_forward.3} parent=55 // pred_check
          %p406 = pneg %p104
        $region70: #{admm_net_forward.3} parent=55 // pred_check_branch
          %408 = sbr.rel (%p406) target = $region72
        $region71: #{admm_net_forward.3} parent=55 // pred_region
          %409 = dma.done [#allocation8], 16
        $region72: #{admm_net_forward.3} parent=55 // pred_fallthru
          _
        // Predicated region
        $region73: #{admm_net_forward.3} parent=55 // pred_check
          %p410 = pneg %p125
        $region74: #{admm_net_forward.3} parent=55 // pred_check_branch
          %412 = sbr.rel (%p410) target = $region76
        $region75: #{admm_net_forward.3} parent=55 // pred_region
          %413 = dma.done [#allocation8], 16
        $region76: #{admm_net_forward.3} parent=55 // pred_fallthru
          _
        %414 = sfence
        %p415 = pneg %p41
        %p416 = pneg %p38
        %p417 = pneg %p62
        %p418 = pneg %p59
        %p419 = pneg %p83
        %p420 = pneg %p80
        %p421 = pneg %p104
        %p422 = pneg %p101
        %p423 = pneg %p125
        %p424 = pneg %p122
        %p425 = scmp.lt.s32.totalorder %s25, 1
        %s426 = scalar_select %p425, %s25, 1
        %s427 = smul.addr %s426, 2
        %s428 = smul.addr %s427, 8
        %s429 = scalar_lea.vmem %s5, %s428
        %p430 = pneg %p151
        %p431 = pneg %p148
        %p432 = scmp.lt.s32.totalorder %s25, 1
        %s433 = scalar_select %p432, %s25, 1
        %s434 = smul.addr %s433, 2
        %s435 = smul.addr %s434, 8
        %s436 = scalar_lea.vmem %s6, %s435
        %p437 = pneg %p177
        %p438 = pneg %p174
        %p439 = scmp.lt.s32.totalorder %s25, 1
        %s440 = scalar_select %p439, %s25, 1
        %s441 = smul.addr %s440, 2
        %s442 = smul.addr %s441, 8
        %s443 = scalar_lea.vmem %s7, %s442
        %p444 = pneg %p203
        %p445 = pneg %p200
        %p446 = scmp.lt.s32.totalorder %s25, 1
        %s447 = scalar_select %p446, %s25, 1
        %s448 = smul.addr %s447, 2
        %s449 = smul.addr %s448, 8
        %s450 = scalar_lea.vmem %s8, %s449
        %p451 = pneg %p229
        %p452 = pneg %p226
        %p453 = pneg %p255
        %p454 = pneg %p252
        %p455 = scmp.lt.s32.totalorder %s25, 1
        %s456 = scalar_select %p455, %s25, 1
        %s457 = smul.addr %s456, 2
        %s458 = smul.addr %s457, 8
        %s459 = scalar_lea.vmem %s9, %s458
        %p460 = pneg %p281
        %p461 = pneg %p278
        %p462 = scmp.lt.s32.totalorder %s25, 1
        %s463 = scalar_select %p462, %s25, 1
        %s464 = smul.addr %s463, 2
        %s465 = smul.addr %s464, 8
        %s466 = scalar_lea.vmem %s10, %s465
        %p467 = scmp.lt.s32.totalorder %s25, 1
        %s468 = scalar_select %p467, %s25, 1
        %s469 = smul.addr %s468, 2
        %s470 = smul.addr %s469, 8
        %s471 = scalar_lea.vmem %s5, %s470
        %p472 = scmp.lt.s32.totalorder %s25, 1
        %s473 = scalar_select %p472, %s25, 1
        %s474 = smul.addr %s473, 2
        %s475 = smul.addr %s474, 8
        %s476 = scalar_lea.vmem %s6, %s475
        %p477 = scmp.lt.s32.totalorder %s25, 1
        %s478 = scalar_select %p477, %s25, 1
        %s479 = smul.addr %s478, 2
        %s480 = smul.addr %s479, 8
        %s481 = scalar_lea.vmem %s7, %s480
        %p482 = scmp.lt.s32.totalorder %s25, 1
        %s483 = scalar_select %p482, %s25, 1
        %s484 = smul.addr %s483, 2
        %s485 = smul.addr %s484, 8
        %s486 = scalar_lea.vmem %s8, %s485
        %p487 = scmp.lt.s32.totalorder %s25, 1
        %s488 = scalar_select %p487, %s25, 1
        %s489 = smul.addr %s488, 2
        %s490 = smul.addr %s489, 8
        %s491 = scalar_lea.vmem %s9, %s490
        %p492 = scmp.lt.s32.totalorder %s25, 1
        %s493 = scalar_select %p492, %s25, 1
        %s494 = smul.addr %s493, 2
        %s495 = smul.addr %s494, 8
        %s496 = scalar_lea.vmem %s10, %s495
        %s497 = sld [smem:[#allocation2]]
        %s498 = sld [smem:[#allocation2 + $0x1]]
        %s499 = sld [smem:[#allocation2 + $0x2]]
        %s500 = sld [smem:[#allocation2 + $0x3]]
        %s501 = sld [smem:[#allocation2 + $0x4]]
        %s502 = sld [smem:[#allocation2 + $0x5]]
        %s503 = sld [smem:[#allocation2 + $0x6]]
        %v504 = vld [vmem:[%s471] sm:$0xff]
        %v505 = vld [vmem:[%s471 + $0x8] sm:$0xff]
        %v506 = vld [vmem:[%s476] sm:$0xff]
        %v507 = vld [vmem:[%s476 + $0x8] sm:$0xff]
        %v508 = vld [vmem:[%s481] sm:$0xff]
        %v509 = vld [vmem:[%s481 + $0x8] sm:$0xff]
        %v511 = vrot.slane %v508, 2
        %vm514 = vcmask 1041408
        %v515 = vrot.slane %v508, 6
        %v516 = vrot.slane %v509, 6
        %v517 = vsel %vm514, %v515, %v516
        %v521 = vrot.slane %v509, 4
        %v523 = vrot.slane %v509, 2
        %vm525 = vcmask 1040384
        %v526 = vsel %vm525, %v511, %v508
        %v527 = vsel %vm514, %v526, %v515
        %v528 = vsel %vm514, %v516, %v521
        %vm529 = vcmask 1042432
        %v530 = vsel %vm529, %v528, %v523
        %533 = vrot.lane.b32.xlu0 %v527, 126
        %v534 = vpop.permute.xlu0 %533
        %535 = vrot.lane.b32.xlu0 %v517, 126
        %v536 = vpop.permute.xlu0 %535
        %537 = vrot.lane.b32.xlu0 %v530, 126
        %v538 = vpop.permute.xlu0 %537
        %542 = vrot.lane.b32.xlu0 %v527, 2
        %v543 = vpop.permute.xlu0 %542
        %544 = vrot.lane.b32.xlu0 %v517, 2
        %v545 = vpop.permute.xlu0 %544
        %546 = vrot.lane.b32.xlu0 %v530, 2
        %v547 = vpop.permute.xlu0 %546
        %551 = vrot.lane.b32.xlu0 %v527, 4
        %v552 = vpop.permute.xlu0 %551
        %553 = vrot.lane.b32.xlu0 %v517, 4
        %v554 = vpop.permute.xlu0 %553
        %555 = vrot.lane.b32.xlu0 %v530, 4
        %v556 = vpop.permute.xlu0 %555
        %560 = vrot.lane.b32.xlu0 %v527, 6
        %v561 = vpop.permute.xlu0 %560
        %562 = vrot.lane.b32.xlu0 %v517, 6
        %v563 = vpop.permute.xlu0 %562
        %564 = vrot.lane.b32.xlu0 %v530, 6
        %v565 = vpop.permute.xlu0 %564
        %vm569 = vcmask 7168
        %v570 = vsel %vm569, %v534, %v527
        %v571 = vsel %vm569, %v536, %v517
        %v572 = vsel %vm569, %v538, %v530
        %vm573 = vcmask 15360
        %v574 = vsel %vm573, %v570, %v543
        %v575 = vsel %vm573, %v571, %v545
        %v576 = vsel %vm573, %v572, %v547
        %vm577 = vcmask 146432
        %v578 = vsel %vm577, %v574, %v552
        %v579 = vsel %vm577, %v575, %v554
        %v580 = vsel %vm577, %v576, %v556
        %vm581 = vcmask 154624
        %v582 = vsel %vm581, %v578, %v561
        %v583 = vsel %vm581, %v579, %v563
        %v584 = vsel %vm581, %v580, %v565
        %v585 = vstv %s499
        %v586 = vadd.f32 %v585, 0.0
        %s587 = sld [smem:[#allocation4]]
        %v588 = vstv %s587
        %v589 = vmul.f32 %v588, %v582
        %v590 = vmul.f32 %v588, %v583
        %v591 = vadd.f32 %v586, %v589
        %v592 = vadd.f32 %v586, %v590
        %s593 = sld [smem:[#allocation4 + $0x1]]
        %v594 = vstv %s593
        %v595 = vmul.f32 %v594, %v582
        %v596 = vmul.f32 %v594, %v583
        %599 = vrot.lane.b32.xlu0 %v595, 127
        %v600 = vpop.permute.xlu0 %599
        %601 = vrot.lane.b32.xlu0 %v596, 127
        %v602 = vpop.permute.xlu0 %601
        %v605 = vadd.f32 %v591, %v600
        %v606 = vadd.f32 %v592, %v602
        %s607 = sld [smem:[#allocation4 + $0x2]]
        %v608 = vstv %s607
        %v609 = vmul.f32 %v608, %v582
        %v610 = vmul.f32 %v608, %v583
        %613 = vrot.lane.b32.xlu0 %v609, 126
        %v614 = vpop.permute.xlu0 %613
        %615 = vrot.lane.b32.xlu0 %v610, 126
        %v616 = vpop.permute.xlu0 %615
        %v619 = vadd.f32 %v605, %v614
        %v620 = vadd.f32 %v606, %v616
        %s621 = sld [smem:[#allocation4 + $0x3]]
        %v622 = vstv %s621
        %v623 = vmul.f32 %v622, %v582
        %v624 = vmul.f32 %v622, %v583
        %627 = vrot.lane.b32.xlu0 %v623, 125
        %v628 = vpop.permute.xlu0 %627
        %629 = vrot.lane.b32.xlu0 %v624, 125
        %v630 = vpop.permute.xlu0 %629
        %v633 = vadd.f32 %v619, %v628
        %v634 = vadd.f32 %v620, %v630
        %s635 = sld [smem:[#allocation4 + $0x4]]
        %v636 = vstv %s635
        %v637 = vmul.f32 %v636, %v582
        %v638 = vmul.f32 %v636, %v583
        %641 = vrot.lane.b32.xlu0 %v637, 124
        %v642 = vpop.permute.xlu0 %641
        %643 = vrot.lane.b32.xlu0 %v638, 124
        %v644 = vpop.permute.xlu0 %643
        %v647 = vadd.f32 %v633, %v642
        %v648 = vadd.f32 %v634, %v644
        %s649 = sld [smem:[#allocation4 + $0x5]]
        %v650 = vstv %s649
        %v651 = vmul.f32 %v650, %v582
        %v652 = vmul.f32 %v650, %v583
        %v653 = vmul.f32 %v650, %v584
        %vm657 = vcmask 1046528
        %v658 = vrot.slane %v651, 1
        %v659 = vrot.slane %v652, 1
        %v660 = vsel %vm657, %v658, %v659
        %v661 = vrot.slane %v653, 1
        %v662 = vsel %vm657, %v659, %v661
        %v665 = vadd.f32 %v647, %v660
        %v666 = vadd.f32 %v648, %v662
        %s667 = sld [smem:[#allocation4 + $0x6]]
        %v668 = vstv %s667
        %v669 = vmul.f32 %v668, %v582
        %v670 = vmul.f32 %v668, %v583
        %v671 = vmul.f32 %v668, %v584
        %v675 = vrot.slane %v669, 1
        %v676 = vrot.slane %v670, 1
        %v677 = vsel %vm657, %v675, %v676
        %v678 = vrot.slane %v671, 1
        %v679 = vsel %vm657, %v676, %v678
        %680 = vrot.lane.b32.xlu0 %v677, 127
        %v681 = vpop.permute.xlu0 %680
        %682 = vrot.lane.b32.xlu0 %v679, 127
        %v683 = vpop.permute.xlu0 %682
        %v686 = vadd.f32 %v665, %v681
        %v687 = vadd.f32 %v666, %v683
        %s688 = sld [smem:[#allocation4 + $0x7]]
        %v689 = vstv %s688
        %v690 = vmul.f32 %v689, %v582
        %v691 = vmul.f32 %v689, %v583
        %v692 = vmul.f32 %v689, %v584
        %v696 = vrot.slane %v690, 1
        %v697 = vrot.slane %v691, 1
        %v698 = vsel %vm657, %v696, %v697
        %v699 = vrot.slane %v692, 1
        %v700 = vsel %vm657, %v697, %v699
        %701 = vrot.lane.b32.xlu0 %v698, 126
        %v702 = vpop.permute.xlu0 %701
        %703 = vrot.lane.b32.xlu0 %v700, 126
        %v704 = vpop.permute.xlu0 %703
        %v707 = vadd.f32 %v686, %v702
        %v708 = vadd.f32 %v687, %v704
        %s709 = sld [smem:[#allocation4 + $0x8]]
        %v710 = vstv %s709
        %v711 = vmul.f32 %v710, %v582
        %v712 = vmul.f32 %v710, %v583
        %v713 = vmul.f32 %v710, %v584
        %v717 = vrot.slane %v711, 1
        %v718 = vrot.slane %v712, 1
        %v719 = vsel %vm657, %v717, %v718
        %v720 = vrot.slane %v713, 1
        %v721 = vsel %vm657, %v718, %v720
        %722 = vrot.lane.b32.xlu0 %v719, 125
        %v723 = vpop.permute.xlu0 %722
        %724 = vrot.lane.b32.xlu0 %v721, 125
        %v725 = vpop.permute.xlu0 %724
        %v728 = vadd.f32 %v707, %v723
        %v729 = vadd.f32 %v708, %v725
        %s730 = sld [smem:[#allocation4 + $0x9]]
        %v731 = vstv %s730
        %v732 = vmul.f32 %v731, %v582
        %v733 = vmul.f32 %v731, %v583
        %v734 = vmul.f32 %v731, %v584
        %v738 = vrot.slane %v732, 1
        %v739 = vrot.slane %v733, 1
        %v740 = vsel %vm657, %v738, %v739
        %v741 = vrot.slane %v734, 1
        %v742 = vsel %vm657, %v739, %v741
        %743 = vrot.lane.b32.xlu0 %v740, 124
        %v744 = vpop.permute.xlu0 %743
        %745 = vrot.lane.b32.xlu0 %v742, 124
        %v746 = vpop.permute.xlu0 %745
        %v749 = vadd.f32 %v728, %v744
        %v750 = vadd.f32 %v729, %v746
        %s751 = sld [smem:[#allocation4 + $0xa]]
        %v752 = vstv %s751
        %v753 = vmul.f32 %v752, %v582
        %v754 = vmul.f32 %v752, %v583
        %v755 = vmul.f32 %v752, %v584
        %vm759 = vcmask 1045504
        %v760 = vrot.slane %v753, 2
        %v761 = vrot.slane %v754, 2
        %v762 = vsel %vm759, %v760, %v761
        %v763 = vrot.slane %v755, 2
        %v764 = vsel %vm759, %v761, %v763
        %v767 = vadd.f32 %v749, %v762
        %v768 = vadd.f32 %v750, %v764
        %s769 = sld [smem:[#allocation4 + $0xb]]
        %v770 = vstv %s769
        %v771 = vmul.f32 %v770, %v582
        %v772 = vmul.f32 %v770, %v583
        %v773 = vmul.f32 %v770, %v584
        %v777 = vrot.slane %v771, 2
        %v778 = vrot.slane %v772, 2
        %v779 = vsel %vm759, %v777, %v778
        %v780 = vrot.slane %v773, 2
        %v781 = vsel %vm759, %v778, %v780
        %782 = vrot.lane.b32.xlu0 %v779, 127
        %v783 = vpop.permute.xlu0 %782
        %784 = vrot.lane.b32.xlu0 %v781, 127
        %v785 = vpop.permute.xlu0 %784
        %v788 = vadd.f32 %v767, %v783
        %v789 = vadd.f32 %v768, %v785
        %s790 = sld [smem:[#allocation4 + $0xc]]
        %v791 = vstv %s790
        %v792 = vmul.f32 %v791, %v582
        %v793 = vmul.f32 %v791, %v583
        %v794 = vmul.f32 %v791, %v584
        %v798 = vrot.slane %v792, 2
        %v799 = vrot.slane %v793, 2
        %v800 = vsel %vm759, %v798, %v799
        %v801 = vrot.slane %v794, 2
        %v802 = vsel %vm759, %v799, %v801
        %803 = vrot.lane.b32.xlu0 %v800, 126
        %v804 = vpop.permute.xlu0 %803
        %805 = vrot.lane.b32.xlu0 %v802, 126
        %v806 = vpop.permute.xlu0 %805
        %v809 = vadd.f32 %v788, %v804
        %v810 = vadd.f32 %v789, %v806
        %s811 = sld [smem:[#allocation4 + $0xd]]
        %v812 = vstv %s811
        %v813 = vmul.f32 %v812, %v582
        %v814 = vmul.f32 %v812, %v583
        %v815 = vmul.f32 %v812, %v584
        %v819 = vrot.slane %v813, 2
        %v820 = vrot.slane %v814, 2
        %v821 = vsel %vm759, %v819, %v820
        %v822 = vrot.slane %v815, 2
        %v823 = vsel %vm759, %v820, %v822
        %824 = vrot.lane.b32.xlu0 %v821, 125
        %v825 = vpop.permute.xlu0 %824
        %826 = vrot.lane.b32.xlu0 %v823, 125
        %v827 = vpop.permute.xlu0 %826
        %v830 = vadd.f32 %v809, %v825
        %v831 = vadd.f32 %v810, %v827
        %s832 = sld [smem:[#allocation4 + $0xe]]
        %v833 = vstv %s832
        %v834 = vmul.f32 %v833, %v582
        %v835 = vmul.f32 %v833, %v583
        %v836 = vmul.f32 %v833, %v584
        %v840 = vrot.slane %v834, 2
        %v841 = vrot.slane %v835, 2
        %v842 = vsel %vm759, %v840, %v841
        %v843 = vrot.slane %v836, 2
        %v844 = vsel %vm759, %v841, %v843
        %845 = vrot.lane.b32.xlu0 %v842, 124
        %v846 = vpop.permute.xlu0 %845
        %847 = vrot.lane.b32.xlu0 %v844, 124
        %v848 = vpop.permute.xlu0 %847
        %v851 = vadd.f32 %v830, %v846
        %v852 = vadd.f32 %v831, %v848
        %s853 = sld [smem:[#allocation4 + $0xf]]
        %v854 = vstv %s853
        %v855 = vmul.f32 %v854, %v582
        %v856 = vmul.f32 %v854, %v583
        %v857 = vmul.f32 %v854, %v584
        %vm861 = vcmask 1044480
        %v862 = vrot.slane %v855, 3
        %v863 = vrot.slane %v856, 3
        %v864 = vsel %vm861, %v862, %v863
        %v865 = vrot.slane %v857, 3
        %v866 = vsel %vm861, %v863, %v865
        %v869 = vadd.f32 %v851, %v864
        %v870 = vadd.f32 %v852, %v866
        %s871 = sld [smem:[#allocation4 + $0x10]]
        %v872 = vstv %s871
        %v873 = vmul.f32 %v872, %v582
        %v874 = vmul.f32 %v872, %v583
        %v875 = vmul.f32 %v872, %v584
        %v879 = vrot.slane %v873, 3
        %v880 = vrot.slane %v874, 3
        %v881 = vsel %vm861, %v879, %v880
        %v882 = vrot.slane %v875, 3
        %v883 = vsel %vm861, %v880, %v882
        %884 = vrot.lane.b32.xlu0 %v881, 127
        %v885 = vpop.permute.xlu0 %884
        %886 = vrot.lane.b32.xlu0 %v883, 127
        %v887 = vpop.permute.xlu0 %886
        %v890 = vadd.f32 %v869, %v885
        %v891 = vadd.f32 %v870, %v887
        %s892 = sld [smem:[#allocation4 + $0x11]]
        %v893 = vstv %s892
        %v894 = vmul.f32 %v893, %v582
        %v895 = vmul.f32 %v893, %v583
        %v896 = vmul.f32 %v893, %v584
        %v900 = vrot.slane %v894, 3
        %v901 = vrot.slane %v895, 3
        %v902 = vsel %vm861, %v900, %v901
        %v903 = vrot.slane %v896, 3
        %v904 = vsel %vm861, %v901, %v903
        %905 = vrot.lane.b32.xlu0 %v902, 126
        %v906 = vpop.permute.xlu0 %905
        %907 = vrot.lane.b32.xlu0 %v904, 126
        %v908 = vpop.permute.xlu0 %907
        %v911 = vadd.f32 %v890, %v906
        %v912 = vadd.f32 %v891, %v908
        %s913 = sld [smem:[#allocation4 + $0x12]]
        %v914 = vstv %s913
        %v915 = vmul.f32 %v914, %v582
        %v916 = vmul.f32 %v914, %v583
        %v917 = vmul.f32 %v914, %v584
        %v921 = vrot.slane %v915, 3
        %v922 = vrot.slane %v916, 3
        %v923 = vsel %vm861, %v921, %v922
        %v924 = vrot.slane %v917, 3
        %v925 = vsel %vm861, %v922, %v924
        %926 = vrot.lane.b32.xlu0 %v923, 125
        %v927 = vpop.permute.xlu0 %926
        %928 = vrot.lane.b32.xlu0 %v925, 125
        %v929 = vpop.permute.xlu0 %928
        %v932 = vadd.f32 %v911, %v927
        %v933 = vadd.f32 %v912, %v929
        %s934 = sld [smem:[#allocation4 + $0x13]]
        %v935 = vstv %s934
        %v936 = vmul.f32 %v935, %v582
        %v937 = vmul.f32 %v935, %v583
        %v938 = vmul.f32 %v935, %v584
        %v942 = vrot.slane %v936, 3
        %v943 = vrot.slane %v937, 3
        %v944 = vsel %vm861, %v942, %v943
        %v945 = vrot.slane %v938, 3
        %v946 = vsel %vm861, %v943, %v945
        %947 = vrot.lane.b32.xlu0 %v944, 124
        %v948 = vpop.permute.xlu0 %947
        %949 = vrot.lane.b32.xlu0 %v946, 124
        %v950 = vpop.permute.xlu0 %949
        %v953 = vadd.f32 %v932, %v948
        %v954 = vadd.f32 %v933, %v950
        %s955 = sld [smem:[#allocation4 + $0x14]]
        %v956 = vstv %s955
        %v957 = vmul.f32 %v956, %v582
        %v958 = vmul.f32 %v956, %v583
        %v959 = vmul.f32 %v956, %v584
        %vm963 = vcmask 1043456
        %v964 = vrot.slane %v957, 4
        %v965 = vrot.slane %v958, 4
        %v966 = vsel %vm963, %v964, %v965
        %v967 = vrot.slane %v959, 4
        %v968 = vsel %vm963, %v965, %v967
        %v971 = vadd.f32 %v953, %v966
        %v972 = vadd.f32 %v954, %v968
        %s973 = sld [smem:[#allocation4 + $0x15]]
        %v974 = vstv %s973
        %v975 = vmul.f32 %v974, %v582
        %v976 = vmul.f32 %v974, %v583
        %v977 = vmul.f32 %v974, %v584
        %v981 = vrot.slane %v975, 4
        %v982 = vrot.slane %v976, 4
        %v983 = vsel %vm963, %v981, %v982
        %v984 = vrot.slane %v977, 4
        %v985 = vsel %vm963, %v982, %v984
        %986 = vrot.lane.b32.xlu0 %v983, 127
        %v987 = vpop.permute.xlu0 %986
        %988 = vrot.lane.b32.xlu0 %v985, 127
        %v989 = vpop.permute.xlu0 %988
        %v992 = vadd.f32 %v971, %v987
        %v993 = vadd.f32 %v972, %v989
        %s994 = sld [smem:[#allocation4 + $0x16]]
        %v995 = vstv %s994
        %v996 = vmul.f32 %v995, %v582
        %v997 = vmul.f32 %v995, %v583
        %v998 = vmul.f32 %v995, %v584
        %v1002 = vrot.slane %v996, 4
        %v1003 = vrot.slane %v997, 4
        %v1004 = vsel %vm963, %v1002, %v1003
        %v1005 = vrot.slane %v998, 4
        %v1006 = vsel %vm963, %v1003, %v1005
        %1007 = vrot.lane.b32.xlu0 %v1004, 126
        %v1008 = vpop.permute.xlu0 %1007
        %1009 = vrot.lane.b32.xlu0 %v1006, 126
        %v1010 = vpop.permute.xlu0 %1009
        %v1013 = vadd.f32 %v992, %v1008
        %v1014 = vadd.f32 %v993, %v1010
        %s1015 = sld [smem:[#allocation4 + $0x17]]
        %v1016 = vstv %s1015
        %v1017 = vmul.f32 %v1016, %v582
        %v1018 = vmul.f32 %v1016, %v583
        %v1019 = vmul.f32 %v1016, %v584
        %v1023 = vrot.slane %v1017, 4
        %v1024 = vrot.slane %v1018, 4
        %v1025 = vsel %vm963, %v1023, %v1024
        %v1026 = vrot.slane %v1019, 4
        %v1027 = vsel %vm963, %v1024, %v1026
        %1028 = vrot.lane.b32.xlu0 %v1025, 125
        %v1029 = vpop.permute.xlu0 %1028
        %1030 = vrot.lane.b32.xlu0 %v1027, 125
        %v1031 = vpop.permute.xlu0 %1030
        %v1034 = vadd.f32 %v1013, %v1029
        %v1035 = vadd.f32 %v1014, %v1031
        %s1036 = sld [smem:[#allocation4 + $0x18]]
        %v1037 = vstv %s1036
        %v1038 = vmul.f32 %v1037, %v582
        %v1039 = vmul.f32 %v1037, %v583
        %v1040 = vmul.f32 %v1037, %v584
        %v1044 = vrot.slane %v1038, 4
        %v1045 = vrot.slane %v1039, 4
        %v1046 = vsel %vm963, %v1044, %v1045
        %v1047 = vrot.slane %v1040, 4
        %v1048 = vsel %vm963, %v1045, %v1047
        %1049 = vrot.lane.b32.xlu0 %v1046, 124
        %v1050 = vpop.permute.xlu0 %1049
        %1051 = vrot.lane.b32.xlu0 %v1048, 124
        %v1052 = vpop.permute.xlu0 %1051
        %v1055 = vadd.f32 %v1034, %v1050
        %v1056 = vadd.f32 %v1035, %v1052
        %v1057 = vstv %s497
        %v1058 = vmul.f32 %v506, %v1057
        %v1059 = vmul.f32 %v507, %v1057
        %v1060 = vadd.f32 %v504, %v1058
        %v1061 = vadd.f32 %v505, %v1059
        %v1062 = vsub.f32 %v1060, %v1055
        %v1063 = vsub.f32 %v1061, %v1056
        %v1065 = vrot.slane %v1062, 2
        %v1068 = vrot.slane %v1062, 6
        %v1069 = vrot.slane %v1063, 6
        %v1070 = vsel %vm514, %v1068, %v1069
        %v1074 = vrot.slane %v1063, 4
        %v1076 = vrot.slane %v1063, 2
        %v1078 = vsel %vm525, %v1065, %v1062
        %v1079 = vsel %vm514, %v1078, %v1068
        %v1080 = vsel %vm514, %v1069, %v1074
        %v1081 = vsel %vm529, %v1080, %v1076
        %1084 = vrot.lane.b32.xlu0 %v1079, 126
        %v1085 = vpop.permute.xlu0 %1084
        %1086 = vrot.lane.b32.xlu0 %v1070, 126
        %v1087 = vpop.permute.xlu0 %1086
        %1088 = vrot.lane.b32.xlu0 %v1081, 126
        %v1089 = vpop.permute.xlu0 %1088
        %1093 = vrot.lane.b32.xlu0 %v1079, 2
        %v1094 = vpop.permute.xlu0 %1093
        %1095 = vrot.lane.b32.xlu0 %v1070, 2
        %v1096 = vpop.permute.xlu0 %1095
        %1097 = vrot.lane.b32.xlu0 %v1081, 2
        %v1098 = vpop.permute.xlu0 %1097
        %1102 = vrot.lane.b32.xlu0 %v1079, 4
        %v1103 = vpop.permute.xlu0 %1102
        %1104 = vrot.lane.b32.xlu0 %v1070, 4
        %v1105 = vpop.permute.xlu0 %1104
        %1106 = vrot.lane.b32.xlu0 %v1081, 4
        %v1107 = vpop.permute.xlu0 %1106
        %1111 = vrot.lane.b32.xlu0 %v1079, 6
        %v1112 = vpop.permute.xlu0 %1111
        %1113 = vrot.lane.b32.xlu0 %v1070, 6
        %v1114 = vpop.permute.xlu0 %1113
        %1115 = vrot.lane.b32.xlu0 %v1081, 6
        %v1116 = vpop.permute.xlu0 %1115
        %v1120 = vsel %vm569, %v1085, %v1079
        %v1121 = vsel %vm569, %v1087, %v1070
        %v1122 = vsel %vm569, %v1089, %v1081
        %v1123 = vsel %vm573, %v1120, %v1094
        %v1124 = vsel %vm573, %v1121, %v1096
        %v1125 = vsel %vm573, %v1122, %v1098
        %v1126 = vsel %vm577, %v1123, %v1103
        %v1127 = vsel %vm577, %v1124, %v1105
        %v1128 = vsel %vm577, %v1125, %v1107
        %v1129 = vsel %vm581, %v1126, %v1112
        %v1130 = vsel %vm581, %v1127, %v1114
        %v1131 = vsel %vm581, %v1128, %v1116
        %v1132 = vstv %s500
        %v1133 = vadd.f32 %v1132, 0.0
        %s1134 = sld [smem:[#allocation6]]
        %v1135 = vstv %s1134
        %v1136 = vmul.f32 %v1135, %v1129
        %v1137 = vmul.f32 %v1135, %v1130
        %v1138 = vadd.f32 %v1133, %v1136
        %v1139 = vadd.f32 %v1133, %v1137
        %s1140 = sld [smem:[#allocation6 + $0x1]]
        %v1141 = vstv %s1140
        %v1142 = vmul.f32 %v1141, %v1129
        %v1143 = vmul.f32 %v1141, %v1130
        %1146 = vrot.lane.b32.xlu0 %v1142, 127
        %v1147 = vpop.permute.xlu0 %1146
        %1148 = vrot.lane.b32.xlu0 %v1143, 127
        %v1149 = vpop.permute.xlu0 %1148
        %v1152 = vadd.f32 %v1138, %v1147
        %v1153 = vadd.f32 %v1139, %v1149
        %s1154 = sld [smem:[#allocation6 + $0x2]]
        %v1155 = vstv %s1154
        %v1156 = vmul.f32 %v1155, %v1129
        %v1157 = vmul.f32 %v1155, %v1130
        %1160 = vrot.lane.b32.xlu0 %v1156, 126
        %v1161 = vpop.permute.xlu0 %1160
        %1162 = vrot.lane.b32.xlu0 %v1157, 126
        %v1163 = vpop.permute.xlu0 %1162
        %v1166 = vadd.f32 %v1152, %v1161
        %v1167 = vadd.f32 %v1153, %v1163
        %s1168 = sld [smem:[#allocation6 + $0x3]]
        %v1169 = vstv %s1168
        %v1170 = vmul.f32 %v1169, %v1129
        %v1171 = vmul.f32 %v1169, %v1130
        %1174 = vrot.lane.b32.xlu0 %v1170, 125
        %v1175 = vpop.permute.xlu0 %1174
        %1176 = vrot.lane.b32.xlu0 %v1171, 125
        %v1177 = vpop.permute.xlu0 %1176
        %v1180 = vadd.f32 %v1166, %v1175
        %v1181 = vadd.f32 %v1167, %v1177
        %s1182 = sld [smem:[#allocation6 + $0x4]]
        %v1183 = vstv %s1182
        %v1184 = vmul.f32 %v1183, %v1129
        %v1185 = vmul.f32 %v1183, %v1130
        %1188 = vrot.lane.b32.xlu0 %v1184, 124
        %v1189 = vpop.permute.xlu0 %1188
        %1190 = vrot.lane.b32.xlu0 %v1185, 124
        %v1191 = vpop.permute.xlu0 %1190
        %v1194 = vadd.f32 %v1180, %v1189
        %v1195 = vadd.f32 %v1181, %v1191
        %s1196 = sld [smem:[#allocation6 + $0x5]]
        %v1197 = vstv %s1196
        %v1198 = vmul.f32 %v1197, %v1129
        %v1199 = vmul.f32 %v1197, %v1130
        %v1200 = vmul.f32 %v1197, %v1131
        %v1204 = vrot.slane %v1198, 1
        %v1205 = vrot.slane %v1199, 1
        %v1206 = vsel %vm657, %v1204, %v1205
        %v1207 = vrot.slane %v1200, 1
        %v1208 = vsel %vm657, %v1205, %v1207
        %v1211 = vadd.f32 %v1194, %v1206
        %v1212 = vadd.f32 %v1195, %v1208
        %s1213 = sld [smem:[#allocation6 + $0x6]]
        %v1214 = vstv %s1213
        %v1215 = vmul.f32 %v1214, %v1129
        %v1216 = vmul.f32 %v1214, %v1130
        %v1217 = vmul.f32 %v1214, %v1131
        %v1221 = vrot.slane %v1215, 1
        %v1222 = vrot.slane %v1216, 1
        %v1223 = vsel %vm657, %v1221, %v1222
        %v1224 = vrot.slane %v1217, 1
        %v1225 = vsel %vm657, %v1222, %v1224
        %1226 = vrot.lane.b32.xlu0 %v1223, 127
        %v1227 = vpop.permute.xlu0 %1226
        %1228 = vrot.lane.b32.xlu0 %v1225, 127
        %v1229 = vpop.permute.xlu0 %1228
        %v1232 = vadd.f32 %v1211, %v1227
        %v1233 = vadd.f32 %v1212, %v1229
        %s1234 = sld [smem:[#allocation6 + $0x7]]
        %v1235 = vstv %s1234
        %v1236 = vmul.f32 %v1235, %v1129
        %v1237 = vmul.f32 %v1235, %v1130
        %v1238 = vmul.f32 %v1235, %v1131
        %v1242 = vrot.slane %v1236, 1
        %v1243 = vrot.slane %v1237, 1
        %v1244 = vsel %vm657, %v1242, %v1243
        %v1245 = vrot.slane %v1238, 1
        %v1246 = vsel %vm657, %v1243, %v1245
        %1247 = vrot.lane.b32.xlu0 %v1244, 126
        %v1248 = vpop.permute.xlu0 %1247
        %1249 = vrot.lane.b32.xlu0 %v1246, 126
        %v1250 = vpop.permute.xlu0 %1249
        %v1253 = vadd.f32 %v1232, %v1248
        %v1254 = vadd.f32 %v1233, %v1250
        %s1255 = sld [smem:[#allocation6 + $0x8]]
        %v1256 = vstv %s1255
        %v1257 = vmul.f32 %v1256, %v1129
        %v1258 = vmul.f32 %v1256, %v1130
        %v1259 = vmul.f32 %v1256, %v1131
        %v1263 = vrot.slane %v1257, 1
        %v1264 = vrot.slane %v1258, 1
        %v1265 = vsel %vm657, %v1263, %v1264
        %v1266 = vrot.slane %v1259, 1
        %v1267 = vsel %vm657, %v1264, %v1266
        %1268 = vrot.lane.b32.xlu0 %v1265, 125
        %v1269 = vpop.permute.xlu0 %1268
        %1270 = vrot.lane.b32.xlu0 %v1267, 125
        %v1271 = vpop.permute.xlu0 %1270
        %v1274 = vadd.f32 %v1253, %v1269
        %v1275 = vadd.f32 %v1254, %v1271
        %s1276 = sld [smem:[#allocation6 + $0x9]]
        %v1277 = vstv %s1276
        %v1278 = vmul.f32 %v1277, %v1129
        %v1279 = vmul.f32 %v1277, %v1130
        %v1280 = vmul.f32 %v1277, %v1131
        %v1284 = vrot.slane %v1278, 1
        %v1285 = vrot.slane %v1279, 1
        %v1286 = vsel %vm657, %v1284, %v1285
        %v1287 = vrot.slane %v1280, 1
        %v1288 = vsel %vm657, %v1285, %v1287
        %1289 = vrot.lane.b32.xlu0 %v1286, 124
        %v1290 = vpop.permute.xlu0 %1289
        %1291 = vrot.lane.b32.xlu0 %v1288, 124
        %v1292 = vpop.permute.xlu0 %1291
        %v1295 = vadd.f32 %v1274, %v1290
        %v1296 = vadd.f32 %v1275, %v1292
        %s1297 = sld [smem:[#allocation6 + $0xa]]
        %v1298 = vstv %s1297
        %v1299 = vmul.f32 %v1298, %v1129
        %v1300 = vmul.f32 %v1298, %v1130
        %v1301 = vmul.f32 %v1298, %v1131
        %v1305 = vrot.slane %v1299, 2
        %v1306 = vrot.slane %v1300, 2
        %v1307 = vsel %vm759, %v1305, %v1306
        %v1308 = vrot.slane %v1301, 2
        %v1309 = vsel %vm759, %v1306, %v1308
        %v1312 = vadd.f32 %v1295, %v1307
        %v1313 = vadd.f32 %v1296, %v1309
        %s1314 = sld [smem:[#allocation6 + $0xb]]
        %v1315 = vstv %s1314
        %v1316 = vmul.f32 %v1315, %v1129
        %v1317 = vmul.f32 %v1315, %v1130
        %v1318 = vmul.f32 %v1315, %v1131
        %v1322 = vrot.slane %v1316, 2
        %v1323 = vrot.slane %v1317, 2
        %v1324 = vsel %vm759, %v1322, %v1323
        %v1325 = vrot.slane %v1318, 2
        %v1326 = vsel %vm759, %v1323, %v1325
        %1327 = vrot.lane.b32.xlu0 %v1324, 127
        %v1328 = vpop.permute.xlu0 %1327
        %1329 = vrot.lane.b32.xlu0 %v1326, 127
        %v1330 = vpop.permute.xlu0 %1329
        %v1333 = vadd.f32 %v1312, %v1328
        %v1334 = vadd.f32 %v1313, %v1330
        %s1335 = sld [smem:[#allocation6 + $0xc]]
        %v1336 = vstv %s1335
        %v1337 = vmul.f32 %v1336, %v1129
        %v1338 = vmul.f32 %v1336, %v1130
        %v1339 = vmul.f32 %v1336, %v1131
        %v1343 = vrot.slane %v1337, 2
        %v1344 = vrot.slane %v1338, 2
        %v1345 = vsel %vm759, %v1343, %v1344
        %v1346 = vrot.slane %v1339, 2
        %v1347 = vsel %vm759, %v1344, %v1346
        %1348 = vrot.lane.b32.xlu0 %v1345, 126
        %v1349 = vpop.permute.xlu0 %1348
        %1350 = vrot.lane.b32.xlu0 %v1347, 126
        %v1351 = vpop.permute.xlu0 %1350
        %v1354 = vadd.f32 %v1333, %v1349
        %v1355 = vadd.f32 %v1334, %v1351
        %s1356 = sld [smem:[#allocation6 + $0xd]]
        %v1357 = vstv %s1356
        %v1358 = vmul.f32 %v1357, %v1129
        %v1359 = vmul.f32 %v1357, %v1130
        %v1360 = vmul.f32 %v1357, %v1131
        %v1364 = vrot.slane %v1358, 2
        %v1365 = vrot.slane %v1359, 2
        %v1366 = vsel %vm759, %v1364, %v1365
        %v1367 = vrot.slane %v1360, 2
        %v1368 = vsel %vm759, %v1365, %v1367
        %1369 = vrot.lane.b32.xlu0 %v1366, 125
        %v1370 = vpop.permute.xlu0 %1369
        %1371 = vrot.lane.b32.xlu0 %v1368, 125
        %v1372 = vpop.permute.xlu0 %1371
        %v1375 = vadd.f32 %v1354, %v1370
        %v1376 = vadd.f32 %v1355, %v1372
        %s1377 = sld [smem:[#allocation6 + $0xe]]
        %v1378 = vstv %s1377
        %v1379 = vmul.f32 %v1378, %v1129
        %v1380 = vmul.f32 %v1378, %v1130
        %v1381 = vmul.f32 %v1378, %v1131
        %v1385 = vrot.slane %v1379, 2
        %v1386 = vrot.slane %v1380, 2
        %v1387 = vsel %vm759, %v1385, %v1386
        %v1388 = vrot.slane %v1381, 2
        %v1389 = vsel %vm759, %v1386, %v1388
        %1390 = vrot.lane.b32.xlu0 %v1387, 124
        %v1391 = vpop.permute.xlu0 %1390
        %1392 = vrot.lane.b32.xlu0 %v1389, 124
        %v1393 = vpop.permute.xlu0 %1392
        %v1396 = vadd.f32 %v1375, %v1391
        %v1397 = vadd.f32 %v1376, %v1393
        %s1398 = sld [smem:[#allocation6 + $0xf]]
        %v1399 = vstv %s1398
        %v1400 = vmul.f32 %v1399, %v1129
        %v1401 = vmul.f32 %v1399, %v1130
        %v1402 = vmul.f32 %v1399, %v1131
        %v1406 = vrot.slane %v1400, 3
        %v1407 = vrot.slane %v1401, 3
        %v1408 = vsel %vm861, %v1406, %v1407
        %v1409 = vrot.slane %v1402, 3
        %v1410 = vsel %vm861, %v1407, %v1409
        %v1413 = vadd.f32 %v1396, %v1408
        %v1414 = vadd.f32 %v1397, %v1410
        %s1415 = sld [smem:[#allocation6 + $0x10]]
        %v1416 = vstv %s1415
        %v1417 = vmul.f32 %v1416, %v1129
        %v1418 = vmul.f32 %v1416, %v1130
        %v1419 = vmul.f32 %v1416, %v1131
        %v1423 = vrot.slane %v1417, 3
        %v1424 = vrot.slane %v1418, 3
        %v1425 = vsel %vm861, %v1423, %v1424
        %v1426 = vrot.slane %v1419, 3
        %v1427 = vsel %vm861, %v1424, %v1426
        %1428 = vrot.lane.b32.xlu0 %v1425, 127
        %v1429 = vpop.permute.xlu0 %1428
        %1430 = vrot.lane.b32.xlu0 %v1427, 127
        %v1431 = vpop.permute.xlu0 %1430
        %v1434 = vadd.f32 %v1413, %v1429
        %v1435 = vadd.f32 %v1414, %v1431
        %s1436 = sld [smem:[#allocation6 + $0x11]]
        %v1437 = vstv %s1436
        %v1438 = vmul.f32 %v1437, %v1129
        %v1439 = vmul.f32 %v1437, %v1130
        %v1440 = vmul.f32 %v1437, %v1131
        %v1444 = vrot.slane %v1438, 3
        %v1445 = vrot.slane %v1439, 3
        %v1446 = vsel %vm861, %v1444, %v1445
        %v1447 = vrot.slane %v1440, 3
        %v1448 = vsel %vm861, %v1445, %v1447
        %1449 = vrot.lane.b32.xlu0 %v1446, 126
        %v1450 = vpop.permute.xlu0 %1449
        %1451 = vrot.lane.b32.xlu0 %v1448, 126
        %v1452 = vpop.permute.xlu0 %1451
        %v1455 = vadd.f32 %v1434, %v1450
        %v1456 = vadd.f32 %v1435, %v1452
        %s1457 = sld [smem:[#allocation6 + $0x12]]
        %v1458 = vstv %s1457
        %v1459 = vmul.f32 %v1458, %v1129
        %v1460 = vmul.f32 %v1458, %v1130
        %v1461 = vmul.f32 %v1458, %v1131
        %v1465 = vrot.slane %v1459, 3
        %v1466 = vrot.slane %v1460, 3
        %v1467 = vsel %vm861, %v1465, %v1466
        %v1468 = vrot.slane %v1461, 3
        %v1469 = vsel %vm861, %v1466, %v1468
        %1470 = vrot.lane.b32.xlu0 %v1467, 125
        %v1471 = vpop.permute.xlu0 %1470
        %1472 = vrot.lane.b32.xlu0 %v1469, 125
        %v1473 = vpop.permute.xlu0 %1472
        %v1476 = vadd.f32 %v1455, %v1471
        %v1477 = vadd.f32 %v1456, %v1473
        %s1478 = sld [smem:[#allocation6 + $0x13]]
        %v1479 = vstv %s1478
        %v1480 = vmul.f32 %v1479, %v1129
        %v1481 = vmul.f32 %v1479, %v1130
        %v1482 = vmul.f32 %v1479, %v1131
        %v1486 = vrot.slane %v1480, 3
        %v1487 = vrot.slane %v1481, 3
        %v1488 = vsel %vm861, %v1486, %v1487
        %v1489 = vrot.slane %v1482, 3
        %v1490 = vsel %vm861, %v1487, %v1489
        %1491 = vrot.lane.b32.xlu0 %v1488, 124
        %v1492 = vpop.permute.xlu0 %1491
        %1493 = vrot.lane.b32.xlu0 %v1490, 124
        %v1494 = vpop.permute.xlu0 %1493
        %v1497 = vadd.f32 %v1476, %v1492
        %v1498 = vadd.f32 %v1477, %v1494
        %s1499 = sld [smem:[#allocation6 + $0x14]]
        %v1500 = vstv %s1499
        %v1501 = vmul.f32 %v1500, %v1129
        %v1502 = vmul.f32 %v1500, %v1130
        %v1503 = vmul.f32 %v1500, %v1131
        %v1507 = vrot.slane %v1501, 4
        %v1508 = vrot.slane %v1502, 4
        %v1509 = vsel %vm963, %v1507, %v1508
        %v1510 = vrot.slane %v1503, 4
        %v1511 = vsel %vm963, %v1508, %v1510
        %v1514 = vadd.f32 %v1497, %v1509
        %v1515 = vadd.f32 %v1498, %v1511
        %s1516 = sld [smem:[#allocation6 + $0x15]]
        %v1517 = vstv %s1516
        %v1518 = vmul.f32 %v1517, %v1129
        %v1519 = vmul.f32 %v1517, %v1130
        %v1520 = vmul.f32 %v1517, %v1131
        %v1524 = vrot.slane %v1518, 4
        %v1525 = vrot.slane %v1519, 4
        %v1526 = vsel %vm963, %v1524, %v1525
        %v1527 = vrot.slane %v1520, 4
        %v1528 = vsel %vm963, %v1525, %v1527
        %1529 = vrot.lane.b32.xlu0 %v1526, 127
        %v1530 = vpop.permute.xlu0 %1529
        %1531 = vrot.lane.b32.xlu0 %v1528, 127
        %v1532 = vpop.permute.xlu0 %1531
        %v1535 = vadd.f32 %v1514, %v1530
        %v1536 = vadd.f32 %v1515, %v1532
        %s1537 = sld [smem:[#allocation6 + $0x16]]
        %v1538 = vstv %s1537
        %v1539 = vmul.f32 %v1538, %v1129
        %v1540 = vmul.f32 %v1538, %v1130
        %v1541 = vmul.f32 %v1538, %v1131
        %v1545 = vrot.slane %v1539, 4
        %v1546 = vrot.slane %v1540, 4
        %v1547 = vsel %vm963, %v1545, %v1546
        %v1548 = vrot.slane %v1541, 4
        %v1549 = vsel %vm963, %v1546, %v1548
        %1550 = vrot.lane.b32.xlu0 %v1547, 126
        %v1551 = vpop.permute.xlu0 %1550
        %1552 = vrot.lane.b32.xlu0 %v1549, 126
        %v1553 = vpop.permute.xlu0 %1552
        %v1556 = vadd.f32 %v1535, %v1551
        %v1557 = vadd.f32 %v1536, %v1553
        %s1558 = sld [smem:[#allocation6 + $0x17]]
        %v1559 = vstv %s1558
        %v1560 = vmul.f32 %v1559, %v1129
        %v1561 = vmul.f32 %v1559, %v1130
        %v1562 = vmul.f32 %v1559, %v1131
        %v1566 = vrot.slane %v1560, 4
        %v1567 = vrot.slane %v1561, 4
        %v1568 = vsel %vm963, %v1566, %v1567
        %v1569 = vrot.slane %v1562, 4
        %v1570 = vsel %vm963, %v1567, %v1569
        %1571 = vrot.lane.b32.xlu0 %v1568, 125
        %v1572 = vpop.permute.xlu0 %1571
        %1573 = vrot.lane.b32.xlu0 %v1570, 125
        %v1574 = vpop.permute.xlu0 %1573
        %v1577 = vadd.f32 %v1556, %v1572
        %v1578 = vadd.f32 %v1557, %v1574
        %s1579 = sld [smem:[#allocation6 + $0x18]]
        %v1580 = vstv %s1579
        %v1581 = vmul.f32 %v1580, %v1129
        %v1582 = vmul.f32 %v1580, %v1130
        %v1583 = vmul.f32 %v1580, %v1131
        %v1587 = vrot.slane %v1581, 4
        %v1588 = vrot.slane %v1582, 4
        %v1589 = vsel %vm963, %v1587, %v1588
        %v1590 = vrot.slane %v1583, 4
        %v1591 = vsel %vm963, %v1588, %v1590
        %1592 = vrot.lane.b32.xlu0 %v1589, 124
        %v1593 = vpop.permute.xlu0 %1592
        %1594 = vrot.lane.b32.xlu0 %v1591, 124
        %v1595 = vpop.permute.xlu0 %1594
        %v1598 = vadd.f32 %v1577, %v1593
        %v1599 = vadd.f32 %v1578, %v1595
        %v1600 = vstv %s498
        %v1601 = vsub.f32 %v1598, %v1600
        %v1602 = vsub.f32 %v1599, %v1600
        %v1603 = vmax.f32 %v1601, 0.0
        %v1604 = vmax.f32 %v1602, 0.0
        %vm1605 = vcmask 130048
        %1606 = vst.msk [vmem:[%s491] sm:$0xff] %vm1605, %v1603
        %1607 = vst.msk [vmem:[%s491 + $0x8] sm:$0xff] %vm1605, %v1604
        %v1608 = vld [vmem:[%s486] sm:$0xff]
        %v1609 = vld [vmem:[%s486 + $0x8] sm:$0xff]
        %v1611 = vrot.slane %v1608, 2
        %v1614 = vrot.slane %v1608, 6
        %v1615 = vrot.slane %v1609, 6
        %v1616 = vsel %vm514, %v1614, %v1615
        %v1620 = vrot.slane %v1609, 4
        %v1622 = vrot.slane %v1609, 2
        %v1624 = vsel %vm525, %v1611, %v1608
        %v1625 = vsel %vm514, %v1624, %v1614
        %v1626 = vsel %vm514, %v1615, %v1620
        %v1627 = vsel %vm529, %v1626, %v1622
        %1630 = vrot.lane.b32.xlu0 %v1625, 126
        %v1631 = vpop.permute.xlu0 %1630
        %1632 = vrot.lane.b32.xlu0 %v1616, 126
        %v1633 = vpop.permute.xlu0 %1632
        %1634 = vrot.lane.b32.xlu0 %v1627, 126
        %v1635 = vpop.permute.xlu0 %1634
        %1639 = vrot.lane.b32.xlu0 %v1625, 2
        %v1640 = vpop.permute.xlu0 %1639
        %1641 = vrot.lane.b32.xlu0 %v1616, 2
        %v1642 = vpop.permute.xlu0 %1641
        %1643 = vrot.lane.b32.xlu0 %v1627, 2
        %v1644 = vpop.permute.xlu0 %1643
        %1648 = vrot.lane.b32.xlu0 %v1625, 4
        %v1649 = vpop.permute.xlu0 %1648
        %1650 = vrot.lane.b32.xlu0 %v1616, 4
        %v1651 = vpop.permute.xlu0 %1650
        %1652 = vrot.lane.b32.xlu0 %v1627, 4
        %v1653 = vpop.permute.xlu0 %1652
        %1657 = vrot.lane.b32.xlu0 %v1625, 6
        %v1658 = vpop.permute.xlu0 %1657
        %1659 = vrot.lane.b32.xlu0 %v1616, 6
        %v1660 = vpop.permute.xlu0 %1659
        %1661 = vrot.lane.b32.xlu0 %v1627, 6
        %v1662 = vpop.permute.xlu0 %1661
        %v1666 = vsel %vm569, %v1631, %v1625
        %v1667 = vsel %vm569, %v1633, %v1616
        %v1668 = vsel %vm569, %v1635, %v1627
        %v1669 = vsel %vm573, %v1666, %v1640
        %v1670 = vsel %vm573, %v1667, %v1642
        %v1671 = vsel %vm573, %v1668, %v1644
        %v1672 = vsel %vm577, %v1669, %v1649
        %v1673 = vsel %vm577, %v1670, %v1651
        %v1674 = vsel %vm577, %v1671, %v1653
        %v1675 = vsel %vm581, %v1672, %v1658
        %v1676 = vsel %vm581, %v1673, %v1660
        %v1677 = vsel %vm581, %v1674, %v1662
        %v1678 = vstv %s502
        %v1679 = vadd.f32 %v1678, 0.0
        %s1680 = sld [smem:[#allocation7]]
        %v1681 = vstv %s1680
        %v1682 = vmul.f32 %v1681, %v1675
        %v1683 = vmul.f32 %v1681, %v1676
        %v1684 = vadd.f32 %v1679, %v1682
        %v1685 = vadd.f32 %v1679, %v1683
        %s1686 = sld [smem:[#allocation7 + $0x1]]
        %v1687 = vstv %s1686
        %v1688 = vmul.f32 %v1687, %v1675
        %v1689 = vmul.f32 %v1687, %v1676
        %1692 = vrot.lane.b32.xlu0 %v1688, 127
        %v1693 = vpop.permute.xlu0 %1692
        %1694 = vrot.lane.b32.xlu0 %v1689, 127
        %v1695 = vpop.permute.xlu0 %1694
        %v1698 = vadd.f32 %v1684, %v1693
        %v1699 = vadd.f32 %v1685, %v1695
        %s1700 = sld [smem:[#allocation7 + $0x2]]
        %v1701 = vstv %s1700
        %v1702 = vmul.f32 %v1701, %v1675
        %v1703 = vmul.f32 %v1701, %v1676
        %1706 = vrot.lane.b32.xlu0 %v1702, 126
        %v1707 = vpop.permute.xlu0 %1706
        %1708 = vrot.lane.b32.xlu0 %v1703, 126
        %v1709 = vpop.permute.xlu0 %1708
        %v1712 = vadd.f32 %v1698, %v1707
        %v1713 = vadd.f32 %v1699, %v1709
        %s1714 = sld [smem:[#allocation7 + $0x3]]
        %v1715 = vstv %s1714
        %v1716 = vmul.f32 %v1715, %v1675
        %v1717 = vmul.f32 %v1715, %v1676
        %1720 = vrot.lane.b32.xlu0 %v1716, 125
        %v1721 = vpop.permute.xlu0 %1720
        %1722 = vrot.lane.b32.xlu0 %v1717, 125
        %v1723 = vpop.permute.xlu0 %1722
        %v1726 = vadd.f32 %v1712, %v1721
        %v1727 = vadd.f32 %v1713, %v1723
        %s1728 = sld [smem:[#allocation7 + $0x4]]
        %v1729 = vstv %s1728
        %v1730 = vmul.f32 %v1729, %v1675
        %v1731 = vmul.f32 %v1729, %v1676
        %1734 = vrot.lane.b32.xlu0 %v1730, 124
        %v1735 = vpop.permute.xlu0 %1734
        %1736 = vrot.lane.b32.xlu0 %v1731, 124
        %v1737 = vpop.permute.xlu0 %1736
        %v1740 = vadd.f32 %v1726, %v1735
        %v1741 = vadd.f32 %v1727, %v1737
        %s1742 = sld [smem:[#allocation7 + $0x5]]
        %v1743 = vstv %s1742
        %v1744 = vmul.f32 %v1743, %v1675
        %v1745 = vmul.f32 %v1743, %v1676
        %v1746 = vmul.f32 %v1743, %v1677
        %v1750 = vrot.slane %v1744, 1
        %v1751 = vrot.slane %v1745, 1
        %v1752 = vsel %vm657, %v1750, %v1751
        %v1753 = vrot.slane %v1746, 1
        %v1754 = vsel %vm657, %v1751, %v1753
        %v1757 = vadd.f32 %v1740, %v1752
        %v1758 = vadd.f32 %v1741, %v1754
        %s1759 = sld [smem:[#allocation7 + $0x6]]
        %v1760 = vstv %s1759
        %v1761 = vmul.f32 %v1760, %v1675
        %v1762 = vmul.f32 %v1760, %v1676
        %v1763 = vmul.f32 %v1760, %v1677
        %v1767 = vrot.slane %v1761, 1
        %v1768 = vrot.slane %v1762, 1
        %v1769 = vsel %vm657, %v1767, %v1768
        %v1770 = vrot.slane %v1763, 1
        %v1771 = vsel %vm657, %v1768, %v1770
        %1772 = vrot.lane.b32.xlu0 %v1769, 127
        %v1773 = vpop.permute.xlu0 %1772
        %1774 = vrot.lane.b32.xlu0 %v1771, 127
        %v1775 = vpop.permute.xlu0 %1774
        %v1778 = vadd.f32 %v1757, %v1773
        %v1779 = vadd.f32 %v1758, %v1775
        %s1780 = sld [smem:[#allocation7 + $0x7]]
        %v1781 = vstv %s1780
        %v1782 = vmul.f32 %v1781, %v1675
        %v1783 = vmul.f32 %v1781, %v1676
        %v1784 = vmul.f32 %v1781, %v1677
        %v1788 = vrot.slane %v1782, 1
        %v1789 = vrot.slane %v1783, 1
        %v1790 = vsel %vm657, %v1788, %v1789
        %v1791 = vrot.slane %v1784, 1
        %v1792 = vsel %vm657, %v1789, %v1791
        %1793 = vrot.lane.b32.xlu0 %v1790, 126
        %v1794 = vpop.permute.xlu0 %1793
        %1795 = vrot.lane.b32.xlu0 %v1792, 126
        %v1796 = vpop.permute.xlu0 %1795
        %v1799 = vadd.f32 %v1778, %v1794
        %v1800 = vadd.f32 %v1779, %v1796
        %s1801 = sld [smem:[#allocation7 + $0x8]]
        %v1802 = vstv %s1801
        %v1803 = vmul.f32 %v1802, %v1675
        %v1804 = vmul.f32 %v1802, %v1676
        %v1805 = vmul.f32 %v1802, %v1677
        %v1809 = vrot.slane %v1803, 1
        %v1810 = vrot.slane %v1804, 1
        %v1811 = vsel %vm657, %v1809, %v1810
        %v1812 = vrot.slane %v1805, 1
        %v1813 = vsel %vm657, %v1810, %v1812
        %1814 = vrot.lane.b32.xlu0 %v1811, 125
        %v1815 = vpop.permute.xlu0 %1814
        %1816 = vrot.lane.b32.xlu0 %v1813, 125
        %v1817 = vpop.permute.xlu0 %1816
        %v1820 = vadd.f32 %v1799, %v1815
        %v1821 = vadd.f32 %v1800, %v1817
        %s1822 = sld [smem:[#allocation7 + $0x9]]
        %v1823 = vstv %s1822
        %v1824 = vmul.f32 %v1823, %v1675
        %v1825 = vmul.f32 %v1823, %v1676
        %v1826 = vmul.f32 %v1823, %v1677
        %v1830 = vrot.slane %v1824, 1
        %v1831 = vrot.slane %v1825, 1
        %v1832 = vsel %vm657, %v1830, %v1831
        %v1833 = vrot.slane %v1826, 1
        %v1834 = vsel %vm657, %v1831, %v1833
        %1835 = vrot.lane.b32.xlu0 %v1832, 124
        %v1836 = vpop.permute.xlu0 %1835
        %1837 = vrot.lane.b32.xlu0 %v1834, 124
        %v1838 = vpop.permute.xlu0 %1837
        %v1841 = vadd.f32 %v1820, %v1836
        %v1842 = vadd.f32 %v1821, %v1838
        %s1843 = sld [smem:[#allocation7 + $0xa]]
        %v1844 = vstv %s1843
        %v1845 = vmul.f32 %v1844, %v1675
        %v1846 = vmul.f32 %v1844, %v1676
        %v1847 = vmul.f32 %v1844, %v1677
        %v1851 = vrot.slane %v1845, 2
        %v1852 = vrot.slane %v1846, 2
        %v1853 = vsel %vm759, %v1851, %v1852
        %v1854 = vrot.slane %v1847, 2
        %v1855 = vsel %vm759, %v1852, %v1854
        %v1858 = vadd.f32 %v1841, %v1853
        %v1859 = vadd.f32 %v1842, %v1855
        %s1860 = sld [smem:[#allocation7 + $0xb]]
        %v1861 = vstv %s1860
        %v1862 = vmul.f32 %v1861, %v1675
        %v1863 = vmul.f32 %v1861, %v1676
        %v1864 = vmul.f32 %v1861, %v1677
        %v1868 = vrot.slane %v1862, 2
        %v1869 = vrot.slane %v1863, 2
        %v1870 = vsel %vm759, %v1868, %v1869
        %v1871 = vrot.slane %v1864, 2
        %v1872 = vsel %vm759, %v1869, %v1871
        %1873 = vrot.lane.b32.xlu0 %v1870, 127
        %v1874 = vpop.permute.xlu0 %1873
        %1875 = vrot.lane.b32.xlu0 %v1872, 127
        %v1876 = vpop.permute.xlu0 %1875
        %v1879 = vadd.f32 %v1858, %v1874
        %v1880 = vadd.f32 %v1859, %v1876
        %s1881 = sld [smem:[#allocation7 + $0xc]]
        %v1882 = vstv %s1881
        %v1883 = vmul.f32 %v1882, %v1675
        %v1884 = vmul.f32 %v1882, %v1676
        %v1885 = vmul.f32 %v1882, %v1677
        %v1889 = vrot.slane %v1883, 2
        %v1890 = vrot.slane %v1884, 2
        %v1891 = vsel %vm759, %v1889, %v1890
        %v1892 = vrot.slane %v1885, 2
        %v1893 = vsel %vm759, %v1890, %v1892
        %1894 = vrot.lane.b32.xlu0 %v1891, 126
        %v1895 = vpop.permute.xlu0 %1894
        %1896 = vrot.lane.b32.xlu0 %v1893, 126
        %v1897 = vpop.permute.xlu0 %1896
        %v1900 = vadd.f32 %v1879, %v1895
        %v1901 = vadd.f32 %v1880, %v1897
        %s1902 = sld [smem:[#allocation7 + $0xd]]
        %v1903 = vstv %s1902
        %v1904 = vmul.f32 %v1903, %v1675
        %v1905 = vmul.f32 %v1903, %v1676
        %v1906 = vmul.f32 %v1903, %v1677
        %v1910 = vrot.slane %v1904, 2
        %v1911 = vrot.slane %v1905, 2
        %v1912 = vsel %vm759, %v1910, %v1911
        %v1913 = vrot.slane %v1906, 2
        %v1914 = vsel %vm759, %v1911, %v1913
        %1915 = vrot.lane.b32.xlu0 %v1912, 125
        %v1916 = vpop.permute.xlu0 %1915
        %1917 = vrot.lane.b32.xlu0 %v1914, 125
        %v1918 = vpop.permute.xlu0 %1917
        %v1921 = vadd.f32 %v1900, %v1916
        %v1922 = vadd.f32 %v1901, %v1918
        %s1923 = sld [smem:[#allocation7 + $0xe]]
        %v1924 = vstv %s1923
        %v1925 = vmul.f32 %v1924, %v1675
        %v1926 = vmul.f32 %v1924, %v1676
        %v1927 = vmul.f32 %v1924, %v1677
        %v1931 = vrot.slane %v1925, 2
        %v1932 = vrot.slane %v1926, 2
        %v1933 = vsel %vm759, %v1931, %v1932
        %v1934 = vrot.slane %v1927, 2
        %v1935 = vsel %vm759, %v1932, %v1934
        %1936 = vrot.lane.b32.xlu0 %v1933, 124
        %v1937 = vpop.permute.xlu0 %1936
        %1938 = vrot.lane.b32.xlu0 %v1935, 124
        %v1939 = vpop.permute.xlu0 %1938
        %v1942 = vadd.f32 %v1921, %v1937
        %v1943 = vadd.f32 %v1922, %v1939
        %s1944 = sld [smem:[#allocation7 + $0xf]]
        %v1945 = vstv %s1944
        %v1946 = vmul.f32 %v1945, %v1675
        %v1947 = vmul.f32 %v1945, %v1676
        %v1948 = vmul.f32 %v1945, %v1677
        %v1952 = vrot.slane %v1946, 3
        %v1953 = vrot.slane %v1947, 3
        %v1954 = vsel %vm861, %v1952, %v1953
        %v1955 = vrot.slane %v1948, 3
        %v1956 = vsel %vm861, %v1953, %v1955
        %v1959 = vadd.f32 %v1942, %v1954
        %v1960 = vadd.f32 %v1943, %v1956
        %s1961 = sld [smem:[#allocation7 + $0x10]]
        %v1962 = vstv %s1961
        %v1963 = vmul.f32 %v1962, %v1675
        %v1964 = vmul.f32 %v1962, %v1676
        %v1965 = vmul.f32 %v1962, %v1677
        %v1969 = vrot.slane %v1963, 3
        %v1970 = vrot.slane %v1964, 3
        %v1971 = vsel %vm861, %v1969, %v1970
        %v1972 = vrot.slane %v1965, 3
        %v1973 = vsel %vm861, %v1970, %v1972
        %1974 = vrot.lane.b32.xlu0 %v1971, 127
        %v1975 = vpop.permute.xlu0 %1974
        %1976 = vrot.lane.b32.xlu0 %v1973, 127
        %v1977 = vpop.permute.xlu0 %1976
        %v1980 = vadd.f32 %v1959, %v1975
        %v1981 = vadd.f32 %v1960, %v1977
        %s1982 = sld [smem:[#allocation7 + $0x11]]
        %v1983 = vstv %s1982
        %v1984 = vmul.f32 %v1983, %v1675
        %v1985 = vmul.f32 %v1983, %v1676
        %v1986 = vmul.f32 %v1983, %v1677
        %v1990 = vrot.slane %v1984, 3
        %v1991 = vrot.slane %v1985, 3
        %v1992 = vsel %vm861, %v1990, %v1991
        %v1993 = vrot.slane %v1986, 3
        %v1994 = vsel %vm861, %v1991, %v1993
        %1995 = vrot.lane.b32.xlu0 %v1992, 126
        %v1996 = vpop.permute.xlu0 %1995
        %1997 = vrot.lane.b32.xlu0 %v1994, 126
        %v1998 = vpop.permute.xlu0 %1997
        %v2001 = vadd.f32 %v1980, %v1996
        %v2002 = vadd.f32 %v1981, %v1998
        %s2003 = sld [smem:[#allocation7 + $0x12]]
        %v2004 = vstv %s2003
        %v2005 = vmul.f32 %v2004, %v1675
        %v2006 = vmul.f32 %v2004, %v1676
        %v2007 = vmul.f32 %v2004, %v1677
        %v2011 = vrot.slane %v2005, 3
        %v2012 = vrot.slane %v2006, 3
        %v2013 = vsel %vm861, %v2011, %v2012
        %v2014 = vrot.slane %v2007, 3
        %v2015 = vsel %vm861, %v2012, %v2014
        %2016 = vrot.lane.b32.xlu0 %v2013, 125
        %v2017 = vpop.permute.xlu0 %2016
        %2018 = vrot.lane.b32.xlu0 %v2015, 125
        %v2019 = vpop.permute.xlu0 %2018
        %v2022 = vadd.f32 %v2001, %v2017
        %v2023 = vadd.f32 %v2002, %v2019
        %s2024 = sld [smem:[#allocation7 + $0x13]]
        %v2025 = vstv %s2024
        %v2026 = vmul.f32 %v2025, %v1675
        %v2027 = vmul.f32 %v2025, %v1676
        %v2028 = vmul.f32 %v2025, %v1677
        %v2032 = vrot.slane %v2026, 3
        %v2033 = vrot.slane %v2027, 3
        %v2034 = vsel %vm861, %v2032, %v2033
        %v2035 = vrot.slane %v2028, 3
        %v2036 = vsel %vm861, %v2033, %v2035
        %2037 = vrot.lane.b32.xlu0 %v2034, 124
        %v2038 = vpop.permute.xlu0 %2037
        %2039 = vrot.lane.b32.xlu0 %v2036, 124
        %v2040 = vpop.permute.xlu0 %2039
        %v2043 = vadd.f32 %v2022, %v2038
        %v2044 = vadd.f32 %v2023, %v2040
        %s2045 = sld [smem:[#allocation7 + $0x14]]
        %v2046 = vstv %s2045
        %v2047 = vmul.f32 %v2046, %v1675
        %v2048 = vmul.f32 %v2046, %v1676
        %v2049 = vmul.f32 %v2046, %v1677
        %v2053 = vrot.slane %v2047, 4
        %v2054 = vrot.slane %v2048, 4
        %v2055 = vsel %vm963, %v2053, %v2054
        %v2056 = vrot.slane %v2049, 4
        %v2057 = vsel %vm963, %v2054, %v2056
        %v2060 = vadd.f32 %v2043, %v2055
        %v2061 = vadd.f32 %v2044, %v2057
        %s2062 = sld [smem:[#allocation7 + $0x15]]
        %v2063 = vstv %s2062
        %v2064 = vmul.f32 %v2063, %v1675
        %v2065 = vmul.f32 %v2063, %v1676
        %v2066 = vmul.f32 %v2063, %v1677
        %v2070 = vrot.slane %v2064, 4
        %v2071 = vrot.slane %v2065, 4
        %v2072 = vsel %vm963, %v2070, %v2071
        %v2073 = vrot.slane %v2066, 4
        %v2074 = vsel %vm963, %v2071, %v2073
        %2075 = vrot.lane.b32.xlu0 %v2072, 127
        %v2076 = vpop.permute.xlu0 %2075
        %2077 = vrot.lane.b32.xlu0 %v2074, 127
        %v2078 = vpop.permute.xlu0 %2077
        %v2081 = vadd.f32 %v2060, %v2076
        %v2082 = vadd.f32 %v2061, %v2078
        %s2083 = sld [smem:[#allocation7 + $0x16]]
        %v2084 = vstv %s2083
        %v2085 = vmul.f32 %v2084, %v1675
        %v2086 = vmul.f32 %v2084, %v1676
        %v2087 = vmul.f32 %v2084, %v1677
        %v2091 = vrot.slane %v2085, 4
        %v2092 = vrot.slane %v2086, 4
        %v2093 = vsel %vm963, %v2091, %v2092
        %v2094 = vrot.slane %v2087, 4
        %v2095 = vsel %vm963, %v2092, %v2094
        %2096 = vrot.lane.b32.xlu0 %v2093, 126
        %v2097 = vpop.permute.xlu0 %2096
        %2098 = vrot.lane.b32.xlu0 %v2095, 126
        %v2099 = vpop.permute.xlu0 %2098
        %v2102 = vadd.f32 %v2081, %v2097
        %v2103 = vadd.f32 %v2082, %v2099
        %s2104 = sld [smem:[#allocation7 + $0x17]]
        %v2105 = vstv %s2104
        %v2106 = vmul.f32 %v2105, %v1675
        %v2107 = vmul.f32 %v2105, %v1676
        %v2108 = vmul.f32 %v2105, %v1677
        %v2112 = vrot.slane %v2106, 4
        %v2113 = vrot.slane %v2107, 4
        %v2114 = vsel %vm963, %v2112, %v2113
        %v2115 = vrot.slane %v2108, 4
        %v2116 = vsel %vm963, %v2113, %v2115
        %2117 = vrot.lane.b32.xlu0 %v2114, 125
        %v2118 = vpop.permute.xlu0 %2117
        %2119 = vrot.lane.b32.xlu0 %v2116, 125
        %v2120 = vpop.permute.xlu0 %2119
        %v2123 = vadd.f32 %v2102, %v2118
        %v2124 = vadd.f32 %v2103, %v2120
        %s2125 = sld [smem:[#allocation7 + $0x18]]
        %v2126 = vstv %s2125
        %v2127 = vmul.f32 %v2126, %v1675
        %v2128 = vmul.f32 %v2126, %v1676
        %v2129 = vmul.f32 %v2126, %v1677
        %v2133 = vrot.slane %v2127, 4
        %v2134 = vrot.slane %v2128, 4
        %v2135 = vsel %vm963, %v2133, %v2134
        %v2136 = vrot.slane %v2129, 4
        %v2137 = vsel %vm963, %v2134, %v2136
        %2138 = vrot.lane.b32.xlu0 %v2135, 124
        %v2139 = vpop.permute.xlu0 %2138
        %2140 = vrot.lane.b32.xlu0 %v2137, 124
        %v2141 = vpop.permute.xlu0 %2140
        %v2144 = vadd.f32 %v2123, %v2139
        %v2145 = vadd.f32 %v2124, %v2141
        %v2146 = vstv %s501
        %v2147 = vmul.f32 %v506, %v2146
        %v2148 = vmul.f32 %v507, %v2146
        %v2149 = vadd.f32 %v504, %v2147
        %v2150 = vadd.f32 %v505, %v2148
        %v2151 = vsub.f32 %v2149, %v2144
        %v2152 = vsub.f32 %v2150, %v2145
        %v2154 = vrot.slane %v2151, 2
        %v2157 = vrot.slane %v2151, 6
        %v2158 = vrot.slane %v2152, 6
        %v2159 = vsel %vm514, %v2157, %v2158
        %v2163 = vrot.slane %v2152, 4
        %v2165 = vrot.slane %v2152, 2
        %v2167 = vsel %vm525, %v2154, %v2151
        %v2168 = vsel %vm514, %v2167, %v2157
        %v2169 = vsel %vm514, %v2158, %v2163
        %v2170 = vsel %vm529, %v2169, %v2165
        %2173 = vrot.lane.b32.xlu0 %v2168, 126
        %v2174 = vpop.permute.xlu0 %2173
        %2175 = vrot.lane.b32.xlu0 %v2159, 126
        %v2176 = vpop.permute.xlu0 %2175
        %2177 = vrot.lane.b32.xlu0 %v2170, 126
        %v2178 = vpop.permute.xlu0 %2177
        %2182 = vrot.lane.b32.xlu0 %v2168, 2
        %v2183 = vpop.permute.xlu0 %2182
        %2184 = vrot.lane.b32.xlu0 %v2159, 2
        %v2185 = vpop.permute.xlu0 %2184
        %2186 = vrot.lane.b32.xlu0 %v2170, 2
        %v2187 = vpop.permute.xlu0 %2186
        %2191 = vrot.lane.b32.xlu0 %v2168, 4
        %v2192 = vpop.permute.xlu0 %2191
        %2193 = vrot.lane.b32.xlu0 %v2159, 4
        %v2194 = vpop.permute.xlu0 %2193
        %2195 = vrot.lane.b32.xlu0 %v2170, 4
        %v2196 = vpop.permute.xlu0 %2195
        %2200 = vrot.lane.b32.xlu0 %v2168, 6
        %v2201 = vpop.permute.xlu0 %2200
        %2202 = vrot.lane.b32.xlu0 %v2159, 6
        %v2203 = vpop.permute.xlu0 %2202
        %2204 = vrot.lane.b32.xlu0 %v2170, 6
        %v2205 = vpop.permute.xlu0 %2204
        %v2209 = vsel %vm569, %v2174, %v2168
        %v2210 = vsel %vm569, %v2176, %v2159
        %v2211 = vsel %vm569, %v2178, %v2170
        %v2212 = vsel %vm573, %v2209, %v2183
        %v2213 = vsel %vm573, %v2210, %v2185
        %v2214 = vsel %vm573, %v2211, %v2187
        %v2215 = vsel %vm577, %v2212, %v2192
        %v2216 = vsel %vm577, %v2213, %v2194
        %v2217 = vsel %vm577, %v2214, %v2196
        %v2218 = vsel %vm581, %v2215, %v2201
        %v2219 = vsel %vm581, %v2216, %v2203
        %v2220 = vsel %vm581, %v2217, %v2205
        %v2221 = vstv %s503
        %v2222 = vadd.f32 %v2221, 0.0
        %s2223 = sld [smem:[#allocation9]]
        %v2224 = vstv %s2223
        %v2225 = vmul.f32 %v2224, %v2218
        %v2226 = vmul.f32 %v2224, %v2219
        %v2227 = vadd.f32 %v2222, %v2225
        %v2228 = vadd.f32 %v2222, %v2226
        %s2229 = sld [smem:[#allocation9 + $0x1]]
        %v2230 = vstv %s2229
        %v2231 = vmul.f32 %v2230, %v2218
        %v2232 = vmul.f32 %v2230, %v2219
        %2235 = vrot.lane.b32.xlu0 %v2231, 127
        %v2236 = vpop.permute.xlu0 %2235
        %2237 = vrot.lane.b32.xlu0 %v2232, 127
        %v2238 = vpop.permute.xlu0 %2237
        %v2241 = vadd.f32 %v2227, %v2236
        %v2242 = vadd.f32 %v2228, %v2238
        %s2243 = sld [smem:[#allocation9 + $0x2]]
        %v2244 = vstv %s2243
        %v2245 = vmul.f32 %v2244, %v2218
        %v2246 = vmul.f32 %v2244, %v2219
        %2249 = vrot.lane.b32.xlu0 %v2245, 126
        %v2250 = vpop.permute.xlu0 %2249
        %2251 = vrot.lane.b32.xlu0 %v2246, 126
        %v2252 = vpop.permute.xlu0 %2251
        %v2255 = vadd.f32 %v2241, %v2250
        %v2256 = vadd.f32 %v2242, %v2252
        %s2257 = sld [smem:[#allocation9 + $0x3]]
        %v2258 = vstv %s2257
        %v2259 = vmul.f32 %v2258, %v2218
        %v2260 = vmul.f32 %v2258, %v2219
        %2263 = vrot.lane.b32.xlu0 %v2259, 125
        %v2264 = vpop.permute.xlu0 %2263
        %2265 = vrot.lane.b32.xlu0 %v2260, 125
        %v2266 = vpop.permute.xlu0 %2265
        %v2269 = vadd.f32 %v2255, %v2264
        %v2270 = vadd.f32 %v2256, %v2266
        %s2271 = sld [smem:[#allocation9 + $0x4]]
        %v2272 = vstv %s2271
        %v2273 = vmul.f32 %v2272, %v2218
        %v2274 = vmul.f32 %v2272, %v2219
        %2277 = vrot.lane.b32.xlu0 %v2273, 124
        %v2278 = vpop.permute.xlu0 %2277
        %2279 = vrot.lane.b32.xlu0 %v2274, 124
        %v2280 = vpop.permute.xlu0 %2279
        %v2283 = vadd.f32 %v2269, %v2278
        %v2284 = vadd.f32 %v2270, %v2280
        %s2285 = sld [smem:[#allocation9 + $0x5]]
        %v2286 = vstv %s2285
        %v2287 = vmul.f32 %v2286, %v2218
        %v2288 = vmul.f32 %v2286, %v2219
        %v2289 = vmul.f32 %v2286, %v2220
        %v2293 = vrot.slane %v2287, 1
        %v2294 = vrot.slane %v2288, 1
        %v2295 = vsel %vm657, %v2293, %v2294
        %v2296 = vrot.slane %v2289, 1
        %v2297 = vsel %vm657, %v2294, %v2296
        %v2300 = vadd.f32 %v2283, %v2295
        %v2301 = vadd.f32 %v2284, %v2297
        %s2302 = sld [smem:[#allocation9 + $0x6]]
        %v2303 = vstv %s2302
        %v2304 = vmul.f32 %v2303, %v2218
        %v2305 = vmul.f32 %v2303, %v2219
        %v2306 = vmul.f32 %v2303, %v2220
        %v2310 = vrot.slane %v2304, 1
        %v2311 = vrot.slane %v2305, 1
        %v2312 = vsel %vm657, %v2310, %v2311
        %v2313 = vrot.slane %v2306, 1
        %v2314 = vsel %vm657, %v2311, %v2313
        %2315 = vrot.lane.b32.xlu0 %v2312, 127
        %v2316 = vpop.permute.xlu0 %2315
        %2317 = vrot.lane.b32.xlu0 %v2314, 127
        %v2318 = vpop.permute.xlu0 %2317
        %v2321 = vadd.f32 %v2300, %v2316
        %v2322 = vadd.f32 %v2301, %v2318
        %s2323 = sld [smem:[#allocation9 + $0x7]]
        %v2324 = vstv %s2323
        %v2325 = vmul.f32 %v2324, %v2218
        %v2326 = vmul.f32 %v2324, %v2219
        %v2327 = vmul.f32 %v2324, %v2220
        %v2331 = vrot.slane %v2325, 1
        %v2332 = vrot.slane %v2326, 1
        %v2333 = vsel %vm657, %v2331, %v2332
        %v2334 = vrot.slane %v2327, 1
        %v2335 = vsel %vm657, %v2332, %v2334
        %2336 = vrot.lane.b32.xlu0 %v2333, 126
        %v2337 = vpop.permute.xlu0 %2336
        %2338 = vrot.lane.b32.xlu0 %v2335, 126
        %v2339 = vpop.permute.xlu0 %2338
        %v2342 = vadd.f32 %v2321, %v2337
        %v2343 = vadd.f32 %v2322, %v2339
        %s2344 = sld [smem:[#allocation9 + $0x8]]
        %v2345 = vstv %s2344
        %v2346 = vmul.f32 %v2345, %v2218
        %v2347 = vmul.f32 %v2345, %v2219
        %v2348 = vmul.f32 %v2345, %v2220
        %v2352 = vrot.slane %v2346, 1
        %v2353 = vrot.slane %v2347, 1
        %v2354 = vsel %vm657, %v2352, %v2353
        %v2355 = vrot.slane %v2348, 1
        %v2356 = vsel %vm657, %v2353, %v2355
        %2357 = vrot.lane.b32.xlu0 %v2354, 125
        %v2358 = vpop.permute.xlu0 %2357
        %2359 = vrot.lane.b32.xlu0 %v2356, 125
        %v2360 = vpop.permute.xlu0 %2359
        %v2363 = vadd.f32 %v2342, %v2358
        %v2364 = vadd.f32 %v2343, %v2360
        %s2365 = sld [smem:[#allocation9 + $0x9]]
        %v2366 = vstv %s2365
        %v2367 = vmul.f32 %v2366, %v2218
        %v2368 = vmul.f32 %v2366, %v2219
        %v2369 = vmul.f32 %v2366, %v2220
        %v2373 = vrot.slane %v2367, 1
        %v2374 = vrot.slane %v2368, 1
        %v2375 = vsel %vm657, %v2373, %v2374
        %v2376 = vrot.slane %v2369, 1
        %v2377 = vsel %vm657, %v2374, %v2376
        %2378 = vrot.lane.b32.xlu0 %v2375, 124
        %v2379 = vpop.permute.xlu0 %2378
        %2380 = vrot.lane.b32.xlu0 %v2377, 124
        %v2381 = vpop.permute.xlu0 %2380
        %v2384 = vadd.f32 %v2363, %v2379
        %v2385 = vadd.f32 %v2364, %v2381
        %s2386 = sld [smem:[#allocation9 + $0xa]]
        %v2387 = vstv %s2386
        %v2388 = vmul.f32 %v2387, %v2218
        %v2389 = vmul.f32 %v2387, %v2219
        %v2390 = vmul.f32 %v2387, %v2220
        %v2394 = vrot.slane %v2388, 2
        %v2395 = vrot.slane %v2389, 2
        %v2396 = vsel %vm759, %v2394, %v2395
        %v2397 = vrot.slane %v2390, 2
        %v2398 = vsel %vm759, %v2395, %v2397
        %v2401 = vadd.f32 %v2384, %v2396
        %v2402 = vadd.f32 %v2385, %v2398
        %s2403 = sld [smem:[#allocation9 + $0xb]]
        %v2404 = vstv %s2403
        %v2405 = vmul.f32 %v2404, %v2218
        %v2406 = vmul.f32 %v2404, %v2219
        %v2407 = vmul.f32 %v2404, %v2220
        %v2411 = vrot.slane %v2405, 2
        %v2412 = vrot.slane %v2406, 2
        %v2413 = vsel %vm759, %v2411, %v2412
        %v2414 = vrot.slane %v2407, 2
        %v2415 = vsel %vm759, %v2412, %v2414
        %2416 = vrot.lane.b32.xlu0 %v2413, 127
        %v2417 = vpop.permute.xlu0 %2416
        %2418 = vrot.lane.b32.xlu0 %v2415, 127
        %v2419 = vpop.permute.xlu0 %2418
        %v2422 = vadd.f32 %v2401, %v2417
        %v2423 = vadd.f32 %v2402, %v2419
        %s2424 = sld [smem:[#allocation9 + $0xc]]
        %v2425 = vstv %s2424
        %v2426 = vmul.f32 %v2425, %v2218
        %v2427 = vmul.f32 %v2425, %v2219
        %v2428 = vmul.f32 %v2425, %v2220
        %v2432 = vrot.slane %v2426, 2
        %v2433 = vrot.slane %v2427, 2
        %v2434 = vsel %vm759, %v2432, %v2433
        %v2435 = vrot.slane %v2428, 2
        %v2436 = vsel %vm759, %v2433, %v2435
        %2437 = vrot.lane.b32.xlu0 %v2434, 126
        %v2438 = vpop.permute.xlu0 %2437
        %2439 = vrot.lane.b32.xlu0 %v2436, 126
        %v2440 = vpop.permute.xlu0 %2439
        %v2443 = vadd.f32 %v2422, %v2438
        %v2444 = vadd.f32 %v2423, %v2440
        %s2445 = sld [smem:[#allocation9 + $0xd]]
        %v2446 = vstv %s2445
        %v2447 = vmul.f32 %v2446, %v2218
        %v2448 = vmul.f32 %v2446, %v2219
        %v2449 = vmul.f32 %v2446, %v2220
        %v2453 = vrot.slane %v2447, 2
        %v2454 = vrot.slane %v2448, 2
        %v2455 = vsel %vm759, %v2453, %v2454
        %v2456 = vrot.slane %v2449, 2
        %v2457 = vsel %vm759, %v2454, %v2456
        %2458 = vrot.lane.b32.xlu0 %v2455, 125
        %v2459 = vpop.permute.xlu0 %2458
        %2460 = vrot.lane.b32.xlu0 %v2457, 125
        %v2461 = vpop.permute.xlu0 %2460
        %v2464 = vadd.f32 %v2443, %v2459
        %v2465 = vadd.f32 %v2444, %v2461
        %s2466 = sld [smem:[#allocation9 + $0xe]]
        %v2467 = vstv %s2466
        %v2468 = vmul.f32 %v2467, %v2218
        %v2469 = vmul.f32 %v2467, %v2219
        %v2470 = vmul.f32 %v2467, %v2220
        %v2474 = vrot.slane %v2468, 2
        %v2475 = vrot.slane %v2469, 2
        %v2476 = vsel %vm759, %v2474, %v2475
        %v2477 = vrot.slane %v2470, 2
        %v2478 = vsel %vm759, %v2475, %v2477
        %2479 = vrot.lane.b32.xlu0 %v2476, 124
        %v2480 = vpop.permute.xlu0 %2479
        %2481 = vrot.lane.b32.xlu0 %v2478, 124
        %v2482 = vpop.permute.xlu0 %2481
        %v2485 = vadd.f32 %v2464, %v2480
        %v2486 = vadd.f32 %v2465, %v2482
        %s2487 = sld [smem:[#allocation9 + $0xf]]
        %v2488 = vstv %s2487
        %v2489 = vmul.f32 %v2488, %v2218
        %v2490 = vmul.f32 %v2488, %v2219
        %v2491 = vmul.f32 %v2488, %v2220
        %v2495 = vrot.slane %v2489, 3
        %v2496 = vrot.slane %v2490, 3
        %v2497 = vsel %vm861, %v2495, %v2496
        %v2498 = vrot.slane %v2491, 3
        %v2499 = vsel %vm861, %v2496, %v2498
        %v2502 = vadd.f32 %v2485, %v2497
        %v2503 = vadd.f32 %v2486, %v2499
        %s2504 = sld [smem:[#allocation9 + $0x10]]
        %v2505 = vstv %s2504
        %v2506 = vmul.f32 %v2505, %v2218
        %v2507 = vmul.f32 %v2505, %v2219
        %v2508 = vmul.f32 %v2505, %v2220
        %v2512 = vrot.slane %v2506, 3
        %v2513 = vrot.slane %v2507, 3
        %v2514 = vsel %vm861, %v2512, %v2513
        %v2515 = vrot.slane %v2508, 3
        %v2516 = vsel %vm861, %v2513, %v2515
        %2517 = vrot.lane.b32.xlu0 %v2514, 127
        %v2518 = vpop.permute.xlu0 %2517
        %2519 = vrot.lane.b32.xlu0 %v2516, 127
        %v2520 = vpop.permute.xlu0 %2519
        %v2523 = vadd.f32 %v2502, %v2518
        %v2524 = vadd.f32 %v2503, %v2520
        %s2525 = sld [smem:[#allocation9 + $0x11]]
        %v2526 = vstv %s2525
        %v2527 = vmul.f32 %v2526, %v2218
        %v2528 = vmul.f32 %v2526, %v2219
        %v2529 = vmul.f32 %v2526, %v2220
        %v2533 = vrot.slane %v2527, 3
        %v2534 = vrot.slane %v2528, 3
        %v2535 = vsel %vm861, %v2533, %v2534
        %v2536 = vrot.slane %v2529, 3
        %v2537 = vsel %vm861, %v2534, %v2536
        %2538 = vrot.lane.b32.xlu0 %v2535, 126
        %v2539 = vpop.permute.xlu0 %2538
        %2540 = vrot.lane.b32.xlu0 %v2537, 126
        %v2541 = vpop.permute.xlu0 %2540
        %v2544 = vadd.f32 %v2523, %v2539
        %v2545 = vadd.f32 %v2524, %v2541
        %s2546 = sld [smem:[#allocation9 + $0x12]]
        %v2547 = vstv %s2546
        %v2548 = vmul.f32 %v2547, %v2218
        %v2549 = vmul.f32 %v2547, %v2219
        %v2550 = vmul.f32 %v2547, %v2220
        %v2554 = vrot.slane %v2548, 3
        %v2555 = vrot.slane %v2549, 3
        %v2556 = vsel %vm861, %v2554, %v2555
        %v2557 = vrot.slane %v2550, 3
        %v2558 = vsel %vm861, %v2555, %v2557
        %2559 = vrot.lane.b32.xlu0 %v2556, 125
        %v2560 = vpop.permute.xlu0 %2559
        %2561 = vrot.lane.b32.xlu0 %v2558, 125
        %v2562 = vpop.permute.xlu0 %2561
        %v2565 = vadd.f32 %v2544, %v2560
        %v2566 = vadd.f32 %v2545, %v2562
        %s2567 = sld [smem:[#allocation9 + $0x13]]
        %v2568 = vstv %s2567
        %v2569 = vmul.f32 %v2568, %v2218
        %v2570 = vmul.f32 %v2568, %v2219
        %v2571 = vmul.f32 %v2568, %v2220
        %v2575 = vrot.slane %v2569, 3
        %v2576 = vrot.slane %v2570, 3
        %v2577 = vsel %vm861, %v2575, %v2576
        %v2578 = vrot.slane %v2571, 3
        %v2579 = vsel %vm861, %v2576, %v2578
        %2580 = vrot.lane.b32.xlu0 %v2577, 124
        %v2581 = vpop.permute.xlu0 %2580
        %2582 = vrot.lane.b32.xlu0 %v2579, 124
        %v2583 = vpop.permute.xlu0 %2582
        %v2586 = vadd.f32 %v2565, %v2581
        %v2587 = vadd.f32 %v2566, %v2583
        %s2588 = sld [smem:[#allocation9 + $0x14]]
        %v2589 = vstv %s2588
        %v2590 = vmul.f32 %v2589, %v2218
        %v2591 = vmul.f32 %v2589, %v2219
        %v2592 = vmul.f32 %v2589, %v2220
        %v2596 = vrot.slane %v2590, 4
        %v2597 = vrot.slane %v2591, 4
        %v2598 = vsel %vm963, %v2596, %v2597
        %v2599 = vrot.slane %v2592, 4
        %v2600 = vsel %vm963, %v2597, %v2599
        %v2603 = vadd.f32 %v2586, %v2598
        %v2604 = vadd.f32 %v2587, %v2600
        %s2605 = sld [smem:[#allocation9 + $0x15]]
        %v2606 = vstv %s2605
        %v2607 = vmul.f32 %v2606, %v2218
        %v2608 = vmul.f32 %v2606, %v2219
        %v2609 = vmul.f32 %v2606, %v2220
        %v2613 = vrot.slane %v2607, 4
        %v2614 = vrot.slane %v2608, 4
        %v2615 = vsel %vm963, %v2613, %v2614
        %v2616 = vrot.slane %v2609, 4
        %v2617 = vsel %vm963, %v2614, %v2616
        %2618 = vrot.lane.b32.xlu0 %v2615, 127
        %v2619 = vpop.permute.xlu0 %2618
        %2620 = vrot.lane.b32.xlu0 %v2617, 127
        %v2621 = vpop.permute.xlu0 %2620
        %v2624 = vadd.f32 %v2603, %v2619
        %v2625 = vadd.f32 %v2604, %v2621
        %s2626 = sld [smem:[#allocation9 + $0x16]]
        %v2627 = vstv %s2626
        %v2628 = vmul.f32 %v2627, %v2218
        %v2629 = vmul.f32 %v2627, %v2219
        %v2630 = vmul.f32 %v2627, %v2220
        %v2634 = vrot.slane %v2628, 4
        %v2635 = vrot.slane %v2629, 4
        %v2636 = vsel %vm963, %v2634, %v2635
        %v2637 = vrot.slane %v2630, 4
        %v2638 = vsel %vm963, %v2635, %v2637
        %2639 = vrot.lane.b32.xlu0 %v2636, 126
        %v2640 = vpop.permute.xlu0 %2639
        %2641 = vrot.lane.b32.xlu0 %v2638, 126
        %v2642 = vpop.permute.xlu0 %2641
        %v2645 = vadd.f32 %v2624, %v2640
        %v2646 = vadd.f32 %v2625, %v2642
        %s2647 = sld [smem:[#allocation9 + $0x17]]
        %v2648 = vstv %s2647
        %v2649 = vmul.f32 %v2648, %v2218
        %v2650 = vmul.f32 %v2648, %v2219
        %v2651 = vmul.f32 %v2648, %v2220
        %v2655 = vrot.slane %v2649, 4
        %v2656 = vrot.slane %v2650, 4
        %v2657 = vsel %vm963, %v2655, %v2656
        %v2658 = vrot.slane %v2651, 4
        %v2659 = vsel %vm963, %v2656, %v2658
        %2660 = vrot.lane.b32.xlu0 %v2657, 125
        %v2661 = vpop.permute.xlu0 %2660
        %2662 = vrot.lane.b32.xlu0 %v2659, 125
        %v2663 = vpop.permute.xlu0 %2662
        %v2666 = vadd.f32 %v2645, %v2661
        %v2667 = vadd.f32 %v2646, %v2663
        %s2668 = sld [smem:[#allocation9 + $0x18]]
        %v2669 = vstv %s2668
        %v2670 = vmul.f32 %v2669, %v2218
        %v2671 = vmul.f32 %v2669, %v2219
        %v2672 = vmul.f32 %v2669, %v2220
        %v2676 = vrot.slane %v2670, 4
        %v2677 = vrot.slane %v2671, 4
        %v2678 = vsel %vm963, %v2676, %v2677
        %v2679 = vrot.slane %v2672, 4
        %v2680 = vsel %vm963, %v2677, %v2679
        %2681 = vrot.lane.b32.xlu0 %v2678, 124
        %v2682 = vpop.permute.xlu0 %2681
        %2683 = vrot.lane.b32.xlu0 %v2680, 124
        %v2684 = vpop.permute.xlu0 %2683
        %v2687 = vadd.f32 %v2666, %v2682
        %v2688 = vadd.f32 %v2667, %v2684
        %2689 = vst.msk [vmem:[%s496] sm:$0xff] %vm1605, %v2687
        %2690 = vst.msk [vmem:[%s496 + $0x8] sm:$0xff] %vm1605, %v2688
        %p2691 = scmp.lt.s32.totalorder %s25, 1
        %s2692 = scalar_select %p2691, %s25, 1
        %s2693 = smul.addr %s2692, 2
        %s2694 = smul.addr %s2693, 8
        %s2695 = scalar_lea.vmem %s9, %s2694
        %p2696 = scmp.lt.s32.totalorder %s25, 1
        %s2697 = scalar_select %p2696, %s25, 1
        %s2698 = smul.addr %s2697, 2
        %s2699 = smul.addr %s2698, 8
        %s2700 = scalar_lea.vmem %s10, %s2699
        // Predicated region
        $region77: #{admm_net_forward.3} parent=55 // pred_check
          %p2701 = pneg %p252
        $region78: #{admm_net_forward.3} parent=55 // pred_check_branch
          %2703 = sbr.rel (%p2701) target = $region80
        $region79: #{admm_net_forward.3} parent=55 // pred_region
          _
        $region80: #{admm_net_forward.3} parent=55 // pred_fallthru
          _
        // Predicated region
        $region81: #{admm_net_forward.3} parent=55 // pred_check
          %p2704 = pneg %p278
        $region82: #{admm_net_forward.3} parent=55 // pred_check_branch
          %2706 = sbr.rel (%p2704) target = $region84
        $region83: #{admm_net_forward.3} parent=55 // pred_region
          _
        $region84: #{admm_net_forward.3} parent=55 // pred_fallthru
          _
      $region56: #{admm_net_forward.3} parent=5 // pred_fallthru
        _
      %p2707 = scmp.le.s32.totalorder 2, %s20
      // Predicated region
      $region85: #{admm_net_forward.3} parent=5 // pred_check
        %p2708 = pneg %p2707
      $region86: #{admm_net_forward.3} parent=5 // pred_check_branch
        %2710 = sbr.rel (%p2708) target = $region88
      $region87: #{admm_net_forward.3} parent=5 // pred_region
        %s2711 = ssub.s32 %s20, 2
        // Predicated region
        $region89: #{admm_net_forward.3} parent=87 // pred_check
          %p2712 = pneg %p258
        $region90: #{admm_net_forward.3} parent=87 // pred_check_branch
          %2714 = sbr.rel (%p2712) target = $region92
        $region91: #{admm_net_forward.3} parent=87 // pred_region
          %p2715 = scmp.lt.s32.totalorder %s26, 1
          %s2716 = scalar_select %p2715, %s26, 1
          %s2717 = smul.addr %s2716, 2
          %s2718 = smul.addr %s2717, 8
          %s2719 = scalar_lea.vmem %s9, %s2718
        $region92: #{admm_net_forward.3} parent=87 // pred_fallthru
          _
        // Predicated region
        $region93: #{admm_net_forward.3} parent=87 // pred_check
          %p2720 = pneg %p284
        $region94: #{admm_net_forward.3} parent=87 // pred_check_branch
          %2722 = sbr.rel (%p2720) target = $region96
        $region95: #{admm_net_forward.3} parent=87 // pred_region
          %p2723 = scmp.lt.s32.totalorder %s26, 1
          %s2724 = scalar_select %p2723, %s26, 1
          %s2725 = smul.addr %s2724, 2
          %s2726 = smul.addr %s2725, 8
          %s2727 = scalar_lea.vmem %s10, %s2726
        $region96: #{admm_net_forward.3} parent=87 // pred_fallthru
          _
      $region88: #{admm_net_forward.3} parent=5 // pred_fallthru
        _
    $region6: #{admm_net_forward.3} parent=1 // loop_footer
      %s24 = sadd.s32 1, %s20
    $region7: #{admm_net_forward.3} parent=1 // loop_footer_branch
      %19 = sbr.rel target = $region3
    $region8: #{admm_net_forward.3} parent=1 // loop_exit
      _
    %2728 = vsyncpa [#allocation3], 1
    %s2729 = scalar_lea.sflag [#allocation3], 1
    %2730 = vsyncpa %s2729, 1
    %2731 = vsyncpa [#allocation5], 1
    %2732 = vsyncpa [#allocation8], 1

// kernel: admm_net_forward.4
$region0: #{admm_net_forward.4}
  #allocation0 [shape = 'u32[]', space=smem, size = 0x4, offset = 0x4, fixed_abs, tag = 'smem constant byte address 0x4 - core index']
  #allocation1 [shape = 'u32[144,128]{1,0:T(1,128)}', space=vmem, size = 0x12000, scoped, tag = 'internal scratch']
  %s0 = inlined_call_operand.vmem [shape: f32[3], index: 0, kind: input, shape index: {}]
  %s1 = inlined_call_operand.vmem [shape: f32[25], index: 1, kind: input, shape index: {}]
  %s2 = inlined_call_operand.vmem [shape: f32[25], index: 2, kind: input, shape index: {}]
  %s3 = inlined_call_operand.vmem [shape: f32[2,16,16], index: 3, kind: input, shape index: {}]
  %s4 = inlined_call_operand.vmem [shape: f32[2,16,16], index: 4, kind: input, shape index: {}]
  %s5 = inlined_call_operand.vmem [shape: f32[2,16,16], index: 5, kind: input, shape index: {}]
  %s6 = inlined_call_operand.vmem [shape: f32[2,16,16], index: 6, kind: input, shape index: {}]
  %s7 = inlined_call_operand.vmem [shape: f32[2,16,16], index: 7, kind: output, shape index: {}]
  %s8 = sld [smem:[#allocation0]]
  $region73: #{admm_net_forward.4} parent=0
    _
  %s10 = ssub.s32 1, %s8
  %s11 = scalar_select 0, %s10, %s8
  $region1: #{admm_net_forward.4} parent=0
    #allocation2 [shape = 'u8[512]{0}', space=smem, size = 0x200, scoped, tag = 'input window, operand 0, single buffered']
    #allocation3 [shape = 's32[2]{0}', space=sflag, size = 0x8, scoped, tag = 'scoped memory for admm_net_forward.4']
    #allocation4 [shape = 'u8[512]{0}', space=smem, size = 0x200, scoped, tag = 'input window, operand 1, single buffered']
    #allocation5 [shape = 's32[1]{0}', space=sflag, size = 0x4, scoped, tag = 'scoped memory for admm_net_forward.4']
    #allocation6 [shape = 'u8[512]{0}', space=smem, size = 0x200, scoped, tag = 'input window, operand 2, single buffered']
    %12 = vsyncpa [#allocation3], 0
    %13 = vsyncpa [#allocation5], 0
    loop: start=0, step=1, limit=4
    $region2: #{admm_net_forward.4} parent=1 // loop_pre_header
      _
    $region3: #{admm_net_forward.4} parent=1 // loop_header
      %s15 = sphi 0, %s19
      %p16 = scmp.ge.s32.totalorder %s15, 4
      %s23 = sphi 0, %s23
      %s25 = sphi 0, %s23
      %s26 = sphi 0, %s25
      %s40 = sphi 0, %s26
      %s44 = sphi 0, %s44
      %s46 = sphi 0, %s44
      %s47 = sphi 0, %s46
      %s61 = sphi 0, %s47
      %s65 = sphi 0, %s65
      %s67 = sphi 0, %s65
      %s68 = sphi 0, %s67
      %s82 = sphi 0, %s68
      %s88 = sphi 0, %s90
      %s91 = sphi 0, %s88
      %s92 = sphi 0, %s91
      %s108 = sphi 0, %s92
      %s114 = sphi 0, %s116
      %s117 = sphi 0, %s114
      %s118 = sphi 0, %s117
      %s134 = sphi 0, %s118
      %s140 = sphi 0, %s142
      %s143 = sphi 0, %s140
      %s144 = sphi 0, %s143
      %s160 = sphi 0, %s144
      %s166 = sphi 0, %s168
      %s169 = sphi 0, %s166
      %s170 = sphi 0, %s169
      %s186 = sphi 0, %s170
      %s192 = sphi 0, %s194
      %s195 = sphi 0, %s192
      %s196 = sphi 0, %s195
      %s212 = sphi 0, %s196
    $region4: #{admm_net_forward.4} parent=1 // loop_header_branch
      %18 = sbr.rel (%p16) target = $region8
    $region5: #{admm_net_forward.4} parent=1 // loop_body
      %s20 = ssub.s32 %s15, 1
      %s21 = ssub.s32 %s15, 2
      %s22 = sadd.s32 %s15, 1
      %s24 = sadd.s32 %s23, 1
      %p27 = scmp.eq.s32.totalorder %s15, 1
      %p28 = scmp.ne.s32.totalorder %s23, %s25
      %p29 = scmp.eq.s32.totalorder %s15, 0
      %p30 = por %p28, %p29
      %p31 = scmp.ne.s32.totalorder %s23, %s25
      %p32 = scmp.eq.s32.totalorder %s20, 1
      %p33 = por %p31, %p32
      %p34 = scmp.ne.s32.totalorder %s25, %s26
      %p35 = scmp.eq.s32.totalorder %s20, 0
      %p36 = por %p34, %p35
      %p37 = scmp.ne.s32.totalorder %s25, %s26
      %p38 = scmp.eq.s32.totalorder %s21, 1
      %p39 = por %p37, %p38
      %p41 = scmp.ne.s32.totalorder %s26, %s40
      %p42 = scmp.eq.s32.totalorder %s21, 0
      %p43 = por %p41, %p42
      %s45 = sadd.s32 %s44, 1
      %p48 = scmp.eq.s32.totalorder %s15, 1
      %p49 = scmp.ne.s32.totalorder %s44, %s46
      %p50 = scmp.eq.s32.totalorder %s15, 0
      %p51 = por %p49, %p50
      %p52 = scmp.ne.s32.totalorder %s44, %s46
      %p53 = scmp.eq.s32.totalorder %s20, 1
      %p54 = por %p52, %p53
      %p55 = scmp.ne.s32.totalorder %s46, %s47
      %p56 = scmp.eq.s32.totalorder %s20, 0
      %p57 = por %p55, %p56
      %p58 = scmp.ne.s32.totalorder %s46, %s47
      %p59 = scmp.eq.s32.totalorder %s21, 1
      %p60 = por %p58, %p59
      %p62 = scmp.ne.s32.totalorder %s47, %s61
      %p63 = scmp.eq.s32.totalorder %s21, 0
      %p64 = por %p62, %p63
      %s66 = sadd.s32 %s65, 1
      %p69 = scmp.eq.s32.totalorder %s15, 1
      %p70 = scmp.ne.s32.totalorder %s65, %s67
      %p71 = scmp.eq.s32.totalorder %s15, 0
      %p72 = por %p70, %p71
      %p73 = scmp.ne.s32.totalorder %s65, %s67
      %p74 = scmp.eq.s32.totalorder %s20, 1
      %p75 = por %p73, %p74
      %p76 = scmp.ne.s32.totalorder %s67, %s68
      %p77 = scmp.eq.s32.totalorder %s20, 0
      %p78 = por %p76, %p77
      %p79 = scmp.ne.s32.totalorder %s67, %s68
      %p80 = scmp.eq.s32.totalorder %s21, 1
      %p81 = por %p79, %p80
      %p83 = scmp.ne.s32.totalorder %s68, %s82
      %p84 = scmp.eq.s32.totalorder %s21, 0
      %p85 = por %p83, %p84
      %s86 = ssub.s32 %s15, %s22
      %p87 = scmp.eq.s32.totalorder %s86, 0
      %s89 = sadd.s32 %s88, 1
      %s90 = scalar_select %p87, %s88, %s89
      %p93 = pneg %p87
      %p94 = scmp.eq.s32.totalorder %s15, 1
      %p95 = por %p93, %p94
      %p96 = scmp.ne.s32.totalorder %s88, %s91
      %p97 = scmp.eq.s32.totalorder %s15, 0
      %p98 = por %p96, %p97
      %p99 = scmp.ne.s32.totalorder %s88, %s91
      %p100 = scmp.eq.s32.totalorder %s20, 1
      %p101 = por %p99, %p100
      %p102 = scmp.ne.s32.totalorder %s91, %s92
      %p103 = scmp.eq.s32.totalorder %s20, 0
      %p104 = por %p102, %p103
      %p105 = scmp.ne.s32.totalorder %s91, %s92
      %p106 = scmp.eq.s32.totalorder %s21, 1
      %p107 = por %p105, %p106
      %p109 = scmp.ne.s32.totalorder %s92, %s108
      %p110 = scmp.eq.s32.totalorder %s21, 0
      %p111 = por %p109, %p110
      %s112 = ssub.s32 %s15, %s22
      %p113 = scmp.eq.s32.totalorder %s112, 0
      %s115 = sadd.s32 %s114, 1
      %s116 = scalar_select %p113, %s114, %s115
      %p119 = pneg %p113
      %p120 = scmp.eq.s32.totalorder %s15, 1
      %p121 = por %p119, %p120
      %p122 = scmp.ne.s32.totalorder %s114, %s117
      %p123 = scmp.eq.s32.totalorder %s15, 0
      %p124 = por %p122, %p123
      %p125 = scmp.ne.s32.totalorder %s114, %s117
      %p126 = scmp.eq.s32.totalorder %s20, 1
      %p127 = por %p125, %p126
      %p128 = scmp.ne.s32.totalorder %s117, %s118
      %p129 = scmp.eq.s32.totalorder %s20, 0
      %p130 = por %p128, %p129
      %p131 = scmp.ne.s32.totalorder %s117, %s118
      %p132 = scmp.eq.s32.totalorder %s21, 1
      %p133 = por %p131, %p132
      %p135 = scmp.ne.s32.totalorder %s118, %s134
      %p136 = scmp.eq.s32.totalorder %s21, 0
      %p137 = por %p135, %p136
      %s138 = ssub.s32 %s15, %s22
      %p139 = scmp.eq.s32.totalorder %s138, 0
      %s141 = sadd.s32 %s140, 1
      %s142 = scalar_select %p139, %s140, %s141
      %p145 = pneg %p139
      %p146 = scmp.eq.s32.totalorder %s15, 1
      %p147 = por %p145, %p146
      %p148 = scmp.ne.s32.totalorder %s140, %s143
      %p149 = scmp.eq.s32.totalorder %s15, 0
      %p150 = por %p148, %p149
      %p151 = scmp.ne.s32.totalorder %s140, %s143
      %p152 = scmp.eq.s32.totalorder %s20, 1
      %p153 = por %p151, %p152
      %p154 = scmp.ne.s32.totalorder %s143, %s144
      %p155 = scmp.eq.s32.totalorder %s20, 0
      %p156 = por %p154, %p155
      %p157 = scmp.ne.s32.totalorder %s143, %s144
      %p158 = scmp.eq.s32.totalorder %s21, 1
      %p159 = por %p157, %p158
      %p161 = scmp.ne.s32.totalorder %s144, %s160
      %p162 = scmp.eq.s32.totalorder %s21, 0
      %p163 = por %p161, %p162
      %s164 = ssub.s32 %s15, %s22
      %p165 = scmp.eq.s32.totalorder %s164, 0
      %s167 = sadd.s32 %s166, 1
      %s168 = scalar_select %p165, %s166, %s167
      %p171 = pneg %p165
      %p172 = scmp.eq.s32.totalorder %s15, 1
      %p173 = por %p171, %p172
      %p174 = scmp.ne.s32.totalorder %s166, %s169
      %p175 = scmp.eq.s32.totalorder %s15, 0
      %p176 = por %p174, %p175
      %p177 = scmp.ne.s32.totalorder %s166, %s169
      %p178 = scmp.eq.s32.totalorder %s20, 1
      %p179 = por %p177, %p178
      %p180 = scmp.ne.s32.totalorder %s169, %s170
      %p181 = scmp.eq.s32.totalorder %s20, 0
      %p182 = por %p180, %p181
      %p183 = scmp.ne.s32.totalorder %s169, %s170
      %p184 = scmp.eq.s32.totalorder %s21, 1
      %p185 = por %p183, %p184
      %p187 = scmp.ne.s32.totalorder %s170, %s186
      %p188 = scmp.eq.s32.totalorder %s21, 0
      %p189 = por %p187, %p188
      %s190 = ssub.s32 %s15, %s22
      %p191 = scmp.eq.s32.totalorder %s190, 0
      %s193 = sadd.s32 %s192, 1
      %s194 = scalar_select %p191, %s192, %s193
      %p197 = pneg %p191
      %p198 = scmp.eq.s32.totalorder %s15, 1
      %p199 = por %p197, %p198
      %p200 = scmp.ne.s32.totalorder %s192, %s195
      %p201 = scmp.eq.s32.totalorder %s15, 0
      %p202 = por %p200, %p201
      %p203 = scmp.ne.s32.totalorder %s192, %s195
      %p204 = scmp.eq.s32.totalorder %s20, 1
      %p205 = por %p203, %p204
      %p206 = scmp.ne.s32.totalorder %s195, %s196
      %p207 = scmp.eq.s32.totalorder %s20, 0
      %p208 = por %p206, %p207
      %p209 = scmp.ne.s32.totalorder %s195, %s196
      %p210 = scmp.eq.s32.totalorder %s21, 1
      %p211 = por %p209, %p210
      %p213 = scmp.ne.s32.totalorder %s196, %s212
      %p214 = scmp.eq.s32.totalorder %s21, 0
      %p215 = por %p213, %p214
      %p216 = scmp.le.s32.totalorder 1, %s15
      %p217 = scmp.lt.s32.totalorder %s15, 3
      %p218 = pnand %p216, %p217
      %p219 = pneg %p218
      // Predicated region
      $region9: #{admm_net_forward.4} parent=5 // pred_check
        _
      $region10: #{admm_net_forward.4} parent=5 // pred_check_branch
        %221 = sbr.rel (%p218) target = $region12
      $region11: #{admm_net_forward.4} parent=5 // pred_region
        %s222 = ssub.s32 %s15, 1
        // Predicated region
        $region13: #{admm_net_forward.4} parent=11 // pred_check
          %p223 = pneg %p36
        $region14: #{admm_net_forward.4} parent=11 // pred_check_branch
          %225 = sbr.rel (%p223) target = $region16
        $region15: #{admm_net_forward.4} parent=11 // pred_region
          %s227 = ssub.s32 16, 16
          %228 = vsyncadd [#allocation3], %s227
          %s230 = sshll.u32 %s0, 4
          %s231 = int_to_ptr.vmem [resolvable:$true] %s230
          %233 = dma.vmem_to_smem %s231, 16, [#allocation2], [#allocation3]
        $region16: #{admm_net_forward.4} parent=11 // pred_fallthru
          _
        // Predicated region
        $region17: #{admm_net_forward.4} parent=11 // pred_check
          %p234 = pneg %p57
        $region18: #{admm_net_forward.4} parent=11 // pred_check_branch
          %236 = sbr.rel (%p234) target = $region20
        $region19: #{admm_net_forward.4} parent=11 // pred_region
          %s238 = ssub.s32 16, 16
          %239 = vsyncadd [#allocation5], %s238
          %s241 = sshll.u32 %s1, 4
          %s242 = int_to_ptr.vmem [resolvable:$true] %s241
          %244 = dma.vmem_to_smem %s242, 16, [#allocation4], [#allocation5]
        $region20: #{admm_net_forward.4} parent=11 // pred_fallthru
          _
        // Predicated region
        $region21: #{admm_net_forward.4} parent=11 // pred_check
          %p245 = pneg %p78
        $region22: #{admm_net_forward.4} parent=11 // pred_check_branch
          %247 = sbr.rel (%p245) target = $region24
        $region23: #{admm_net_forward.4} parent=11 // pred_region
          %s249 = ssub.s32 16, 16
          %250 = vsyncadd [#allocation5], %s249
          %s252 = sshll.u32 %s2, 4
          %s253 = int_to_ptr.vmem [resolvable:$true] %s252
          %255 = dma.vmem_to_smem %s253, 16, [#allocation6], [#allocation5]
        $region24: #{admm_net_forward.4} parent=11 // pred_fallthru
          _
      $region12: #{admm_net_forward.4} parent=5 // pred_fallthru
        _
      %p256 = scmp.lt.s32.totalorder %s15, 2
      // Predicated region
      $region25: #{admm_net_forward.4} parent=5 // pred_check
        %p257 = pneg %p256
      $region26: #{admm_net_forward.4} parent=5 // pred_check_branch
        %259 = sbr.rel (%p257) target = $region28
      $region27: #{admm_net_forward.4} parent=5 // pred_region
        // Predicated region
        $region29: #{admm_net_forward.4} parent=27 // pred_check
          %p260 = pneg %p98
        $region30: #{admm_net_forward.4} parent=27 // pred_check_branch
          %262 = sbr.rel (%p260) target = $region32
        $region31: #{admm_net_forward.4} parent=27 // pred_region
          %p263 = scmp.lt.s32.totalorder %s15, 1
          %s264 = scalar_select %p263, %s15, 1
          %s265 = smul.addr %s264, 2
          %s266 = smul.addr %s265, 8
          %s267 = scalar_lea.vmem %s3, %s266
        $region32: #{admm_net_forward.4} parent=27 // pred_fallthru
          _
        // Predicated region
        $region33: #{admm_net_forward.4} parent=27 // pred_check
          %p268 = pneg %p124
        $region34: #{admm_net_forward.4} parent=27 // pred_check_branch
          %270 = sbr.rel (%p268) target = $region36
        $region35: #{admm_net_forward.4} parent=27 // pred_region
          %p271 = scmp.lt.s32.totalorder %s15, 1
          %s272 = scalar_select %p271, %s15, 1
          %s273 = smul.addr %s272, 2
          %s274 = smul.addr %s273, 8
          %s275 = scalar_lea.vmem %s4, %s274
        $region36: #{admm_net_forward.4} parent=27 // pred_fallthru
          _
        // Predicated region
        $region37: #{admm_net_forward.4} parent=27 // pred_check
          %p276 = pneg %p150
        $region38: #{admm_net_forward.4} parent=27 // pred_check_branch
          %278 = sbr.rel (%p276) target = $region40
        $region39: #{admm_net_forward.4} parent=27 // pred_region
          %p279 = scmp.lt.s32.totalorder %s15, 1
          %s280 = scalar_select %p279, %s15, 1
          %s281 = smul.addr %s280, 2
          %s282 = smul.addr %s281, 8
          %s283 = scalar_lea.vmem %s5, %s282
        $region40: #{admm_net_forward.4} parent=27 // pred_fallthru
          _
        // Predicated region
        $region41: #{admm_net_forward.4} parent=27 // pred_check
          %p284 = pneg %p176
        $region42: #{admm_net_forward.4} parent=27 // pred_check_branch
          %286 = sbr.rel (%p284) target = $region44
        $region43: #{admm_net_forward.4} parent=27 // pred_region
          %p287 = scmp.lt.s32.totalorder %s15, 1
          %s288 = scalar_select %p287, %s15, 1
          %s289 = smul.addr %s288, 2
          %s290 = smul.addr %s289, 8
          %s291 = scalar_lea.vmem %s6, %s290
        $region44: #{admm_net_forward.4} parent=27 // pred_fallthru
          _
      $region28: #{admm_net_forward.4} parent=5 // pred_fallthru
        _
      %p292 = scmp.le.s32.totalorder 1, %s15
      %p293 = scmp.lt.s32.totalorder %s15, 3
      %p294 = pnand %p292, %p293
      %p295 = pneg %p294
      // Predicated region
      $region45: #{admm_net_forward.4} parent=5 // pred_check
        _
      $region46: #{admm_net_forward.4} parent=5 // pred_check_branch
        %297 = sbr.rel (%p294) target = $region48
      $region47: #{admm_net_forward.4} parent=5 // pred_region
        %s298 = ssub.s32 %s15, 1
        // Predicated region
        $region49: #{admm_net_forward.4} parent=47 // pred_check
          %p299 = pneg %p36
        $region50: #{admm_net_forward.4} parent=47 // pred_check_branch
          %301 = sbr.rel (%p299) target = $region52
        $region51: #{admm_net_forward.4} parent=47 // pred_region
          %302 = dma.done [#allocation3], 16
        $region52: #{admm_net_forward.4} parent=47 // pred_fallthru
          _
        // Predicated region
        $region53: #{admm_net_forward.4} parent=47 // pred_check
          %p303 = pneg %p57
        $region54: #{admm_net_forward.4} parent=47 // pred_check_branch
          %305 = sbr.rel (%p303) target = $region56
        $region55: #{admm_net_forward.4} parent=47 // pred_region
          %306 = dma.done [#allocation5], 16
        $region56: #{admm_net_forward.4} parent=47 // pred_fallthru
          _
        // Predicated region
        $region57: #{admm_net_forward.4} parent=47 // pred_check
          %p307 = pneg %p78
        $region58: #{admm_net_forward.4} parent=47 // pred_check_branch
          %309 = sbr.rel (%p307) target = $region60
        $region59: #{admm_net_forward.4} parent=47 // pred_region
          %310 = dma.done [#allocation5], 16
        $region60: #{admm_net_forward.4} parent=47 // pred_fallthru
          _
        %311 = sfence
        %p312 = pneg %p36
        %p313 = pneg %p33
        %p314 = pneg %p57
        %p315 = pneg %p54
        %p316 = pneg %p78
        %p317 = pneg %p75
        %p318 = scmp.lt.s32.totalorder %s20, 1
        %s319 = scalar_select %p318, %s20, 1
        %s320 = smul.addr %s319, 2
        %s321 = smul.addr %s320, 8
        %s322 = scalar_lea.vmem %s3, %s321
        %p323 = pneg %p104
        %p324 = pneg %p101
        %p325 = scmp.lt.s32.totalorder %s20, 1
        %s326 = scalar_select %p325, %s20, 1
        %s327 = smul.addr %s326, 2
        %s328 = smul.addr %s327, 8
        %s329 = scalar_lea.vmem %s4, %s328
        %p330 = pneg %p130
        %p331 = pneg %p127
        %p332 = scmp.lt.s32.totalorder %s20, 1
        %s333 = scalar_select %p332, %s20, 1
        %s334 = smul.addr %s333, 2
        %s335 = smul.addr %s334, 8
        %s336 = scalar_lea.vmem %s5, %s335
        %p337 = pneg %p156
        %p338 = pneg %p153
        %p339 = scmp.lt.s32.totalorder %s20, 1
        %s340 = scalar_select %p339, %s20, 1
        %s341 = smul.addr %s340, 2
        %s342 = smul.addr %s341, 8
        %s343 = scalar_lea.vmem %s6, %s342
        %p344 = pneg %p182
        %p345 = pneg %p179
        %p346 = pneg %p208
        %p347 = pneg %p205
        %p348 = scmp.lt.s32.totalorder %s20, 1
        %s349 = scalar_select %p348, %s20, 1
        %s350 = smul.addr %s349, 2
        %s351 = smul.addr %s350, 8
        %s352 = scalar_lea.vmem %s7, %s351
        %p353 = scmp.lt.s32.totalorder %s20, 1
        %s354 = scalar_select %p353, %s20, 1
        %s355 = smul.addr %s354, 2
        %s356 = smul.addr %s355, 8
        %s357 = scalar_lea.vmem %s3, %s356
        %p358 = scmp.lt.s32.totalorder %s20, 1
        %s359 = scalar_select %p358, %s20, 1
        %s360 = smul.addr %s359, 2
        %s361 = smul.addr %s360, 8
        %s362 = scalar_lea.vmem %s4, %s361
        %p363 = scmp.lt.s32.totalorder %s20, 1
        %s364 = scalar_select %p363, %s20, 1
        %s365 = smul.addr %s364, 2
        %s366 = smul.addr %s365, 8
        %s367 = scalar_lea.vmem %s5, %s366
        %p368 = scmp.lt.s32.totalorder %s20, 1
        %s369 = scalar_select %p368, %s20, 1
        %s370 = smul.addr %s369, 2
        %s371 = smul.addr %s370, 8
        %s372 = scalar_lea.vmem %s6, %s371
        %p373 = scmp.lt.s32.totalorder %s20, 1
        %s374 = scalar_select %p373, %s20, 1
        %s375 = smul.addr %s374, 2
        %s376 = smul.addr %s375, 8
        %s377 = scalar_lea.vmem %s7, %s376
        %s378 = sld [smem:[#allocation2]]
        %s379 = sld [smem:[#allocation2 + $0x1]]
        %s380 = sld [smem:[#allocation2 + $0x2]]
        %v381 = vld [vmem:[%s367] sm:$0xff]
        %v382 = vld [vmem:[%s367 + $0x8] sm:$0xff]
        %v384 = vrot.slane %v381, 2
        %vm387 = vcmask 1041408
        %v388 = vrot.slane %v381, 6
        %v389 = vrot.slane %v382, 6
        %v390 = vsel %vm387, %v388, %v389
        %v394 = vrot.slane %v382, 4
        %v396 = vrot.slane %v382, 2
        %vm398 = vcmask 1040384
        %v399 = vsel %vm398, %v384, %v381
        %v400 = vsel %vm387, %v399, %v388
        %v401 = vsel %vm387, %v389, %v394
        %vm402 = vcmask 1042432
        %v403 = vsel %vm402, %v401, %v396
        %406 = vrot.lane.b32.xlu0 %v400, 126
        %v407 = vpop.permute.xlu0 %406
        %408 = vrot.lane.b32.xlu0 %v390, 126
        %v409 = vpop.permute.xlu0 %408
        %410 = vrot.lane.b32.xlu0 %v403, 126
        %v411 = vpop.permute.xlu0 %410
        %415 = vrot.lane.b32.xlu0 %v400, 2
        %v416 = vpop.permute.xlu0 %415
        %417 = vrot.lane.b32.xlu0 %v390, 2
        %v418 = vpop.permute.xlu0 %417
        %419 = vrot.lane.b32.xlu0 %v403, 2
        %v420 = vpop.permute.xlu0 %419
        %424 = vrot.lane.b32.xlu0 %v400, 4
        %v425 = vpop.permute.xlu0 %424
        %426 = vrot.lane.b32.xlu0 %v390, 4
        %v427 = vpop.permute.xlu0 %426
        %428 = vrot.lane.b32.xlu0 %v403, 4
        %v429 = vpop.permute.xlu0 %428
        %433 = vrot.lane.b32.xlu0 %v400, 6
        %v434 = vpop.permute.xlu0 %433
        %435 = vrot.lane.b32.xlu0 %v390, 6
        %v436 = vpop.permute.xlu0 %435
        %437 = vrot.lane.b32.xlu0 %v403, 6
        %v438 = vpop.permute.xlu0 %437
        %vm442 = vcmask 7168
        %v443 = vsel %vm442, %v407, %v400
        %v444 = vsel %vm442, %v409, %v390
        %v445 = vsel %vm442, %v411, %v403
        %vm446 = vcmask 15360
        %v447 = vsel %vm446, %v443, %v416
        %v448 = vsel %vm446, %v444, %v418
        %v449 = vsel %vm446, %v445, %v420
        %vm450 = vcmask 146432
        %v451 = vsel %vm450, %v447, %v425
        %v452 = vsel %vm450, %v448, %v427
        %v453 = vsel %vm450, %v449, %v429
        %vm454 = vcmask 154624
        %v455 = vsel %vm454, %v451, %v434
        %v456 = vsel %vm454, %v452, %v436
        %v457 = vsel %vm454, %v453, %v438
        %v458 = vstv %s379
        %v459 = vadd.f32 %v458, 0.0
        %s460 = sld [smem:[#allocation4]]
        %v461 = vstv %s460
        %v462 = vmul.f32 %v461, %v455
        %v463 = vmul.f32 %v461, %v456
        %v464 = vadd.f32 %v459, %v462
        %v465 = vadd.f32 %v459, %v463
        %s466 = sld [smem:[#allocation4 + $0x1]]
        %v467 = vstv %s466
        %v468 = vmul.f32 %v467, %v455
        %v469 = vmul.f32 %v467, %v456
        %472 = vrot.lane.b32.xlu0 %v468, 127
        %v473 = vpop.permute.xlu0 %472
        %474 = vrot.lane.b32.xlu0 %v469, 127
        %v475 = vpop.permute.xlu0 %474
        %v478 = vadd.f32 %v464, %v473
        %v479 = vadd.f32 %v465, %v475
        %s480 = sld [smem:[#allocation4 + $0x2]]
        %v481 = vstv %s480
        %v482 = vmul.f32 %v481, %v455
        %v483 = vmul.f32 %v481, %v456
        %486 = vrot.lane.b32.xlu0 %v482, 126
        %v487 = vpop.permute.xlu0 %486
        %488 = vrot.lane.b32.xlu0 %v483, 126
        %v489 = vpop.permute.xlu0 %488
        %v492 = vadd.f32 %v478, %v487
        %v493 = vadd.f32 %v479, %v489
        %s494 = sld [smem:[#allocation4 + $0x3]]
        %v495 = vstv %s494
        %v496 = vmul.f32 %v495, %v455
        %v497 = vmul.f32 %v495, %v456
        %500 = vrot.lane.b32.xlu0 %v496, 125
        %v501 = vpop.permute.xlu0 %500
        %502 = vrot.lane.b32.xlu0 %v497, 125
        %v503 = vpop.permute.xlu0 %502
        %v506 = vadd.f32 %v492, %v501
        %v507 = vadd.f32 %v493, %v503
        %s508 = sld [smem:[#allocation4 + $0x4]]
        %v509 = vstv %s508
        %v510 = vmul.f32 %v509, %v455
        %v511 = vmul.f32 %v509, %v456
        %514 = vrot.lane.b32.xlu0 %v510, 124
        %v515 = vpop.permute.xlu0 %514
        %516 = vrot.lane.b32.xlu0 %v511, 124
        %v517 = vpop.permute.xlu0 %516
        %v520 = vadd.f32 %v506, %v515
        %v521 = vadd.f32 %v507, %v517
        %s522 = sld [smem:[#allocation4 + $0x5]]
        %v523 = vstv %s522
        %v524 = vmul.f32 %v523, %v455
        %v525 = vmul.f32 %v523, %v456
        %v526 = vmul.f32 %v523, %v457
        %vm530 = vcmask 1046528
        %v531 = vrot.slane %v524, 1
        %v532 = vrot.slane %v525, 1
        %v533 = vsel %vm530, %v531, %v532
        %v534 = vrot.slane %v526, 1
        %v535 = vsel %vm530, %v532, %v534
        %v538 = vadd.f32 %v520, %v533
        %v539 = vadd.f32 %v521, %v535
        %s540 = sld [smem:[#allocation4 + $0x6]]
        %v541 = vstv %s540
        %v542 = vmul.f32 %v541, %v455
        %v543 = vmul.f32 %v541, %v456
        %v544 = vmul.f32 %v541, %v457
        %v548 = vrot.slane %v542, 1
        %v549 = vrot.slane %v543, 1
        %v550 = vsel %vm530, %v548, %v549
        %v551 = vrot.slane %v544, 1
        %v552 = vsel %vm530, %v549, %v551
        %553 = vrot.lane.b32.xlu0 %v550, 127
        %v554 = vpop.permute.xlu0 %553
        %555 = vrot.lane.b32.xlu0 %v552, 127
        %v556 = vpop.permute.xlu0 %555
        %v559 = vadd.f32 %v538, %v554
        %v560 = vadd.f32 %v539, %v556
        %s561 = sld [smem:[#allocation4 + $0x7]]
        %v562 = vstv %s561
        %v563 = vmul.f32 %v562, %v455
        %v564 = vmul.f32 %v562, %v456
        %v565 = vmul.f32 %v562, %v457
        %v569 = vrot.slane %v563, 1
        %v570 = vrot.slane %v564, 1
        %v571 = vsel %vm530, %v569, %v570
        %v572 = vrot.slane %v565, 1
        %v573 = vsel %vm530, %v570, %v572
        %574 = vrot.lane.b32.xlu0 %v571, 126
        %v575 = vpop.permute.xlu0 %574
        %576 = vrot.lane.b32.xlu0 %v573, 126
        %v577 = vpop.permute.xlu0 %576
        %v580 = vadd.f32 %v559, %v575
        %v581 = vadd.f32 %v560, %v577
        %s582 = sld [smem:[#allocation4 + $0x8]]
        %v583 = vstv %s582
        %v584 = vmul.f32 %v583, %v455
        %v585 = vmul.f32 %v583, %v456
        %v586 = vmul.f32 %v583, %v457
        %v590 = vrot.slane %v584, 1
        %v591 = vrot.slane %v585, 1
        %v592 = vsel %vm530, %v590, %v591
        %v593 = vrot.slane %v586, 1
        %v594 = vsel %vm530, %v591, %v593
        %595 = vrot.lane.b32.xlu0 %v592, 125
        %v596 = vpop.permute.xlu0 %595
        %597 = vrot.lane.b32.xlu0 %v594, 125
        %v598 = vpop.permute.xlu0 %597
        %v601 = vadd.f32 %v580, %v596
        %v602 = vadd.f32 %v581, %v598
        %s603 = sld [smem:[#allocation4 + $0x9]]
        %v604 = vstv %s603
        %v605 = vmul.f32 %v604, %v455
        %v606 = vmul.f32 %v604, %v456
        %v607 = vmul.f32 %v604, %v457
        %v611 = vrot.slane %v605, 1
        %v612 = vrot.slane %v606, 1
        %v613 = vsel %vm530, %v611, %v612
        %v614 = vrot.slane %v607, 1
        %v615 = vsel %vm530, %v612, %v614
        %616 = vrot.lane.b32.xlu0 %v613, 124
        %v617 = vpop.permute.xlu0 %616
        %618 = vrot.lane.b32.xlu0 %v615, 124
        %v619 = vpop.permute.xlu0 %618
        %v622 = vadd.f32 %v601, %v617
        %v623 = vadd.f32 %v602, %v619
        %s624 = sld [smem:[#allocation4 + $0xa]]
        %v625 = vstv %s624
        %v626 = vmul.f32 %v625, %v455
        %v627 = vmul.f32 %v625, %v456
        %v628 = vmul.f32 %v625, %v457
        %vm632 = vcmask 1045504
        %v633 = vrot.slane %v626, 2
        %v634 = vrot.slane %v627, 2
        %v635 = vsel %vm632, %v633, %v634
        %v636 = vrot.slane %v628, 2
        %v637 = vsel %vm632, %v634, %v636
        %v640 = vadd.f32 %v622, %v635
        %v641 = vadd.f32 %v623, %v637
        %s642 = sld [smem:[#allocation4 + $0xb]]
        %v643 = vstv %s642
        %v644 = vmul.f32 %v643, %v455
        %v645 = vmul.f32 %v643, %v456
        %v646 = vmul.f32 %v643, %v457
        %v650 = vrot.slane %v644, 2
        %v651 = vrot.slane %v645, 2
        %v652 = vsel %vm632, %v650, %v651
        %v653 = vrot.slane %v646, 2
        %v654 = vsel %vm632, %v651, %v653
        %655 = vrot.lane.b32.xlu0 %v652, 127
        %v656 = vpop.permute.xlu0 %655
        %657 = vrot.lane.b32.xlu0 %v654, 127
        %v658 = vpop.permute.xlu0 %657
        %v661 = vadd.f32 %v640, %v656
        %v662 = vadd.f32 %v641, %v658
        %s663 = sld [smem:[#allocation4 + $0xc]]
        %v664 = vstv %s663
        %v665 = vmul.f32 %v664, %v455
        %v666 = vmul.f32 %v664, %v456
        %v667 = vmul.f32 %v664, %v457
        %v671 = vrot.slane %v665, 2
        %v672 = vrot.slane %v666, 2
        %v673 = vsel %vm632, %v671, %v672
        %v674 = vrot.slane %v667, 2
        %v675 = vsel %vm632, %v672, %v674
        %676 = vrot.lane.b32.xlu0 %v673, 126
        %v677 = vpop.permute.xlu0 %676
        %678 = vrot.lane.b32.xlu0 %v675, 126
        %v679 = vpop.permute.xlu0 %678
        %v682 = vadd.f32 %v661, %v677
        %v683 = vadd.f32 %v662, %v679
        %s684 = sld [smem:[#allocation4 + $0xd]]
        %v685 = vstv %s684
        %v686 = vmul.f32 %v685, %v455
        %v687 = vmul.f32 %v685, %v456
        %v688 = vmul.f32 %v685, %v457
        %v692 = vrot.slane %v686, 2
        %v693 = vrot.slane %v687, 2
        %v694 = vsel %vm632, %v692, %v693
        %v695 = vrot.slane %v688, 2
        %v696 = vsel %vm632, %v693, %v695
        %697 = vrot.lane.b32.xlu0 %v694, 125
        %v698 = vpop.permute.xlu0 %697
        %699 = vrot.lane.b32.xlu0 %v696, 125
        %v700 = vpop.permute.xlu0 %699
        %v703 = vadd.f32 %v682, %v698
        %v704 = vadd.f32 %v683, %v700
        %s705 = sld [smem:[#allocation4 + $0xe]]
        %v706 = vstv %s705
        %v707 = vmul.f32 %v706, %v455
        %v708 = vmul.f32 %v706, %v456
        %v709 = vmul.f32 %v706, %v457
        %v713 = vrot.slane %v707, 2
        %v714 = vrot.slane %v708, 2
        %v715 = vsel %vm632, %v713, %v714
        %v716 = vrot.slane %v709, 2
        %v717 = vsel %vm632, %v714, %v716
        %718 = vrot.lane.b32.xlu0 %v715, 124
        %v719 = vpop.permute.xlu0 %718
        %720 = vrot.lane.b32.xlu0 %v717, 124
        %v721 = vpop.permute.xlu0 %720
        %v724 = vadd.f32 %v703, %v719
        %v725 = vadd.f32 %v704, %v721
        %s726 = sld [smem:[#allocation4 + $0xf]]
        %v727 = vstv %s726
        %v728 = vmul.f32 %v727, %v455
        %v729 = vmul.f32 %v727, %v456
        %v730 = vmul.f32 %v727, %v457
        %vm734 = vcmask 1044480
        %v735 = vrot.slane %v728, 3
        %v736 = vrot.slane %v729, 3
        %v737 = vsel %vm734, %v735, %v736
        %v738 = vrot.slane %v730, 3
        %v739 = vsel %vm734, %v736, %v738
        %v742 = vadd.f32 %v724, %v737
        %v743 = vadd.f32 %v725, %v739
        %s744 = sld [smem:[#allocation4 + $0x10]]
        %v745 = vstv %s744
        %v746 = vmul.f32 %v745, %v455
        %v747 = vmul.f32 %v745, %v456
        %v748 = vmul.f32 %v745, %v457
        %v752 = vrot.slane %v746, 3
        %v753 = vrot.slane %v747, 3
        %v754 = vsel %vm734, %v752, %v753
        %v755 = vrot.slane %v748, 3
        %v756 = vsel %vm734, %v753, %v755
        %757 = vrot.lane.b32.xlu0 %v754, 127
        %v758 = vpop.permute.xlu0 %757
        %759 = vrot.lane.b32.xlu0 %v756, 127
        %v760 = vpop.permute.xlu0 %759
        %v763 = vadd.f32 %v742, %v758
        %v764 = vadd.f32 %v743, %v760
        %s765 = sld [smem:[#allocation4 + $0x11]]
        %v766 = vstv %s765
        %v767 = vmul.f32 %v766, %v455
        %v768 = vmul.f32 %v766, %v456
        %v769 = vmul.f32 %v766, %v457
        %v773 = vrot.slane %v767, 3
        %v774 = vrot.slane %v768, 3
        %v775 = vsel %vm734, %v773, %v774
        %v776 = vrot.slane %v769, 3
        %v777 = vsel %vm734, %v774, %v776
        %778 = vrot.lane.b32.xlu0 %v775, 126
        %v779 = vpop.permute.xlu0 %778
        %780 = vrot.lane.b32.xlu0 %v777, 126
        %v781 = vpop.permute.xlu0 %780
        %v784 = vadd.f32 %v763, %v779
        %v785 = vadd.f32 %v764, %v781
        %s786 = sld [smem:[#allocation4 + $0x12]]
        %v787 = vstv %s786
        %v788 = vmul.f32 %v787, %v455
        %v789 = vmul.f32 %v787, %v456
        %v790 = vmul.f32 %v787, %v457
        %v794 = vrot.slane %v788, 3
        %v795 = vrot.slane %v789, 3
        %v796 = vsel %vm734, %v794, %v795
        %v797 = vrot.slane %v790, 3
        %v798 = vsel %vm734, %v795, %v797
        %799 = vrot.lane.b32.xlu0 %v796, 125
        %v800 = vpop.permute.xlu0 %799
        %801 = vrot.lane.b32.xlu0 %v798, 125
        %v802 = vpop.permute.xlu0 %801
        %v805 = vadd.f32 %v784, %v800
        %v806 = vadd.f32 %v785, %v802
        %s807 = sld [smem:[#allocation4 + $0x13]]
        %v808 = vstv %s807
        %v809 = vmul.f32 %v808, %v455
        %v810 = vmul.f32 %v808, %v456
        %v811 = vmul.f32 %v808, %v457
        %v815 = vrot.slane %v809, 3
        %v816 = vrot.slane %v810, 3
        %v817 = vsel %vm734, %v815, %v816
        %v818 = vrot.slane %v811, 3
        %v819 = vsel %vm734, %v816, %v818
        %820 = vrot.lane.b32.xlu0 %v817, 124
        %v821 = vpop.permute.xlu0 %820
        %822 = vrot.lane.b32.xlu0 %v819, 124
        %v823 = vpop.permute.xlu0 %822
        %v826 = vadd.f32 %v805, %v821
        %v827 = vadd.f32 %v806, %v823
        %s828 = sld [smem:[#allocation4 + $0x14]]
        %v829 = vstv %s828
        %v830 = vmul.f32 %v829, %v455
        %v831 = vmul.f32 %v829, %v456
        %v832 = vmul.f32 %v829, %v457
        %vm836 = vcmask 1043456
        %v837 = vrot.slane %v830, 4
        %v838 = vrot.slane %v831, 4
        %v839 = vsel %vm836, %v837, %v838
        %v840 = vrot.slane %v832, 4
        %v841 = vsel %vm836, %v838, %v840
        %v844 = vadd.f32 %v826, %v839
        %v845 = vadd.f32 %v827, %v841
        %s846 = sld [smem:[#allocation4 + $0x15]]
        %v847 = vstv %s846
        %v848 = vmul.f32 %v847, %v455
        %v849 = vmul.f32 %v847, %v456
        %v850 = vmul.f32 %v847, %v457
        %v854 = vrot.slane %v848, 4
        %v855 = vrot.slane %v849, 4
        %v856 = vsel %vm836, %v854, %v855
        %v857 = vrot.slane %v850, 4
        %v858 = vsel %vm836, %v855, %v857
        %859 = vrot.lane.b32.xlu0 %v856, 127
        %v860 = vpop.permute.xlu0 %859
        %861 = vrot.lane.b32.xlu0 %v858, 127
        %v862 = vpop.permute.xlu0 %861
        %v865 = vadd.f32 %v844, %v860
        %v866 = vadd.f32 %v845, %v862
        %s867 = sld [smem:[#allocation4 + $0x16]]
        %v868 = vstv %s867
        %v869 = vmul.f32 %v868, %v455
        %v870 = vmul.f32 %v868, %v456
        %v871 = vmul.f32 %v868, %v457
        %v875 = vrot.slane %v869, 4
        %v876 = vrot.slane %v870, 4
        %v877 = vsel %vm836, %v875, %v876
        %v878 = vrot.slane %v871, 4
        %v879 = vsel %vm836, %v876, %v878
        %880 = vrot.lane.b32.xlu0 %v877, 126
        %v881 = vpop.permute.xlu0 %880
        %882 = vrot.lane.b32.xlu0 %v879, 126
        %v883 = vpop.permute.xlu0 %882
        %v886 = vadd.f32 %v865, %v881
        %v887 = vadd.f32 %v866, %v883
        %s888 = sld [smem:[#allocation4 + $0x17]]
        %v889 = vstv %s888
        %v890 = vmul.f32 %v889, %v455
        %v891 = vmul.f32 %v889, %v456
        %v892 = vmul.f32 %v889, %v457
        %v896 = vrot.slane %v890, 4
        %v897 = vrot.slane %v891, 4
        %v898 = vsel %vm836, %v896, %v897
        %v899 = vrot.slane %v892, 4
        %v900 = vsel %vm836, %v897, %v899
        %901 = vrot.lane.b32.xlu0 %v898, 125
        %v902 = vpop.permute.xlu0 %901
        %903 = vrot.lane.b32.xlu0 %v900, 125
        %v904 = vpop.permute.xlu0 %903
        %v907 = vadd.f32 %v886, %v902
        %v908 = vadd.f32 %v887, %v904
        %s909 = sld [smem:[#allocation4 + $0x18]]
        %v910 = vstv %s909
        %v911 = vmul.f32 %v910, %v455
        %v912 = vmul.f32 %v910, %v456
        %v913 = vmul.f32 %v910, %v457
        %v917 = vrot.slane %v911, 4
        %v918 = vrot.slane %v912, 4
        %v919 = vsel %vm836, %v917, %v918
        %v920 = vrot.slane %v913, 4
        %v921 = vsel %vm836, %v918, %v920
        %922 = vrot.lane.b32.xlu0 %v919, 124
        %v923 = vpop.permute.xlu0 %922
        %924 = vrot.lane.b32.xlu0 %v921, 124
        %v925 = vpop.permute.xlu0 %924
        %v928 = vadd.f32 %v907, %v923
        %v929 = vadd.f32 %v908, %v925
        %v930 = vld [vmem:[%s372] sm:$0xff]
        %v931 = vld [vmem:[%s372 + $0x8] sm:$0xff]
        %v933 = vrot.slane %v930, 2
        %v936 = vrot.slane %v930, 6
        %v937 = vrot.slane %v931, 6
        %v938 = vsel %vm387, %v936, %v937
        %v942 = vrot.slane %v931, 4
        %v944 = vrot.slane %v931, 2
        %v946 = vsel %vm398, %v933, %v930
        %v947 = vsel %vm387, %v946, %v936
        %v948 = vsel %vm387, %v937, %v942
        %v949 = vsel %vm402, %v948, %v944
        %952 = vrot.lane.b32.xlu0 %v947, 126
        %v953 = vpop.permute.xlu0 %952
        %954 = vrot.lane.b32.xlu0 %v938, 126
        %v955 = vpop.permute.xlu0 %954
        %956 = vrot.lane.b32.xlu0 %v949, 126
        %v957 = vpop.permute.xlu0 %956
        %961 = vrot.lane.b32.xlu0 %v947, 2
        %v962 = vpop.permute.xlu0 %961
        %963 = vrot.lane.b32.xlu0 %v938, 2
        %v964 = vpop.permute.xlu0 %963
        %965 = vrot.lane.b32.xlu0 %v949, 2
        %v966 = vpop.permute.xlu0 %965
        %970 = vrot.lane.b32.xlu0 %v947, 4
        %v971 = vpop.permute.xlu0 %970
        %972 = vrot.lane.b32.xlu0 %v938, 4
        %v973 = vpop.permute.xlu0 %972
        %974 = vrot.lane.b32.xlu0 %v949, 4
        %v975 = vpop.permute.xlu0 %974
        %979 = vrot.lane.b32.xlu0 %v947, 6
        %v980 = vpop.permute.xlu0 %979
        %981 = vrot.lane.b32.xlu0 %v938, 6
        %v982 = vpop.permute.xlu0 %981
        %983 = vrot.lane.b32.xlu0 %v949, 6
        %v984 = vpop.permute.xlu0 %983
        %v988 = vsel %vm442, %v953, %v947
        %v989 = vsel %vm442, %v955, %v938
        %v990 = vsel %vm442, %v957, %v949
        %v991 = vsel %vm446, %v988, %v962
        %v992 = vsel %vm446, %v989, %v964
        %v993 = vsel %vm446, %v990, %v966
        %v994 = vsel %vm450, %v991, %v971
        %v995 = vsel %vm450, %v992, %v973
        %v996 = vsel %vm450, %v993, %v975
        %v997 = vsel %vm454, %v994, %v980
        %v998 = vsel %vm454, %v995, %v982
        %v999 = vsel %vm454, %v996, %v984
        %v1000 = vstv %s380
        %v1001 = vadd.f32 %v1000, 0.0
        %s1002 = sld [smem:[#allocation6]]
        %v1003 = vstv %s1002
        %v1004 = vmul.f32 %v1003, %v997
        %v1005 = vmul.f32 %v1003, %v998
        %v1006 = vadd.f32 %v1001, %v1004
        %v1007 = vadd.f32 %v1001, %v1005
        %s1008 = sld [smem:[#allocation6 + $0x1]]
        %v1009 = vstv %s1008
        %v1010 = vmul.f32 %v1009, %v997
        %v1011 = vmul.f32 %v1009, %v998
        %1014 = vrot.lane.b32.xlu0 %v1010, 127
        %v1015 = vpop.permute.xlu0 %1014
        %1016 = vrot.lane.b32.xlu0 %v1011, 127
        %v1017 = vpop.permute.xlu0 %1016
        %v1020 = vadd.f32 %v1006, %v1015
        %v1021 = vadd.f32 %v1007, %v1017
        %s1022 = sld [smem:[#allocation6 + $0x2]]
        %v1023 = vstv %s1022
        %v1024 = vmul.f32 %v1023, %v997
        %v1025 = vmul.f32 %v1023, %v998
        %1028 = vrot.lane.b32.xlu0 %v1024, 126
        %v1029 = vpop.permute.xlu0 %1028
        %1030 = vrot.lane.b32.xlu0 %v1025, 126
        %v1031 = vpop.permute.xlu0 %1030
        %v1034 = vadd.f32 %v1020, %v1029
        %v1035 = vadd.f32 %v1021, %v1031
        %s1036 = sld [smem:[#allocation6 + $0x3]]
        %v1037 = vstv %s1036
        %v1038 = vmul.f32 %v1037, %v997
        %v1039 = vmul.f32 %v1037, %v998
        %1042 = vrot.lane.b32.xlu0 %v1038, 125
        %v1043 = vpop.permute.xlu0 %1042
        %1044 = vrot.lane.b32.xlu0 %v1039, 125
        %v1045 = vpop.permute.xlu0 %1044
        %v1048 = vadd.f32 %v1034, %v1043
        %v1049 = vadd.f32 %v1035, %v1045
        %s1050 = sld [smem:[#allocation6 + $0x4]]
        %v1051 = vstv %s1050
        %v1052 = vmul.f32 %v1051, %v997
        %v1053 = vmul.f32 %v1051, %v998
        %1056 = vrot.lane.b32.xlu0 %v1052, 124
        %v1057 = vpop.permute.xlu0 %1056
        %1058 = vrot.lane.b32.xlu0 %v1053, 124
        %v1059 = vpop.permute.xlu0 %1058
        %v1062 = vadd.f32 %v1048, %v1057
        %v1063 = vadd.f32 %v1049, %v1059
        %s1064 = sld [smem:[#allocation6 + $0x5]]
        %v1065 = vstv %s1064
        %v1066 = vmul.f32 %v1065, %v997
        %v1067 = vmul.f32 %v1065, %v998
        %v1068 = vmul.f32 %v1065, %v999
        %v1072 = vrot.slane %v1066, 1
        %v1073 = vrot.slane %v1067, 1
        %v1074 = vsel %vm530, %v1072, %v1073
        %v1075 = vrot.slane %v1068, 1
        %v1076 = vsel %vm530, %v1073, %v1075
        %v1079 = vadd.f32 %v1062, %v1074
        %v1080 = vadd.f32 %v1063, %v1076
        %s1081 = sld [smem:[#allocation6 + $0x6]]
        %v1082 = vstv %s1081
        %v1083 = vmul.f32 %v1082, %v997
        %v1084 = vmul.f32 %v1082, %v998
        %v1085 = vmul.f32 %v1082, %v999
        %v1089 = vrot.slane %v1083, 1
        %v1090 = vrot.slane %v1084, 1
        %v1091 = vsel %vm530, %v1089, %v1090
        %v1092 = vrot.slane %v1085, 1
        %v1093 = vsel %vm530, %v1090, %v1092
        %1094 = vrot.lane.b32.xlu0 %v1091, 127
        %v1095 = vpop.permute.xlu0 %1094
        %1096 = vrot.lane.b32.xlu0 %v1093, 127
        %v1097 = vpop.permute.xlu0 %1096
        %v1100 = vadd.f32 %v1079, %v1095
        %v1101 = vadd.f32 %v1080, %v1097
        %s1102 = sld [smem:[#allocation6 + $0x7]]
        %v1103 = vstv %s1102
        %v1104 = vmul.f32 %v1103, %v997
        %v1105 = vmul.f32 %v1103, %v998
        %v1106 = vmul.f32 %v1103, %v999
        %v1110 = vrot.slane %v1104, 1
        %v1111 = vrot.slane %v1105, 1
        %v1112 = vsel %vm530, %v1110, %v1111
        %v1113 = vrot.slane %v1106, 1
        %v1114 = vsel %vm530, %v1111, %v1113
        %1115 = vrot.lane.b32.xlu0 %v1112, 126
        %v1116 = vpop.permute.xlu0 %1115
        %1117 = vrot.lane.b32.xlu0 %v1114, 126
        %v1118 = vpop.permute.xlu0 %1117
        %v1121 = vadd.f32 %v1100, %v1116
        %v1122 = vadd.f32 %v1101, %v1118
        %s1123 = sld [smem:[#allocation6 + $0x8]]
        %v1124 = vstv %s1123
        %v1125 = vmul.f32 %v1124, %v997
        %v1126 = vmul.f32 %v1124, %v998
        %v1127 = vmul.f32 %v1124, %v999
        %v1131 = vrot.slane %v1125, 1
        %v1132 = vrot.slane %v1126, 1
        %v1133 = vsel %vm530, %v1131, %v1132
        %v1134 = vrot.slane %v1127, 1
        %v1135 = vsel %vm530, %v1132, %v1134
        %1136 = vrot.lane.b32.xlu0 %v1133, 125
        %v1137 = vpop.permute.xlu0 %1136
        %1138 = vrot.lane.b32.xlu0 %v1135, 125
        %v1139 = vpop.permute.xlu0 %1138
        %v1142 = vadd.f32 %v1121, %v1137
        %v1143 = vadd.f32 %v1122, %v1139
        %s1144 = sld [smem:[#allocation6 + $0x9]]
        %v1145 = vstv %s1144
        %v1146 = vmul.f32 %v1145, %v997
        %v1147 = vmul.f32 %v1145, %v998
        %v1148 = vmul.f32 %v1145, %v999
        %v1152 = vrot.slane %v1146, 1
        %v1153 = vrot.slane %v1147, 1
        %v1154 = vsel %vm530, %v1152, %v1153
        %v1155 = vrot.slane %v1148, 1
        %v1156 = vsel %vm530, %v1153, %v1155
        %1157 = vrot.lane.b32.xlu0 %v1154, 124
        %v1158 = vpop.permute.xlu0 %1157
        %1159 = vrot.lane.b32.xlu0 %v1156, 124
        %v1160 = vpop.permute.xlu0 %1159
        %v1163 = vadd.f32 %v1142, %v1158
        %v1164 = vadd.f32 %v1143, %v1160
        %s1165 = sld [smem:[#allocation6 + $0xa]]
        %v1166 = vstv %s1165
        %v1167 = vmul.f32 %v1166, %v997
        %v1168 = vmul.f32 %v1166, %v998
        %v1169 = vmul.f32 %v1166, %v999
        %v1173 = vrot.slane %v1167, 2
        %v1174 = vrot.slane %v1168, 2
        %v1175 = vsel %vm632, %v1173, %v1174
        %v1176 = vrot.slane %v1169, 2
        %v1177 = vsel %vm632, %v1174, %v1176
        %v1180 = vadd.f32 %v1163, %v1175
        %v1181 = vadd.f32 %v1164, %v1177
        %s1182 = sld [smem:[#allocation6 + $0xb]]
        %v1183 = vstv %s1182
        %v1184 = vmul.f32 %v1183, %v997
        %v1185 = vmul.f32 %v1183, %v998
        %v1186 = vmul.f32 %v1183, %v999
        %v1190 = vrot.slane %v1184, 2
        %v1191 = vrot.slane %v1185, 2
        %v1192 = vsel %vm632, %v1190, %v1191
        %v1193 = vrot.slane %v1186, 2
        %v1194 = vsel %vm632, %v1191, %v1193
        %1195 = vrot.lane.b32.xlu0 %v1192, 127
        %v1196 = vpop.permute.xlu0 %1195
        %1197 = vrot.lane.b32.xlu0 %v1194, 127
        %v1198 = vpop.permute.xlu0 %1197
        %v1201 = vadd.f32 %v1180, %v1196
        %v1202 = vadd.f32 %v1181, %v1198
        %s1203 = sld [smem:[#allocation6 + $0xc]]
        %v1204 = vstv %s1203
        %v1205 = vmul.f32 %v1204, %v997
        %v1206 = vmul.f32 %v1204, %v998
        %v1207 = vmul.f32 %v1204, %v999
        %v1211 = vrot.slane %v1205, 2
        %v1212 = vrot.slane %v1206, 2
        %v1213 = vsel %vm632, %v1211, %v1212
        %v1214 = vrot.slane %v1207, 2
        %v1215 = vsel %vm632, %v1212, %v1214
        %1216 = vrot.lane.b32.xlu0 %v1213, 126
        %v1217 = vpop.permute.xlu0 %1216
        %1218 = vrot.lane.b32.xlu0 %v1215, 126
        %v1219 = vpop.permute.xlu0 %1218
        %v1222 = vadd.f32 %v1201, %v1217
        %v1223 = vadd.f32 %v1202, %v1219
        %s1224 = sld [smem:[#allocation6 + $0xd]]
        %v1225 = vstv %s1224
        %v1226 = vmul.f32 %v1225, %v997
        %v1227 = vmul.f32 %v1225, %v998
        %v1228 = vmul.f32 %v1225, %v999
        %v1232 = vrot.slane %v1226, 2
        %v1233 = vrot.slane %v1227, 2
        %v1234 = vsel %vm632, %v1232, %v1233
        %v1235 = vrot.slane %v1228, 2
        %v1236 = vsel %vm632, %v1233, %v1235
        %1237 = vrot.lane.b32.xlu0 %v1234, 125
        %v1238 = vpop.permute.xlu0 %1237
        %1239 = vrot.lane.b32.xlu0 %v1236, 125
        %v1240 = vpop.permute.xlu0 %1239
        %v1243 = vadd.f32 %v1222, %v1238
        %v1244 = vadd.f32 %v1223, %v1240
        %s1245 = sld [smem:[#allocation6 + $0xe]]
        %v1246 = vstv %s1245
        %v1247 = vmul.f32 %v1246, %v997
        %v1248 = vmul.f32 %v1246, %v998
        %v1249 = vmul.f32 %v1246, %v999
        %v1253 = vrot.slane %v1247, 2
        %v1254 = vrot.slane %v1248, 2
        %v1255 = vsel %vm632, %v1253, %v1254
        %v1256 = vrot.slane %v1249, 2
        %v1257 = vsel %vm632, %v1254, %v1256
        %1258 = vrot.lane.b32.xlu0 %v1255, 124
        %v1259 = vpop.permute.xlu0 %1258
        %1260 = vrot.lane.b32.xlu0 %v1257, 124
        %v1261 = vpop.permute.xlu0 %1260
        %v1264 = vadd.f32 %v1243, %v1259
        %v1265 = vadd.f32 %v1244, %v1261
        %s1266 = sld [smem:[#allocation6 + $0xf]]
        %v1267 = vstv %s1266
        %v1268 = vmul.f32 %v1267, %v997
        %v1269 = vmul.f32 %v1267, %v998
        %v1270 = vmul.f32 %v1267, %v999
        %v1274 = vrot.slane %v1268, 3
        %v1275 = vrot.slane %v1269, 3
        %v1276 = vsel %vm734, %v1274, %v1275
        %v1277 = vrot.slane %v1270, 3
        %v1278 = vsel %vm734, %v1275, %v1277
        %v1281 = vadd.f32 %v1264, %v1276
        %v1282 = vadd.f32 %v1265, %v1278
        %s1283 = sld [smem:[#allocation6 + $0x10]]
        %v1284 = vstv %s1283
        %v1285 = vmul.f32 %v1284, %v997
        %v1286 = vmul.f32 %v1284, %v998
        %v1287 = vmul.f32 %v1284, %v999
        %v1291 = vrot.slane %v1285, 3
        %v1292 = vrot.slane %v1286, 3
        %v1293 = vsel %vm734, %v1291, %v1292
        %v1294 = vrot.slane %v1287, 3
        %v1295 = vsel %vm734, %v1292, %v1294
        %1296 = vrot.lane.b32.xlu0 %v1293, 127
        %v1297 = vpop.permute.xlu0 %1296
        %1298 = vrot.lane.b32.xlu0 %v1295, 127
        %v1299 = vpop.permute.xlu0 %1298
        %v1302 = vadd.f32 %v1281, %v1297
        %v1303 = vadd.f32 %v1282, %v1299
        %s1304 = sld [smem:[#allocation6 + $0x11]]
        %v1305 = vstv %s1304
        %v1306 = vmul.f32 %v1305, %v997
        %v1307 = vmul.f32 %v1305, %v998
        %v1308 = vmul.f32 %v1305, %v999
        %v1312 = vrot.slane %v1306, 3
        %v1313 = vrot.slane %v1307, 3
        %v1314 = vsel %vm734, %v1312, %v1313
        %v1315 = vrot.slane %v1308, 3
        %v1316 = vsel %vm734, %v1313, %v1315
        %1317 = vrot.lane.b32.xlu0 %v1314, 126
        %v1318 = vpop.permute.xlu0 %1317
        %1319 = vrot.lane.b32.xlu0 %v1316, 126
        %v1320 = vpop.permute.xlu0 %1319
        %v1323 = vadd.f32 %v1302, %v1318
        %v1324 = vadd.f32 %v1303, %v1320
        %s1325 = sld [smem:[#allocation6 + $0x12]]
        %v1326 = vstv %s1325
        %v1327 = vmul.f32 %v1326, %v997
        %v1328 = vmul.f32 %v1326, %v998
        %v1329 = vmul.f32 %v1326, %v999
        %v1333 = vrot.slane %v1327, 3
        %v1334 = vrot.slane %v1328, 3
        %v1335 = vsel %vm734, %v1333, %v1334
        %v1336 = vrot.slane %v1329, 3
        %v1337 = vsel %vm734, %v1334, %v1336
        %1338 = vrot.lane.b32.xlu0 %v1335, 125
        %v1339 = vpop.permute.xlu0 %1338
        %1340 = vrot.lane.b32.xlu0 %v1337, 125
        %v1341 = vpop.permute.xlu0 %1340
        %v1344 = vadd.f32 %v1323, %v1339
        %v1345 = vadd.f32 %v1324, %v1341
        %s1346 = sld [smem:[#allocation6 + $0x13]]
        %v1347 = vstv %s1346
        %v1348 = vmul.f32 %v1347, %v997
        %v1349 = vmul.f32 %v1347, %v998
        %v1350 = vmul.f32 %v1347, %v999
        %v1354 = vrot.slane %v1348, 3
        %v1355 = vrot.slane %v1349, 3
        %v1356 = vsel %vm734, %v1354, %v1355
        %v1357 = vrot.slane %v1350, 3
        %v1358 = vsel %vm734, %v1355, %v1357
        %1359 = vrot.lane.b32.xlu0 %v1356, 124
        %v1360 = vpop.permute.xlu0 %1359
        %1361 = vrot.lane.b32.xlu0 %v1358, 124
        %v1362 = vpop.permute.xlu0 %1361
        %v1365 = vadd.f32 %v1344, %v1360
        %v1366 = vadd.f32 %v1345, %v1362
        %s1367 = sld [smem:[#allocation6 + $0x14]]
        %v1368 = vstv %s1367
        %v1369 = vmul.f32 %v1368, %v997
        %v1370 = vmul.f32 %v1368, %v998
        %v1371 = vmul.f32 %v1368, %v999
        %v1375 = vrot.slane %v1369, 4
        %v1376 = vrot.slane %v1370, 4
        %v1377 = vsel %vm836, %v1375, %v1376
        %v1378 = vrot.slane %v1371, 4
        %v1379 = vsel %vm836, %v1376, %v1378
        %v1382 = vadd.f32 %v1365, %v1377
        %v1383 = vadd.f32 %v1366, %v1379
        %s1384 = sld [smem:[#allocation6 + $0x15]]
        %v1385 = vstv %s1384
        %v1386 = vmul.f32 %v1385, %v997
        %v1387 = vmul.f32 %v1385, %v998
        %v1388 = vmul.f32 %v1385, %v999
        %v1392 = vrot.slane %v1386, 4
        %v1393 = vrot.slane %v1387, 4
        %v1394 = vsel %vm836, %v1392, %v1393
        %v1395 = vrot.slane %v1388, 4
        %v1396 = vsel %vm836, %v1393, %v1395
        %1397 = vrot.lane.b32.xlu0 %v1394, 127
        %v1398 = vpop.permute.xlu0 %1397
        %1399 = vrot.lane.b32.xlu0 %v1396, 127
        %v1400 = vpop.permute.xlu0 %1399
        %v1403 = vadd.f32 %v1382, %v1398
        %v1404 = vadd.f32 %v1383, %v1400
        %s1405 = sld [smem:[#allocation6 + $0x16]]
        %v1406 = vstv %s1405
        %v1407 = vmul.f32 %v1406, %v997
        %v1408 = vmul.f32 %v1406, %v998
        %v1409 = vmul.f32 %v1406, %v999
        %v1413 = vrot.slane %v1407, 4
        %v1414 = vrot.slane %v1408, 4
        %v1415 = vsel %vm836, %v1413, %v1414
        %v1416 = vrot.slane %v1409, 4
        %v1417 = vsel %vm836, %v1414, %v1416
        %1418 = vrot.lane.b32.xlu0 %v1415, 126
        %v1419 = vpop.permute.xlu0 %1418
        %1420 = vrot.lane.b32.xlu0 %v1417, 126
        %v1421 = vpop.permute.xlu0 %1420
        %v1424 = vadd.f32 %v1403, %v1419
        %v1425 = vadd.f32 %v1404, %v1421
        %s1426 = sld [smem:[#allocation6 + $0x17]]
        %v1427 = vstv %s1426
        %v1428 = vmul.f32 %v1427, %v997
        %v1429 = vmul.f32 %v1427, %v998
        %v1430 = vmul.f32 %v1427, %v999
        %v1434 = vrot.slane %v1428, 4
        %v1435 = vrot.slane %v1429, 4
        %v1436 = vsel %vm836, %v1434, %v1435
        %v1437 = vrot.slane %v1430, 4
        %v1438 = vsel %vm836, %v1435, %v1437
        %1439 = vrot.lane.b32.xlu0 %v1436, 125
        %v1440 = vpop.permute.xlu0 %1439
        %1441 = vrot.lane.b32.xlu0 %v1438, 125
        %v1442 = vpop.permute.xlu0 %1441
        %v1445 = vadd.f32 %v1424, %v1440
        %v1446 = vadd.f32 %v1425, %v1442
        %s1447 = sld [smem:[#allocation6 + $0x18]]
        %v1448 = vstv %s1447
        %v1449 = vmul.f32 %v1448, %v997
        %v1450 = vmul.f32 %v1448, %v998
        %v1451 = vmul.f32 %v1448, %v999
        %v1455 = vrot.slane %v1449, 4
        %v1456 = vrot.slane %v1450, 4
        %v1457 = vsel %vm836, %v1455, %v1456
        %v1458 = vrot.slane %v1451, 4
        %v1459 = vsel %vm836, %v1456, %v1458
        %1460 = vrot.lane.b32.xlu0 %v1457, 124
        %v1461 = vpop.permute.xlu0 %1460
        %1462 = vrot.lane.b32.xlu0 %v1459, 124
        %v1463 = vpop.permute.xlu0 %1462
        %v1466 = vadd.f32 %v1445, %v1461
        %v1467 = vadd.f32 %v1446, %v1463
        %v1468 = vld [vmem:[%s357] sm:$0xff]
        %v1469 = vld [vmem:[%s357 + $0x8] sm:$0xff]
        %v1470 = vld [vmem:[%s362] sm:$0xff]
        %v1471 = vld [vmem:[%s362 + $0x8] sm:$0xff]
        %v1472 = vsub.f32 %v1470, %v928
        %v1473 = vsub.f32 %v1471, %v929
        %v1474 = vsub.f32 %v1472, %v1466
        %v1475 = vsub.f32 %v1473, %v1467
        %v1476 = vstv %s378
        %v1477 = vmul.f32 %v1476, %v1474
        %v1478 = vmul.f32 %v1476, %v1475
        %v1479 = vadd.f32 %v1468, %v1477
        %v1480 = vadd.f32 %v1469, %v1478
        %vm1481 = vcmask 130048
        %1482 = vst.msk [vmem:[%s377] sm:$0xff] %vm1481, %v1479
        %1483 = vst.msk [vmem:[%s377 + $0x8] sm:$0xff] %vm1481, %v1480
        %p1484 = scmp.lt.s32.totalorder %s20, 1
        %s1485 = scalar_select %p1484, %s20, 1
        %s1486 = smul.addr %s1485, 2
        %s1487 = smul.addr %s1486, 8
        %s1488 = scalar_lea.vmem %s7, %s1487
        // Predicated region
        $region61: #{admm_net_forward.4} parent=47 // pred_check
          %p1489 = pneg %p205
        $region62: #{admm_net_forward.4} parent=47 // pred_check_branch
          %1491 = sbr.rel (%p1489) target = $region64
        $region63: #{admm_net_forward.4} parent=47 // pred_region
          _
        $region64: #{admm_net_forward.4} parent=47 // pred_fallthru
          _
      $region48: #{admm_net_forward.4} parent=5 // pred_fallthru
        _
      %p1492 = scmp.le.s32.totalorder 2, %s15
      // Predicated region
      $region65: #{admm_net_forward.4} parent=5 // pred_check
        %p1493 = pneg %p1492
      $region66: #{admm_net_forward.4} parent=5 // pred_check_branch
        %1495 = sbr.rel (%p1493) target = $region68
      $region67: #{admm_net_forward.4} parent=5 // pred_region
        %s1496 = ssub.s32 %s15, 2
        // Predicated region
        $region69: #{admm_net_forward.4} parent=67 // pred_check
          %p1497 = pneg %p211
        $region70: #{admm_net_forward.4} parent=67 // pred_check_branch
          %1499 = sbr.rel (%p1497) target = $region72
        $region71: #{admm_net_forward.4} parent=67 // pred_region
          %p1500 = scmp.lt.s32.totalorder %s21, 1
          %s1501 = scalar_select %p1500, %s21, 1
          %s1502 = smul.addr %s1501, 2
          %s1503 = smul.addr %s1502, 8
          %s1504 = scalar_lea.vmem %s7, %s1503
        $region72: #{admm_net_forward.4} parent=67 // pred_fallthru
          _
      $region68: #{admm_net_forward.4} parent=5 // pred_fallthru
        _
    $region6: #{admm_net_forward.4} parent=1 // loop_footer
      %s19 = sadd.s32 1, %s15
    $region7: #{admm_net_forward.4} parent=1 // loop_footer_branch
      %14 = sbr.rel target = $region3
    $region8: #{admm_net_forward.4} parent=1 // loop_exit
      _
    %1505 = vsyncpa [#allocation3], 1
    %s1506 = scalar_lea.sflag [#allocation3], 1
    %1507 = vsyncpa %s1506, 1
    %1508 = vsyncpa [#allocation5], 1

</llo_original>
